<compile_context>
chip_gen: v7x
topology: tpu7x:2x2x1
jax: 0.10.0
libtpu: 0.0.40
codegen_flags: <defaults>
</compile_context>

<pallas_src>
import functools

import jax
import jax.numpy as jnp
import numpy as np
from jax import lax
from jax.experimental import pallas as pl
from jax.experimental.pallas import tpu as pltpu

EPS = 1e-3  # BatchNorm2d(eps=0.001)


def _conv_pool_tile(xb_ref, xh_ref, w_ref, *, ta, wo, cconv, cin):
    """Conv(3x3, s2, pad1) and MaxPool(2x2, s2) for one row tile, lane axis = width.

    xb_ref: (1, 4, ta, cin, B)  stride-2 parity planes, pq = 2p+q, rows t*ta .. t*ta+ta-1
            plane element (a, c, b) holds padded pixel (2a+p, 2b+q) of channel c
    xh_ref: (1, 2, 1, cin, B)   halo plane-row t*ta+ta of planes 0, 1 (kh=2 taps only)
    w_ref : (9, cconv, cin)     conv weights, leading index k = kh*3 + kw

    Returns conv (ta, cconv, wo) f32 and pool (ta, cin, wo) f32.
    """
    p00 = xb_ref[0, 0, :, :, :]            # (ta, cin, B)
    p01 = xb_ref[0, 1, :, :, :]
    p10 = xb_ref[0, 2, :, :, :]
    p11 = xb_ref[0, 3, :, :, :]
    h00 = xh_ref[0, 0, :, :, :]            # (1, cin, B)
    h01 = xh_ref[0, 1, :, :, :]
    if ta > 1:
        # rows a+1 of the p=0 planes: drop body row 0, append the halo row.
        # Concatenation is along the major (row) axis -> vreg-page copies only.
        p00s = jnp.concatenate([xb_ref[0, 0, 1:ta, :, :], h00], axis=0)
        p01s = jnp.concatenate([xb_ref[0, 1, 1:ta, :, :], h01], axis=0)
    else:
        p00s, p01s = h00, h01

    def c0(plane):   # columns b .. b+wo-1   (kw parity, column offset 0)
        return plane[:, :, 0:wo]

    def c1(plane):   # columns b+1 .. b+wo   (column offset 1 -> 1-lane shift)
        return plane[:, :, 1:wo + 1]

    # tap k = kh*3 + kw reads padded pixel (2a+kh, 2b+kw); each tap is (ta, cin, wo)
    taps = (c0(p00), c0(p01), c1(p00),      # kh = 0
            c0(p10), c0(p11), c1(p10),      # kh = 1
            c0(p00s), c0(p01s), c1(p00s))   # kh = 2

    # conv: 9 accumulating batched matmuls (batch=row, M=cconv, K=cin, N=wo) on the MXU
    wk_all = w_ref[...]                     # (9, cconv, cin) bf16
    conv = None
    for k in range(9):
        wk = jnp.broadcast_to(wk_all[k][None, :, :], (ta, cconv, cin))
        dk = lax.dot_general(wk, taps[k],
                             (((2,), (1,)), ((0,), (0,))),
                             preferred_element_type=jnp.float32)   # (ta, cconv, wo)
        conv = dk if conv is None else conv + dk
    # NOTE: conv bias intentionally omitted -- a constant per-channel bias cancels
    # exactly under training-mode BatchNorm (batch mean subtraction).
    # TODO(synk): fold the bias into the BN shift if eval-mode running stats are needed.

    # max-pool taps are the unpadded pixels (2a+i, 2b+j), i, j in {0, 1}
    pool = jnp.maximum(jnp.maximum(taps[4], taps[5]),
                       jnp.maximum(taps[7], taps[8])).astype(jnp.float32)
    return conv, pool


def _stats_kernel(xb_ref, xh_ref, w_ref, stat_ref, *, ta, wo, cconv, cin):
    """Pass 1: per-tile per-channel sum / sum-of-squares partials (no accumulator)."""
    conv, pool = _conv_pool_tile(xb_ref, xh_ref, w_ref,
                                 ta=ta, wo=wo, cconv=cconv, cin=cin)
    # page-reduce (rows) first -- elementwise adds -- then lane-reduce (width)
    cs = jnp.sum(jnp.sum(conv, axis=0), axis=1, keepdims=True)              # (cconv, 1)
    cs2 = jnp.sum(jnp.sum(conv * conv, axis=0), axis=1, keepdims=True)
    ps = jnp.sum(jnp.sum(pool, axis=0), axis=1, keepdims=True)              # (cin, 1)
    ps2 = jnp.sum(jnp.sum(pool * pool, axis=0), axis=1, keepdims=True)
    stat_ref[0, 0, 0:cconv, 0:1] = cs
    stat_ref[0, 0, 0:cconv, 1:2] = cs2
    stat_ref[0, 0, cconv:cconv + cin, 0:1] = ps
    stat_ref[0, 0, cconv:cconv + cin, 1:2] = ps2


def _apply_kernel(xb_ref, xh_ref, w_ref, ss_ref, out_ref, *, ta, wo, cconv, cin):
    """Pass 2: recompute conv/pool, apply folded BN scale/shift + ReLU, lane-dense store."""
    conv, pool = _conv_pool_tile(xb_ref, xh_ref, w_ref,
                                 ta=ta, wo=wo, cconv=cconv, cin=cin)
    sc = ss_ref[0:cconv, 0:1]                       # (cconv, 1) scale, conv channels
    sh = ss_ref[0:cconv, 1:2]                       # (cconv, 1) shift
    sp = ss_ref[cconv:cconv + cin, 0:1]             # (cin, 1)  scale, pool channels
    sb = ss_ref[cconv:cconv + cin, 1:2]             # (cin, 1)  shift
    # conv and pool written to their own channel ranges: no channel concatenate.
    out_ref[0, :, 0:cconv, :] = jnp.maximum(conv * sc + sh, 0.0)
    out_ref[0, :, cconv:cconv + cin, :] = jnp.maximum(pool * sp + sb, 0.0)


def _pick_tile_rows(ho, wo, cin, cconv, requested=None, budget_bytes=12 * 1024 * 1024):
    """Output-row tile size: largest divisor of ho whose per-step VMEM footprint
    (lane/sublane padding included, double buffering included) stays under budget.
    Large ta also keeps the halo re-read fraction (1/(2*ta)) negligible and amortizes
    the ~0.35us per-grid-step overhead."""
    if requested is not None:
        ta = max(1, min(int(requested), ho))
    else:
        cout = cin + cconv
        b_pad = -(-(wo + 1) // 128) * 128
        wo_pad = -(-wo // 128) * 128
        cin_pad = -(-cin // 8) * 8
        cconv_pad = -(-cconv // 8) * 8
        cout_pad = -(-cout // 8) * 8
        per_row = 4 * cin_pad * b_pad * 2 * 2            # bf16 body planes, x2 buffers
        per_row += 2 * cin_pad * b_pad * 2               # shifted-plane copies (bf16)
        per_row += cout_pad * wo_pad * 4 * 2             # f32 output tile, x2 buffers
        per_row += (cconv_pad + 2 * cin_pad) * wo_pad * 4  # f32 conv/pool + tap temps
        ta = max(1, min(ho, budget_bytes // max(per_row, 1)))
    while ho % ta != 0:
        ta -= 1
    return ta


@functools.partial(jax.jit, static_argnames=("tile_rows",))
def downsampler_block(x_nchw, w, b, gamma, beta, *, tile_rows=None):
    """x: (N, Cin, H, W); w: (Cconv, Cin, 3, 3); b: (Cconv,) [cancels under training-mode
    BN]; gamma/beta: (Cout,), Cout = Cconv + Cin.
    Returns relu(BN(cat([conv(x), maxpool(x)], C))) as (N, Cout, H//2, W//2) f32."""
    del b  # exact: constant per-channel bias cancels in training-mode BatchNorm
    N, Cin, H, W = x_nchw.shape
    assert H % 2 == 0 and W % 2 == 0, "DownsamplerBlock expects even H, W"
    Cconv = w.shape[0]
    Cout = Cconv + Cin
    Ho, Wo = H // 2, W // 2
    A, B = Ho + 1, Wo + 1
    M = N * Ho * Wo

    ta = _pick_tile_rows(Ho, Wo, Cin, Cconv, tile_rows)
    T = Ho // ta

    # ---- wrapper glue: layout only (pad + stride-2 space-to-depth), bf16 inputs ----
    xb = x_nchw.astype(jnp.bfloat16)
    xp = jnp.pad(xb, ((0, 0), (0, 0), (1, 1), (1, 1)))            # (N, Cin, 2A, 2B)
    # planes[n, 2p+q, a, c, b] = xp[n, c, 2a+p, 2b+q]  (width on the lane axis)
    planes = (xp.reshape(N, Cin, A, 2, B, 2)
                .transpose(0, 3, 5, 2, 1, 4)
                .reshape(N, 4, A, Cin, B))
    # weights -> (9, Cconv, Cin), leading index k = kh*3 + kw
    w9 = jnp.transpose(w, (2, 3, 0, 1)).reshape(9, Cconv, Cin).astype(jnp.bfloat16)

    grid = (N, T)
    body_spec = pl.BlockSpec((1, 4, ta, Cin, B), lambda n, t: (n, 0, t, 0, 0))
    # halo: only parity planes 0 and 1 are ever read for the kh=2 taps
    halo_spec = pl.BlockSpec((1, 2, 1, Cin, B), lambda n, t: (n, 0, (t + 1) * ta, 0, 0))
    w_spec = pl.BlockSpec((9, Cconv, Cin), lambda n, t: (0, 0, 0))

    # ---- pass 1: per-tile partial sums / sums-of-squares (megacore-parallel) ----
    partials = pl.pallas_call(
        functools.partial(_stats_kernel, ta=ta, wo=Wo, cconv=Cconv, cin=Cin),
        out_shape=jax.ShapeDtypeStruct((N, T, Cout, 2), jnp.float32),
        grid=grid,
        in_specs=[body_spec, halo_spec, w_spec],
        out_specs=pl.BlockSpec((1, 1, Cout, 2), lambda n, t: (n, t, 0, 0)),
        compiler_params=pltpu.CompilerParams(
            dimension_semantics=("parallel", "parallel"),
            vmem_limit_bytes=48 * 1024 * 1024,
            allow_input_fusion=[True, True, False]),
    )(planes, planes, w9)

    sums = jnp.sum(partials, axis=(0, 1))                         # (Cout, 2)
    mean = sums[:, 0] / M
    var = jnp.maximum(sums[:, 1] / M - mean * mean, 0.0)          # biased batch variance
    scale = gamma * lax.rsqrt(var + EPS)
    shift = beta - mean * scale
    ss = jnp.stack([scale, shift], axis=1).astype(jnp.float32)    # (Cout, 2)

    # ---- pass 2: recompute conv/pool, apply BN + ReLU, lane-dense fused store ----
    y = pl.pallas_call(
        functools.partial(_apply_kernel, ta=ta, wo=Wo, cconv=Cconv, cin=Cin),
        out_shape=jax.ShapeDtypeStruct((N, Ho, Cout, Wo), jnp.float32),
        grid=grid,
        in_specs=[body_spec, halo_spec, w_spec,
                  pl.BlockSpec((Cout, 2), lambda n, t: (0, 0))],
        out_specs=pl.BlockSpec((1, ta, Cout, Wo), lambda n, t: (n, t, 0, 0)),
        compiler_params=pltpu.CompilerParams(
            dimension_semantics=("parallel", "parallel"),
            vmem_limit_bytes=48 * 1024 * 1024,
            allow_input_fusion=[True, True, False, False]),
    )(planes, planes, w9, ss)

    # TODO(synk): writing NCHW directly from the kernel would need an in-kernel
    # row<->channel relayout; one XLA transpose of the (lane-dense) output instead.
    return jnp.transpose(y, (0, 2, 1, 3))                         # (N, Cout, Ho, Wo)


def reference(x, w, b, gamma, beta):
    """Pure-JAX reference mirroring the PyTorch forward (training-mode BN)."""
    conv = lax.conv_general_dilated(
        x, w, window_strides=(2, 2), padding=((1, 1), (1, 1)),
        dimension_numbers=('NCHW', 'OIHW', 'NCHW')) + b[None, :, None, None]
    pool = lax.reduce_window(x, -jnp.inf, lax.max,
                             (1, 1, 2, 2), (1, 1, 2, 2), 'VALID')
    y = jnp.concatenate([conv, pool], axis=1)
    mean = jnp.mean(y, axis=(0, 2, 3), keepdims=True)
    var = jnp.mean(jnp.square(y - mean), axis=(0, 2, 3), keepdims=True)
    yn = (y - mean) / jnp.sqrt(var + EPS) * gamma[None, :, None, None] \
         + beta[None, :, None, None]
    return jnp.maximum(yn, 0.0)


if __name__ == "__main__":
    N, Cin, H, W = 2, 4, 16, 16
    Cout = 16                      # DownsamplerBlock(ninput=4, noutput=16)
    Cconv = Cout - Cin

    key = jax.random.PRNGKey(0)
    k1, k2, k3, k4, k5 = jax.random.split(key, 5)
    x = jax.random.normal(k1, (N, Cin, H, W), jnp.float32)
    w = 0.1 * jax.random.normal(k2, (Cconv, Cin, 3, 3), jnp.float32)
    b = 0.1 * jax.random.normal(k3, (Cconv,), jnp.float32)
    gamma = 1.0 + 0.1 * jax.random.normal(k4, (Cout,), jnp.float32)
    beta = 0.1 * jax.random.normal(k5, (Cout,), jnp.float32)

    # Kernel reads activations/weights as bf16 (f32 accumulation / BN / output), so
    # compare against the f32 reference evaluated on bf16-rounded inputs.  The conv
    # bias is kept in the reference: it cancels exactly under training-mode BN.
    x_q = x.astype(jnp.bfloat16).astype(jnp.float32)
    w_q = w.astype(jnp.bfloat16).astype(jnp.float32)
    ref = reference(x_q, w_q, b, gamma, beta)

    # default tiling (whole image row-range per grid step at this size)
    out = jax.block_until_ready(downsampler_block(x, w, b, gamma, beta))
    assert out.shape == (N, Cout, H // 2, W // 2)
    np.testing.assert_allclose(np.asarray(out), np.asarray(ref), rtol=5e-3, atol=5e-3)

    # also exercise the multi-tile row grid (halo indexing + partial-sum stats path)
    out_tiled = jax.block_until_ready(
        downsampler_block(x, w, b, gamma, beta, tile_rows=2))
    np.testing.assert_allclose(np.asarray(out_tiled), np.asarray(ref),
                               rtol=5e-3, atol=5e-3)

    print("KERNEL_OK")
</pallas_src>

<mosaic_0001>
module attributes {stable_mosaic.version = 11 : i64} {
  func.func @_stats_kernel(%arg0: i32, %arg1: i32, %arg2: memref<1x4x8x4x9xbf16, #tpu.memory_space<vmem>>, %arg3: memref<1x2x1x4x9xbf16, #tpu.memory_space<vmem>>, %arg4: memref<9x12x4xbf16, #tpu.memory_space<vmem>>, %arg5: memref<1x1x16x2xf32, #tpu.memory_space<vmem>>) attributes {dimension_semantics = [#tpu.dimension_semantics<parallel>, #tpu.dimension_semantics<parallel>], iteration_bounds = array<i64: 2, 1>, scalar_prefetch = 0 : i64, scratch_operands = 0 : i64, tpu.core_type = #tpu.core_type<tc>, window_params = [{transform_indices = @transform_0, window_bounds = array<i64: 1, 4, 8, 4, 9>}, {transform_indices = @transform_1, window_bounds = array<i64: 1, 2, 1, 4, 9>}, {pipeline_mode = #tpu.pipeline_mode<synchronous>, transform_indices = @transform_2, window_bounds = array<i64: 9, 12, 4>}, {transform_indices = @transform_3, window_bounds = array<i64: 1, 1, 16, 2>}]} {
    %c0 = arith.constant 0 : index
    %c0_0 = arith.constant 0 : index
    %c0_1 = arith.constant 0 : index
    %c0_2 = arith.constant 0 : index
    %c0_3 = arith.constant 0 : index
    %0 = vector.load %arg2[%c0, %c0_0, %c0_1, %c0_2, %c0_3] : memref<1x4x8x4x9xbf16, #tpu.memory_space<vmem>>, vector<1x1x8x4x9xbf16>
    %1 = vector.shape_cast %0 : vector<1x1x8x4x9xbf16> to vector<8x4x9xbf16>
    %c0_4 = arith.constant 0 : index
    %c1 = arith.constant 1 : index
    %c0_5 = arith.constant 0 : index
    %c0_6 = arith.constant 0 : index
    %c0_7 = arith.constant 0 : index
    %2 = vector.load %arg2[%c0_4, %c1, %c0_5, %c0_6, %c0_7] : memref<1x4x8x4x9xbf16, #tpu.memory_space<vmem>>, vector<1x1x8x4x9xbf16>
    %3 = vector.shape_cast %2 : vector<1x1x8x4x9xbf16> to vector<8x4x9xbf16>
    %c0_8 = arith.constant 0 : index
    %c2 = arith.constant 2 : index
    %c0_9 = arith.constant 0 : index
    %c0_10 = arith.constant 0 : index
    %c0_11 = arith.constant 0 : index
    %4 = vector.load %arg2[%c0_8, %c2, %c0_9, %c0_10, %c0_11] : memref<1x4x8x4x9xbf16, #tpu.memory_space<vmem>>, vector<1x1x8x4x9xbf16>
    %5 = vector.shape_cast %4 : vector<1x1x8x4x9xbf16> to vector<8x4x9xbf16>
    %c0_12 = arith.constant 0 : index
    %c3 = arith.constant 3 : index
    %c0_13 = arith.constant 0 : index
    %c0_14 = arith.constant 0 : index
    %c0_15 = arith.constant 0 : index
    %6 = vector.load %arg2[%c0_12, %c3, %c0_13, %c0_14, %c0_15] : memref<1x4x8x4x9xbf16, #tpu.memory_space<vmem>>, vector<1x1x8x4x9xbf16>
    %7 = vector.shape_cast %6 : vector<1x1x8x4x9xbf16> to vector<8x4x9xbf16>
    %c0_16 = arith.constant 0 : index
    %c0_17 = arith.constant 0 : index
    %c0_18 = arith.constant 0 : index
    %c0_19 = arith.constant 0 : index
    %c0_20 = arith.constant 0 : index
    %8 = vector.load %arg3[%c0_16, %c0_17, %c0_18, %c0_19, %c0_20] : memref<1x2x1x4x9xbf16, #tpu.memory_space<vmem>>, vector<1x1x1x4x9xbf16>
    %9 = vector.shape_cast %8 : vector<1x1x1x4x9xbf16> to vector<1x4x9xbf16>
    %c0_21 = arith.constant 0 : index
    %c1_22 = arith.constant 1 : index
    %c0_23 = arith.constant 0 : index
    %c0_24 = arith.constant 0 : index
    %c0_25 = arith.constant 0 : index
    %10 = vector.load %arg3[%c0_21, %c1_22, %c0_23, %c0_24, %c0_25] : memref<1x2x1x4x9xbf16, #tpu.memory_space<vmem>>, vector<1x1x1x4x9xbf16>
    %11 = vector.shape_cast %10 : vector<1x1x1x4x9xbf16> to vector<1x4x9xbf16>
    %c0_26 = arith.constant 0 : index
    %c0_27 = arith.constant 0 : index
    %c1_28 = arith.constant 1 : index
    %c0_29 = arith.constant 0 : index
    %c0_30 = arith.constant 0 : index
    %12 = vector.load %arg2[%c0_26, %c0_27, %c1_28, %c0_29, %c0_30] : memref<1x4x8x4x9xbf16, #tpu.memory_space<vmem>>, vector<1x1x7x4x9xbf16>
    %13 = vector.shape_cast %12 : vector<1x1x7x4x9xbf16> to vector<7x4x9xbf16>
    %14 = tpu.concatenate %13, %9 in 0 : vector<7x4x9xbf16>, vector<1x4x9xbf16> -> vector<8x4x9xbf16>
    %c0_31 = arith.constant 0 : index
    %c1_32 = arith.constant 1 : index
    %c1_33 = arith.constant 1 : index
    %c0_34 = arith.constant 0 : index
    %c0_35 = arith.constant 0 : index
    %15 = vector.load %arg2[%c0_31, %c1_32, %c1_33, %c0_34, %c0_35] : memref<1x4x8x4x9xbf16, #tpu.memory_space<vmem>>, vector<1x1x7x4x9xbf16>
    %16 = vector.shape_cast %15 : vector<1x1x7x4x9xbf16> to vector<7x4x9xbf16>
    %17 = tpu.concatenate %16, %11 in 0 : vector<7x4x9xbf16>, vector<1x4x9xbf16> -> vector<8x4x9xbf16>
    %18 = vector.extract_strided_slice %1 {offsets = [0, 0, 0], sizes = [8, 4, 8], strides = [1, 1, 1]} : vector<8x4x9xbf16> to vector<8x4x8xbf16>
    %19 = vector.extract_strided_slice %3 {offsets = [0, 0, 0], sizes = [8, 4, 8], strides = [1, 1, 1]} : vector<8x4x9xbf16> to vector<8x4x8xbf16>
    %20 = vector.extract_strided_slice %1 {offsets = [0, 0, 1], sizes = [8, 4, 8], strides = [1, 1, 1]} : vector<8x4x9xbf16> to vector<8x4x8xbf16>
    %21 = vector.extract_strided_slice %5 {offsets = [0, 0, 0], sizes = [8, 4, 8], strides = [1, 1, 1]} : vector<8x4x9xbf16> to vector<8x4x8xbf16>
    %22 = vector.extract_strided_slice %7 {offsets = [0, 0, 0], sizes = [8, 4, 8], strides = [1, 1, 1]} : vector<8x4x9xbf16> to vector<8x4x8xbf16>
    %23 = vector.extract_strided_slice %5 {offsets = [0, 0, 1], sizes = [8, 4, 8], strides = [1, 1, 1]} : vector<8x4x9xbf16> to vector<8x4x8xbf16>
    %24 = vector.extract_strided_slice %14 {offsets = [0, 0, 0], sizes = [8, 4, 8], strides = [1, 1, 1]} : vector<8x4x9xbf16> to vector<8x4x8xbf16>
    %25 = vector.extract_strided_slice %17 {offsets = [0, 0, 0], sizes = [8, 4, 8], strides = [1, 1, 1]} : vector<8x4x9xbf16> to vector<8x4x8xbf16>
    %26 = vector.extract_strided_slice %14 {offsets = [0, 0, 1], sizes = [8, 4, 8], strides = [1, 1, 1]} : vector<8x4x9xbf16> to vector<8x4x8xbf16>
    %c0_36 = arith.constant 0 : index
    %c0_37 = arith.constant 0 : index
    %c0_38 = arith.constant 0 : index
    %27 = vector.load %arg4[%c0_36, %c0_37, %c0_38] : memref<9x12x4xbf16, #tpu.memory_space<vmem>>, vector<9x12x4xbf16>
    %28 = vector.extract_strided_slice %27 {offsets = [0, 0, 0], sizes = [1, 12, 4], strides = [1, 1, 1]} : vector<9x12x4xbf16> to vector<1x12x4xbf16>
    %29 = vector.shape_cast %28 : vector<1x12x4xbf16> to vector<12x4xbf16>
    %30 = vector.shape_cast %29 : vector<12x4xbf16> to vector<1x12x4xbf16>
    %31 = vector.shape_cast %30 : vector<1x12x4xbf16> to vector<1x12x4xbf16>
    %32 = vector.broadcast %31 : vector<1x12x4xbf16> to vector<8x12x4xbf16>
    %cst = arith.constant dense<0.000000e+00> : vector<8x12x8xf32>
    %33 = tpu.matmul %32, %18, %cst {dimension_numbers = #tpu.dot_dimension_numbers<[2], [1], [1], [2], [0, 0, 0, 1, 1, 2], [0], [0]>} : vector<8x12x4xbf16>, vector<8x4x8xbf16>, vector<8x12x8xf32> -> vector<8x12x8xf32>
    %34 = vector.extract_strided_slice %27 {offsets = [1, 0, 0], sizes = [1, 12, 4], strides = [1, 1, 1]} : vector<9x12x4xbf16> to vector<1x12x4xbf16>
    %35 = vector.shape_cast %34 : vector<1x12x4xbf16> to vector<12x4xbf16>
    %36 = vector.shape_cast %35 : vector<12x4xbf16> to vector<1x12x4xbf16>
    %37 = vector.shape_cast %36 : vector<1x12x4xbf16> to vector<1x12x4xbf16>
    %38 = vector.broadcast %37 : vector<1x12x4xbf16> to vector<8x12x4xbf16>
    %cst_39 = arith.constant dense<0.000000e+00> : vector<8x12x8xf32>
    %39 = tpu.matmul %38, %19, %cst_39 {dimension_numbers = #tpu.dot_dimension_numbers<[2], [1], [1], [2], [0, 0, 0, 1, 1, 2], [0], [0]>} : vector<8x12x4xbf16>, vector<8x4x8xbf16>, vector<8x12x8xf32> -> vector<8x12x8xf32>
    %40 = arith.addf %33, %39 : vector<8x12x8xf32>
    %41 = vector.extract_strided_slice %27 {offsets = [2, 0, 0], sizes = [1, 12, 4], strides = [1, 1, 1]} : vector<9x12x4xbf16> to vector<1x12x4xbf16>
    %42 = vector.shape_cast %41 : vector<1x12x4xbf16> to vector<12x4xbf16>
    %43 = vector.shape_cast %42 : vector<12x4xbf16> to vector<1x12x4xbf16>
    %44 = vector.shape_cast %43 : vector<1x12x4xbf16> to vector<1x12x4xbf16>
    %45 = vector.broadcast %44 : vector<1x12x4xbf16> to vector<8x12x4xbf16>
    %cst_40 = arith.constant dense<0.000000e+00> : vector<8x12x8xf32>
    %46 = tpu.matmul %45, %20, %cst_40 {dimension_numbers = #tpu.dot_dimension_numbers<[2], [1], [1], [2], [0, 0, 0, 1, 1, 2], [0], [0]>} : vector<8x12x4xbf16>, vector<8x4x8xbf16>, vector<8x12x8xf32> -> vector<8x12x8xf32>
    %47 = arith.addf %40, %46 : vector<8x12x8xf32>
    %48 = vector.extract_strided_slice %27 {offsets = [3, 0, 0], sizes = [1, 12, 4], strides = [1, 1, 1]} : vector<9x12x4xbf16> to vector<1x12x4xbf16>
    %49 = vector.shape_cast %48 : vector<1x12x4xbf16> to vector<12x4xbf16>
    %50 = vector.shape_cast %49 : vector<12x4xbf16> to vector<1x12x4xbf16>
    %51 = vector.shape_cast %50 : vector<1x12x4xbf16> to vector<1x12x4xbf16>
    %52 = vector.broadcast %51 : vector<1x12x4xbf16> to vector<8x12x4xbf16>
    %cst_41 = arith.constant dense<0.000000e+00> : vector<8x12x8xf32>
    %53 = tpu.matmul %52, %21, %cst_41 {dimension_numbers = #tpu.dot_dimension_numbers<[2], [1], [1], [2], [0, 0, 0, 1, 1, 2], [0], [0]>} : vector<8x12x4xbf16>, vector<8x4x8xbf16>, vector<8x12x8xf32> -> vector<8x12x8xf32>
    %54 = arith.addf %47, %53 : vector<8x12x8xf32>
    %55 = vector.extract_strided_slice %27 {offsets = [4, 0, 0], sizes = [1, 12, 4], strides = [1, 1, 1]} : vector<9x12x4xbf16> to vector<1x12x4xbf16>
    %56 = vector.shape_cast %55 : vector<1x12x4xbf16> to vector<12x4xbf16>
    %57 = vector.shape_cast %56 : vector<12x4xbf16> to vector<1x12x4xbf16>
    %58 = vector.shape_cast %57 : vector<1x12x4xbf16> to vector<1x12x4xbf16>
    %59 = vector.broadcast %58 : vector<1x12x4xbf16> to vector<8x12x4xbf16>
    %cst_42 = arith.constant dense<0.000000e+00> : vector<8x12x8xf32>
    %60 = tpu.matmul %59, %22, %cst_42 {dimension_numbers = #tpu.dot_dimension_numbers<[2], [1], [1], [2], [0, 0, 0, 1, 1, 2], [0], [0]>} : vector<8x12x4xbf16>, vector<8x4x8xbf16>, vector<8x12x8xf32> -> vector<8x12x8xf32>
    %61 = arith.addf %54, %60 : vector<8x12x8xf32>
    %62 = vector.extract_strided_slice %27 {offsets = [5, 0, 0], sizes = [1, 12, 4], strides = [1, 1, 1]} : vector<9x12x4xbf16> to vector<1x12x4xbf16>
    %63 = vector.shape_cast %62 : vector<1x12x4xbf16> to vector<12x4xbf16>
    %64 = vector.shape_cast %63 : vector<12x4xbf16> to vector<1x12x4xbf16>
    %65 = vector.shape_cast %64 : vector<1x12x4xbf16> to vector<1x12x4xbf16>
    %66 = vector.broadcast %65 : vector<1x12x4xbf16> to vector<8x12x4xbf16>
    %cst_43 = arith.constant dense<0.000000e+00> : vector<8x12x8xf32>
    %67 = tpu.matmul %66, %23, %cst_43 {dimension_numbers = #tpu.dot_dimension_numbers<[2], [1], [1], [2], [0, 0, 0, 1, 1, 2], [0], [0]>} : vector<8x12x4xbf16>, vector<8x4x8xbf16>, vector<8x12x8xf32> -> vector<8x12x8xf32>
    %68 = arith.addf %61, %67 : vector<8x12x8xf32>
    %69 = vector.extract_strided_slice %27 {offsets = [6, 0, 0], sizes = [1, 12, 4], strides = [1, 1, 1]} : vector<9x12x4xbf16> to vector<1x12x4xbf16>
    %70 = vector.shape_cast %69 : vector<1x12x4xbf16> to vector<12x4xbf16>
    %71 = vector.shape_cast %70 : vector<12x4xbf16> to vector<1x12x4xbf16>
    %72 = vector.shape_cast %71 : vector<1x12x4xbf16> to vector<1x12x4xbf16>
    %73 = vector.broadcast %72 : vector<1x12x4xbf16> to vector<8x12x4xbf16>
    %cst_44 = arith.constant dense<0.000000e+00> : vector<8x12x8xf32>
    %74 = tpu.matmul %73, %24, %cst_44 {dimension_numbers = #tpu.dot_dimension_numbers<[2], [1], [1], [2], [0, 0, 0, 1, 1, 2], [0], [0]>} : vector<8x12x4xbf16>, vector<8x4x8xbf16>, vector<8x12x8xf32> -> vector<8x12x8xf32>
    %75 = arith.addf %68, %74 : vector<8x12x8xf32>
    %76 = vector.extract_strided_slice %27 {offsets = [7, 0, 0], sizes = [1, 12, 4], strides = [1, 1, 1]} : vector<9x12x4xbf16> to vector<1x12x4xbf16>
    %77 = vector.shape_cast %76 : vector<1x12x4xbf16> to vector<12x4xbf16>
    %78 = vector.shape_cast %77 : vector<12x4xbf16> to vector<1x12x4xbf16>
    %79 = vector.shape_cast %78 : vector<1x12x4xbf16> to vector<1x12x4xbf16>
    %80 = vector.broadcast %79 : vector<1x12x4xbf16> to vector<8x12x4xbf16>
    %cst_45 = arith.constant dense<0.000000e+00> : vector<8x12x8xf32>
    %81 = tpu.matmul %80, %25, %cst_45 {dimension_numbers = #tpu.dot_dimension_numbers<[2], [1], [1], [2], [0, 0, 0, 1, 1, 2], [0], [0]>} : vector<8x12x4xbf16>, vector<8x4x8xbf16>, vector<8x12x8xf32> -> vector<8x12x8xf32>
    %82 = arith.addf %75, %81 : vector<8x12x8xf32>
    %83 = vector.extract_strided_slice %27 {offsets = [8, 0, 0], sizes = [1, 12, 4], strides = [1, 1, 1]} : vector<9x12x4xbf16> to vector<1x12x4xbf16>
    %84 = vector.shape_cast %83 : vector<1x12x4xbf16> to vector<12x4xbf16>
    %85 = vector.shape_cast %84 : vector<12x4xbf16> to vector<1x12x4xbf16>
    %86 = vector.shape_cast %85 : vector<1x12x4xbf16> to vector<1x12x4xbf16>
    %87 = vector.broadcast %86 : vector<1x12x4xbf16> to vector<8x12x4xbf16>
    %cst_46 = arith.constant dense<0.000000e+00> : vector<8x12x8xf32>
    %88 = tpu.matmul %87, %26, %cst_46 {dimension_numbers = #tpu.dot_dimension_numbers<[2], [1], [1], [2], [0, 0, 0, 1, 1, 2], [0], [0]>} : vector<8x12x4xbf16>, vector<8x4x8xbf16>, vector<8x12x8xf32> -> vector<8x12x8xf32>
    %89 = arith.addf %82, %88 : vector<8x12x8xf32>
    %90 = arith.maximumf %22, %23 : vector<8x4x8xbf16>
    %91 = arith.maximumf %25, %26 : vector<8x4x8xbf16>
    %92 = arith.maximumf %90, %91 : vector<8x4x8xbf16>
    %93 = arith.extf %92 : vector<8x4x8xbf16> to vector<8x4x8xf32>
    %cst_47 = arith.constant dense<0.000000e+00> : vector<12x8xf32>
    %94 = vector.multi_reduction <add>, %89, %cst_47 [0] : vector<8x12x8xf32> to vector<12x8xf32>
    %cst_48 = arith.constant dense<0.000000e+00> : vector<12xf32>
    %95 = vector.multi_reduction <add>, %94, %cst_48 [1] : vector<12x8xf32> to vector<12xf32>
    %96 = vector.shape_cast %95 : vector<12xf32> to vector<12x1xf32>
    %97 = arith.mulf %89, %89 : vector<8x12x8xf32>
    %cst_49 = arith.constant dense<0.000000e+00> : vector<12x8xf32>
    %98 = vector.multi_reduction <add>, %97, %cst_49 [0] : vector<8x12x8xf32> to vector<12x8xf32>
    %cst_50 = arith.constant dense<0.000000e+00> : vector<12xf32>
    %99 = vector.multi_reduction <add>, %98, %cst_50 [1] : vector<12x8xf32> to vector<12xf32>
    %100 = vector.shape_cast %99 : vector<12xf32> to vector<12x1xf32>
    %cst_51 = arith.constant dense<0.000000e+00> : vector<4x8xf32>
    %101 = vector.multi_reduction <add>, %93, %cst_51 [0] : vector<8x4x8xf32> to vector<4x8xf32>
    %cst_52 = arith.constant dense<0.000000e+00> : vector<4xf32>
    %102 = vector.multi_reduction <add>, %101, %cst_52 [1] : vector<4x8xf32> to vector<4xf32>
    %103 = vector.shape_cast %102 : vector<4xf32> to vector<4x1xf32>
    %104 = arith.mulf %93, %93 : vector<8x4x8xf32>
    %cst_53 = arith.constant dense<0.000000e+00> : vector<4x8xf32>
    %105 = vector.multi_reduction <add>, %104, %cst_53 [0] : vector<8x4x8xf32> to vector<4x8xf32>
    %cst_54 = arith.constant dense<0.000000e+00> : vector<4xf32>
    %106 = vector.multi_reduction <add>, %105, %cst_54 [1] : vector<4x8xf32> to vector<4xf32>
    %107 = vector.shape_cast %106 : vector<4xf32> to vector<4x1xf32>
    %c0_55 = arith.constant 0 : index
    %c0_56 = arith.constant 0 : index
    %c0_57 = arith.constant 0 : index
    %c0_58 = arith.constant 0 : index
    %108 = vector.load %arg5[%c0_55, %c0_56, %c0_57, %c0_58] : memref<1x1x16x2xf32, #tpu.memory_space<vmem>>, vector<1x1x12x1xf32>
    %109 = vector.shape_cast %108 : vector<1x1x12x1xf32> to vector<12x1xf32>
    %110 = vector.shape_cast %96 : vector<12x1xf32> to vector<1x1x12x1xf32>
    tpu.vector_store %arg5[%c0_55, %c0_56, %c0_57, %c0_58], %110 {strides = array<i32>} : memref<1x1x16x2xf32, #tpu.memory_space<vmem>>, vector<1x1x12x1xf32>,
    %c0_59 = arith.constant 0 : index
    %c0_60 = arith.constant 0 : index
    %c0_61 = arith.constant 0 : index
    %c1_62 = arith.constant 1 : index
    %111 = vector.load %arg5[%c0_59, %c0_60, %c0_61, %c1_62] : memref<1x1x16x2xf32, #tpu.memory_space<vmem>>, vector<1x1x12x1xf32>
    %112 = vector.shape_cast %111 : vector<1x1x12x1xf32> to vector<12x1xf32>
    %113 = vector.shape_cast %100 : vector<12x1xf32> to vector<1x1x12x1xf32>
    tpu.vector_store %arg5[%c0_59, %c0_60, %c0_61, %c1_62], %113 {strides = array<i32>} : memref<1x1x16x2xf32, #tpu.memory_space<vmem>>, vector<1x1x12x1xf32>,
    %c0_63 = arith.constant 0 : index
    %c0_64 = arith.constant 0 : index
    %c12 = arith.constant 12 : index
    %c0_65 = arith.constant 0 : index
    %114 = vector.load %arg5[%c0_63, %c0_64, %c12, %c0_65] : memref<1x1x16x2xf32, #tpu.memory_space<vmem>>, vector<1x1x4x1xf32>
    %115 = vector.shape_cast %114 : vector<1x1x4x1xf32> to vector<4x1xf32>
    %116 = vector.shape_cast %103 : vector<4x1xf32> to vector<1x1x4x1xf32>
    tpu.vector_store %arg5[%c0_63, %c0_64, %c12, %c0_65], %116 {strides = array<i32>} : memref<1x1x16x2xf32, #tpu.memory_space<vmem>>, vector<1x1x4x1xf32>,
    %c0_66 = arith.constant 0 : index
    %c0_67 = arith.constant 0 : index
    %c12_68 = arith.constant 12 : index
    %c1_69 = arith.constant 1 : index
    %117 = vector.load %arg5[%c0_66, %c0_67, %c12_68, %c1_69] : memref<1x1x16x2xf32, #tpu.memory_space<vmem>>, vector<1x1x4x1xf32>
    %118 = vector.shape_cast %117 : vector<1x1x4x1xf32> to vector<4x1xf32>
    %119 = vector.shape_cast %107 : vector<4x1xf32> to vector<1x1x4x1xf32>
    tpu.vector_store %arg5[%c0_66, %c0_67, %c12_68, %c1_69], %119 {strides = array<i32>} : memref<1x1x16x2xf32, #tpu.memory_space<vmem>>, vector<1x1x4x1xf32>,
    return
  }
  func.func @transform_0(%arg0: i32, %arg1: i32) -> (i32, i32, i32, i32, i32) {
    %c0_i32 = arith.constant 0 : i32
    %c0_i32_0 = arith.constant 0 : i32
    %c0_i32_1 = arith.constant 0 : i32
    %c0_i32_2 = arith.constant 0 : i32
    return %arg0, %c0_i32, %arg1, %c0_i32_0, %c0_i32_1 : i32, i32, i32, i32, i32
  }
  func.func @transform_1(%arg0: i32, %arg1: i32) -> (i32, i32, i32, i32, i32) {
    %c1_i32 = arith.constant 1 : i32
    %0 = arith.addi %arg1, %c1_i32 : i32
    %c8_i32 = arith.constant 8 : i32
    %1 = arith.muli %0, %c8_i32 : i32
    %c0_i32 = arith.constant 0 : i32
    %c0_i32_0 = arith.constant 0 : i32
    %c0_i32_1 = arith.constant 0 : i32
    %c0_i32_2 = arith.constant 0 : i32
    return %arg0, %c0_i32, %1, %c0_i32_0, %c0_i32_1 : i32, i32, i32, i32, i32
  }
  func.func @transform_2(%arg0: i32, %arg1: i32) -> (i32, i32, i32) {
    %c0_i32 = arith.constant 0 : i32
    %c0_i32_0 = arith.constant 0 : i32
    %c0_i32_1 = arith.constant 0 : i32
    %c0_i32_2 = arith.constant 0 : i32
    return %c0_i32, %c0_i32_0, %c0_i32_1 : i32, i32, i32
  }
  func.func @transform_3(%arg0: i32, %arg1: i32) -> (i32, i32, i32, i32) {
    %c0_i32 = arith.constant 0 : i32
    %c0_i32_0 = arith.constant 0 : i32
    %c0_i32_1 = arith.constant 0 : i32
    return %arg0, %arg1, %c0_i32, %c0_i32_0 : i32, i32, i32, i32
  }
}

module attributes {stable_mosaic.version = 11 : i64} {
  func.func @_apply_kernel(%arg0: i32, %arg1: i32, %arg2: memref<1x4x8x4x9xbf16, #tpu.memory_space<vmem>>, %arg3: memref<1x2x1x4x9xbf16, #tpu.memory_space<vmem>>, %arg4: memref<9x12x4xbf16, #tpu.memory_space<vmem>>, %arg5: memref<16x2xf32, #tpu.memory_space<vmem>>, %arg6: memref<1x8x16x8xf32, #tpu.memory_space<vmem>>) attributes {dimension_semantics = [#tpu.dimension_semantics<parallel>, #tpu.dimension_semantics<parallel>], iteration_bounds = array<i64: 2, 1>, scalar_prefetch = 0 : i64, scratch_operands = 0 : i64, tpu.core_type = #tpu.core_type<tc>, window_params = [{transform_indices = @transform_0, window_bounds = array<i64: 1, 4, 8, 4, 9>}, {transform_indices = @transform_1, window_bounds = array<i64: 1, 2, 1, 4, 9>}, {pipeline_mode = #tpu.pipeline_mode<synchronous>, transform_indices = @transform_2, window_bounds = array<i64: 9, 12, 4>}, {pipeline_mode = #tpu.pipeline_mode<synchronous>, transform_indices = @transform_3, window_bounds = array<i64: 16, 2>}, {transform_indices = @transform_4, window_bounds = array<i64: 1, 8, 16, 8>}]} {
    %c0 = arith.constant 0 : index
    %c0_0 = arith.constant 0 : index
    %c0_1 = arith.constant 0 : index
    %c0_2 = arith.constant 0 : index
    %c0_3 = arith.constant 0 : index
    %0 = vector.load %arg2[%c0, %c0_0, %c0_1, %c0_2, %c0_3] : memref<1x4x8x4x9xbf16, #tpu.memory_space<vmem>>, vector<1x1x8x4x9xbf16>
    %1 = vector.shape_cast %0 : vector<1x1x8x4x9xbf16> to vector<8x4x9xbf16>
    %c0_4 = arith.constant 0 : index
    %c1 = arith.constant 1 : index
    %c0_5 = arith.constant 0 : index
    %c0_6 = arith.constant 0 : index
    %c0_7 = arith.constant 0 : index
    %2 = vector.load %arg2[%c0_4, %c1, %c0_5, %c0_6, %c0_7] : memref<1x4x8x4x9xbf16, #tpu.memory_space<vmem>>, vector<1x1x8x4x9xbf16>
    %3 = vector.shape_cast %2 : vector<1x1x8x4x9xbf16> to vector<8x4x9xbf16>
    %c0_8 = arith.constant 0 : index
    %c2 = arith.constant 2 : index
    %c0_9 = arith.constant 0 : index
    %c0_10 = arith.constant 0 : index
    %c0_11 = arith.constant 0 : index
    %4 = vector.load %arg2[%c0_8, %c2, %c0_9, %c0_10, %c0_11] : memref<1x4x8x4x9xbf16, #tpu.memory_space<vmem>>, vector<1x1x8x4x9xbf16>
    %5 = vector.shape_cast %4 : vector<1x1x8x4x9xbf16> to vector<8x4x9xbf16>
    %c0_12 = arith.constant 0 : index
    %c3 = arith.constant 3 : index
    %c0_13 = arith.constant 0 : index
    %c0_14 = arith.constant 0 : index
    %c0_15 = arith.constant 0 : index
    %6 = vector.load %arg2[%c0_12, %c3, %c0_13, %c0_14, %c0_15] : memref<1x4x8x4x9xbf16, #tpu.memory_space<vmem>>, vector<1x1x8x4x9xbf16>
    %7 = vector.shape_cast %6 : vector<1x1x8x4x9xbf16> to vector<8x4x9xbf16>
    %c0_16 = arith.constant 0 : index
    %c0_17 = arith.constant 0 : index
    %c0_18 = arith.constant 0 : index
    %c0_19 = arith.constant 0 : index
    %c0_20 = arith.constant 0 : index
    %8 = vector.load %arg3[%c0_16, %c0_17, %c0_18, %c0_19, %c0_20] : memref<1x2x1x4x9xbf16, #tpu.memory_space<vmem>>, vector<1x1x1x4x9xbf16>
    %9 = vector.shape_cast %8 : vector<1x1x1x4x9xbf16> to vector<1x4x9xbf16>
    %c0_21 = arith.constant 0 : index
    %c1_22 = arith.constant 1 : index
    %c0_23 = arith.constant 0 : index
    %c0_24 = arith.constant 0 : index
    %c0_25 = arith.constant 0 : index
    %10 = vector.load %arg3[%c0_21, %c1_22, %c0_23, %c0_24, %c0_25] : memref<1x2x1x4x9xbf16, #tpu.memory_space<vmem>>, vector<1x1x1x4x9xbf16>
    %11 = vector.shape_cast %10 : vector<1x1x1x4x9xbf16> to vector<1x4x9xbf16>
    %c0_26 = arith.constant 0 : index
    %c0_27 = arith.constant 0 : index
    %c1_28 = arith.constant 1 : index
    %c0_29 = arith.constant 0 : index
    %c0_30 = arith.constant 0 : index
    %12 = vector.load %arg2[%c0_26, %c0_27, %c1_28, %c0_29, %c0_30] : memref<1x4x8x4x9xbf16, #tpu.memory_space<vmem>>, vector<1x1x7x4x9xbf16>
    %13 = vector.shape_cast %12 : vector<1x1x7x4x9xbf16> to vector<7x4x9xbf16>
    %14 = tpu.concatenate %13, %9 in 0 : vector<7x4x9xbf16>, vector<1x4x9xbf16> -> vector<8x4x9xbf16>
    %c0_31 = arith.constant 0 : index
    %c1_32 = arith.constant 1 : index
    %c1_33 = arith.constant 1 : index
    %c0_34 = arith.constant 0 : index
    %c0_35 = arith.constant 0 : index
    %15 = vector.load %arg2[%c0_31, %c1_32, %c1_33, %c0_34, %c0_35] : memref<1x4x8x4x9xbf16, #tpu.memory_space<vmem>>, vector<1x1x7x4x9xbf16>
    %16 = vector.shape_cast %15 : vector<1x1x7x4x9xbf16> to vector<7x4x9xbf16>
    %17 = tpu.concatenate %16, %11 in 0 : vector<7x4x9xbf16>, vector<1x4x9xbf16> -> vector<8x4x9xbf16>
    %18 = vector.extract_strided_slice %1 {offsets = [0, 0, 0], sizes = [8, 4, 8], strides = [1, 1, 1]} : vector<8x4x9xbf16> to vector<8x4x8xbf16>
    %19 = vector.extract_strided_slice %3 {offsets = [0, 0, 0], sizes = [8, 4, 8], strides = [1, 1, 1]} : vector<8x4x9xbf16> to vector<8x4x8xbf16>
    %20 = vector.extract_strided_slice %1 {offsets = [0, 0, 1], sizes = [8, 4, 8], strides = [1, 1, 1]} : vector<8x4x9xbf16> to vector<8x4x8xbf16>
    %21 = vector.extract_strided_slice %5 {offsets = [0, 0, 0], sizes = [8, 4, 8], strides = [1, 1, 1]} : vector<8x4x9xbf16> to vector<8x4x8xbf16>
    %22 = vector.extract_strided_slice %7 {offsets = [0, 0, 0], sizes = [8, 4, 8], strides = [1, 1, 1]} : vector<8x4x9xbf16> to vector<8x4x8xbf16>
    %23 = vector.extract_strided_slice %5 {offsets = [0, 0, 1], sizes = [8, 4, 8], strides = [1, 1, 1]} : vector<8x4x9xbf16> to vector<8x4x8xbf16>
    %24 = vector.extract_strided_slice %14 {offsets = [0, 0, 0], sizes = [8, 4, 8], strides = [1, 1, 1]} : vector<8x4x9xbf16> to vector<8x4x8xbf16>
    %25 = vector.extract_strided_slice %17 {offsets = [0, 0, 0], sizes = [8, 4, 8], strides = [1, 1, 1]} : vector<8x4x9xbf16> to vector<8x4x8xbf16>
    %26 = vector.extract_strided_slice %14 {offsets = [0, 0, 1], sizes = [8, 4, 8], strides = [1, 1, 1]} : vector<8x4x9xbf16> to vector<8x4x8xbf16>
    %c0_36 = arith.constant 0 : index
    %c0_37 = arith.constant 0 : index
    %c0_38 = arith.constant 0 : index
    %27 = vector.load %arg4[%c0_36, %c0_37, %c0_38] : memref<9x12x4xbf16, #tpu.memory_space<vmem>>, vector<9x12x4xbf16>
    %28 = vector.extract_strided_slice %27 {offsets = [0, 0, 0], sizes = [1, 12, 4], strides = [1, 1, 1]} : vector<9x12x4xbf16> to vector<1x12x4xbf16>
    %29 = vector.shape_cast %28 : vector<1x12x4xbf16> to vector<12x4xbf16>
    %30 = vector.shape_cast %29 : vector<12x4xbf16> to vector<1x12x4xbf16>
    %31 = vector.shape_cast %30 : vector<1x12x4xbf16> to vector<1x12x4xbf16>
    %32 = vector.broadcast %31 : vector<1x12x4xbf16> to vector<8x12x4xbf16>
    %cst = arith.constant dense<0.000000e+00> : vector<8x12x8xf32>
    %33 = tpu.matmul %32, %18, %cst {dimension_numbers = #tpu.dot_dimension_numbers<[2], [1], [1], [2], [0, 0, 0, 1, 1, 2], [0], [0]>} : vector<8x12x4xbf16>, vector<8x4x8xbf16>, vector<8x12x8xf32> -> vector<8x12x8xf32>
    %34 = vector.extract_strided_slice %27 {offsets = [1, 0, 0], sizes = [1, 12, 4], strides = [1, 1, 1]} : vector<9x12x4xbf16> to vector<1x12x4xbf16>
    %35 = vector.shape_cast %34 : vector<1x12x4xbf16> to vector<12x4xbf16>
    %36 = vector.shape_cast %35 : vector<12x4xbf16> to vector<1x12x4xbf16>
    %37 = vector.shape_cast %36 : vector<1x12x4xbf16> to vector<1x12x4xbf16>
    %38 = vector.broadcast %37 : vector<1x12x4xbf16> to vector<8x12x4xbf16>
    %cst_39 = arith.constant dense<0.000000e+00> : vector<8x12x8xf32>
    %39 = tpu.matmul %38, %19, %cst_39 {dimension_numbers = #tpu.dot_dimension_numbers<[2], [1], [1], [2], [0, 0, 0, 1, 1, 2], [0], [0]>} : vector<8x12x4xbf16>, vector<8x4x8xbf16>, vector<8x12x8xf32> -> vector<8x12x8xf32>
    %40 = arith.addf %33, %39 : vector<8x12x8xf32>
    %41 = vector.extract_strided_slice %27 {offsets = [2, 0, 0], sizes = [1, 12, 4], strides = [1, 1, 1]} : vector<9x12x4xbf16> to vector<1x12x4xbf16>
    %42 = vector.shape_cast %41 : vector<1x12x4xbf16> to vector<12x4xbf16>
    %43 = vector.shape_cast %42 : vector<12x4xbf16> to vector<1x12x4xbf16>
    %44 = vector.shape_cast %43 : vector<1x12x4xbf16> to vector<1x12x4xbf16>
    %45 = vector.broadcast %44 : vector<1x12x4xbf16> to vector<8x12x4xbf16>
    %cst_40 = arith.constant dense<0.000000e+00> : vector<8x12x8xf32>
    %46 = tpu.matmul %45, %20, %cst_40 {dimension_numbers = #tpu.dot_dimension_numbers<[2], [1], [1], [2], [0, 0, 0, 1, 1, 2], [0], [0]>} : vector<8x12x4xbf16>, vector<8x4x8xbf16>, vector<8x12x8xf32> -> vector<8x12x8xf32>
    %47 = arith.addf %40, %46 : vector<8x12x8xf32>
    %48 = vector.extract_strided_slice %27 {offsets = [3, 0, 0], sizes = [1, 12, 4], strides = [1, 1, 1]} : vector<9x12x4xbf16> to vector<1x12x4xbf16>
    %49 = vector.shape_cast %48 : vector<1x12x4xbf16> to vector<12x4xbf16>
    %50 = vector.shape_cast %49 : vector<12x4xbf16> to vector<1x12x4xbf16>
    %51 = vector.shape_cast %50 : vector<1x12x4xbf16> to vector<1x12x4xbf16>
    %52 = vector.broadcast %51 : vector<1x12x4xbf16> to vector<8x12x4xbf16>
    %cst_41 = arith.constant dense<0.000000e+00> : vector<8x12x8xf32>
    %53 = tpu.matmul %52, %21, %cst_41 {dimension_numbers = #tpu.dot_dimension_numbers<[2], [1], [1], [2], [0, 0, 0, 1, 1, 2], [0], [0]>} : vector<8x12x4xbf16>, vector<8x4x8xbf16>, vector<8x12x8xf32> -> vector<8x12x8xf32>
    %54 = arith.addf %47, %53 : vector<8x12x8xf32>
    %55 = vector.extract_strided_slice %27 {offsets = [4, 0, 0], sizes = [1, 12, 4], strides = [1, 1, 1]} : vector<9x12x4xbf16> to vector<1x12x4xbf16>
    %56 = vector.shape_cast %55 : vector<1x12x4xbf16> to vector<12x4xbf16>
    %57 = vector.shape_cast %56 : vector<12x4xbf16> to vector<1x12x4xbf16>
    %58 = vector.shape_cast %57 : vector<1x12x4xbf16> to vector<1x12x4xbf16>
    %59 = vector.broadcast %58 : vector<1x12x4xbf16> to vector<8x12x4xbf16>
    %cst_42 = arith.constant dense<0.000000e+00> : vector<8x12x8xf32>
    %60 = tpu.matmul %59, %22, %cst_42 {dimension_numbers = #tpu.dot_dimension_numbers<[2], [1], [1], [2], [0, 0, 0, 1, 1, 2], [0], [0]>} : vector<8x12x4xbf16>, vector<8x4x8xbf16>, vector<8x12x8xf32> -> vector<8x12x8xf32>
    %61 = arith.addf %54, %60 : vector<8x12x8xf32>
    %62 = vector.extract_strided_slice %27 {offsets = [5, 0, 0], sizes = [1, 12, 4], strides = [1, 1, 1]} : vector<9x12x4xbf16> to vector<1x12x4xbf16>
    %63 = vector.shape_cast %62 : vector<1x12x4xbf16> to vector<12x4xbf16>
    %64 = vector.shape_cast %63 : vector<12x4xbf16> to vector<1x12x4xbf16>
    %65 = vector.shape_cast %64 : vector<1x12x4xbf16> to vector<1x12x4xbf16>
    %66 = vector.broadcast %65 : vector<1x12x4xbf16> to vector<8x12x4xbf16>
    %cst_43 = arith.constant dense<0.000000e+00> : vector<8x12x8xf32>
    %67 = tpu.matmul %66, %23, %cst_43 {dimension_numbers = #tpu.dot_dimension_numbers<[2], [1], [1], [2], [0, 0, 0, 1, 1, 2], [0], [0]>} : vector<8x12x4xbf16>, vector<8x4x8xbf16>, vector<8x12x8xf32> -> vector<8x12x8xf32>
    %68 = arith.addf %61, %67 : vector<8x12x8xf32>
    %69 = vector.extract_strided_slice %27 {offsets = [6, 0, 0], sizes = [1, 12, 4], strides = [1, 1, 1]} : vector<9x12x4xbf16> to vector<1x12x4xbf16>
    %70 = vector.shape_cast %69 : vector<1x12x4xbf16> to vector<12x4xbf16>
    %71 = vector.shape_cast %70 : vector<12x4xbf16> to vector<1x12x4xbf16>
    %72 = vector.shape_cast %71 : vector<1x12x4xbf16> to vector<1x12x4xbf16>
    %73 = vector.broadcast %72 : vector<1x12x4xbf16> to vector<8x12x4xbf16>
    %cst_44 = arith.constant dense<0.000000e+00> : vector<8x12x8xf32>
    %74 = tpu.matmul %73, %24, %cst_44 {dimension_numbers = #tpu.dot_dimension_numbers<[2], [1], [1], [2], [0, 0, 0, 1, 1, 2], [0], [0]>} : vector<8x12x4xbf16>, vector<8x4x8xbf16>, vector<8x12x8xf32> -> vector<8x12x8xf32>
    %75 = arith.addf %68, %74 : vector<8x12x8xf32>
    %76 = vector.extract_strided_slice %27 {offsets = [7, 0, 0], sizes = [1, 12, 4], strides = [1, 1, 1]} : vector<9x12x4xbf16> to vector<1x12x4xbf16>
    %77 = vector.shape_cast %76 : vector<1x12x4xbf16> to vector<12x4xbf16>
    %78 = vector.shape_cast %77 : vector<12x4xbf16> to vector<1x12x4xbf16>
    %79 = vector.shape_cast %78 : vector<1x12x4xbf16> to vector<1x12x4xbf16>
    %80 = vector.broadcast %79 : vector<1x12x4xbf16> to vector<8x12x4xbf16>
    %cst_45 = arith.constant dense<0.000000e+00> : vector<8x12x8xf32>
    %81 = tpu.matmul %80, %25, %cst_45 {dimension_numbers = #tpu.dot_dimension_numbers<[2], [1], [1], [2], [0, 0, 0, 1, 1, 2], [0], [0]>} : vector<8x12x4xbf16>, vector<8x4x8xbf16>, vector<8x12x8xf32> -> vector<8x12x8xf32>
    %82 = arith.addf %75, %81 : vector<8x12x8xf32>
    %83 = vector.extract_strided_slice %27 {offsets = [8, 0, 0], sizes = [1, 12, 4], strides = [1, 1, 1]} : vector<9x12x4xbf16> to vector<1x12x4xbf16>
    %84 = vector.shape_cast %83 : vector<1x12x4xbf16> to vector<12x4xbf16>
    %85 = vector.shape_cast %84 : vector<12x4xbf16> to vector<1x12x4xbf16>
    %86 = vector.shape_cast %85 : vector<1x12x4xbf16> to vector<1x12x4xbf16>
    %87 = vector.broadcast %86 : vector<1x12x4xbf16> to vector<8x12x4xbf16>
    %cst_46 = arith.constant dense<0.000000e+00> : vector<8x12x8xf32>
    %88 = tpu.matmul %87, %26, %cst_46 {dimension_numbers = #tpu.dot_dimension_numbers<[2], [1], [1], [2], [0, 0, 0, 1, 1, 2], [0], [0]>} : vector<8x12x4xbf16>, vector<8x4x8xbf16>, vector<8x12x8xf32> -> vector<8x12x8xf32>
    %89 = arith.addf %82, %88 : vector<8x12x8xf32>
    %90 = arith.maximumf %22, %23 : vector<8x4x8xbf16>
    %91 = arith.maximumf %25, %26 : vector<8x4x8xbf16>
    %92 = arith.maximumf %90, %91 : vector<8x4x8xbf16>
    %93 = arith.extf %92 : vector<8x4x8xbf16> to vector<8x4x8xf32>
    %c0_47 = arith.constant 0 : index
    %c0_48 = arith.constant 0 : index
    %94 = vector.load %arg5[%c0_47, %c0_48] : memref<16x2xf32, #tpu.memory_space<vmem>>, vector<12x1xf32>
    %c0_49 = arith.constant 0 : index
    %c1_50 = arith.constant 1 : index
    %95 = vector.load %arg5[%c0_49, %c1_50] : memref<16x2xf32, #tpu.memory_space<vmem>>, vector<12x1xf32>
    %c12 = arith.constant 12 : index
    %c0_51 = arith.constant 0 : index
    %96 = vector.load %arg5[%c12, %c0_51] : memref<16x2xf32, #tpu.memory_space<vmem>>, vector<4x1xf32>
    %c12_52 = arith.constant 12 : index
    %c1_53 = arith.constant 1 : index
    %97 = vector.load %arg5[%c12_52, %c1_53] : memref<16x2xf32, #tpu.memory_space<vmem>>, vector<4x1xf32>
    %98 = vector.shape_cast %94 : vector<12x1xf32> to vector<1x12x1xf32>
    %99 = vector.broadcast %98 : vector<1x12x1xf32> to vector<8x12x8xf32>
    %100 = arith.mulf %89, %99 : vector<8x12x8xf32>
    %101 = vector.shape_cast %95 : vector<12x1xf32> to vector<1x12x1xf32>
    %102 = vector.broadcast %101 : vector<1x12x1xf32> to vector<8x12x8xf32>
    %103 = arith.addf %100, %102 : vector<8x12x8xf32>
    %cst_54 = arith.constant 0.000000e+00 : f32
    %104 = vector.broadcast %cst_54 : f32 to vector<8x12x8xf32>
    %105 = arith.maximumf %103, %104 : vector<8x12x8xf32>
    %c0_55 = arith.constant 0 : index
    %c0_56 = arith.constant 0 : index
    %c0_57 = arith.constant 0 : index
    %c0_58 = arith.constant 0 : index
    %106 = vector.load %arg6[%c0_55, %c0_56, %c0_57, %c0_58] : memref<1x8x16x8xf32, #tpu.memory_space<vmem>>, vector<1x8x12x8xf32>
    %107 = vector.shape_cast %106 : vector<1x8x12x8xf32> to vector<8x12x8xf32>
    %108 = vector.shape_cast %105 : vector<8x12x8xf32> to vector<1x8x12x8xf32>
    tpu.vector_store %arg6[%c0_55, %c0_56, %c0_57, %c0_58], %108 {strides = array<i32>} : memref<1x8x16x8xf32, #tpu.memory_space<vmem>>, vector<1x8x12x8xf32>,
    %109 = vector.shape_cast %96 : vector<4x1xf32> to vector<1x4x1xf32>
    %110 = vector.broadcast %109 : vector<1x4x1xf32> to vector<8x4x8xf32>
    %111 = arith.mulf %93, %110 : vector<8x4x8xf32>
    %112 = vector.shape_cast %97 : vector<4x1xf32> to vector<1x4x1xf32>
    %113 = vector.broadcast %112 : vector<1x4x1xf32> to vector<8x4x8xf32>
    %114 = arith.addf %111, %113 : vector<8x4x8xf32>
    %cst_59 = arith.constant 0.000000e+00 : f32
    %115 = vector.broadcast %cst_59 : f32 to vector<8x4x8xf32>
    %116 = arith.maximumf %114, %115 : vector<8x4x8xf32>
    %c0_60 = arith.constant 0 : index
    %c0_61 = arith.constant 0 : index
    %c12_62 = arith.constant 12 : index
    %c0_63 = arith.constant 0 : index
    %117 = vector.load %arg6[%c0_60, %c0_61, %c12_62, %c0_63] : memref<1x8x16x8xf32, #tpu.memory_space<vmem>>, vector<1x8x4x8xf32>
    %118 = vector.shape_cast %117 : vector<1x8x4x8xf32> to vector<8x4x8xf32>
    %119 = vector.shape_cast %116 : vector<8x4x8xf32> to vector<1x8x4x8xf32>
    tpu.vector_store %arg6[%c0_60, %c0_61, %c12_62, %c0_63], %119 {strides = array<i32>} : memref<1x8x16x8xf32, #tpu.memory_space<vmem>>, vector<1x8x4x8xf32>,
    return
  }
  func.func @transform_0(%arg0: i32, %arg1: i32) -> (i32, i32, i32, i32, i32) {
    %c0_i32 = arith.constant 0 : i32
    %c0_i32_0 = arith.constant 0 : i32
    %c0_i32_1 = arith.constant 0 : i32
    %c0_i32_2 = arith.constant 0 : i32
    return %arg0, %c0_i32, %arg1, %c0_i32_0, %c0_i32_1 : i32, i32, i32, i32, i32
  }
  func.func @transform_1(%arg0: i32, %arg1: i32) -> (i32, i32, i32, i32, i32) {
    %c1_i32 = arith.constant 1 : i32
    %0 = arith.addi %arg1, %c1_i32 : i32
    %c8_i32 = arith.constant 8 : i32
    %1 = arith.muli %0, %c8_i32 : i32
    %c0_i32 = arith.constant 0 : i32
    %c0_i32_0 = arith.constant 0 : i32
    %c0_i32_1 = arith.constant 0 : i32
    %c0_i32_2 = arith.constant 0 : i32
    return %arg0, %c0_i32, %1, %c0_i32_0, %c0_i32_1 : i32, i32, i32, i32, i32
  }
  func.func @transform_2(%arg0: i32, %arg1: i32) -> (i32, i32, i32) {
    %c0_i32 = arith.constant 0 : i32
    %c0_i32_0 = arith.constant 0 : i32
    %c0_i32_1 = arith.constant 0 : i32
    %c0_i32_2 = arith.constant 0 : i32
    return %c0_i32, %c0_i32_0, %c0_i32_1 : i32, i32, i32
  }
  func.func @transform_3(%arg0: i32, %arg1: i32) -> (i32, i32) {
    %c0_i32 = arith.constant 0 : i32
    %c0_i32_0 = arith.constant 0 : i32
    %c0_i32_1 = arith.constant 0 : i32
    return %c0_i32, %c0_i32_0 : i32, i32
  }
  func.func @transform_4(%arg0: i32, %arg1: i32) -> (i32, i32, i32, i32) {
    %c0_i32 = arith.constant 0 : i32
    %c0_i32_0 = arith.constant 0 : i32
    %c0_i32_1 = arith.constant 0 : i32
    return %arg0, %arg1, %c0_i32, %c0_i32_0 : i32, i32, i32, i32
  }
}

</mosaic_0001>

<llo_original>
// kernel: downsampler_block.2
$region0: #{downsampler_block.2}
  #allocation0 [shape = 'u32[]', space=smem, size = 0x4, offset = 0x4, fixed_abs, tag = 'smem constant byte address 0x4 - core index']
  #allocation1 [shape = 'u32[144,128]{1,0:T(1,128)}', space=vmem, size = 0x12000, scoped, tag = 'internal scratch']
  %s0 = inlined_call_operand.vmem [shape: bf16[2,4,9,4,9], index: 0, kind: input, shape index: {}, may-alias: {0,1}]
  %s1 = inlined_call_operand.vmem [shape: bf16[2,4,9,4,9], index: 1, kind: input, shape index: {}, may-alias: {0,1}]
  %s2 = inlined_call_operand.vmem [shape: bf16[9,12,4], index: 2, kind: input, shape index: {}]
  %s3 = inlined_call_operand.vmem [shape: f32[2,1,16,2], index: 3, kind: output, shape index: {}]
  %s4 = sld [smem:[#allocation0]]
  $region141: #{downsampler_block.2} parent=0
    _
  %s6 = ssub.s32 1, %s4
  %s7 = scalar_select 0, %s6, %s4
  $region1: #{downsampler_block.2} parent=0
    #allocation2 [shape = 'u8[65536]{0}', space=vmem, size = 0x10000, scoped, tag = 'input window, operand 0']
    #allocation3 [shape = 'u8[4096]{0}', space=vmem, size = 0x1000, scoped, tag = 'input window, operand 1']
    loop: start=0, step=1, limit=4
    $region2: #{downsampler_block.2} parent=1 // loop_pre_header
      _
    $region3: #{downsampler_block.2} parent=1 // loop_header
      %s9 = sphi 0, %s13
      %p10 = scmp.ge.s32.totalorder %s9, 4
      %s16 = sphi 0, %s28
      %s17 = sphi 0, %s24
      %s18 = sphi 0, %s16
      %s19 = sphi 0, %s17
      %s20 = sphi 0, %s18
      %s21 = sphi 0, %s19
      %s33 = sphi 0, %s35
      %s36 = sphi 0, %s33
      %s37 = sphi 0, %s36
      %s53 = sphi 0, %s37
      %s65 = sphi 0, %s67
      %s68 = sphi 0, %s65
      %s69 = sphi 0, %s68
      %s85 = sphi 0, %s69
      %s89 = sphi 0, %s89
      %s91 = sphi 0, %s89
      %s92 = sphi 0, %s91
      %s106 = sphi 0, %s92
      %s114 = sphi 0, %s116
      %s117 = sphi 0, %s114
      %s118 = sphi 0, %s117
      %s134 = sphi 0, %s118
    $region4: #{downsampler_block.2} parent=1 // loop_header_branch
      %12 = sbr.rel (%p10) target = $region8
    $region5: #{downsampler_block.2} parent=1 // loop_body
      %s14 = ssub.s32 %s9, 1
      %s15 = ssub.s32 %s9, 2
      %s22 = sadd.s32 1, %s17
      %p23 = scmp.ge.s32.totalorder %s22, 1
      %s24 = scalar_select %p23, 0, %s22
      %s25 = sadd.s32 1, %s16
      %s26 = scalar_select %p23, %s25, %s16
      %p27 = scmp.ge.s32.totalorder %s26, 2
      %s28 = scalar_select %p27, 0, %s26
      %s29 = ssub.s32 %s16, %s28
      %s30 = ssub.s32 %s17, %s24
      %s31 = sor.u32 %s29, %s30
      %p32 = scmp.eq.s32.totalorder %s31, 0
      %s34 = sadd.s32 %s33, 1
      %s35 = scalar_select %p32, %s33, %s34
      %p38 = pneg %p32
      %p39 = scmp.eq.s32.totalorder %s9, 1
      %p40 = por %p38, %p39
      %p41 = scmp.ne.s32.totalorder %s33, %s36
      %p42 = scmp.eq.s32.totalorder %s9, 0
      %p43 = por %p41, %p42
      %p44 = scmp.ne.s32.totalorder %s33, %s36
      %p45 = scmp.eq.s32.totalorder %s14, 1
      %p46 = por %p44, %p45
      %p47 = scmp.ne.s32.totalorder %s36, %s37
      %p48 = scmp.eq.s32.totalorder %s14, 0
      %p49 = por %p47, %p48
      %p50 = scmp.ne.s32.totalorder %s36, %s37
      %p51 = scmp.eq.s32.totalorder %s15, 1
      %p52 = por %p50, %p51
      %p54 = scmp.ne.s32.totalorder %s37, %s53
      %p55 = scmp.eq.s32.totalorder %s15, 0
      %p56 = por %p54, %p55
      %s57 = sadd.s32 %s17, 1
      %s58 = smul.u32 %s57, 8
      %s59 = sadd.s32 %s24, 1
      %s60 = smul.u32 %s59, 8
      %s61 = ssub.s32 %s16, %s28
      %s62 = ssub.s32 %s58, %s60
      %s63 = sor.u32 %s61, %s62
      %p64 = scmp.eq.s32.totalorder %s63, 0
      %s66 = sadd.s32 %s65, 1
      %s67 = scalar_select %p64, %s65, %s66
      %p70 = pneg %p64
      %p71 = scmp.eq.s32.totalorder %s9, 1
      %p72 = por %p70, %p71
      %p73 = scmp.ne.s32.totalorder %s65, %s68
      %p74 = scmp.eq.s32.totalorder %s9, 0
      %p75 = por %p73, %p74
      %p76 = scmp.ne.s32.totalorder %s65, %s68
      %p77 = scmp.eq.s32.totalorder %s14, 1
      %p78 = por %p76, %p77
      %p79 = scmp.ne.s32.totalorder %s68, %s69
      %p80 = scmp.eq.s32.totalorder %s14, 0
      %p81 = por %p79, %p80
      %p82 = scmp.ne.s32.totalorder %s68, %s69
      %p83 = scmp.eq.s32.totalorder %s15, 1
      %p84 = por %p82, %p83
      %p86 = scmp.ne.s32.totalorder %s69, %s85
      %p87 = scmp.eq.s32.totalorder %s15, 0
      %p88 = por %p86, %p87
      %s90 = sadd.s32 %s89, 1
      %p93 = scmp.eq.s32.totalorder %s9, 1
      %p94 = scmp.ne.s32.totalorder %s89, %s91
      %p95 = scmp.eq.s32.totalorder %s9, 0
      %p96 = por %p94, %p95
      %p97 = scmp.ne.s32.totalorder %s89, %s91
      %p98 = scmp.eq.s32.totalorder %s14, 1
      %p99 = por %p97, %p98
      %p100 = scmp.ne.s32.totalorder %s91, %s92
      %p101 = scmp.eq.s32.totalorder %s14, 0
      %p102 = por %p100, %p101
      %p103 = scmp.ne.s32.totalorder %s91, %s92
      %p104 = scmp.eq.s32.totalorder %s15, 1
      %p105 = por %p103, %p104
      %p107 = scmp.ne.s32.totalorder %s92, %s106
      %p108 = scmp.eq.s32.totalorder %s15, 0
      %p109 = por %p107, %p108
      %s110 = ssub.s32 %s16, %s28
      %s111 = ssub.s32 %s17, %s24
      %s112 = sor.u32 %s110, %s111
      %p113 = scmp.eq.s32.totalorder %s112, 0
      %s115 = sadd.s32 %s114, 1
      %s116 = scalar_select %p113, %s114, %s115
      %p119 = pneg %p113
      %p120 = scmp.eq.s32.totalorder %s9, 1
      %p121 = por %p119, %p120
      %p122 = scmp.ne.s32.totalorder %s114, %s117
      %p123 = scmp.eq.s32.totalorder %s9, 0
      %p124 = por %p122, %p123
      %p125 = scmp.ne.s32.totalorder %s114, %s117
      %p126 = scmp.eq.s32.totalorder %s14, 1
      %p127 = por %p125, %p126
      %p128 = scmp.ne.s32.totalorder %s117, %s118
      %p129 = scmp.eq.s32.totalorder %s14, 0
      %p130 = por %p128, %p129
      %p131 = scmp.ne.s32.totalorder %s117, %s118
      %p132 = scmp.eq.s32.totalorder %s15, 1
      %p133 = por %p131, %p132
      %p135 = scmp.ne.s32.totalorder %s118, %s134
      %p136 = scmp.eq.s32.totalorder %s15, 0
      %p137 = por %p135, %p136
      %p138 = scmp.le.s32.totalorder 1, %s9
      %p139 = scmp.lt.s32.totalorder %s9, 3
      %p140 = pnand %p138, %p139
      %p141 = pneg %p140
      // Predicated region
      $region9: #{downsampler_block.2} parent=5 // pred_check
        _
      $region10: #{downsampler_block.2} parent=5 // pred_check_branch
        %143 = sbr.rel (%p140) target = $region12
      $region11: #{downsampler_block.2} parent=5 // pred_region
        %s144 = ssub.s32 %s9, 1
        // Predicated region
        $region13: #{downsampler_block.2} parent=11 // pred_check
          %p145 = pneg %p102
        $region14: #{downsampler_block.2} parent=11 // pred_check_branch
          %147 = sbr.rel (%p145) target = $region16
        $region15: #{downsampler_block.2} parent=11 // pred_region
          _
        $region16: #{downsampler_block.2} parent=11 // pred_fallthru
          _
      $region12: #{downsampler_block.2} parent=5 // pred_fallthru
        _
      %p148 = scmp.lt.s32.totalorder %s9, 2
      // Predicated region
      $region17: #{downsampler_block.2} parent=5 // pred_check
        %p149 = pneg %p148
      $region18: #{downsampler_block.2} parent=5 // pred_check_branch
        %151 = sbr.rel (%p149) target = $region20
      $region19: #{downsampler_block.2} parent=5 // pred_region
        // Predicated region
        $region21: #{downsampler_block.2} parent=19 // pred_check
          %p152 = pneg %p43
        $region22: #{downsampler_block.2} parent=19 // pred_check_branch
          %154 = sbr.rel (%p152) target = $region24
        $region23: #{downsampler_block.2} parent=19 // pred_region
          %s155 = sand.u32 %s33, 1
          %s156 = sand.u32 %s33, 1
          %s157 = smul.addr %s156, 64
          %s158 = scalar_lea.vmem [#allocation2], %s157
          %s159 = smul.u32 8, %s17
          %s160 = ssub.s32 9, %s159
          %p161 = scmp.lt.s32.totalorder %s160, 8
          %s162 = scalar_select %p161, %s160, 8
          %s163 = smul.u32 128, %s162
          %p164 = scmp.ne.s32.totalorder 0, %s163
          %s165 = smul.addr %s16, 36
          %s166 = sadd.s32 %s159, %s165
          %s167 = smul.addr %s166, 2
          %s168 = scalar_lea.vmem %s0, %s167
          // Predicated region
          $region25: #{downsampler_block.2} parent=23 // pred_check
            %p169 = pneg %p164
          $region26: #{downsampler_block.2} parent=23 // pred_check_branch
            %171 = sbr.rel (%p169) target = $region28
          $region27: #{downsampler_block.2} parent=23 // pred_region
            // Predicated region
            $region29: #{downsampler_block.2} parent=27 // pred_check
              _
            $region30: #{downsampler_block.2} parent=27 // pred_check_branch
              %173 = sbr.rel target = $region32
            $region31: #{downsampler_block.2} parent=27 // pred_region
              // Predicated region
              $region51: #{downsampler_block.2} parent=31 // pred_check
                _
              $region52: #{downsampler_block.2} parent=31 // pred_check_branch
                %290 = sbr.rel (0) target = $region54
              $region53: #{downsampler_block.2} parent=31 // pred_region
                %s291 = sshrl.u32 %s162, 3
                // While loop
                $region55: #{downsampler_block.2} parent=53 // loop_pre_header
                  _
                $region56: #{downsampler_block.2} parent=53 // loop_header
                  %s293 = sphi 0, %s295
                  %p294 = scmp.ge.s32.totalorder %s293, %s291
                  %s298 = sphi 0, %s303
                  %s299 = sphi %s168, %s306
                  %s300 = sphi %s158, %s307
                $region57: #{downsampler_block.2} parent=53 // loop_header_branch
                  %297 = sbr.rel (%p294) target = $region61
                $region58: #{downsampler_block.2} parent=53 // loop_body
                  %s301 = sadd.s32 1, %s298
                  %p302 = scmp.ge.s32.totalorder %s301, %s291
                  %s303 = scalar_select %p302, 0, %s301
                  %s304 = smul.u32 %s303, 16
                  %s305 = smul.u32 %s303, 16
                  %s306 = scalar_lea.vmem %s168, %s304
                  %s307 = scalar_lea.vmem %s158, %s305 [#allocation2]
                $region59: #{downsampler_block.2} parent=53 // loop_footer
                  %s295 = sadd.s32 %s293, 1
                $region60: #{downsampler_block.2} parent=53 // loop_footer_branch
                  %292 = sbr.rel target = $region56
                $region61: #{downsampler_block.2} parent=53 // loop_exit
                  _
                %s308 = sshrl.u32 %s162, 3
                %s309 = sand.u32 %s162, 7
                %s310 = smul.u32 %s308, 8
                %s311 = smul.u32 2, %s310
                %s312 = scalar_lea.vmem %s168, %s311
                %s313 = smul.u32 2, %s310
                %s314 = scalar_lea.vmem %s158, %s313 [#allocation2]
                // While loop
                $region62: #{downsampler_block.2} parent=53 // loop_pre_header
                  _
                $region63: #{downsampler_block.2} parent=53 // loop_header
                  %s316 = sphi 0, %s318
                  %p317 = scmp.ge.s32.totalorder %s316, %s309
                  %s321 = sphi 0, %s326
                  %s322 = sphi %s312, %s329
                  %s323 = sphi %s314, %s330
                $region64: #{downsampler_block.2} parent=53 // loop_header_branch
                  %320 = sbr.rel (%p317) target = $region68
                $region65: #{downsampler_block.2} parent=53 // loop_body
                  %s324 = sadd.s32 1, %s321
                  %p325 = scmp.ge.s32.totalorder %s324, %s309
                  %s326 = scalar_select %p325, 0, %s324
                  %s327 = smul.u32 %s326, 2
                  %s328 = smul.u32 %s326, 2
                  %s329 = scalar_lea.vmem %s312, %s327
                  %s330 = scalar_lea.vmem %s314, %s328 [#allocation2]
                $region66: #{downsampler_block.2} parent=53 // loop_footer
                  %s318 = sadd.s32 %s316, 1
                $region67: #{downsampler_block.2} parent=53 // loop_footer_branch
                  %315 = sbr.rel target = $region63
                $region68: #{downsampler_block.2} parent=53 // loop_exit
                  _
                %s332 = sshrl.u32 %s162, 3
                // While loop
                $region69: #{downsampler_block.2} parent=53 // loop_pre_header
                  _
                $region70: #{downsampler_block.2} parent=53 // loop_header
                  %s334 = sphi 0, %s336
                  %p335 = scmp.ge.s32.totalorder %s334, %s332
                  %s339 = sphi 0, %s408
                  %s340 = sphi %s168, %s411
                  %s341 = sphi %s158, %s412
                $region71: #{downsampler_block.2} parent=53 // loop_header_branch
                  %338 = sbr.rel (%p335) target = $region75
                $region72: #{downsampler_block.2} parent=53 // loop_body
                  %v342 = vld [vmem:[%s340] sm:$0x3]
                  %343 = vst [vmem:[%s341] sm:$0x3] %v342
                  %v344 = vld [vmem:[%s340 + $0x2] sm:$0x3]
                  %345 = vst [vmem:[%s341 + $0x2] sm:$0x3] %v344
                  %v346 = vld [vmem:[%s340 + $0x4] sm:$0x3]
                  %347 = vst [vmem:[%s341 + $0x4] sm:$0x3] %v346
                  %v348 = vld [vmem:[%s340 + $0x6] sm:$0x3]
                  %349 = vst [vmem:[%s341 + $0x6] sm:$0x3] %v348
                  %v350 = vld [vmem:[%s340 + $0x8] sm:$0x3]
                  %351 = vst [vmem:[%s341 + $0x8] sm:$0x3] %v350
                  %v352 = vld [vmem:[%s340 + $0xa] sm:$0x3]
                  %353 = vst [vmem:[%s341 + $0xa] sm:$0x3] %v352
                  %v354 = vld [vmem:[%s340 + $0xc] sm:$0x3]
                  %355 = vst [vmem:[%s341 + $0xc] sm:$0x3] %v354
                  %v356 = vld [vmem:[%s340 + $0xe] sm:$0x3]
                  %357 = vst [vmem:[%s341 + $0xe] sm:$0x3] %v356
                  %v358 = vld [vmem:[%s340 + $0x12] sm:$0x3]
                  %359 = vst [vmem:[%s341 + $0x10] sm:$0x3] %v358
                  %v360 = vld [vmem:[%s340 + $0x14] sm:$0x3]
                  %361 = vst [vmem:[%s341 + $0x12] sm:$0x3] %v360
                  %v362 = vld [vmem:[%s340 + $0x16] sm:$0x3]
                  %363 = vst [vmem:[%s341 + $0x14] sm:$0x3] %v362
                  %v364 = vld [vmem:[%s340 + $0x18] sm:$0x3]
                  %365 = vst [vmem:[%s341 + $0x16] sm:$0x3] %v364
                  %v366 = vld [vmem:[%s340 + $0x1a] sm:$0x3]
                  %367 = vst [vmem:[%s341 + $0x18] sm:$0x3] %v366
                  %v368 = vld [vmem:[%s340 + $0x1c] sm:$0x3]
                  %369 = vst [vmem:[%s341 + $0x1a] sm:$0x3] %v368
                  %v370 = vld [vmem:[%s340 + $0x1e] sm:$0x3]
                  %371 = vst [vmem:[%s341 + $0x1c] sm:$0x3] %v370
                  %v372 = vld [vmem:[%s340 + $0x20] sm:$0x3]
                  %373 = vst [vmem:[%s341 + $0x1e] sm:$0x3] %v372
                  %v374 = vld [vmem:[%s340 + $0x24] sm:$0x3]
                  %375 = vst [vmem:[%s341 + $0x20] sm:$0x3] %v374
                  %v376 = vld [vmem:[%s340 + $0x26] sm:$0x3]
                  %377 = vst [vmem:[%s341 + $0x22] sm:$0x3] %v376
                  %v378 = vld [vmem:[%s340 + $0x28] sm:$0x3]
                  %379 = vst [vmem:[%s341 + $0x24] sm:$0x3] %v378
                  %v380 = vld [vmem:[%s340 + $0x2a] sm:$0x3]
                  %381 = vst [vmem:[%s341 + $0x26] sm:$0x3] %v380
                  %v382 = vld [vmem:[%s340 + $0x2c] sm:$0x3]
                  %383 = vst [vmem:[%s341 + $0x28] sm:$0x3] %v382
                  %v384 = vld [vmem:[%s340 + $0x2e] sm:$0x3]
                  %385 = vst [vmem:[%s341 + $0x2a] sm:$0x3] %v384
                  %v386 = vld [vmem:[%s340 + $0x30] sm:$0x3]
                  %387 = vst [vmem:[%s341 + $0x2c] sm:$0x3] %v386
                  %v388 = vld [vmem:[%s340 + $0x32] sm:$0x3]
                  %389 = vst [vmem:[%s341 + $0x2e] sm:$0x3] %v388
                  %v390 = vld [vmem:[%s340 + $0x36] sm:$0x3]
                  %391 = vst [vmem:[%s341 + $0x30] sm:$0x3] %v390
                  %v392 = vld [vmem:[%s340 + $0x38] sm:$0x3]
                  %393 = vst [vmem:[%s341 + $0x32] sm:$0x3] %v392
                  %v394 = vld [vmem:[%s340 + $0x3a] sm:$0x3]
                  %395 = vst [vmem:[%s341 + $0x34] sm:$0x3] %v394
                  %v396 = vld [vmem:[%s340 + $0x3c] sm:$0x3]
                  %397 = vst [vmem:[%s341 + $0x36] sm:$0x3] %v396
                  %v398 = vld [vmem:[%s340 + $0x3e] sm:$0x3]
                  %399 = vst [vmem:[%s341 + $0x38] sm:$0x3] %v398
                  %v400 = vld [vmem:[%s340 + $0x40] sm:$0x3]
                  %401 = vst [vmem:[%s341 + $0x3a] sm:$0x3] %v400
                  %v402 = vld [vmem:[%s340 + $0x42] sm:$0x3]
                  %403 = vst [vmem:[%s341 + $0x3c] sm:$0x3] %v402
                  %v404 = vld [vmem:[%s340 + $0x44] sm:$0x3]
                  %405 = vst [vmem:[%s341 + $0x3e] sm:$0x3] %v404
                  %s406 = sadd.s32 1, %s339
                  %p407 = scmp.ge.s32.totalorder %s406, %s332
                  %s408 = scalar_select %p407, 0, %s406
                  %s409 = smul.u32 %s408, 16
                  %s410 = smul.u32 %s408, 16
                  %s411 = scalar_lea.vmem %s168, %s409
                  %s412 = scalar_lea.vmem %s158, %s410 [#allocation2]
                $region73: #{downsampler_block.2} parent=53 // loop_footer
                  %s336 = sadd.s32 %s334, 1
                $region74: #{downsampler_block.2} parent=53 // loop_footer_branch
                  %333 = sbr.rel target = $region70
                $region75: #{downsampler_block.2} parent=53 // loop_exit
                  _
                %s413 = sshrl.u32 %s162, 3
                %s414 = sand.u32 %s162, 7
                %s415 = smul.u32 %s413, 8
                %s416 = smul.u32 2, %s415
                %s417 = scalar_lea.vmem %s168, %s416
                %s418 = smul.u32 2, %s415
                %s419 = scalar_lea.vmem %s158, %s418 [#allocation2]
                // While loop
                $region76: #{downsampler_block.2} parent=53 // loop_pre_header
                  _
                $region77: #{downsampler_block.2} parent=53 // loop_header
                  %s421 = sphi 0, %s423
                  %p422 = scmp.ge.s32.totalorder %s421, %s414
                  %s426 = sphi 0, %s439
                  %s427 = sphi %s417, %s442
                  %s428 = sphi %s419, %s443
                $region78: #{downsampler_block.2} parent=53 // loop_header_branch
                  %425 = sbr.rel (%p422) target = $region82
                $region79: #{downsampler_block.2} parent=53 // loop_body
                  %v429 = vld [vmem:[%s427] sm:$0x3]
                  %430 = vst [vmem:[%s428] sm:$0x3] %v429
                  %v431 = vld [vmem:[%s427 + $0x12] sm:$0x3]
                  %432 = vst [vmem:[%s428 + $0x10] sm:$0x3] %v431
                  %v433 = vld [vmem:[%s427 + $0x24] sm:$0x3]
                  %434 = vst [vmem:[%s428 + $0x20] sm:$0x3] %v433
                  %v435 = vld [vmem:[%s427 + $0x36] sm:$0x3]
                  %436 = vst [vmem:[%s428 + $0x30] sm:$0x3] %v435
                  %s437 = sadd.s32 1, %s426
                  %p438 = scmp.ge.s32.totalorder %s437, %s414
                  %s439 = scalar_select %p438, 0, %s437
                  %s440 = smul.u32 %s439, 2
                  %s441 = smul.u32 %s439, 2
                  %s442 = scalar_lea.vmem %s417, %s440
                  %s443 = scalar_lea.vmem %s419, %s441 [#allocation2]
                $region80: #{downsampler_block.2} parent=53 // loop_footer
                  %s423 = sadd.s32 %s421, 1
                $region81: #{downsampler_block.2} parent=53 // loop_footer_branch
                  %420 = sbr.rel target = $region77
                $region82: #{downsampler_block.2} parent=53 // loop_exit
                  _
              $region54: #{downsampler_block.2} parent=31 // pred_fallthru
                _
            $region32: #{downsampler_block.2} parent=27 // pred_fallthru
              _
            // Predicated region
            $region33: #{downsampler_block.2} parent=27 // pred_check
              _
            $region34: #{downsampler_block.2} parent=27 // pred_check_branch
              %175 = sbr.rel (0) target = $region36
            $region35: #{downsampler_block.2} parent=27 // pred_region
              %s177 = sshrl.u32 %s162, 3
              // While loop
              $region37: #{downsampler_block.2} parent=35 // loop_pre_header
                _
              $region38: #{downsampler_block.2} parent=35 // loop_header
                %s179 = sphi 0, %s181
                %p180 = scmp.ge.s32.totalorder %s179, %s177
                %s184 = sphi 0, %s253
                %s185 = sphi %s168, %s256
                %s186 = sphi %s158, %s257
              $region39: #{downsampler_block.2} parent=35 // loop_header_branch
                %183 = sbr.rel (%p180) target = $region43
              $region40: #{downsampler_block.2} parent=35 // loop_body
                %v187 = vld [vmem:[%s185] sm:$0x3]
                %188 = vst [vmem:[%s186] sm:$0x3] %v187
                %v189 = vld [vmem:[%s185 + $0x2] sm:$0x3]
                %190 = vst [vmem:[%s186 + $0x2] sm:$0x3] %v189
                %v191 = vld [vmem:[%s185 + $0x4] sm:$0x3]
                %192 = vst [vmem:[%s186 + $0x4] sm:$0x3] %v191
                %v193 = vld [vmem:[%s185 + $0x6] sm:$0x3]
                %194 = vst [vmem:[%s186 + $0x6] sm:$0x3] %v193
                %v195 = vld [vmem:[%s185 + $0x8] sm:$0x3]
                %196 = vst [vmem:[%s186 + $0x8] sm:$0x3] %v195
                %v197 = vld [vmem:[%s185 + $0xa] sm:$0x3]
                %198 = vst [vmem:[%s186 + $0xa] sm:$0x3] %v197
                %v199 = vld [vmem:[%s185 + $0xc] sm:$0x3]
                %200 = vst [vmem:[%s186 + $0xc] sm:$0x3] %v199
                %v201 = vld [vmem:[%s185 + $0xe] sm:$0x3]
                %202 = vst [vmem:[%s186 + $0xe] sm:$0x3] %v201
                %v203 = vld [vmem:[%s185 + $0x12] sm:$0x3]
                %204 = vst [vmem:[%s186 + $0x10] sm:$0x3] %v203
                %v205 = vld [vmem:[%s185 + $0x14] sm:$0x3]
                %206 = vst [vmem:[%s186 + $0x12] sm:$0x3] %v205
                %v207 = vld [vmem:[%s185 + $0x16] sm:$0x3]
                %208 = vst [vmem:[%s186 + $0x14] sm:$0x3] %v207
                %v209 = vld [vmem:[%s185 + $0x18] sm:$0x3]
                %210 = vst [vmem:[%s186 + $0x16] sm:$0x3] %v209
                %v211 = vld [vmem:[%s185 + $0x1a] sm:$0x3]
                %212 = vst [vmem:[%s186 + $0x18] sm:$0x3] %v211
                %v213 = vld [vmem:[%s185 + $0x1c] sm:$0x3]
                %214 = vst [vmem:[%s186 + $0x1a] sm:$0x3] %v213
                %v215 = vld [vmem:[%s185 + $0x1e] sm:$0x3]
                %216 = vst [vmem:[%s186 + $0x1c] sm:$0x3] %v215
                %v217 = vld [vmem:[%s185 + $0x20] sm:$0x3]
                %218 = vst [vmem:[%s186 + $0x1e] sm:$0x3] %v217
                %v219 = vld [vmem:[%s185 + $0x24] sm:$0x3]
                %220 = vst [vmem:[%s186 + $0x20] sm:$0x3] %v219
                %v221 = vld [vmem:[%s185 + $0x26] sm:$0x3]
                %222 = vst [vmem:[%s186 + $0x22] sm:$0x3] %v221
                %v223 = vld [vmem:[%s185 + $0x28] sm:$0x3]
                %224 = vst [vmem:[%s186 + $0x24] sm:$0x3] %v223
                %v225 = vld [vmem:[%s185 + $0x2a] sm:$0x3]
                %226 = vst [vmem:[%s186 + $0x26] sm:$0x3] %v225
                %v227 = vld [vmem:[%s185 + $0x2c] sm:$0x3]
                %228 = vst [vmem:[%s186 + $0x28] sm:$0x3] %v227
                %v229 = vld [vmem:[%s185 + $0x2e] sm:$0x3]
                %230 = vst [vmem:[%s186 + $0x2a] sm:$0x3] %v229
                %v231 = vld [vmem:[%s185 + $0x30] sm:$0x3]
                %232 = vst [vmem:[%s186 + $0x2c] sm:$0x3] %v231
                %v233 = vld [vmem:[%s185 + $0x32] sm:$0x3]
                %234 = vst [vmem:[%s186 + $0x2e] sm:$0x3] %v233
                %v235 = vld [vmem:[%s185 + $0x36] sm:$0x3]
                %236 = vst [vmem:[%s186 + $0x30] sm:$0x3] %v235
                %v237 = vld [vmem:[%s185 + $0x38] sm:$0x3]
                %238 = vst [vmem:[%s186 + $0x32] sm:$0x3] %v237
                %v239 = vld [vmem:[%s185 + $0x3a] sm:$0x3]
                %240 = vst [vmem:[%s186 + $0x34] sm:$0x3] %v239
                %v241 = vld [vmem:[%s185 + $0x3c] sm:$0x3]
                %242 = vst [vmem:[%s186 + $0x36] sm:$0x3] %v241
                %v243 = vld [vmem:[%s185 + $0x3e] sm:$0x3]
                %244 = vst [vmem:[%s186 + $0x38] sm:$0x3] %v243
                %v245 = vld [vmem:[%s185 + $0x40] sm:$0x3]
                %246 = vst [vmem:[%s186 + $0x3a] sm:$0x3] %v245
                %v247 = vld [vmem:[%s185 + $0x42] sm:$0x3]
                %248 = vst [vmem:[%s186 + $0x3c] sm:$0x3] %v247
                %v249 = vld [vmem:[%s185 + $0x44] sm:$0x3]
                %250 = vst [vmem:[%s186 + $0x3e] sm:$0x3] %v249
                %s251 = sadd.s32 1, %s184
                %p252 = scmp.ge.s32.totalorder %s251, %s177
                %s253 = scalar_select %p252, 0, %s251
                %s254 = smul.u32 %s253, 16
                %s255 = smul.u32 %s253, 16
                %s256 = scalar_lea.vmem %s168, %s254
                %s257 = scalar_lea.vmem %s158, %s255 [#allocation2]
              $region41: #{downsampler_block.2} parent=35 // loop_footer
                %s181 = sadd.s32 %s179, 1
              $region42: #{downsampler_block.2} parent=35 // loop_footer_branch
                %178 = sbr.rel target = $region38
              $region43: #{downsampler_block.2} parent=35 // loop_exit
                _
              %s258 = sshrl.u32 %s162, 3
              %s259 = sand.u32 %s162, 7
              %s260 = smul.u32 %s258, 8
              %s261 = smul.u32 2, %s260
              %s262 = scalar_lea.vmem %s168, %s261
              %s263 = smul.u32 2, %s260
              %s264 = scalar_lea.vmem %s158, %s263 [#allocation2]
              // While loop
              $region44: #{downsampler_block.2} parent=35 // loop_pre_header
                _
              $region45: #{downsampler_block.2} parent=35 // loop_header
                %s266 = sphi 0, %s268
                %p267 = scmp.ge.s32.totalorder %s266, %s259
                %s271 = sphi 0, %s284
                %s272 = sphi %s262, %s287
                %s273 = sphi %s264, %s288
              $region46: #{downsampler_block.2} parent=35 // loop_header_branch
                %270 = sbr.rel (%p267) target = $region50
              $region47: #{downsampler_block.2} parent=35 // loop_body
                %v274 = vld [vmem:[%s272] sm:$0x3]
                %275 = vst [vmem:[%s273] sm:$0x3] %v274
                %v276 = vld [vmem:[%s272 + $0x12] sm:$0x3]
                %277 = vst [vmem:[%s273 + $0x10] sm:$0x3] %v276
                %v278 = vld [vmem:[%s272 + $0x24] sm:$0x3]
                %279 = vst [vmem:[%s273 + $0x20] sm:$0x3] %v278
                %v280 = vld [vmem:[%s272 + $0x36] sm:$0x3]
                %281 = vst [vmem:[%s273 + $0x30] sm:$0x3] %v280
                %s282 = sadd.s32 1, %s271
                %p283 = scmp.ge.s32.totalorder %s282, %s259
                %s284 = scalar_select %p283, 0, %s282
                %s285 = smul.u32 %s284, 2
                %s286 = smul.u32 %s284, 2
                %s287 = scalar_lea.vmem %s262, %s285
                %s288 = scalar_lea.vmem %s264, %s286 [#allocation2]
              $region48: #{downsampler_block.2} parent=35 // loop_footer
                %s268 = sadd.s32 %s266, 1
              $region49: #{downsampler_block.2} parent=35 // loop_footer_branch
                %265 = sbr.rel target = $region45
              $region50: #{downsampler_block.2} parent=35 // loop_exit
                _
            $region36: #{downsampler_block.2} parent=27 // pred_fallthru
              _
          $region28: #{downsampler_block.2} parent=23 // pred_fallthru
            _
          %444 = vnop
        $region24: #{downsampler_block.2} parent=19 // pred_fallthru
          _
        // Predicated region
        $region83: #{downsampler_block.2} parent=19 // pred_check
          %p445 = pneg %p75
        $region84: #{downsampler_block.2} parent=19 // pred_check_branch
          %447 = sbr.rel (%p445) target = $region86
        $region85: #{downsampler_block.2} parent=19 // pred_region
          %s448 = sand.u32 %s65, 1
          %s449 = sand.u32 %s65, 1
          %s450 = smul.addr %s449, 4
          %s451 = scalar_lea.vmem [#allocation3], %s450
          %s452 = sadd.s32 %s17, 1
          %s453 = smul.u32 %s452, 8
          %s454 = smul.addr %s16, 36
          %s455 = sadd.s32 %s453, %s454
          %s456 = smul.addr %s455, 2
          %s457 = scalar_lea.vmem %s1, %s456
          // Predicated region
          $region87: #{downsampler_block.2} parent=85 // pred_check
            _
          $region88: #{downsampler_block.2} parent=85 // pred_check_branch
            %459 = sbr.rel (0) target = $region90
          $region89: #{downsampler_block.2} parent=85 // pred_region
            // Predicated region
            $region91: #{downsampler_block.2} parent=89 // pred_check
              _
            $region92: #{downsampler_block.2} parent=89 // pred_check_branch
              %461 = sbr.rel target = $region94
            $region93: #{downsampler_block.2} parent=89 // pred_region
              // Predicated region
              $region106: #{downsampler_block.2} parent=93 // pred_check
                _
              $region107: #{downsampler_block.2} parent=93 // pred_check_branch
                %478 = sbr.rel (0) target = $region109
              $region108: #{downsampler_block.2} parent=93 // pred_region
                loop: start=0, step=1, limit=1
                $region110: #{downsampler_block.2} parent=108 // loop_pre_header
                  _
                $region111: #{downsampler_block.2} parent=108 // loop_header
                  %s481 = sphi 0, %s485
                  %p482 = scmp.ge.s32.totalorder %s481, 1
                  %s486 = sphi %s457, %s457
                  %s487 = sphi %s451, %s451
                $region112: #{downsampler_block.2} parent=108 // loop_header_branch
                  %484 = sbr.rel (%p482) target = $region116
                $region113: #{downsampler_block.2} parent=108 // loop_body
                  %v488 = vld [vmem:[%s486] sm:$0x3]
                  %489 = vst [vmem:[%s487] sm:$0x3] %v488
                  %v490 = vld [vmem:[%s486 + $0x12] sm:$0x3]
                  %491 = vst [vmem:[%s487 + $0x2] sm:$0x3] %v490
                $region114: #{downsampler_block.2} parent=108 // loop_footer
                  %s485 = sadd.s32 1, %s481
                $region115: #{downsampler_block.2} parent=108 // loop_footer_branch
                  %480 = sbr.rel target = $region111
                $region116: #{downsampler_block.2} parent=108 // loop_exit
                  _
              $region109: #{downsampler_block.2} parent=93 // pred_fallthru
                _
            $region94: #{downsampler_block.2} parent=89 // pred_fallthru
              _
            // Predicated region
            $region95: #{downsampler_block.2} parent=89 // pred_check
              _
            $region96: #{downsampler_block.2} parent=89 // pred_check_branch
              %463 = sbr.rel (0) target = $region98
            $region97: #{downsampler_block.2} parent=89 // pred_region
              loop: start=0, step=1, limit=1
              $region99: #{downsampler_block.2} parent=97 // loop_pre_header
                _
              $region100: #{downsampler_block.2} parent=97 // loop_header
                %s466 = sphi 0, %s470
                %p467 = scmp.ge.s32.totalorder %s466, 1
                %s471 = sphi %s457, %s457
                %s472 = sphi %s451, %s451
              $region101: #{downsampler_block.2} parent=97 // loop_header_branch
                %469 = sbr.rel (%p467) target = $region105
              $region102: #{downsampler_block.2} parent=97 // loop_body
                %v473 = vld [vmem:[%s471] sm:$0x3]
                %474 = vst [vmem:[%s472] sm:$0x3] %v473
                %v475 = vld [vmem:[%s471 + $0x12] sm:$0x3]
                %476 = vst [vmem:[%s472 + $0x2] sm:$0x3] %v475
              $region103: #{downsampler_block.2} parent=97 // loop_footer
                %s470 = sadd.s32 1, %s466
              $region104: #{downsampler_block.2} parent=97 // loop_footer_branch
                %465 = sbr.rel target = $region100
              $region105: #{downsampler_block.2} parent=97 // loop_exit
                _
            $region98: #{downsampler_block.2} parent=89 // pred_fallthru
              _
          $region90: #{downsampler_block.2} parent=85 // pred_fallthru
            _
          %492 = vnop
        $region86: #{downsampler_block.2} parent=19 // pred_fallthru
          _
      $region20: #{downsampler_block.2} parent=5 // pred_fallthru
        _
      %p493 = scmp.le.s32.totalorder 1, %s9
      %p494 = scmp.lt.s32.totalorder %s9, 3
      %p495 = pnand %p493, %p494
      %p496 = pneg %p495
      // Predicated region
      $region117: #{downsampler_block.2} parent=5 // pred_check
        _
      $region118: #{downsampler_block.2} parent=5 // pred_check_branch
        %498 = sbr.rel (%p495) target = $region120
      $region119: #{downsampler_block.2} parent=5 // pred_region
        %s499 = ssub.s32 %s9, 1
        %s500 = sand.u32 %s36, 1
        %s501 = sand.u32 %s36, 1
        %s502 = smul.addr %s501, 64
        %s503 = scalar_lea.vmem [#allocation2], %s502
        // Predicated region
        $region121: #{downsampler_block.2} parent=119 // pred_check
          %p504 = pneg %p49
        $region122: #{downsampler_block.2} parent=119 // pred_check_branch
          %506 = sbr.rel (%p504) target = $region124
        $region123: #{downsampler_block.2} parent=119 // pred_region
          _
        $region124: #{downsampler_block.2} parent=119 // pred_fallthru
          _
        %s507 = sand.u32 %s68, 1
        %s508 = sand.u32 %s68, 1
        %s509 = smul.addr %s508, 4
        %s510 = scalar_lea.vmem [#allocation3], %s509
        // Predicated region
        $region125: #{downsampler_block.2} parent=119 // pred_check
          %p511 = pneg %p81
        $region126: #{downsampler_block.2} parent=119 // pred_check_branch
          %513 = sbr.rel (%p511) target = $region128
        $region127: #{downsampler_block.2} parent=119 // pred_region
          _
        $region128: #{downsampler_block.2} parent=119 // pred_fallthru
          _
        %s514 = sand.u32 %s36, 1
        %s515 = sand.u32 %s36, 1
        %s516 = smul.addr %s515, 64
        %s517 = scalar_lea.vmem [#allocation2], %s516
        %p518 = pneg %p49
        %p519 = pneg %p46
        %s520 = sand.u32 %s68, 1
        %s521 = sand.u32 %s68, 1
        %s522 = smul.addr %s521, 4
        %s523 = scalar_lea.vmem [#allocation3], %s522
        %p524 = pneg %p81
        %p525 = pneg %p78
        %p526 = pneg %p102
        %p527 = pneg %p99
        %p528 = pneg %p130
        %p529 = pneg %p127
        %p530 = scmp.lt.s32.totalorder %s18, 1
        %s531 = scalar_select %p530, %s18, 1
        %p532 = scmp.lt.s32.totalorder %s19, 0
        %s533 = scalar_select %p532, %s19, 0
        %s534 = smul.addr %s533, 2
        %s535 = smul.addr %s531, 2
        %s536 = sadd.s32 %s534, %s535
        %s537 = smul.addr %s536, 8
        %s538 = scalar_lea.vmem %s3, %s537
        %s539 = smul.u32 8, %s19
        %s540 = ssub.s32 9, %s539
        %p541 = scmp.lt.s32.totalorder %s540, 8
        %s542 = scalar_select %p541, %s540, 8
        %s543 = smul.u32 128, %s542
        %s544 = sadd.s32 %s19, 1
        %s545 = smul.u32 %s544, 8
        %p546 = scmp.lt.s32.totalorder %s18, 1
        %s547 = scalar_select %p546, %s18, 1
        %p548 = scmp.lt.s32.totalorder %s19, 0
        %s549 = scalar_select %p548, %s19, 0
        %s550 = smul.addr %s549, 2
        %s551 = smul.addr %s547, 2
        %s552 = sadd.s32 %s550, %s551
        %s553 = smul.addr %s552, 8
        %s554 = scalar_lea.vmem %s3, %s553
        %v556 = vld [vmem:[%s503] sm:$0x3]
        %v557 = vld [vmem:[%s503 + $0x2] sm:$0x3]
        %v558 = vld [vmem:[%s503 + $0x4] sm:$0x3]
        %v559 = vld [vmem:[%s503 + $0x6] sm:$0x3]
        %v560 = vld [vmem:[%s503 + $0x8] sm:$0x3]
        %v561 = vld [vmem:[%s503 + $0xa] sm:$0x3]
        %v562 = vld [vmem:[%s503 + $0xc] sm:$0x3]
        %v563 = vld [vmem:[%s503 + $0xe] sm:$0x3]
        %s564 = scalar_lea.vmem %s503, 16 [#allocation2]
        %v565 = vld [vmem:[%s564] sm:$0x3]
        %v566 = vld [vmem:[%s564 + $0x2] sm:$0x3]
        %v567 = vld [vmem:[%s564 + $0x4] sm:$0x3]
        %v568 = vld [vmem:[%s564 + $0x6] sm:$0x3]
        %v569 = vld [vmem:[%s564 + $0x8] sm:$0x3]
        %v570 = vld [vmem:[%s564 + $0xa] sm:$0x3]
        %v571 = vld [vmem:[%s564 + $0xc] sm:$0x3]
        %v572 = vld [vmem:[%s564 + $0xe] sm:$0x3]
        %s573 = scalar_lea.vmem %s503, 32 [#allocation2]
        %v574 = vld [vmem:[%s573] sm:$0x3]
        %v575 = vld [vmem:[%s573 + $0x2] sm:$0x3]
        %v576 = vld [vmem:[%s573 + $0x4] sm:$0x3]
        %v577 = vld [vmem:[%s573 + $0x6] sm:$0x3]
        %v578 = vld [vmem:[%s573 + $0x8] sm:$0x3]
        %v579 = vld [vmem:[%s573 + $0xa] sm:$0x3]
        %v580 = vld [vmem:[%s573 + $0xc] sm:$0x3]
        %v581 = vld [vmem:[%s573 + $0xe] sm:$0x3]
        %s582 = scalar_lea.vmem %s503, 48 [#allocation2]
        %v583 = vld [vmem:[%s582] sm:$0x3]
        %v584 = vld [vmem:[%s582 + $0x2] sm:$0x3]
        %v585 = vld [vmem:[%s582 + $0x4] sm:$0x3]
        %v586 = vld [vmem:[%s582 + $0x6] sm:$0x3]
        %v587 = vld [vmem:[%s582 + $0x8] sm:$0x3]
        %v588 = vld [vmem:[%s582 + $0xa] sm:$0x3]
        %v589 = vld [vmem:[%s582 + $0xc] sm:$0x3]
        %v590 = vld [vmem:[%s582 + $0xe] sm:$0x3]
        %v591 = vld [vmem:[%s510] sm:$0x3]
        %s592 = scalar_lea.vmem %s510, 2 [#allocation3]
        %v593 = vld [vmem:[%s592] sm:$0x3]
        %s594 = scalar_lea.vmem %s503, 2 [#allocation2]
        %v595 = vld [vmem:[%s594] sm:$0x3]
        %v596 = vld [vmem:[%s594 + $0x2] sm:$0x3]
        %v597 = vld [vmem:[%s594 + $0x4] sm:$0x3]
        %v598 = vld [vmem:[%s594 + $0x6] sm:$0x3]
        %v599 = vld [vmem:[%s594 + $0x8] sm:$0x3]
        %v600 = vld [vmem:[%s594 + $0xa] sm:$0x3]
        %v601 = vld [vmem:[%s594 + $0xc] sm:$0x3]
        %s602 = scalar_lea.vmem %s503, 18 [#allocation2]
        %v603 = vld [vmem:[%s602] sm:$0x3]
        %v604 = vld [vmem:[%s602 + $0x2] sm:$0x3]
        %v605 = vld [vmem:[%s602 + $0x4] sm:$0x3]
        %v606 = vld [vmem:[%s602 + $0x6] sm:$0x3]
        %v607 = vld [vmem:[%s602 + $0x8] sm:$0x3]
        %v608 = vld [vmem:[%s602 + $0xa] sm:$0x3]
        %v609 = vld [vmem:[%s602 + $0xc] sm:$0x3]
        %v610 = vld [vmem:[%s2] sm:$0xf]
        %v611 = vld [vmem:[%s2 + $0x4] sm:$0x3]
        %v612 = vld [vmem:[%s2 + $0x8] sm:$0xf]
        %v613 = vld [vmem:[%s2 + $0xc] sm:$0x3]
        %v614 = vld [vmem:[%s2 + $0x10] sm:$0xf]
        %v615 = vld [vmem:[%s2 + $0x14] sm:$0x3]
        %v616 = vld [vmem:[%s2 + $0x18] sm:$0xf]
        %v617 = vld [vmem:[%s2 + $0x1c] sm:$0x3]
        %v618 = vld [vmem:[%s2 + $0x20] sm:$0xf]
        %v619 = vld [vmem:[%s2 + $0x24] sm:$0x3]
        %v620 = vld [vmem:[%s2 + $0x28] sm:$0xf]
        %v621 = vld [vmem:[%s2 + $0x2c] sm:$0x3]
        %v622 = vld [vmem:[%s2 + $0x30] sm:$0xf]
        %v623 = vld [vmem:[%s2 + $0x34] sm:$0x3]
        %v624 = vld [vmem:[%s2 + $0x38] sm:$0xf]
        %v625 = vld [vmem:[%s2 + $0x3c] sm:$0x3]
        %v626 = vld [vmem:[%s2 + $0x40] sm:$0xf]
        %v627 = vld [vmem:[%s2 + $0x44] sm:$0x3]
        %v630 = vunpack.c.l.b16 %v612
        %v631 = vunpack.c.l.b16 %v613
        %v632 = vpack.c.b16 %v631, %v630
        %vm633 = vcmask 31744
        %v635 = vsel %vm633, %v632, 0
        %vm637 = vcmask 1041408
        %v639 = vsel %vm637, %v565, 0
        %641 = vmatprep.subr.bf16.mxu0 0
        %642 = vmatpush1.bf16.msra.mxu0 %v639
        %643 = vmatprep.subr.bf16.mxu0 0
        %644 = vmatpush1.bf16.msra.mxu0 0
        %645 = vmatprep.subr.bf16.mxu0 0
        %646 = vmatpush1.bf16.msra.mxu0 0
        %647 = vmatprep.subr.bf16.mxu0 0
        %648 = vmatpush1.bf16.msra.mxu0 0
        %649 = vmatprep.subr.bf16.mxu0 0
        %650 = vmatpush1.bf16.msra.mxu0 0
        %651 = vmatprep.subr.bf16.mxu0 0
        %652 = vmatpush1.bf16.msra.mxu0 0
        %653 = vmatprep.subr.bf16.mxu0 0
        %654 = vmatpush1.bf16.msra.mxu0 0
        %655 = vmatprep.subr.bf16.mxu0 0
        %656 = vmatpush1.bf16.msra.mxu0 0
        %657 = vmatprep.subr.bf16.mxu0 0
        %658 = vmatpush1.bf16.msra.mxu0 0
        %659 = vmatprep.subr.bf16.mxu0 0
        %660 = vmatpush1.bf16.msra.mxu0 0
        %661 = vmatprep.subr.bf16.mxu0 0
        %662 = vmatpush1.bf16.msra.mxu0 0
        %663 = vmatprep.subr.bf16.mxu0 0
        %664 = vmatpush1.bf16.msra.mxu0 0
        %665 = vmatprep.subr.bf16.mxu0 0
        %666 = vmatpush1.bf16.msra.mxu0 0
        %667 = vmatprep.subr.bf16.mxu0 0
        %668 = vmatpush1.bf16.msra.mxu0 0
        %669 = vmatprep.subr.bf16.mxu0 0
        %670 = vmatpush1.bf16.msra.mxu0 0
        %671 = vmatprep.subr.bf16.mxu0 0
        %672 = vmatpush1.bf16.msra.mxu0 0
        %673 = vmatprep.mubr.bf16.mxu0 0
        %674 = vmatmul.mubr.bf16.gmra.mrb[0].mxu0 %v635
        %v675 = vpop.f32.mrb[0].mxu0
        %v676 = vadd.f32 0.0, %v675
        %v677 = vpop.f32.mrb[0].mxu0
        %v678 = vpop.f32.mrb[0].mxu0
        %v679 = vadd.f32 0.0, %v678
        %v680 = vpop.f32.mrb[0].mxu0
        %681 = vdwg.mxu0
        %v683 = vsel %vm637, %v566, 0
        %685 = vmatprep.subr.bf16.mxu0 0
        %686 = vmatpush1.bf16.msra.mxu0 %v683
        %687 = vmatprep.subr.bf16.mxu0 0
        %688 = vmatpush1.bf16.msra.mxu0 0
        %689 = vmatprep.subr.bf16.mxu0 0
        %690 = vmatpush1.bf16.msra.mxu0 0
        %691 = vmatprep.subr.bf16.mxu0 0
        %692 = vmatpush1.bf16.msra.mxu0 0
        %693 = vmatprep.subr.bf16.mxu0 0
        %694 = vmatpush1.bf16.msra.mxu0 0
        %695 = vmatprep.subr.bf16.mxu0 0
        %696 = vmatpush1.bf16.msra.mxu0 0
        %697 = vmatprep.subr.bf16.mxu0 0
        %698 = vmatpush1.bf16.msra.mxu0 0
        %699 = vmatprep.subr.bf16.mxu0 0
        %700 = vmatpush1.bf16.msra.mxu0 0
        %701 = vmatprep.subr.bf16.mxu0 0
        %702 = vmatpush1.bf16.msra.mxu0 0
        %703 = vmatprep.subr.bf16.mxu0 0
        %704 = vmatpush1.bf16.msra.mxu0 0
        %705 = vmatprep.subr.bf16.mxu0 0
        %706 = vmatpush1.bf16.msra.mxu0 0
        %707 = vmatprep.subr.bf16.mxu0 0
        %708 = vmatpush1.bf16.msra.mxu0 0
        %709 = vmatprep.subr.bf16.mxu0 0
        %710 = vmatpush1.bf16.msra.mxu0 0
        %711 = vmatprep.subr.bf16.mxu0 0
        %712 = vmatpush1.bf16.msra.mxu0 0
        %713 = vmatprep.subr.bf16.mxu0 0
        %714 = vmatpush1.bf16.msra.mxu0 0
        %715 = vmatprep.subr.bf16.mxu0 0
        %716 = vmatpush1.bf16.msra.mxu0 0
        %717 = vmatprep.mubr.bf16.mxu0 0
        %718 = vmatmul.mubr.bf16.gmra.mrb[0].mxu0 %v635
        %v719 = vpop.f32.mrb[0].mxu0
        %v720 = vadd.f32 0.0, %v719
        %v721 = vpop.f32.mrb[0].mxu0
        %v722 = vpop.f32.mrb[0].mxu0
        %v723 = vadd.f32 0.0, %v722
        %v724 = vpop.f32.mrb[0].mxu0
        %725 = vdwg.mxu0
        %v727 = vsel %vm637, %v567, 0
        %729 = vmatprep.subr.bf16.mxu0 0
        %730 = vmatpush1.bf16.msra.mxu0 %v727
        %731 = vmatprep.subr.bf16.mxu0 0
        %732 = vmatpush1.bf16.msra.mxu0 0
        %733 = vmatprep.subr.bf16.mxu0 0
        %734 = vmatpush1.bf16.msra.mxu0 0
        %735 = vmatprep.subr.bf16.mxu0 0
        %736 = vmatpush1.bf16.msra.mxu0 0
        %737 = vmatprep.subr.bf16.mxu0 0
        %738 = vmatpush1.bf16.msra.mxu0 0
        %739 = vmatprep.subr.bf16.mxu0 0
        %740 = vmatpush1.bf16.msra.mxu0 0
        %741 = vmatprep.subr.bf16.mxu0 0
        %742 = vmatpush1.bf16.msra.mxu0 0
        %743 = vmatprep.subr.bf16.mxu0 0
        %744 = vmatpush1.bf16.msra.mxu0 0
        %745 = vmatprep.subr.bf16.mxu0 0
        %746 = vmatpush1.bf16.msra.mxu0 0
        %747 = vmatprep.subr.bf16.mxu0 0
        %748 = vmatpush1.bf16.msra.mxu0 0
        %749 = vmatprep.subr.bf16.mxu0 0
        %750 = vmatpush1.bf16.msra.mxu0 0
        %751 = vmatprep.subr.bf16.mxu0 0
        %752 = vmatpush1.bf16.msra.mxu0 0
        %753 = vmatprep.subr.bf16.mxu0 0
        %754 = vmatpush1.bf16.msra.mxu0 0
        %755 = vmatprep.subr.bf16.mxu0 0
        %756 = vmatpush1.bf16.msra.mxu0 0
        %757 = vmatprep.subr.bf16.mxu0 0
        %758 = vmatpush1.bf16.msra.mxu0 0
        %759 = vmatprep.subr.bf16.mxu0 0
        %760 = vmatpush1.bf16.msra.mxu0 0
        %761 = vmatprep.mubr.bf16.mxu0 0
        %762 = vmatmul.mubr.bf16.gmra.mrb[0].mxu0 %v635
        %v763 = vpop.f32.mrb[0].mxu0
        %v764 = vadd.f32 0.0, %v763
        %v765 = vpop.f32.mrb[0].mxu0
        %v766 = vpop.f32.mrb[0].mxu0
        %v767 = vadd.f32 0.0, %v766
        %v768 = vpop.f32.mrb[0].mxu0
        %769 = vdwg.mxu0
        %v771 = vsel %vm637, %v568, 0
        %773 = vmatprep.subr.bf16.mxu0 0
        %774 = vmatpush1.bf16.msra.mxu0 %v771
        %775 = vmatprep.subr.bf16.mxu0 0
        %776 = vmatpush1.bf16.msra.mxu0 0
        %777 = vmatprep.subr.bf16.mxu0 0
        %778 = vmatpush1.bf16.msra.mxu0 0
        %779 = vmatprep.subr.bf16.mxu0 0
        %780 = vmatpush1.bf16.msra.mxu0 0
        %781 = vmatprep.subr.bf16.mxu0 0
        %782 = vmatpush1.bf16.msra.mxu0 0
        %783 = vmatprep.subr.bf16.mxu0 0
        %784 = vmatpush1.bf16.msra.mxu0 0
        %785 = vmatprep.subr.bf16.mxu0 0
        %786 = vmatpush1.bf16.msra.mxu0 0
        %787 = vmatprep.subr.bf16.mxu0 0
        %788 = vmatpush1.bf16.msra.mxu0 0
        %789 = vmatprep.subr.bf16.mxu0 0
        %790 = vmatpush1.bf16.msra.mxu0 0
        %791 = vmatprep.subr.bf16.mxu0 0
        %792 = vmatpush1.bf16.msra.mxu0 0
        %793 = vmatprep.subr.bf16.mxu0 0
        %794 = vmatpush1.bf16.msra.mxu0 0
        %795 = vmatprep.subr.bf16.mxu0 0
        %796 = vmatpush1.bf16.msra.mxu0 0
        %797 = vmatprep.subr.bf16.mxu0 0
        %798 = vmatpush1.bf16.msra.mxu0 0
        %799 = vmatprep.subr.bf16.mxu0 0
        %800 = vmatpush1.bf16.msra.mxu0 0
        %801 = vmatprep.subr.bf16.mxu0 0
        %802 = vmatpush1.bf16.msra.mxu0 0
        %803 = vmatprep.subr.bf16.mxu0 0
        %804 = vmatpush1.bf16.msra.mxu0 0
        %805 = vmatprep.mubr.bf16.mxu0 0
        %806 = vmatmul.mubr.bf16.gmra.mrb[0].mxu0 %v635
        %v807 = vpop.f32.mrb[0].mxu0
        %v808 = vadd.f32 0.0, %v807
        %v809 = vpop.f32.mrb[0].mxu0
        %v810 = vpop.f32.mrb[0].mxu0
        %v811 = vadd.f32 0.0, %v810
        %v812 = vpop.f32.mrb[0].mxu0
        %813 = vdwg.mxu0
        %v815 = vsel %vm637, %v569, 0
        %817 = vmatprep.subr.bf16.mxu0 0
        %818 = vmatpush1.bf16.msra.mxu0 %v815
        %819 = vmatprep.subr.bf16.mxu0 0
        %820 = vmatpush1.bf16.msra.mxu0 0
        %821 = vmatprep.subr.bf16.mxu0 0
        %822 = vmatpush1.bf16.msra.mxu0 0
        %823 = vmatprep.subr.bf16.mxu0 0
        %824 = vmatpush1.bf16.msra.mxu0 0
        %825 = vmatprep.subr.bf16.mxu0 0
        %826 = vmatpush1.bf16.msra.mxu0 0
        %827 = vmatprep.subr.bf16.mxu0 0
        %828 = vmatpush1.bf16.msra.mxu0 0
        %829 = vmatprep.subr.bf16.mxu0 0
        %830 = vmatpush1.bf16.msra.mxu0 0
        %831 = vmatprep.subr.bf16.mxu0 0
        %832 = vmatpush1.bf16.msra.mxu0 0
        %833 = vmatprep.subr.bf16.mxu0 0
        %834 = vmatpush1.bf16.msra.mxu0 0
        %835 = vmatprep.subr.bf16.mxu0 0
        %836 = vmatpush1.bf16.msra.mxu0 0
        %837 = vmatprep.subr.bf16.mxu0 0
        %838 = vmatpush1.bf16.msra.mxu0 0
        %839 = vmatprep.subr.bf16.mxu0 0
        %840 = vmatpush1.bf16.msra.mxu0 0
        %841 = vmatprep.subr.bf16.mxu0 0
        %842 = vmatpush1.bf16.msra.mxu0 0
        %843 = vmatprep.subr.bf16.mxu0 0
        %844 = vmatpush1.bf16.msra.mxu0 0
        %845 = vmatprep.subr.bf16.mxu0 0
        %846 = vmatpush1.bf16.msra.mxu0 0
        %847 = vmatprep.subr.bf16.mxu0 0
        %848 = vmatpush1.bf16.msra.mxu0 0
        %849 = vmatprep.mubr.bf16.mxu0 0
        %850 = vmatmul.mubr.bf16.gmra.mrb[0].mxu0 %v635
        %v851 = vpop.f32.mrb[0].mxu0
        %v852 = vadd.f32 0.0, %v851
        %v853 = vpop.f32.mrb[0].mxu0
        %v854 = vpop.f32.mrb[0].mxu0
        %v855 = vadd.f32 0.0, %v854
        %v856 = vpop.f32.mrb[0].mxu0
        %857 = vdwg.mxu0
        %v859 = vsel %vm637, %v570, 0
        %861 = vmatprep.subr.bf16.mxu0 0
        %862 = vmatpush1.bf16.msra.mxu0 %v859
        %863 = vmatprep.subr.bf16.mxu0 0
        %864 = vmatpush1.bf16.msra.mxu0 0
        %865 = vmatprep.subr.bf16.mxu0 0
        %866 = vmatpush1.bf16.msra.mxu0 0
        %867 = vmatprep.subr.bf16.mxu0 0
        %868 = vmatpush1.bf16.msra.mxu0 0
        %869 = vmatprep.subr.bf16.mxu0 0
        %870 = vmatpush1.bf16.msra.mxu0 0
        %871 = vmatprep.subr.bf16.mxu0 0
        %872 = vmatpush1.bf16.msra.mxu0 0
        %873 = vmatprep.subr.bf16.mxu0 0
        %874 = vmatpush1.bf16.msra.mxu0 0
        %875 = vmatprep.subr.bf16.mxu0 0
        %876 = vmatpush1.bf16.msra.mxu0 0
        %877 = vmatprep.subr.bf16.mxu0 0
        %878 = vmatpush1.bf16.msra.mxu0 0
        %879 = vmatprep.subr.bf16.mxu0 0
        %880 = vmatpush1.bf16.msra.mxu0 0
        %881 = vmatprep.subr.bf16.mxu0 0
        %882 = vmatpush1.bf16.msra.mxu0 0
        %883 = vmatprep.subr.bf16.mxu0 0
        %884 = vmatpush1.bf16.msra.mxu0 0
        %885 = vmatprep.subr.bf16.mxu0 0
        %886 = vmatpush1.bf16.msra.mxu0 0
        %887 = vmatprep.subr.bf16.mxu0 0
        %888 = vmatpush1.bf16.msra.mxu0 0
        %889 = vmatprep.subr.bf16.mxu0 0
        %890 = vmatpush1.bf16.msra.mxu0 0
        %891 = vmatprep.subr.bf16.mxu0 0
        %892 = vmatpush1.bf16.msra.mxu0 0
        %893 = vmatprep.mubr.bf16.mxu0 0
        %894 = vmatmul.mubr.bf16.gmra.mrb[0].mxu0 %v635
        %v895 = vpop.f32.mrb[0].mxu0
        %v896 = vadd.f32 0.0, %v895
        %v897 = vpop.f32.mrb[0].mxu0
        %v898 = vpop.f32.mrb[0].mxu0
        %v899 = vadd.f32 0.0, %v898
        %v900 = vpop.f32.mrb[0].mxu0
        %901 = vdwg.mxu0
        %v903 = vsel %vm637, %v571, 0
        %905 = vmatprep.subr.bf16.mxu0 0
        %906 = vmatpush1.bf16.msra.mxu0 %v903
        %907 = vmatprep.subr.bf16.mxu0 0
        %908 = vmatpush1.bf16.msra.mxu0 0
        %909 = vmatprep.subr.bf16.mxu0 0
        %910 = vmatpush1.bf16.msra.mxu0 0
        %911 = vmatprep.subr.bf16.mxu0 0
        %912 = vmatpush1.bf16.msra.mxu0 0
        %913 = vmatprep.subr.bf16.mxu0 0
        %914 = vmatpush1.bf16.msra.mxu0 0
        %915 = vmatprep.subr.bf16.mxu0 0
        %916 = vmatpush1.bf16.msra.mxu0 0
        %917 = vmatprep.subr.bf16.mxu0 0
        %918 = vmatpush1.bf16.msra.mxu0 0
        %919 = vmatprep.subr.bf16.mxu0 0
        %920 = vmatpush1.bf16.msra.mxu0 0
        %921 = vmatprep.subr.bf16.mxu0 0
        %922 = vmatpush1.bf16.msra.mxu0 0
        %923 = vmatprep.subr.bf16.mxu0 0
        %924 = vmatpush1.bf16.msra.mxu0 0
        %925 = vmatprep.subr.bf16.mxu0 0
        %926 = vmatpush1.bf16.msra.mxu0 0
        %927 = vmatprep.subr.bf16.mxu0 0
        %928 = vmatpush1.bf16.msra.mxu0 0
        %929 = vmatprep.subr.bf16.mxu0 0
        %930 = vmatpush1.bf16.msra.mxu0 0
        %931 = vmatprep.subr.bf16.mxu0 0
        %932 = vmatpush1.bf16.msra.mxu0 0
        %933 = vmatprep.subr.bf16.mxu0 0
        %934 = vmatpush1.bf16.msra.mxu0 0
        %935 = vmatprep.subr.bf16.mxu0 0
        %936 = vmatpush1.bf16.msra.mxu0 0
        %937 = vmatprep.mubr.bf16.mxu0 0
        %938 = vmatmul.mubr.bf16.gmra.mrb[0].mxu0 %v635
        %v939 = vpop.f32.mrb[0].mxu0
        %v940 = vadd.f32 0.0, %v939
        %v941 = vpop.f32.mrb[0].mxu0
        %v942 = vpop.f32.mrb[0].mxu0
        %v943 = vadd.f32 0.0, %v942
        %v944 = vpop.f32.mrb[0].mxu0
        %945 = vdwg.mxu0
        %v947 = vsel %vm637, %v572, 0
        %949 = vmatprep.subr.bf16.mxu0 0
        %950 = vmatpush1.bf16.msra.mxu0 %v947
        %951 = vmatprep.subr.bf16.mxu0 0
        %952 = vmatpush1.bf16.msra.mxu0 0
        %953 = vmatprep.subr.bf16.mxu0 0
        %954 = vmatpush1.bf16.msra.mxu0 0
        %955 = vmatprep.subr.bf16.mxu0 0
        %956 = vmatpush1.bf16.msra.mxu0 0
        %957 = vmatprep.subr.bf16.mxu0 0
        %958 = vmatpush1.bf16.msra.mxu0 0
        %959 = vmatprep.subr.bf16.mxu0 0
        %960 = vmatpush1.bf16.msra.mxu0 0
        %961 = vmatprep.subr.bf16.mxu0 0
        %962 = vmatpush1.bf16.msra.mxu0 0
        %963 = vmatprep.subr.bf16.mxu0 0
        %964 = vmatpush1.bf16.msra.mxu0 0
        %965 = vmatprep.subr.bf16.mxu0 0
        %966 = vmatpush1.bf16.msra.mxu0 0
        %967 = vmatprep.subr.bf16.mxu0 0
        %968 = vmatpush1.bf16.msra.mxu0 0
        %969 = vmatprep.subr.bf16.mxu0 0
        %970 = vmatpush1.bf16.msra.mxu0 0
        %971 = vmatprep.subr.bf16.mxu0 0
        %972 = vmatpush1.bf16.msra.mxu0 0
        %973 = vmatprep.subr.bf16.mxu0 0
        %974 = vmatpush1.bf16.msra.mxu0 0
        %975 = vmatprep.subr.bf16.mxu0 0
        %976 = vmatpush1.bf16.msra.mxu0 0
        %977 = vmatprep.subr.bf16.mxu0 0
        %978 = vmatpush1.bf16.msra.mxu0 0
        %979 = vmatprep.subr.bf16.mxu0 0
        %980 = vmatpush1.bf16.msra.mxu0 0
        %981 = vmatprep.mubr.bf16.mxu0 0
        %982 = vmatmul.mubr.bf16.gmra.mrb[0].mxu0 %v635
        %v983 = vpop.f32.mrb[0].mxu0
        %v984 = vadd.f32 0.0, %v983
        %v985 = vpop.f32.mrb[0].mxu0
        %v986 = vpop.f32.mrb[0].mxu0
        %v987 = vadd.f32 0.0, %v986
        %v988 = vpop.f32.mrb[0].mxu0
        %989 = vdwg.mxu0
        %v992 = vunpack.c.l.b16 %v610
        %v993 = vunpack.c.l.b16 %v611
        %v994 = vpack.c.b16 %v993, %v992
        %v996 = vsel %vm633, %v994, 0
        %v999 = vsel %vm637, %v556, 0
        %1001 = vmatprep.subr.bf16.mxu0 0
        %1002 = vmatpush1.bf16.msra.mxu0 %v999
        %1003 = vmatprep.subr.bf16.mxu0 0
        %1004 = vmatpush1.bf16.msra.mxu0 0
        %1005 = vmatprep.subr.bf16.mxu0 0
        %1006 = vmatpush1.bf16.msra.mxu0 0
        %1007 = vmatprep.subr.bf16.mxu0 0
        %1008 = vmatpush1.bf16.msra.mxu0 0
        %1009 = vmatprep.subr.bf16.mxu0 0
        %1010 = vmatpush1.bf16.msra.mxu0 0
        %1011 = vmatprep.subr.bf16.mxu0 0
        %1012 = vmatpush1.bf16.msra.mxu0 0
        %1013 = vmatprep.subr.bf16.mxu0 0
        %1014 = vmatpush1.bf16.msra.mxu0 0
        %1015 = vmatprep.subr.bf16.mxu0 0
        %1016 = vmatpush1.bf16.msra.mxu0 0
        %1017 = vmatprep.subr.bf16.mxu0 0
        %1018 = vmatpush1.bf16.msra.mxu0 0
        %1019 = vmatprep.subr.bf16.mxu0 0
        %1020 = vmatpush1.bf16.msra.mxu0 0
        %1021 = vmatprep.subr.bf16.mxu0 0
        %1022 = vmatpush1.bf16.msra.mxu0 0
        %1023 = vmatprep.subr.bf16.mxu0 0
        %1024 = vmatpush1.bf16.msra.mxu0 0
        %1025 = vmatprep.subr.bf16.mxu0 0
        %1026 = vmatpush1.bf16.msra.mxu0 0
        %1027 = vmatprep.subr.bf16.mxu0 0
        %1028 = vmatpush1.bf16.msra.mxu0 0
        %1029 = vmatprep.subr.bf16.mxu0 0
        %1030 = vmatpush1.bf16.msra.mxu0 0
        %1031 = vmatprep.subr.bf16.mxu0 0
        %1032 = vmatpush1.bf16.msra.mxu0 0
        %1033 = vmatprep.mubr.bf16.mxu0 0
        %1034 = vmatmul.mubr.bf16.gmra.mrb[0].mxu0 %v996
        %v1035 = vpop.f32.mrb[0].mxu0
        %v1036 = vadd.f32 %v676, %v1035
        %v1037 = vpop.f32.mrb[0].mxu0
        %v1038 = vpop.f32.mrb[0].mxu0
        %v1039 = vadd.f32 %v679, %v1038
        %v1040 = vpop.f32.mrb[0].mxu0
        %1041 = vdwg.mxu0
        %v1043 = vsel %vm637, %v557, 0
        %1045 = vmatprep.subr.bf16.mxu0 0
        %1046 = vmatpush1.bf16.msra.mxu0 %v1043
        %1047 = vmatprep.subr.bf16.mxu0 0
        %1048 = vmatpush1.bf16.msra.mxu0 0
        %1049 = vmatprep.subr.bf16.mxu0 0
        %1050 = vmatpush1.bf16.msra.mxu0 0
        %1051 = vmatprep.subr.bf16.mxu0 0
        %1052 = vmatpush1.bf16.msra.mxu0 0
        %1053 = vmatprep.subr.bf16.mxu0 0
        %1054 = vmatpush1.bf16.msra.mxu0 0
        %1055 = vmatprep.subr.bf16.mxu0 0
        %1056 = vmatpush1.bf16.msra.mxu0 0
        %1057 = vmatprep.subr.bf16.mxu0 0
        %1058 = vmatpush1.bf16.msra.mxu0 0
        %1059 = vmatprep.subr.bf16.mxu0 0
        %1060 = vmatpush1.bf16.msra.mxu0 0
        %1061 = vmatprep.subr.bf16.mxu0 0
        %1062 = vmatpush1.bf16.msra.mxu0 0
        %1063 = vmatprep.subr.bf16.mxu0 0
        %1064 = vmatpush1.bf16.msra.mxu0 0
        %1065 = vmatprep.subr.bf16.mxu0 0
        %1066 = vmatpush1.bf16.msra.mxu0 0
        %1067 = vmatprep.subr.bf16.mxu0 0
        %1068 = vmatpush1.bf16.msra.mxu0 0
        %1069 = vmatprep.subr.bf16.mxu0 0
        %1070 = vmatpush1.bf16.msra.mxu0 0
        %1071 = vmatprep.subr.bf16.mxu0 0
        %1072 = vmatpush1.bf16.msra.mxu0 0
        %1073 = vmatprep.subr.bf16.mxu0 0
        %1074 = vmatpush1.bf16.msra.mxu0 0
        %1075 = vmatprep.subr.bf16.mxu0 0
        %1076 = vmatpush1.bf16.msra.mxu0 0
        %1077 = vmatprep.mubr.bf16.mxu0 0
        %1078 = vmatmul.mubr.bf16.gmra.mrb[0].mxu0 %v996
        %v1079 = vpop.f32.mrb[0].mxu0
        %v1080 = vadd.f32 %v720, %v1079
        %v1081 = vpop.f32.mrb[0].mxu0
        %v1082 = vpop.f32.mrb[0].mxu0
        %v1083 = vadd.f32 %v723, %v1082
        %v1084 = vpop.f32.mrb[0].mxu0
        %1085 = vdwg.mxu0
        %v1087 = vsel %vm637, %v558, 0
        %1089 = vmatprep.subr.bf16.mxu0 0
        %1090 = vmatpush1.bf16.msra.mxu0 %v1087
        %1091 = vmatprep.subr.bf16.mxu0 0
        %1092 = vmatpush1.bf16.msra.mxu0 0
        %1093 = vmatprep.subr.bf16.mxu0 0
        %1094 = vmatpush1.bf16.msra.mxu0 0
        %1095 = vmatprep.subr.bf16.mxu0 0
        %1096 = vmatpush1.bf16.msra.mxu0 0
        %1097 = vmatprep.subr.bf16.mxu0 0
        %1098 = vmatpush1.bf16.msra.mxu0 0
        %1099 = vmatprep.subr.bf16.mxu0 0
        %1100 = vmatpush1.bf16.msra.mxu0 0
        %1101 = vmatprep.subr.bf16.mxu0 0
        %1102 = vmatpush1.bf16.msra.mxu0 0
        %1103 = vmatprep.subr.bf16.mxu0 0
        %1104 = vmatpush1.bf16.msra.mxu0 0
        %1105 = vmatprep.subr.bf16.mxu0 0
        %1106 = vmatpush1.bf16.msra.mxu0 0
        %1107 = vmatprep.subr.bf16.mxu0 0
        %1108 = vmatpush1.bf16.msra.mxu0 0
        %1109 = vmatprep.subr.bf16.mxu0 0
        %1110 = vmatpush1.bf16.msra.mxu0 0
        %1111 = vmatprep.subr.bf16.mxu0 0
        %1112 = vmatpush1.bf16.msra.mxu0 0
        %1113 = vmatprep.subr.bf16.mxu0 0
        %1114 = vmatpush1.bf16.msra.mxu0 0
        %1115 = vmatprep.subr.bf16.mxu0 0
        %1116 = vmatpush1.bf16.msra.mxu0 0
        %1117 = vmatprep.subr.bf16.mxu0 0
        %1118 = vmatpush1.bf16.msra.mxu0 0
        %1119 = vmatprep.subr.bf16.mxu0 0
        %1120 = vmatpush1.bf16.msra.mxu0 0
        %1121 = vmatprep.mubr.bf16.mxu0 0
        %1122 = vmatmul.mubr.bf16.gmra.mrb[0].mxu0 %v996
        %v1123 = vpop.f32.mrb[0].mxu0
        %v1124 = vadd.f32 %v764, %v1123
        %v1125 = vpop.f32.mrb[0].mxu0
        %v1126 = vpop.f32.mrb[0].mxu0
        %v1127 = vadd.f32 %v767, %v1126
        %v1128 = vpop.f32.mrb[0].mxu0
        %1129 = vdwg.mxu0
        %v1131 = vsel %vm637, %v559, 0
        %1133 = vmatprep.subr.bf16.mxu0 0
        %1134 = vmatpush1.bf16.msra.mxu0 %v1131
        %1135 = vmatprep.subr.bf16.mxu0 0
        %1136 = vmatpush1.bf16.msra.mxu0 0
        %1137 = vmatprep.subr.bf16.mxu0 0
        %1138 = vmatpush1.bf16.msra.mxu0 0
        %1139 = vmatprep.subr.bf16.mxu0 0
        %1140 = vmatpush1.bf16.msra.mxu0 0
        %1141 = vmatprep.subr.bf16.mxu0 0
        %1142 = vmatpush1.bf16.msra.mxu0 0
        %1143 = vmatprep.subr.bf16.mxu0 0
        %1144 = vmatpush1.bf16.msra.mxu0 0
        %1145 = vmatprep.subr.bf16.mxu0 0
        %1146 = vmatpush1.bf16.msra.mxu0 0
        %1147 = vmatprep.subr.bf16.mxu0 0
        %1148 = vmatpush1.bf16.msra.mxu0 0
        %1149 = vmatprep.subr.bf16.mxu0 0
        %1150 = vmatpush1.bf16.msra.mxu0 0
        %1151 = vmatprep.subr.bf16.mxu0 0
        %1152 = vmatpush1.bf16.msra.mxu0 0
        %1153 = vmatprep.subr.bf16.mxu0 0
        %1154 = vmatpush1.bf16.msra.mxu0 0
        %1155 = vmatprep.subr.bf16.mxu0 0
        %1156 = vmatpush1.bf16.msra.mxu0 0
        %1157 = vmatprep.subr.bf16.mxu0 0
        %1158 = vmatpush1.bf16.msra.mxu0 0
        %1159 = vmatprep.subr.bf16.mxu0 0
        %1160 = vmatpush1.bf16.msra.mxu0 0
        %1161 = vmatprep.subr.bf16.mxu0 0
        %1162 = vmatpush1.bf16.msra.mxu0 0
        %1163 = vmatprep.subr.bf16.mxu0 0
        %1164 = vmatpush1.bf16.msra.mxu0 0
        %1165 = vmatprep.mubr.bf16.mxu0 0
        %1166 = vmatmul.mubr.bf16.gmra.mrb[0].mxu0 %v996
        %v1167 = vpop.f32.mrb[0].mxu0
        %v1168 = vadd.f32 %v808, %v1167
        %v1169 = vpop.f32.mrb[0].mxu0
        %v1170 = vpop.f32.mrb[0].mxu0
        %v1171 = vadd.f32 %v811, %v1170
        %v1172 = vpop.f32.mrb[0].mxu0
        %1173 = vdwg.mxu0
        %v1175 = vsel %vm637, %v560, 0
        %1177 = vmatprep.subr.bf16.mxu0 0
        %1178 = vmatpush1.bf16.msra.mxu0 %v1175
        %1179 = vmatprep.subr.bf16.mxu0 0
        %1180 = vmatpush1.bf16.msra.mxu0 0
        %1181 = vmatprep.subr.bf16.mxu0 0
        %1182 = vmatpush1.bf16.msra.mxu0 0
        %1183 = vmatprep.subr.bf16.mxu0 0
        %1184 = vmatpush1.bf16.msra.mxu0 0
        %1185 = vmatprep.subr.bf16.mxu0 0
        %1186 = vmatpush1.bf16.msra.mxu0 0
        %1187 = vmatprep.subr.bf16.mxu0 0
        %1188 = vmatpush1.bf16.msra.mxu0 0
        %1189 = vmatprep.subr.bf16.mxu0 0
        %1190 = vmatpush1.bf16.msra.mxu0 0
        %1191 = vmatprep.subr.bf16.mxu0 0
        %1192 = vmatpush1.bf16.msra.mxu0 0
        %1193 = vmatprep.subr.bf16.mxu0 0
        %1194 = vmatpush1.bf16.msra.mxu0 0
        %1195 = vmatprep.subr.bf16.mxu0 0
        %1196 = vmatpush1.bf16.msra.mxu0 0
        %1197 = vmatprep.subr.bf16.mxu0 0
        %1198 = vmatpush1.bf16.msra.mxu0 0
        %1199 = vmatprep.subr.bf16.mxu0 0
        %1200 = vmatpush1.bf16.msra.mxu0 0
        %1201 = vmatprep.subr.bf16.mxu0 0
        %1202 = vmatpush1.bf16.msra.mxu0 0
        %1203 = vmatprep.subr.bf16.mxu0 0
        %1204 = vmatpush1.bf16.msra.mxu0 0
        %1205 = vmatprep.subr.bf16.mxu0 0
        %1206 = vmatpush1.bf16.msra.mxu0 0
        %1207 = vmatprep.subr.bf16.mxu0 0
        %1208 = vmatpush1.bf16.msra.mxu0 0
        %1209 = vmatprep.mubr.bf16.mxu0 0
        %1210 = vmatmul.mubr.bf16.gmra.mrb[0].mxu0 %v996
        %v1211 = vpop.f32.mrb[0].mxu0
        %v1212 = vadd.f32 %v852, %v1211
        %v1213 = vpop.f32.mrb[0].mxu0
        %v1214 = vpop.f32.mrb[0].mxu0
        %v1215 = vadd.f32 %v855, %v1214
        %v1216 = vpop.f32.mrb[0].mxu0
        %1217 = vdwg.mxu0
        %v1219 = vsel %vm637, %v561, 0
        %1221 = vmatprep.subr.bf16.mxu0 0
        %1222 = vmatpush1.bf16.msra.mxu0 %v1219
        %1223 = vmatprep.subr.bf16.mxu0 0
        %1224 = vmatpush1.bf16.msra.mxu0 0
        %1225 = vmatprep.subr.bf16.mxu0 0
        %1226 = vmatpush1.bf16.msra.mxu0 0
        %1227 = vmatprep.subr.bf16.mxu0 0
        %1228 = vmatpush1.bf16.msra.mxu0 0
        %1229 = vmatprep.subr.bf16.mxu0 0
        %1230 = vmatpush1.bf16.msra.mxu0 0
        %1231 = vmatprep.subr.bf16.mxu0 0
        %1232 = vmatpush1.bf16.msra.mxu0 0
        %1233 = vmatprep.subr.bf16.mxu0 0
        %1234 = vmatpush1.bf16.msra.mxu0 0
        %1235 = vmatprep.subr.bf16.mxu0 0
        %1236 = vmatpush1.bf16.msra.mxu0 0
        %1237 = vmatprep.subr.bf16.mxu0 0
        %1238 = vmatpush1.bf16.msra.mxu0 0
        %1239 = vmatprep.subr.bf16.mxu0 0
        %1240 = vmatpush1.bf16.msra.mxu0 0
        %1241 = vmatprep.subr.bf16.mxu0 0
        %1242 = vmatpush1.bf16.msra.mxu0 0
        %1243 = vmatprep.subr.bf16.mxu0 0
        %1244 = vmatpush1.bf16.msra.mxu0 0
        %1245 = vmatprep.subr.bf16.mxu0 0
        %1246 = vmatpush1.bf16.msra.mxu0 0
        %1247 = vmatprep.subr.bf16.mxu0 0
        %1248 = vmatpush1.bf16.msra.mxu0 0
        %1249 = vmatprep.subr.bf16.mxu0 0
        %1250 = vmatpush1.bf16.msra.mxu0 0
        %1251 = vmatprep.subr.bf16.mxu0 0
        %1252 = vmatpush1.bf16.msra.mxu0 0
        %1253 = vmatprep.mubr.bf16.mxu0 0
        %1254 = vmatmul.mubr.bf16.gmra.mrb[0].mxu0 %v996
        %v1255 = vpop.f32.mrb[0].mxu0
        %v1256 = vadd.f32 %v896, %v1255
        %v1257 = vpop.f32.mrb[0].mxu0
        %v1258 = vpop.f32.mrb[0].mxu0
        %v1259 = vadd.f32 %v899, %v1258
        %v1260 = vpop.f32.mrb[0].mxu0
        %1261 = vdwg.mxu0
        %v1263 = vsel %vm637, %v562, 0
        %1265 = vmatprep.subr.bf16.mxu0 0
        %1266 = vmatpush1.bf16.msra.mxu0 %v1263
        %1267 = vmatprep.subr.bf16.mxu0 0
        %1268 = vmatpush1.bf16.msra.mxu0 0
        %1269 = vmatprep.subr.bf16.mxu0 0
        %1270 = vmatpush1.bf16.msra.mxu0 0
        %1271 = vmatprep.subr.bf16.mxu0 0
        %1272 = vmatpush1.bf16.msra.mxu0 0
        %1273 = vmatprep.subr.bf16.mxu0 0
        %1274 = vmatpush1.bf16.msra.mxu0 0
        %1275 = vmatprep.subr.bf16.mxu0 0
        %1276 = vmatpush1.bf16.msra.mxu0 0
        %1277 = vmatprep.subr.bf16.mxu0 0
        %1278 = vmatpush1.bf16.msra.mxu0 0
        %1279 = vmatprep.subr.bf16.mxu0 0
        %1280 = vmatpush1.bf16.msra.mxu0 0
        %1281 = vmatprep.subr.bf16.mxu0 0
        %1282 = vmatpush1.bf16.msra.mxu0 0
        %1283 = vmatprep.subr.bf16.mxu0 0
        %1284 = vmatpush1.bf16.msra.mxu0 0
        %1285 = vmatprep.subr.bf16.mxu0 0
        %1286 = vmatpush1.bf16.msra.mxu0 0
        %1287 = vmatprep.subr.bf16.mxu0 0
        %1288 = vmatpush1.bf16.msra.mxu0 0
        %1289 = vmatprep.subr.bf16.mxu0 0
        %1290 = vmatpush1.bf16.msra.mxu0 0
        %1291 = vmatprep.subr.bf16.mxu0 0
        %1292 = vmatpush1.bf16.msra.mxu0 0
        %1293 = vmatprep.subr.bf16.mxu0 0
        %1294 = vmatpush1.bf16.msra.mxu0 0
        %1295 = vmatprep.subr.bf16.mxu0 0
        %1296 = vmatpush1.bf16.msra.mxu0 0
        %1297 = vmatprep.mubr.bf16.mxu0 0
        %1298 = vmatmul.mubr.bf16.gmra.mrb[0].mxu0 %v996
        %v1299 = vpop.f32.mrb[0].mxu0
        %v1300 = vadd.f32 %v940, %v1299
        %v1301 = vpop.f32.mrb[0].mxu0
        %v1302 = vpop.f32.mrb[0].mxu0
        %v1303 = vadd.f32 %v943, %v1302
        %v1304 = vpop.f32.mrb[0].mxu0
        %1305 = vdwg.mxu0
        %v1307 = vsel %vm637, %v563, 0
        %1309 = vmatprep.subr.bf16.mxu0 0
        %1310 = vmatpush1.bf16.msra.mxu0 %v1307
        %1311 = vmatprep.subr.bf16.mxu0 0
        %1312 = vmatpush1.bf16.msra.mxu0 0
        %1313 = vmatprep.subr.bf16.mxu0 0
        %1314 = vmatpush1.bf16.msra.mxu0 0
        %1315 = vmatprep.subr.bf16.mxu0 0
        %1316 = vmatpush1.bf16.msra.mxu0 0
        %1317 = vmatprep.subr.bf16.mxu0 0
        %1318 = vmatpush1.bf16.msra.mxu0 0
        %1319 = vmatprep.subr.bf16.mxu0 0
        %1320 = vmatpush1.bf16.msra.mxu0 0
        %1321 = vmatprep.subr.bf16.mxu0 0
        %1322 = vmatpush1.bf16.msra.mxu0 0
        %1323 = vmatprep.subr.bf16.mxu0 0
        %1324 = vmatpush1.bf16.msra.mxu0 0
        %1325 = vmatprep.subr.bf16.mxu0 0
        %1326 = vmatpush1.bf16.msra.mxu0 0
        %1327 = vmatprep.subr.bf16.mxu0 0
        %1328 = vmatpush1.bf16.msra.mxu0 0
        %1329 = vmatprep.subr.bf16.mxu0 0
        %1330 = vmatpush1.bf16.msra.mxu0 0
        %1331 = vmatprep.subr.bf16.mxu0 0
        %1332 = vmatpush1.bf16.msra.mxu0 0
        %1333 = vmatprep.subr.bf16.mxu0 0
        %1334 = vmatpush1.bf16.msra.mxu0 0
        %1335 = vmatprep.subr.bf16.mxu0 0
        %1336 = vmatpush1.bf16.msra.mxu0 0
        %1337 = vmatprep.subr.bf16.mxu0 0
        %1338 = vmatpush1.bf16.msra.mxu0 0
        %1339 = vmatprep.subr.bf16.mxu0 0
        %1340 = vmatpush1.bf16.msra.mxu0 0
        %1341 = vmatprep.mubr.bf16.mxu0 0
        %1342 = vmatmul.mubr.bf16.gmra.mrb[0].mxu0 %v996
        %v1343 = vpop.f32.mrb[0].mxu0
        %v1344 = vadd.f32 %v984, %v1343
        %v1345 = vpop.f32.mrb[0].mxu0
        %v1346 = vpop.f32.mrb[0].mxu0
        %v1347 = vadd.f32 %v987, %v1346
        %v1348 = vpop.f32.mrb[0].mxu0
        %1349 = vdwg.mxu0
        %v1352 = vunpack.c.l.b16 %v614
        %v1353 = vunpack.c.l.b16 %v615
        %v1354 = vpack.c.b16 %v1353, %v1352
        %v1357 = vunpack.c.l.s4 1983009808
        %v1358 = vunpack.c.0.s8 %v1357
        %v1359 = vlaneseq
        %v1360 = vshrl.u32 %v1359, 7
        %v1361 = vsub.s32 %v1358, %v1360
        %v1362 = vrot.slane %v556, %v1361
        %1363 = vrot.lane.b32.xlu0 %v1362, 127
        %v1364 = vpop.permute.xlu0 %1363
        %v1366 = vsel %vm633, %v1354, 0
        %v1369 = vsel %vm637, %v1364, 0
        %1371 = vmatprep.subr.bf16.mxu0 0
        %1372 = vmatpush1.bf16.msra.mxu0 %v1369
        %1373 = vmatprep.subr.bf16.mxu0 0
        %1374 = vmatpush1.bf16.msra.mxu0 0
        %1375 = vmatprep.subr.bf16.mxu0 0
        %1376 = vmatpush1.bf16.msra.mxu0 0
        %1377 = vmatprep.subr.bf16.mxu0 0
        %1378 = vmatpush1.bf16.msra.mxu0 0
        %1379 = vmatprep.subr.bf16.mxu0 0
        %1380 = vmatpush1.bf16.msra.mxu0 0
        %1381 = vmatprep.subr.bf16.mxu0 0
        %1382 = vmatpush1.bf16.msra.mxu0 0
        %1383 = vmatprep.subr.bf16.mxu0 0
        %1384 = vmatpush1.bf16.msra.mxu0 0
        %1385 = vmatprep.subr.bf16.mxu0 0
        %1386 = vmatpush1.bf16.msra.mxu0 0
        %1387 = vmatprep.subr.bf16.mxu0 0
        %1388 = vmatpush1.bf16.msra.mxu0 0
        %1389 = vmatprep.subr.bf16.mxu0 0
        %1390 = vmatpush1.bf16.msra.mxu0 0
        %1391 = vmatprep.subr.bf16.mxu0 0
        %1392 = vmatpush1.bf16.msra.mxu0 0
        %1393 = vmatprep.subr.bf16.mxu0 0
        %1394 = vmatpush1.bf16.msra.mxu0 0
        %1395 = vmatprep.subr.bf16.mxu0 0
        %1396 = vmatpush1.bf16.msra.mxu0 0
        %1397 = vmatprep.subr.bf16.mxu0 0
        %1398 = vmatpush1.bf16.msra.mxu0 0
        %1399 = vmatprep.subr.bf16.mxu0 0
        %1400 = vmatpush1.bf16.msra.mxu0 0
        %1401 = vmatprep.subr.bf16.mxu0 0
        %1402 = vmatpush1.bf16.msra.mxu0 0
        %1403 = vmatprep.mubr.bf16.mxu0 0
        %1404 = vmatmul.mubr.bf16.gmra.mrb[0].mxu0 %v1366
        %v1405 = vpop.f32.mrb[0].mxu0
        %v1406 = vadd.f32 0.0, %v1405
        %v1407 = vpop.f32.mrb[0].mxu0
        %v1408 = vpop.f32.mrb[0].mxu0
        %v1409 = vadd.f32 0.0, %v1408
        %v1410 = vpop.f32.mrb[0].mxu0
        %1411 = vdwg.mxu0
        %v1414 = vunpack.c.l.s4 1983009808
        %v1415 = vunpack.c.0.s8 %v1414
        %v1416 = vlaneseq
        %v1417 = vshrl.u32 %v1416, 7
        %v1418 = vsub.s32 %v1415, %v1417
        %v1419 = vrot.slane %v557, %v1418
        %1420 = vrot.lane.b32.xlu0 %v1419, 127
        %v1421 = vpop.permute.xlu0 %1420
        %v1423 = vsel %vm637, %v1421, 0
        %1425 = vmatprep.subr.bf16.mxu0 0
        %1426 = vmatpush1.bf16.msra.mxu0 %v1423
        %1427 = vmatprep.subr.bf16.mxu0 0
        %1428 = vmatpush1.bf16.msra.mxu0 0
        %1429 = vmatprep.subr.bf16.mxu0 0
        %1430 = vmatpush1.bf16.msra.mxu0 0
        %1431 = vmatprep.subr.bf16.mxu0 0
        %1432 = vmatpush1.bf16.msra.mxu0 0
        %1433 = vmatprep.subr.bf16.mxu0 0
        %1434 = vmatpush1.bf16.msra.mxu0 0
        %1435 = vmatprep.subr.bf16.mxu0 0
        %1436 = vmatpush1.bf16.msra.mxu0 0
        %1437 = vmatprep.subr.bf16.mxu0 0
        %1438 = vmatpush1.bf16.msra.mxu0 0
        %1439 = vmatprep.subr.bf16.mxu0 0
        %1440 = vmatpush1.bf16.msra.mxu0 0
        %1441 = vmatprep.subr.bf16.mxu0 0
        %1442 = vmatpush1.bf16.msra.mxu0 0
        %1443 = vmatprep.subr.bf16.mxu0 0
        %1444 = vmatpush1.bf16.msra.mxu0 0
        %1445 = vmatprep.subr.bf16.mxu0 0
        %1446 = vmatpush1.bf16.msra.mxu0 0
        %1447 = vmatprep.subr.bf16.mxu0 0
        %1448 = vmatpush1.bf16.msra.mxu0 0
        %1449 = vmatprep.subr.bf16.mxu0 0
        %1450 = vmatpush1.bf16.msra.mxu0 0
        %1451 = vmatprep.subr.bf16.mxu0 0
        %1452 = vmatpush1.bf16.msra.mxu0 0
        %1453 = vmatprep.subr.bf16.mxu0 0
        %1454 = vmatpush1.bf16.msra.mxu0 0
        %1455 = vmatprep.subr.bf16.mxu0 0
        %1456 = vmatpush1.bf16.msra.mxu0 0
        %1457 = vmatprep.mubr.bf16.mxu0 0
        %1458 = vmatmul.mubr.bf16.gmra.mrb[0].mxu0 %v1366
        %v1459 = vpop.f32.mrb[0].mxu0
        %v1460 = vadd.f32 0.0, %v1459
        %v1461 = vpop.f32.mrb[0].mxu0
        %v1462 = vpop.f32.mrb[0].mxu0
        %v1463 = vadd.f32 0.0, %v1462
        %v1464 = vpop.f32.mrb[0].mxu0
        %1465 = vdwg.mxu0
        %v1468 = vunpack.c.l.s4 1983009808
        %v1469 = vunpack.c.0.s8 %v1468
        %v1470 = vlaneseq
        %v1471 = vshrl.u32 %v1470, 7
        %v1472 = vsub.s32 %v1469, %v1471
        %v1473 = vrot.slane %v558, %v1472
        %1474 = vrot.lane.b32.xlu0 %v1473, 127
        %v1475 = vpop.permute.xlu0 %1474
        %v1477 = vsel %vm637, %v1475, 0
        %1479 = vmatprep.subr.bf16.mxu0 0
        %1480 = vmatpush1.bf16.msra.mxu0 %v1477
        %1481 = vmatprep.subr.bf16.mxu0 0
        %1482 = vmatpush1.bf16.msra.mxu0 0
        %1483 = vmatprep.subr.bf16.mxu0 0
        %1484 = vmatpush1.bf16.msra.mxu0 0
        %1485 = vmatprep.subr.bf16.mxu0 0
        %1486 = vmatpush1.bf16.msra.mxu0 0
        %1487 = vmatprep.subr.bf16.mxu0 0
        %1488 = vmatpush1.bf16.msra.mxu0 0
        %1489 = vmatprep.subr.bf16.mxu0 0
        %1490 = vmatpush1.bf16.msra.mxu0 0
        %1491 = vmatprep.subr.bf16.mxu0 0
        %1492 = vmatpush1.bf16.msra.mxu0 0
        %1493 = vmatprep.subr.bf16.mxu0 0
        %1494 = vmatpush1.bf16.msra.mxu0 0
        %1495 = vmatprep.subr.bf16.mxu0 0
        %1496 = vmatpush1.bf16.msra.mxu0 0
        %1497 = vmatprep.subr.bf16.mxu0 0
        %1498 = vmatpush1.bf16.msra.mxu0 0
        %1499 = vmatprep.subr.bf16.mxu0 0
        %1500 = vmatpush1.bf16.msra.mxu0 0
        %1501 = vmatprep.subr.bf16.mxu0 0
        %1502 = vmatpush1.bf16.msra.mxu0 0
        %1503 = vmatprep.subr.bf16.mxu0 0
        %1504 = vmatpush1.bf16.msra.mxu0 0
        %1505 = vmatprep.subr.bf16.mxu0 0
        %1506 = vmatpush1.bf16.msra.mxu0 0
        %1507 = vmatprep.subr.bf16.mxu0 0
        %1508 = vmatpush1.bf16.msra.mxu0 0
        %1509 = vmatprep.subr.bf16.mxu0 0
        %1510 = vmatpush1.bf16.msra.mxu0 0
        %1511 = vmatprep.mubr.bf16.mxu0 0
        %1512 = vmatmul.mubr.bf16.gmra.mrb[0].mxu0 %v1366
        %v1513 = vpop.f32.mrb[0].mxu0
        %v1514 = vadd.f32 0.0, %v1513
        %v1515 = vpop.f32.mrb[0].mxu0
        %v1516 = vpop.f32.mrb[0].mxu0
        %v1517 = vadd.f32 0.0, %v1516
        %v1518 = vpop.f32.mrb[0].mxu0
        %1519 = vdwg.mxu0
        %v1522 = vunpack.c.l.s4 1983009808
        %v1523 = vunpack.c.0.s8 %v1522
        %v1524 = vlaneseq
        %v1525 = vshrl.u32 %v1524, 7
        %v1526 = vsub.s32 %v1523, %v1525
        %v1527 = vrot.slane %v559, %v1526
        %1528 = vrot.lane.b32.xlu0 %v1527, 127
        %v1529 = vpop.permute.xlu0 %1528
        %v1531 = vsel %vm637, %v1529, 0
        %1533 = vmatprep.subr.bf16.mxu0 0
        %1534 = vmatpush1.bf16.msra.mxu0 %v1531
        %1535 = vmatprep.subr.bf16.mxu0 0
        %1536 = vmatpush1.bf16.msra.mxu0 0
        %1537 = vmatprep.subr.bf16.mxu0 0
        %1538 = vmatpush1.bf16.msra.mxu0 0
        %1539 = vmatprep.subr.bf16.mxu0 0
        %1540 = vmatpush1.bf16.msra.mxu0 0
        %1541 = vmatprep.subr.bf16.mxu0 0
        %1542 = vmatpush1.bf16.msra.mxu0 0
        %1543 = vmatprep.subr.bf16.mxu0 0
        %1544 = vmatpush1.bf16.msra.mxu0 0
        %1545 = vmatprep.subr.bf16.mxu0 0
        %1546 = vmatpush1.bf16.msra.mxu0 0
        %1547 = vmatprep.subr.bf16.mxu0 0
        %1548 = vmatpush1.bf16.msra.mxu0 0
        %1549 = vmatprep.subr.bf16.mxu0 0
        %1550 = vmatpush1.bf16.msra.mxu0 0
        %1551 = vmatprep.subr.bf16.mxu0 0
        %1552 = vmatpush1.bf16.msra.mxu0 0
        %1553 = vmatprep.subr.bf16.mxu0 0
        %1554 = vmatpush1.bf16.msra.mxu0 0
        %1555 = vmatprep.subr.bf16.mxu0 0
        %1556 = vmatpush1.bf16.msra.mxu0 0
        %1557 = vmatprep.subr.bf16.mxu0 0
        %1558 = vmatpush1.bf16.msra.mxu0 0
        %1559 = vmatprep.subr.bf16.mxu0 0
        %1560 = vmatpush1.bf16.msra.mxu0 0
        %1561 = vmatprep.subr.bf16.mxu0 0
        %1562 = vmatpush1.bf16.msra.mxu0 0
        %1563 = vmatprep.subr.bf16.mxu0 0
        %1564 = vmatpush1.bf16.msra.mxu0 0
        %1565 = vmatprep.mubr.bf16.mxu0 0
        %1566 = vmatmul.mubr.bf16.gmra.mrb[0].mxu0 %v1366
        %v1567 = vpop.f32.mrb[0].mxu0
        %v1568 = vadd.f32 0.0, %v1567
        %v1569 = vpop.f32.mrb[0].mxu0
        %v1570 = vpop.f32.mrb[0].mxu0
        %v1571 = vadd.f32 0.0, %v1570
        %v1572 = vpop.f32.mrb[0].mxu0
        %1573 = vdwg.mxu0
        %v1576 = vunpack.c.l.s4 1983009808
        %v1577 = vunpack.c.0.s8 %v1576
        %v1578 = vlaneseq
        %v1579 = vshrl.u32 %v1578, 7
        %v1580 = vsub.s32 %v1577, %v1579
        %v1581 = vrot.slane %v560, %v1580
        %1582 = vrot.lane.b32.xlu0 %v1581, 127
        %v1583 = vpop.permute.xlu0 %1582
        %v1585 = vsel %vm637, %v1583, 0
        %1587 = vmatprep.subr.bf16.mxu0 0
        %1588 = vmatpush1.bf16.msra.mxu0 %v1585
        %1589 = vmatprep.subr.bf16.mxu0 0
        %1590 = vmatpush1.bf16.msra.mxu0 0
        %1591 = vmatprep.subr.bf16.mxu0 0
        %1592 = vmatpush1.bf16.msra.mxu0 0
        %1593 = vmatprep.subr.bf16.mxu0 0
        %1594 = vmatpush1.bf16.msra.mxu0 0
        %1595 = vmatprep.subr.bf16.mxu0 0
        %1596 = vmatpush1.bf16.msra.mxu0 0
        %1597 = vmatprep.subr.bf16.mxu0 0
        %1598 = vmatpush1.bf16.msra.mxu0 0
        %1599 = vmatprep.subr.bf16.mxu0 0
        %1600 = vmatpush1.bf16.msra.mxu0 0
        %1601 = vmatprep.subr.bf16.mxu0 0
        %1602 = vmatpush1.bf16.msra.mxu0 0
        %1603 = vmatprep.subr.bf16.mxu0 0
        %1604 = vmatpush1.bf16.msra.mxu0 0
        %1605 = vmatprep.subr.bf16.mxu0 0
        %1606 = vmatpush1.bf16.msra.mxu0 0
        %1607 = vmatprep.subr.bf16.mxu0 0
        %1608 = vmatpush1.bf16.msra.mxu0 0
        %1609 = vmatprep.subr.bf16.mxu0 0
        %1610 = vmatpush1.bf16.msra.mxu0 0
        %1611 = vmatprep.subr.bf16.mxu0 0
        %1612 = vmatpush1.bf16.msra.mxu0 0
        %1613 = vmatprep.subr.bf16.mxu0 0
        %1614 = vmatpush1.bf16.msra.mxu0 0
        %1615 = vmatprep.subr.bf16.mxu0 0
        %1616 = vmatpush1.bf16.msra.mxu0 0
        %1617 = vmatprep.subr.bf16.mxu0 0
        %1618 = vmatpush1.bf16.msra.mxu0 0
        %1619 = vmatprep.mubr.bf16.mxu0 0
        %1620 = vmatmul.mubr.bf16.gmra.mrb[0].mxu0 %v1366
        %v1621 = vpop.f32.mrb[0].mxu0
        %v1622 = vadd.f32 0.0, %v1621
        %v1623 = vpop.f32.mrb[0].mxu0
        %v1624 = vpop.f32.mrb[0].mxu0
        %v1625 = vadd.f32 0.0, %v1624
        %v1626 = vpop.f32.mrb[0].mxu0
        %1627 = vdwg.mxu0
        %v1630 = vunpack.c.l.s4 1983009808
        %v1631 = vunpack.c.0.s8 %v1630
        %v1632 = vlaneseq
        %v1633 = vshrl.u32 %v1632, 7
        %v1634 = vsub.s32 %v1631, %v1633
        %v1635 = vrot.slane %v561, %v1634
        %1636 = vrot.lane.b32.xlu0 %v1635, 127
        %v1637 = vpop.permute.xlu0 %1636
        %v1639 = vsel %vm637, %v1637, 0
        %1641 = vmatprep.subr.bf16.mxu0 0
        %1642 = vmatpush1.bf16.msra.mxu0 %v1639
        %1643 = vmatprep.subr.bf16.mxu0 0
        %1644 = vmatpush1.bf16.msra.mxu0 0
        %1645 = vmatprep.subr.bf16.mxu0 0
        %1646 = vmatpush1.bf16.msra.mxu0 0
        %1647 = vmatprep.subr.bf16.mxu0 0
        %1648 = vmatpush1.bf16.msra.mxu0 0
        %1649 = vmatprep.subr.bf16.mxu0 0
        %1650 = vmatpush1.bf16.msra.mxu0 0
        %1651 = vmatprep.subr.bf16.mxu0 0
        %1652 = vmatpush1.bf16.msra.mxu0 0
        %1653 = vmatprep.subr.bf16.mxu0 0
        %1654 = vmatpush1.bf16.msra.mxu0 0
        %1655 = vmatprep.subr.bf16.mxu0 0
        %1656 = vmatpush1.bf16.msra.mxu0 0
        %1657 = vmatprep.subr.bf16.mxu0 0
        %1658 = vmatpush1.bf16.msra.mxu0 0
        %1659 = vmatprep.subr.bf16.mxu0 0
        %1660 = vmatpush1.bf16.msra.mxu0 0
        %1661 = vmatprep.subr.bf16.mxu0 0
        %1662 = vmatpush1.bf16.msra.mxu0 0
        %1663 = vmatprep.subr.bf16.mxu0 0
        %1664 = vmatpush1.bf16.msra.mxu0 0
        %1665 = vmatprep.subr.bf16.mxu0 0
        %1666 = vmatpush1.bf16.msra.mxu0 0
        %1667 = vmatprep.subr.bf16.mxu0 0
        %1668 = vmatpush1.bf16.msra.mxu0 0
        %1669 = vmatprep.subr.bf16.mxu0 0
        %1670 = vmatpush1.bf16.msra.mxu0 0
        %1671 = vmatprep.subr.bf16.mxu0 0
        %1672 = vmatpush1.bf16.msra.mxu0 0
        %1673 = vmatprep.mubr.bf16.mxu0 0
        %1674 = vmatmul.mubr.bf16.gmra.mrb[0].mxu0 %v1366
        %v1675 = vpop.f32.mrb[0].mxu0
        %v1676 = vadd.f32 0.0, %v1675
        %v1677 = vpop.f32.mrb[0].mxu0
        %v1678 = vpop.f32.mrb[0].mxu0
        %v1679 = vadd.f32 0.0, %v1678
        %v1680 = vpop.f32.mrb[0].mxu0
        %1681 = vdwg.mxu0
        %v1684 = vunpack.c.l.s4 1983009808
        %v1685 = vunpack.c.0.s8 %v1684
        %v1686 = vlaneseq
        %v1687 = vshrl.u32 %v1686, 7
        %v1688 = vsub.s32 %v1685, %v1687
        %v1689 = vrot.slane %v562, %v1688
        %1690 = vrot.lane.b32.xlu0 %v1689, 127
        %v1691 = vpop.permute.xlu0 %1690
        %v1693 = vsel %vm637, %v1691, 0
        %1695 = vmatprep.subr.bf16.mxu0 0
        %1696 = vmatpush1.bf16.msra.mxu0 %v1693
        %1697 = vmatprep.subr.bf16.mxu0 0
        %1698 = vmatpush1.bf16.msra.mxu0 0
        %1699 = vmatprep.subr.bf16.mxu0 0
        %1700 = vmatpush1.bf16.msra.mxu0 0
        %1701 = vmatprep.subr.bf16.mxu0 0
        %1702 = vmatpush1.bf16.msra.mxu0 0
        %1703 = vmatprep.subr.bf16.mxu0 0
        %1704 = vmatpush1.bf16.msra.mxu0 0
        %1705 = vmatprep.subr.bf16.mxu0 0
        %1706 = vmatpush1.bf16.msra.mxu0 0
        %1707 = vmatprep.subr.bf16.mxu0 0
        %1708 = vmatpush1.bf16.msra.mxu0 0
        %1709 = vmatprep.subr.bf16.mxu0 0
        %1710 = vmatpush1.bf16.msra.mxu0 0
        %1711 = vmatprep.subr.bf16.mxu0 0
        %1712 = vmatpush1.bf16.msra.mxu0 0
        %1713 = vmatprep.subr.bf16.mxu0 0
        %1714 = vmatpush1.bf16.msra.mxu0 0
        %1715 = vmatprep.subr.bf16.mxu0 0
        %1716 = vmatpush1.bf16.msra.mxu0 0
        %1717 = vmatprep.subr.bf16.mxu0 0
        %1718 = vmatpush1.bf16.msra.mxu0 0
        %1719 = vmatprep.subr.bf16.mxu0 0
        %1720 = vmatpush1.bf16.msra.mxu0 0
        %1721 = vmatprep.subr.bf16.mxu0 0
        %1722 = vmatpush1.bf16.msra.mxu0 0
        %1723 = vmatprep.subr.bf16.mxu0 0
        %1724 = vmatpush1.bf16.msra.mxu0 0
        %1725 = vmatprep.subr.bf16.mxu0 0
        %1726 = vmatpush1.bf16.msra.mxu0 0
        %1727 = vmatprep.mubr.bf16.mxu0 0
        %1728 = vmatmul.mubr.bf16.gmra.mrb[0].mxu0 %v1366
        %v1729 = vpop.f32.mrb[0].mxu0
        %v1730 = vadd.f32 0.0, %v1729
        %v1731 = vpop.f32.mrb[0].mxu0
        %v1732 = vpop.f32.mrb[0].mxu0
        %v1733 = vadd.f32 0.0, %v1732
        %v1734 = vpop.f32.mrb[0].mxu0
        %1735 = vdwg.mxu0
        %v1738 = vunpack.c.l.s4 1983009808
        %v1739 = vunpack.c.0.s8 %v1738
        %v1740 = vlaneseq
        %v1741 = vshrl.u32 %v1740, 7
        %v1742 = vsub.s32 %v1739, %v1741
        %v1743 = vrot.slane %v563, %v1742
        %1744 = vrot.lane.b32.xlu0 %v1743, 127
        %v1745 = vpop.permute.xlu0 %1744
        %v1747 = vsel %vm637, %v1745, 0
        %1749 = vmatprep.subr.bf16.mxu0 0
        %1750 = vmatpush1.bf16.msra.mxu0 %v1747
        %1751 = vmatprep.subr.bf16.mxu0 0
        %1752 = vmatpush1.bf16.msra.mxu0 0
        %1753 = vmatprep.subr.bf16.mxu0 0
        %1754 = vmatpush1.bf16.msra.mxu0 0
        %1755 = vmatprep.subr.bf16.mxu0 0
        %1756 = vmatpush1.bf16.msra.mxu0 0
        %1757 = vmatprep.subr.bf16.mxu0 0
        %1758 = vmatpush1.bf16.msra.mxu0 0
        %1759 = vmatprep.subr.bf16.mxu0 0
        %1760 = vmatpush1.bf16.msra.mxu0 0
        %1761 = vmatprep.subr.bf16.mxu0 0
        %1762 = vmatpush1.bf16.msra.mxu0 0
        %1763 = vmatprep.subr.bf16.mxu0 0
        %1764 = vmatpush1.bf16.msra.mxu0 0
        %1765 = vmatprep.subr.bf16.mxu0 0
        %1766 = vmatpush1.bf16.msra.mxu0 0
        %1767 = vmatprep.subr.bf16.mxu0 0
        %1768 = vmatpush1.bf16.msra.mxu0 0
        %1769 = vmatprep.subr.bf16.mxu0 0
        %1770 = vmatpush1.bf16.msra.mxu0 0
        %1771 = vmatprep.subr.bf16.mxu0 0
        %1772 = vmatpush1.bf16.msra.mxu0 0
        %1773 = vmatprep.subr.bf16.mxu0 0
        %1774 = vmatpush1.bf16.msra.mxu0 0
        %1775 = vmatprep.subr.bf16.mxu0 0
        %1776 = vmatpush1.bf16.msra.mxu0 0
        %1777 = vmatprep.subr.bf16.mxu0 0
        %1778 = vmatpush1.bf16.msra.mxu0 0
        %1779 = vmatprep.subr.bf16.mxu0 0
        %1780 = vmatpush1.bf16.msra.mxu0 0
        %1781 = vmatprep.mubr.bf16.mxu0 0
        %1782 = vmatmul.mubr.bf16.gmra.mrb[0].mxu0 %v1366
        %v1783 = vpop.f32.mrb[0].mxu0
        %v1784 = vadd.f32 0.0, %v1783
        %v1785 = vpop.f32.mrb[0].mxu0
        %v1786 = vpop.f32.mrb[0].mxu0
        %v1787 = vadd.f32 0.0, %v1786
        %v1788 = vpop.f32.mrb[0].mxu0
        %1789 = vdwg.mxu0
        %v1790 = vadd.f32 %v1036, %v1406
        %v1791 = vadd.f32 %v1039, %v1409
        %v1792 = vadd.f32 %v1080, %v1460
        %v1793 = vadd.f32 %v1083, %v1463
        %v1794 = vadd.f32 %v1124, %v1514
        %v1795 = vadd.f32 %v1127, %v1517
        %v1796 = vadd.f32 %v1168, %v1568
        %v1797 = vadd.f32 %v1171, %v1571
        %v1798 = vadd.f32 %v1212, %v1622
        %v1799 = vadd.f32 %v1215, %v1625
        %v1800 = vadd.f32 %v1256, %v1676
        %v1801 = vadd.f32 %v1259, %v1679
        %v1802 = vadd.f32 %v1300, %v1730
        %v1803 = vadd.f32 %v1303, %v1733
        %v1804 = vadd.f32 %v1344, %v1784
        %v1805 = vadd.f32 %v1347, %v1787
        %v1808 = vunpack.c.l.b16 %v616
        %v1809 = vunpack.c.l.b16 %v617
        %v1810 = vpack.c.b16 %v1809, %v1808
        %v1812 = vsel %vm633, %v1810, 0
        %v1815 = vsel %vm637, %v574, 0
        %1817 = vmatprep.subr.bf16.mxu0 0
        %1818 = vmatpush1.bf16.msra.mxu0 %v1815
        %1819 = vmatprep.subr.bf16.mxu0 0
        %1820 = vmatpush1.bf16.msra.mxu0 0
        %1821 = vmatprep.subr.bf16.mxu0 0
        %1822 = vmatpush1.bf16.msra.mxu0 0
        %1823 = vmatprep.subr.bf16.mxu0 0
        %1824 = vmatpush1.bf16.msra.mxu0 0
        %1825 = vmatprep.subr.bf16.mxu0 0
        %1826 = vmatpush1.bf16.msra.mxu0 0
        %1827 = vmatprep.subr.bf16.mxu0 0
        %1828 = vmatpush1.bf16.msra.mxu0 0
        %1829 = vmatprep.subr.bf16.mxu0 0
        %1830 = vmatpush1.bf16.msra.mxu0 0
        %1831 = vmatprep.subr.bf16.mxu0 0
        %1832 = vmatpush1.bf16.msra.mxu0 0
        %1833 = vmatprep.subr.bf16.mxu0 0
        %1834 = vmatpush1.bf16.msra.mxu0 0
        %1835 = vmatprep.subr.bf16.mxu0 0
        %1836 = vmatpush1.bf16.msra.mxu0 0
        %1837 = vmatprep.subr.bf16.mxu0 0
        %1838 = vmatpush1.bf16.msra.mxu0 0
        %1839 = vmatprep.subr.bf16.mxu0 0
        %1840 = vmatpush1.bf16.msra.mxu0 0
        %1841 = vmatprep.subr.bf16.mxu0 0
        %1842 = vmatpush1.bf16.msra.mxu0 0
        %1843 = vmatprep.subr.bf16.mxu0 0
        %1844 = vmatpush1.bf16.msra.mxu0 0
        %1845 = vmatprep.subr.bf16.mxu0 0
        %1846 = vmatpush1.bf16.msra.mxu0 0
        %1847 = vmatprep.subr.bf16.mxu0 0
        %1848 = vmatpush1.bf16.msra.mxu0 0
        %1849 = vmatprep.mubr.bf16.mxu0 0
        %1850 = vmatmul.mubr.bf16.gmra.mrb[0].mxu0 %v1812
        %v1851 = vpop.f32.mrb[0].mxu0
        %v1852 = vadd.f32 0.0, %v1851
        %v1853 = vpop.f32.mrb[0].mxu0
        %v1854 = vpop.f32.mrb[0].mxu0
        %v1855 = vadd.f32 0.0, %v1854
        %v1856 = vpop.f32.mrb[0].mxu0
        %1857 = vdwg.mxu0
        %v1859 = vsel %vm637, %v575, 0
        %1861 = vmatprep.subr.bf16.mxu0 0
        %1862 = vmatpush1.bf16.msra.mxu0 %v1859
        %1863 = vmatprep.subr.bf16.mxu0 0
        %1864 = vmatpush1.bf16.msra.mxu0 0
        %1865 = vmatprep.subr.bf16.mxu0 0
        %1866 = vmatpush1.bf16.msra.mxu0 0
        %1867 = vmatprep.subr.bf16.mxu0 0
        %1868 = vmatpush1.bf16.msra.mxu0 0
        %1869 = vmatprep.subr.bf16.mxu0 0
        %1870 = vmatpush1.bf16.msra.mxu0 0
        %1871 = vmatprep.subr.bf16.mxu0 0
        %1872 = vmatpush1.bf16.msra.mxu0 0
        %1873 = vmatprep.subr.bf16.mxu0 0
        %1874 = vmatpush1.bf16.msra.mxu0 0
        %1875 = vmatprep.subr.bf16.mxu0 0
        %1876 = vmatpush1.bf16.msra.mxu0 0
        %1877 = vmatprep.subr.bf16.mxu0 0
        %1878 = vmatpush1.bf16.msra.mxu0 0
        %1879 = vmatprep.subr.bf16.mxu0 0
        %1880 = vmatpush1.bf16.msra.mxu0 0
        %1881 = vmatprep.subr.bf16.mxu0 0
        %1882 = vmatpush1.bf16.msra.mxu0 0
        %1883 = vmatprep.subr.bf16.mxu0 0
        %1884 = vmatpush1.bf16.msra.mxu0 0
        %1885 = vmatprep.subr.bf16.mxu0 0
        %1886 = vmatpush1.bf16.msra.mxu0 0
        %1887 = vmatprep.subr.bf16.mxu0 0
        %1888 = vmatpush1.bf16.msra.mxu0 0
        %1889 = vmatprep.subr.bf16.mxu0 0
        %1890 = vmatpush1.bf16.msra.mxu0 0
        %1891 = vmatprep.subr.bf16.mxu0 0
        %1892 = vmatpush1.bf16.msra.mxu0 0
        %1893 = vmatprep.mubr.bf16.mxu0 0
        %1894 = vmatmul.mubr.bf16.gmra.mrb[0].mxu0 %v1812
        %v1895 = vpop.f32.mrb[0].mxu0
        %v1896 = vadd.f32 0.0, %v1895
        %v1897 = vpop.f32.mrb[0].mxu0
        %v1898 = vpop.f32.mrb[0].mxu0
        %v1899 = vadd.f32 0.0, %v1898
        %v1900 = vpop.f32.mrb[0].mxu0
        %1901 = vdwg.mxu0
        %v1903 = vsel %vm637, %v576, 0
        %1905 = vmatprep.subr.bf16.mxu0 0
        %1906 = vmatpush1.bf16.msra.mxu0 %v1903
        %1907 = vmatprep.subr.bf16.mxu0 0
        %1908 = vmatpush1.bf16.msra.mxu0 0
        %1909 = vmatprep.subr.bf16.mxu0 0
        %1910 = vmatpush1.bf16.msra.mxu0 0
        %1911 = vmatprep.subr.bf16.mxu0 0
        %1912 = vmatpush1.bf16.msra.mxu0 0
        %1913 = vmatprep.subr.bf16.mxu0 0
        %1914 = vmatpush1.bf16.msra.mxu0 0
        %1915 = vmatprep.subr.bf16.mxu0 0
        %1916 = vmatpush1.bf16.msra.mxu0 0
        %1917 = vmatprep.subr.bf16.mxu0 0
        %1918 = vmatpush1.bf16.msra.mxu0 0
        %1919 = vmatprep.subr.bf16.mxu0 0
        %1920 = vmatpush1.bf16.msra.mxu0 0
        %1921 = vmatprep.subr.bf16.mxu0 0
        %1922 = vmatpush1.bf16.msra.mxu0 0
        %1923 = vmatprep.subr.bf16.mxu0 0
        %1924 = vmatpush1.bf16.msra.mxu0 0
        %1925 = vmatprep.subr.bf16.mxu0 0
        %1926 = vmatpush1.bf16.msra.mxu0 0
        %1927 = vmatprep.subr.bf16.mxu0 0
        %1928 = vmatpush1.bf16.msra.mxu0 0
        %1929 = vmatprep.subr.bf16.mxu0 0
        %1930 = vmatpush1.bf16.msra.mxu0 0
        %1931 = vmatprep.subr.bf16.mxu0 0
        %1932 = vmatpush1.bf16.msra.mxu0 0
        %1933 = vmatprep.subr.bf16.mxu0 0
        %1934 = vmatpush1.bf16.msra.mxu0 0
        %1935 = vmatprep.subr.bf16.mxu0 0
        %1936 = vmatpush1.bf16.msra.mxu0 0
        %1937 = vmatprep.mubr.bf16.mxu0 0
        %1938 = vmatmul.mubr.bf16.gmra.mrb[0].mxu0 %v1812
        %v1939 = vpop.f32.mrb[0].mxu0
        %v1940 = vadd.f32 0.0, %v1939
        %v1941 = vpop.f32.mrb[0].mxu0
        %v1942 = vpop.f32.mrb[0].mxu0
        %v1943 = vadd.f32 0.0, %v1942
        %v1944 = vpop.f32.mrb[0].mxu0
        %1945 = vdwg.mxu0
        %v1947 = vsel %vm637, %v577, 0
        %1949 = vmatprep.subr.bf16.mxu0 0
        %1950 = vmatpush1.bf16.msra.mxu0 %v1947
        %1951 = vmatprep.subr.bf16.mxu0 0
        %1952 = vmatpush1.bf16.msra.mxu0 0
        %1953 = vmatprep.subr.bf16.mxu0 0
        %1954 = vmatpush1.bf16.msra.mxu0 0
        %1955 = vmatprep.subr.bf16.mxu0 0
        %1956 = vmatpush1.bf16.msra.mxu0 0
        %1957 = vmatprep.subr.bf16.mxu0 0
        %1958 = vmatpush1.bf16.msra.mxu0 0
        %1959 = vmatprep.subr.bf16.mxu0 0
        %1960 = vmatpush1.bf16.msra.mxu0 0
        %1961 = vmatprep.subr.bf16.mxu0 0
        %1962 = vmatpush1.bf16.msra.mxu0 0
        %1963 = vmatprep.subr.bf16.mxu0 0
        %1964 = vmatpush1.bf16.msra.mxu0 0
        %1965 = vmatprep.subr.bf16.mxu0 0
        %1966 = vmatpush1.bf16.msra.mxu0 0
        %1967 = vmatprep.subr.bf16.mxu0 0
        %1968 = vmatpush1.bf16.msra.mxu0 0
        %1969 = vmatprep.subr.bf16.mxu0 0
        %1970 = vmatpush1.bf16.msra.mxu0 0
        %1971 = vmatprep.subr.bf16.mxu0 0
        %1972 = vmatpush1.bf16.msra.mxu0 0
        %1973 = vmatprep.subr.bf16.mxu0 0
        %1974 = vmatpush1.bf16.msra.mxu0 0
        %1975 = vmatprep.subr.bf16.mxu0 0
        %1976 = vmatpush1.bf16.msra.mxu0 0
        %1977 = vmatprep.subr.bf16.mxu0 0
        %1978 = vmatpush1.bf16.msra.mxu0 0
        %1979 = vmatprep.subr.bf16.mxu0 0
        %1980 = vmatpush1.bf16.msra.mxu0 0
        %1981 = vmatprep.mubr.bf16.mxu0 0
        %1982 = vmatmul.mubr.bf16.gmra.mrb[0].mxu0 %v1812
        %v1983 = vpop.f32.mrb[0].mxu0
        %v1984 = vadd.f32 0.0, %v1983
        %v1985 = vpop.f32.mrb[0].mxu0
        %v1986 = vpop.f32.mrb[0].mxu0
        %v1987 = vadd.f32 0.0, %v1986
        %v1988 = vpop.f32.mrb[0].mxu0
        %1989 = vdwg.mxu0
        %v1991 = vsel %vm637, %v578, 0
        %1993 = vmatprep.subr.bf16.mxu0 0
        %1994 = vmatpush1.bf16.msra.mxu0 %v1991
        %1995 = vmatprep.subr.bf16.mxu0 0
        %1996 = vmatpush1.bf16.msra.mxu0 0
        %1997 = vmatprep.subr.bf16.mxu0 0
        %1998 = vmatpush1.bf16.msra.mxu0 0
        %1999 = vmatprep.subr.bf16.mxu0 0
        %2000 = vmatpush1.bf16.msra.mxu0 0
        %2001 = vmatprep.subr.bf16.mxu0 0
        %2002 = vmatpush1.bf16.msra.mxu0 0
        %2003 = vmatprep.subr.bf16.mxu0 0
        %2004 = vmatpush1.bf16.msra.mxu0 0
        %2005 = vmatprep.subr.bf16.mxu0 0
        %2006 = vmatpush1.bf16.msra.mxu0 0
        %2007 = vmatprep.subr.bf16.mxu0 0
        %2008 = vmatpush1.bf16.msra.mxu0 0
        %2009 = vmatprep.subr.bf16.mxu0 0
        %2010 = vmatpush1.bf16.msra.mxu0 0
        %2011 = vmatprep.subr.bf16.mxu0 0
        %2012 = vmatpush1.bf16.msra.mxu0 0
        %2013 = vmatprep.subr.bf16.mxu0 0
        %2014 = vmatpush1.bf16.msra.mxu0 0
        %2015 = vmatprep.subr.bf16.mxu0 0
        %2016 = vmatpush1.bf16.msra.mxu0 0
        %2017 = vmatprep.subr.bf16.mxu0 0
        %2018 = vmatpush1.bf16.msra.mxu0 0
        %2019 = vmatprep.subr.bf16.mxu0 0
        %2020 = vmatpush1.bf16.msra.mxu0 0
        %2021 = vmatprep.subr.bf16.mxu0 0
        %2022 = vmatpush1.bf16.msra.mxu0 0
        %2023 = vmatprep.subr.bf16.mxu0 0
        %2024 = vmatpush1.bf16.msra.mxu0 0
        %2025 = vmatprep.mubr.bf16.mxu0 0
        %2026 = vmatmul.mubr.bf16.gmra.mrb[0].mxu0 %v1812
        %v2027 = vpop.f32.mrb[0].mxu0
        %v2028 = vadd.f32 0.0, %v2027
        %v2029 = vpop.f32.mrb[0].mxu0
        %v2030 = vpop.f32.mrb[0].mxu0
        %v2031 = vadd.f32 0.0, %v2030
        %v2032 = vpop.f32.mrb[0].mxu0
        %2033 = vdwg.mxu0
        %v2035 = vsel %vm637, %v579, 0
        %2037 = vmatprep.subr.bf16.mxu0 0
        %2038 = vmatpush1.bf16.msra.mxu0 %v2035
        %2039 = vmatprep.subr.bf16.mxu0 0
        %2040 = vmatpush1.bf16.msra.mxu0 0
        %2041 = vmatprep.subr.bf16.mxu0 0
        %2042 = vmatpush1.bf16.msra.mxu0 0
        %2043 = vmatprep.subr.bf16.mxu0 0
        %2044 = vmatpush1.bf16.msra.mxu0 0
        %2045 = vmatprep.subr.bf16.mxu0 0
        %2046 = vmatpush1.bf16.msra.mxu0 0
        %2047 = vmatprep.subr.bf16.mxu0 0
        %2048 = vmatpush1.bf16.msra.mxu0 0
        %2049 = vmatprep.subr.bf16.mxu0 0
        %2050 = vmatpush1.bf16.msra.mxu0 0
        %2051 = vmatprep.subr.bf16.mxu0 0
        %2052 = vmatpush1.bf16.msra.mxu0 0
        %2053 = vmatprep.subr.bf16.mxu0 0
        %2054 = vmatpush1.bf16.msra.mxu0 0
        %2055 = vmatprep.subr.bf16.mxu0 0
        %2056 = vmatpush1.bf16.msra.mxu0 0
        %2057 = vmatprep.subr.bf16.mxu0 0
        %2058 = vmatpush1.bf16.msra.mxu0 0
        %2059 = vmatprep.subr.bf16.mxu0 0
        %2060 = vmatpush1.bf16.msra.mxu0 0
        %2061 = vmatprep.subr.bf16.mxu0 0
        %2062 = vmatpush1.bf16.msra.mxu0 0
        %2063 = vmatprep.subr.bf16.mxu0 0
        %2064 = vmatpush1.bf16.msra.mxu0 0
        %2065 = vmatprep.subr.bf16.mxu0 0
        %2066 = vmatpush1.bf16.msra.mxu0 0
        %2067 = vmatprep.subr.bf16.mxu0 0
        %2068 = vmatpush1.bf16.msra.mxu0 0
        %2069 = vmatprep.mubr.bf16.mxu0 0
        %2070 = vmatmul.mubr.bf16.gmra.mrb[0].mxu0 %v1812
        %v2071 = vpop.f32.mrb[0].mxu0
        %v2072 = vadd.f32 0.0, %v2071
        %v2073 = vpop.f32.mrb[0].mxu0
        %v2074 = vpop.f32.mrb[0].mxu0
        %v2075 = vadd.f32 0.0, %v2074
        %v2076 = vpop.f32.mrb[0].mxu0
        %2077 = vdwg.mxu0
        %v2079 = vsel %vm637, %v580, 0
        %2081 = vmatprep.subr.bf16.mxu0 0
        %2082 = vmatpush1.bf16.msra.mxu0 %v2079
        %2083 = vmatprep.subr.bf16.mxu0 0
        %2084 = vmatpush1.bf16.msra.mxu0 0
        %2085 = vmatprep.subr.bf16.mxu0 0
        %2086 = vmatpush1.bf16.msra.mxu0 0
        %2087 = vmatprep.subr.bf16.mxu0 0
        %2088 = vmatpush1.bf16.msra.mxu0 0
        %2089 = vmatprep.subr.bf16.mxu0 0
        %2090 = vmatpush1.bf16.msra.mxu0 0
        %2091 = vmatprep.subr.bf16.mxu0 0
        %2092 = vmatpush1.bf16.msra.mxu0 0
        %2093 = vmatprep.subr.bf16.mxu0 0
        %2094 = vmatpush1.bf16.msra.mxu0 0
        %2095 = vmatprep.subr.bf16.mxu0 0
        %2096 = vmatpush1.bf16.msra.mxu0 0
        %2097 = vmatprep.subr.bf16.mxu0 0
        %2098 = vmatpush1.bf16.msra.mxu0 0
        %2099 = vmatprep.subr.bf16.mxu0 0
        %2100 = vmatpush1.bf16.msra.mxu0 0
        %2101 = vmatprep.subr.bf16.mxu0 0
        %2102 = vmatpush1.bf16.msra.mxu0 0
        %2103 = vmatprep.subr.bf16.mxu0 0
        %2104 = vmatpush1.bf16.msra.mxu0 0
        %2105 = vmatprep.subr.bf16.mxu0 0
        %2106 = vmatpush1.bf16.msra.mxu0 0
        %2107 = vmatprep.subr.bf16.mxu0 0
        %2108 = vmatpush1.bf16.msra.mxu0 0
        %2109 = vmatprep.subr.bf16.mxu0 0
        %2110 = vmatpush1.bf16.msra.mxu0 0
        %2111 = vmatprep.subr.bf16.mxu0 0
        %2112 = vmatpush1.bf16.msra.mxu0 0
        %2113 = vmatprep.mubr.bf16.mxu0 0
        %2114 = vmatmul.mubr.bf16.gmra.mrb[0].mxu0 %v1812
        %v2115 = vpop.f32.mrb[0].mxu0
        %v2116 = vadd.f32 0.0, %v2115
        %v2117 = vpop.f32.mrb[0].mxu0
        %v2118 = vpop.f32.mrb[0].mxu0
        %v2119 = vadd.f32 0.0, %v2118
        %v2120 = vpop.f32.mrb[0].mxu0
        %2121 = vdwg.mxu0
        %v2123 = vsel %vm637, %v581, 0
        %2125 = vmatprep.subr.bf16.mxu0 0
        %2126 = vmatpush1.bf16.msra.mxu0 %v2123
        %2127 = vmatprep.subr.bf16.mxu0 0
        %2128 = vmatpush1.bf16.msra.mxu0 0
        %2129 = vmatprep.subr.bf16.mxu0 0
        %2130 = vmatpush1.bf16.msra.mxu0 0
        %2131 = vmatprep.subr.bf16.mxu0 0
        %2132 = vmatpush1.bf16.msra.mxu0 0
        %2133 = vmatprep.subr.bf16.mxu0 0
        %2134 = vmatpush1.bf16.msra.mxu0 0
        %2135 = vmatprep.subr.bf16.mxu0 0
        %2136 = vmatpush1.bf16.msra.mxu0 0
        %2137 = vmatprep.subr.bf16.mxu0 0
        %2138 = vmatpush1.bf16.msra.mxu0 0
        %2139 = vmatprep.subr.bf16.mxu0 0
        %2140 = vmatpush1.bf16.msra.mxu0 0
        %2141 = vmatprep.subr.bf16.mxu0 0
        %2142 = vmatpush1.bf16.msra.mxu0 0
        %2143 = vmatprep.subr.bf16.mxu0 0
        %2144 = vmatpush1.bf16.msra.mxu0 0
        %2145 = vmatprep.subr.bf16.mxu0 0
        %2146 = vmatpush1.bf16.msra.mxu0 0
        %2147 = vmatprep.subr.bf16.mxu0 0
        %2148 = vmatpush1.bf16.msra.mxu0 0
        %2149 = vmatprep.subr.bf16.mxu0 0
        %2150 = vmatpush1.bf16.msra.mxu0 0
        %2151 = vmatprep.subr.bf16.mxu0 0
        %2152 = vmatpush1.bf16.msra.mxu0 0
        %2153 = vmatprep.subr.bf16.mxu0 0
        %2154 = vmatpush1.bf16.msra.mxu0 0
        %2155 = vmatprep.subr.bf16.mxu0 0
        %2156 = vmatpush1.bf16.msra.mxu0 0
        %2157 = vmatprep.mubr.bf16.mxu0 0
        %2158 = vmatmul.mubr.bf16.gmra.mrb[0].mxu0 %v1812
        %v2159 = vpop.f32.mrb[0].mxu0
        %v2160 = vadd.f32 0.0, %v2159
        %v2161 = vpop.f32.mrb[0].mxu0
        %v2162 = vpop.f32.mrb[0].mxu0
        %v2163 = vadd.f32 0.0, %v2162
        %v2164 = vpop.f32.mrb[0].mxu0
        %2165 = vdwg.mxu0
        %v2166 = vadd.f32 %v1790, %v1852
        %v2167 = vadd.f32 %v1791, %v1855
        %v2168 = vadd.f32 %v1792, %v1896
        %v2169 = vadd.f32 %v1793, %v1899
        %v2170 = vadd.f32 %v1794, %v1940
        %v2171 = vadd.f32 %v1795, %v1943
        %v2172 = vadd.f32 %v1796, %v1984
        %v2173 = vadd.f32 %v1797, %v1987
        %v2174 = vadd.f32 %v1798, %v2028
        %v2175 = vadd.f32 %v1799, %v2031
        %v2176 = vadd.f32 %v1800, %v2072
        %v2177 = vadd.f32 %v1801, %v2075
        %v2178 = vadd.f32 %v1802, %v2116
        %v2179 = vadd.f32 %v1803, %v2119
        %v2180 = vadd.f32 %v1804, %v2160
        %v2181 = vadd.f32 %v1805, %v2163
        %v2184 = vunpack.c.l.b16 %v618
        %v2185 = vunpack.c.l.b16 %v619
        %v2186 = vpack.c.b16 %v2185, %v2184
        %v2188 = vsel %vm633, %v2186, 0
        %v2191 = vsel %vm637, %v583, 0
        %2193 = vmatprep.subr.bf16.mxu0 0
        %2194 = vmatpush1.bf16.msra.mxu0 %v2191
        %2195 = vmatprep.subr.bf16.mxu0 0
        %2196 = vmatpush1.bf16.msra.mxu0 0
        %2197 = vmatprep.subr.bf16.mxu0 0
        %2198 = vmatpush1.bf16.msra.mxu0 0
        %2199 = vmatprep.subr.bf16.mxu0 0
        %2200 = vmatpush1.bf16.msra.mxu0 0
        %2201 = vmatprep.subr.bf16.mxu0 0
        %2202 = vmatpush1.bf16.msra.mxu0 0
        %2203 = vmatprep.subr.bf16.mxu0 0
        %2204 = vmatpush1.bf16.msra.mxu0 0
        %2205 = vmatprep.subr.bf16.mxu0 0
        %2206 = vmatpush1.bf16.msra.mxu0 0
        %2207 = vmatprep.subr.bf16.mxu0 0
        %2208 = vmatpush1.bf16.msra.mxu0 0
        %2209 = vmatprep.subr.bf16.mxu0 0
        %2210 = vmatpush1.bf16.msra.mxu0 0
        %2211 = vmatprep.subr.bf16.mxu0 0
        %2212 = vmatpush1.bf16.msra.mxu0 0
        %2213 = vmatprep.subr.bf16.mxu0 0
        %2214 = vmatpush1.bf16.msra.mxu0 0
        %2215 = vmatprep.subr.bf16.mxu0 0
        %2216 = vmatpush1.bf16.msra.mxu0 0
        %2217 = vmatprep.subr.bf16.mxu0 0
        %2218 = vmatpush1.bf16.msra.mxu0 0
        %2219 = vmatprep.subr.bf16.mxu0 0
        %2220 = vmatpush1.bf16.msra.mxu0 0
        %2221 = vmatprep.subr.bf16.mxu0 0
        %2222 = vmatpush1.bf16.msra.mxu0 0
        %2223 = vmatprep.subr.bf16.mxu0 0
        %2224 = vmatpush1.bf16.msra.mxu0 0
        %2225 = vmatprep.mubr.bf16.mxu0 0
        %2226 = vmatmul.mubr.bf16.gmra.mrb[0].mxu0 %v2188
        %v2227 = vpop.f32.mrb[0].mxu0
        %v2228 = vadd.f32 0.0, %v2227
        %v2229 = vpop.f32.mrb[0].mxu0
        %v2230 = vpop.f32.mrb[0].mxu0
        %v2231 = vadd.f32 0.0, %v2230
        %v2232 = vpop.f32.mrb[0].mxu0
        %2233 = vdwg.mxu0
        %v2235 = vsel %vm637, %v584, 0
        %2237 = vmatprep.subr.bf16.mxu0 0
        %2238 = vmatpush1.bf16.msra.mxu0 %v2235
        %2239 = vmatprep.subr.bf16.mxu0 0
        %2240 = vmatpush1.bf16.msra.mxu0 0
        %2241 = vmatprep.subr.bf16.mxu0 0
        %2242 = vmatpush1.bf16.msra.mxu0 0
        %2243 = vmatprep.subr.bf16.mxu0 0
        %2244 = vmatpush1.bf16.msra.mxu0 0
        %2245 = vmatprep.subr.bf16.mxu0 0
        %2246 = vmatpush1.bf16.msra.mxu0 0
        %2247 = vmatprep.subr.bf16.mxu0 0
        %2248 = vmatpush1.bf16.msra.mxu0 0
        %2249 = vmatprep.subr.bf16.mxu0 0
        %2250 = vmatpush1.bf16.msra.mxu0 0
        %2251 = vmatprep.subr.bf16.mxu0 0
        %2252 = vmatpush1.bf16.msra.mxu0 0
        %2253 = vmatprep.subr.bf16.mxu0 0
        %2254 = vmatpush1.bf16.msra.mxu0 0
        %2255 = vmatprep.subr.bf16.mxu0 0
        %2256 = vmatpush1.bf16.msra.mxu0 0
        %2257 = vmatprep.subr.bf16.mxu0 0
        %2258 = vmatpush1.bf16.msra.mxu0 0
        %2259 = vmatprep.subr.bf16.mxu0 0
        %2260 = vmatpush1.bf16.msra.mxu0 0
        %2261 = vmatprep.subr.bf16.mxu0 0
        %2262 = vmatpush1.bf16.msra.mxu0 0
        %2263 = vmatprep.subr.bf16.mxu0 0
        %2264 = vmatpush1.bf16.msra.mxu0 0
        %2265 = vmatprep.subr.bf16.mxu0 0
        %2266 = vmatpush1.bf16.msra.mxu0 0
        %2267 = vmatprep.subr.bf16.mxu0 0
        %2268 = vmatpush1.bf16.msra.mxu0 0
        %2269 = vmatprep.mubr.bf16.mxu0 0
        %2270 = vmatmul.mubr.bf16.gmra.mrb[0].mxu0 %v2188
        %v2271 = vpop.f32.mrb[0].mxu0
        %v2272 = vadd.f32 0.0, %v2271
        %v2273 = vpop.f32.mrb[0].mxu0
        %v2274 = vpop.f32.mrb[0].mxu0
        %v2275 = vadd.f32 0.0, %v2274
        %v2276 = vpop.f32.mrb[0].mxu0
        %2277 = vdwg.mxu0
        %v2279 = vsel %vm637, %v585, 0
        %2281 = vmatprep.subr.bf16.mxu0 0
        %2282 = vmatpush1.bf16.msra.mxu0 %v2279
        %2283 = vmatprep.subr.bf16.mxu0 0
        %2284 = vmatpush1.bf16.msra.mxu0 0
        %2285 = vmatprep.subr.bf16.mxu0 0
        %2286 = vmatpush1.bf16.msra.mxu0 0
        %2287 = vmatprep.subr.bf16.mxu0 0
        %2288 = vmatpush1.bf16.msra.mxu0 0
        %2289 = vmatprep.subr.bf16.mxu0 0
        %2290 = vmatpush1.bf16.msra.mxu0 0
        %2291 = vmatprep.subr.bf16.mxu0 0
        %2292 = vmatpush1.bf16.msra.mxu0 0
        %2293 = vmatprep.subr.bf16.mxu0 0
        %2294 = vmatpush1.bf16.msra.mxu0 0
        %2295 = vmatprep.subr.bf16.mxu0 0
        %2296 = vmatpush1.bf16.msra.mxu0 0
        %2297 = vmatprep.subr.bf16.mxu0 0
        %2298 = vmatpush1.bf16.msra.mxu0 0
        %2299 = vmatprep.subr.bf16.mxu0 0
        %2300 = vmatpush1.bf16.msra.mxu0 0
        %2301 = vmatprep.subr.bf16.mxu0 0
        %2302 = vmatpush1.bf16.msra.mxu0 0
        %2303 = vmatprep.subr.bf16.mxu0 0
        %2304 = vmatpush1.bf16.msra.mxu0 0
        %2305 = vmatprep.subr.bf16.mxu0 0
        %2306 = vmatpush1.bf16.msra.mxu0 0
        %2307 = vmatprep.subr.bf16.mxu0 0
        %2308 = vmatpush1.bf16.msra.mxu0 0
        %2309 = vmatprep.subr.bf16.mxu0 0
        %2310 = vmatpush1.bf16.msra.mxu0 0
        %2311 = vmatprep.subr.bf16.mxu0 0
        %2312 = vmatpush1.bf16.msra.mxu0 0
        %2313 = vmatprep.mubr.bf16.mxu0 0
        %2314 = vmatmul.mubr.bf16.gmra.mrb[0].mxu0 %v2188
        %v2315 = vpop.f32.mrb[0].mxu0
        %v2316 = vadd.f32 0.0, %v2315
        %v2317 = vpop.f32.mrb[0].mxu0
        %v2318 = vpop.f32.mrb[0].mxu0
        %v2319 = vadd.f32 0.0, %v2318
        %v2320 = vpop.f32.mrb[0].mxu0
        %2321 = vdwg.mxu0
        %v2323 = vsel %vm637, %v586, 0
        %2325 = vmatprep.subr.bf16.mxu0 0
        %2326 = vmatpush1.bf16.msra.mxu0 %v2323
        %2327 = vmatprep.subr.bf16.mxu0 0
        %2328 = vmatpush1.bf16.msra.mxu0 0
        %2329 = vmatprep.subr.bf16.mxu0 0
        %2330 = vmatpush1.bf16.msra.mxu0 0
        %2331 = vmatprep.subr.bf16.mxu0 0
        %2332 = vmatpush1.bf16.msra.mxu0 0
        %2333 = vmatprep.subr.bf16.mxu0 0
        %2334 = vmatpush1.bf16.msra.mxu0 0
        %2335 = vmatprep.subr.bf16.mxu0 0
        %2336 = vmatpush1.bf16.msra.mxu0 0
        %2337 = vmatprep.subr.bf16.mxu0 0
        %2338 = vmatpush1.bf16.msra.mxu0 0
        %2339 = vmatprep.subr.bf16.mxu0 0
        %2340 = vmatpush1.bf16.msra.mxu0 0
        %2341 = vmatprep.subr.bf16.mxu0 0
        %2342 = vmatpush1.bf16.msra.mxu0 0
        %2343 = vmatprep.subr.bf16.mxu0 0
        %2344 = vmatpush1.bf16.msra.mxu0 0
        %2345 = vmatprep.subr.bf16.mxu0 0
        %2346 = vmatpush1.bf16.msra.mxu0 0
        %2347 = vmatprep.subr.bf16.mxu0 0
        %2348 = vmatpush1.bf16.msra.mxu0 0
        %2349 = vmatprep.subr.bf16.mxu0 0
        %2350 = vmatpush1.bf16.msra.mxu0 0
        %2351 = vmatprep.subr.bf16.mxu0 0
        %2352 = vmatpush1.bf16.msra.mxu0 0
        %2353 = vmatprep.subr.bf16.mxu0 0
        %2354 = vmatpush1.bf16.msra.mxu0 0
        %2355 = vmatprep.subr.bf16.mxu0 0
        %2356 = vmatpush1.bf16.msra.mxu0 0
        %2357 = vmatprep.mubr.bf16.mxu0 0
        %2358 = vmatmul.mubr.bf16.gmra.mrb[0].mxu0 %v2188
        %v2359 = vpop.f32.mrb[0].mxu0
        %v2360 = vadd.f32 0.0, %v2359
        %v2361 = vpop.f32.mrb[0].mxu0
        %v2362 = vpop.f32.mrb[0].mxu0
        %v2363 = vadd.f32 0.0, %v2362
        %v2364 = vpop.f32.mrb[0].mxu0
        %2365 = vdwg.mxu0
        %v2367 = vsel %vm637, %v587, 0
        %2369 = vmatprep.subr.bf16.mxu0 0
        %2370 = vmatpush1.bf16.msra.mxu0 %v2367
        %2371 = vmatprep.subr.bf16.mxu0 0
        %2372 = vmatpush1.bf16.msra.mxu0 0
        %2373 = vmatprep.subr.bf16.mxu0 0
        %2374 = vmatpush1.bf16.msra.mxu0 0
        %2375 = vmatprep.subr.bf16.mxu0 0
        %2376 = vmatpush1.bf16.msra.mxu0 0
        %2377 = vmatprep.subr.bf16.mxu0 0
        %2378 = vmatpush1.bf16.msra.mxu0 0
        %2379 = vmatprep.subr.bf16.mxu0 0
        %2380 = vmatpush1.bf16.msra.mxu0 0
        %2381 = vmatprep.subr.bf16.mxu0 0
        %2382 = vmatpush1.bf16.msra.mxu0 0
        %2383 = vmatprep.subr.bf16.mxu0 0
        %2384 = vmatpush1.bf16.msra.mxu0 0
        %2385 = vmatprep.subr.bf16.mxu0 0
        %2386 = vmatpush1.bf16.msra.mxu0 0
        %2387 = vmatprep.subr.bf16.mxu0 0
        %2388 = vmatpush1.bf16.msra.mxu0 0
        %2389 = vmatprep.subr.bf16.mxu0 0
        %2390 = vmatpush1.bf16.msra.mxu0 0
        %2391 = vmatprep.subr.bf16.mxu0 0
        %2392 = vmatpush1.bf16.msra.mxu0 0
        %2393 = vmatprep.subr.bf16.mxu0 0
        %2394 = vmatpush1.bf16.msra.mxu0 0
        %2395 = vmatprep.subr.bf16.mxu0 0
        %2396 = vmatpush1.bf16.msra.mxu0 0
        %2397 = vmatprep.subr.bf16.mxu0 0
        %2398 = vmatpush1.bf16.msra.mxu0 0
        %2399 = vmatprep.subr.bf16.mxu0 0
        %2400 = vmatpush1.bf16.msra.mxu0 0
        %2401 = vmatprep.mubr.bf16.mxu0 0
        %2402 = vmatmul.mubr.bf16.gmra.mrb[0].mxu0 %v2188
        %v2403 = vpop.f32.mrb[0].mxu0
        %v2404 = vadd.f32 0.0, %v2403
        %v2405 = vpop.f32.mrb[0].mxu0
        %v2406 = vpop.f32.mrb[0].mxu0
        %v2407 = vadd.f32 0.0, %v2406
        %v2408 = vpop.f32.mrb[0].mxu0
        %2409 = vdwg.mxu0
        %v2411 = vsel %vm637, %v588, 0
        %2413 = vmatprep.subr.bf16.mxu0 0
        %2414 = vmatpush1.bf16.msra.mxu0 %v2411
        %2415 = vmatprep.subr.bf16.mxu0 0
        %2416 = vmatpush1.bf16.msra.mxu0 0
        %2417 = vmatprep.subr.bf16.mxu0 0
        %2418 = vmatpush1.bf16.msra.mxu0 0
        %2419 = vmatprep.subr.bf16.mxu0 0
        %2420 = vmatpush1.bf16.msra.mxu0 0
        %2421 = vmatprep.subr.bf16.mxu0 0
        %2422 = vmatpush1.bf16.msra.mxu0 0
        %2423 = vmatprep.subr.bf16.mxu0 0
        %2424 = vmatpush1.bf16.msra.mxu0 0
        %2425 = vmatprep.subr.bf16.mxu0 0
        %2426 = vmatpush1.bf16.msra.mxu0 0
        %2427 = vmatprep.subr.bf16.mxu0 0
        %2428 = vmatpush1.bf16.msra.mxu0 0
        %2429 = vmatprep.subr.bf16.mxu0 0
        %2430 = vmatpush1.bf16.msra.mxu0 0
        %2431 = vmatprep.subr.bf16.mxu0 0
        %2432 = vmatpush1.bf16.msra.mxu0 0
        %2433 = vmatprep.subr.bf16.mxu0 0
        %2434 = vmatpush1.bf16.msra.mxu0 0
        %2435 = vmatprep.subr.bf16.mxu0 0
        %2436 = vmatpush1.bf16.msra.mxu0 0
        %2437 = vmatprep.subr.bf16.mxu0 0
        %2438 = vmatpush1.bf16.msra.mxu0 0
        %2439 = vmatprep.subr.bf16.mxu0 0
        %2440 = vmatpush1.bf16.msra.mxu0 0
        %2441 = vmatprep.subr.bf16.mxu0 0
        %2442 = vmatpush1.bf16.msra.mxu0 0
        %2443 = vmatprep.subr.bf16.mxu0 0
        %2444 = vmatpush1.bf16.msra.mxu0 0
        %2445 = vmatprep.mubr.bf16.mxu0 0
        %2446 = vmatmul.mubr.bf16.gmra.mrb[0].mxu0 %v2188
        %v2447 = vpop.f32.mrb[0].mxu0
        %v2448 = vadd.f32 0.0, %v2447
        %v2449 = vpop.f32.mrb[0].mxu0
        %v2450 = vpop.f32.mrb[0].mxu0
        %v2451 = vadd.f32 0.0, %v2450
        %v2452 = vpop.f32.mrb[0].mxu0
        %2453 = vdwg.mxu0
        %v2455 = vsel %vm637, %v589, 0
        %2457 = vmatprep.subr.bf16.mxu0 0
        %2458 = vmatpush1.bf16.msra.mxu0 %v2455
        %2459 = vmatprep.subr.bf16.mxu0 0
        %2460 = vmatpush1.bf16.msra.mxu0 0
        %2461 = vmatprep.subr.bf16.mxu0 0
        %2462 = vmatpush1.bf16.msra.mxu0 0
        %2463 = vmatprep.subr.bf16.mxu0 0
        %2464 = vmatpush1.bf16.msra.mxu0 0
        %2465 = vmatprep.subr.bf16.mxu0 0
        %2466 = vmatpush1.bf16.msra.mxu0 0
        %2467 = vmatprep.subr.bf16.mxu0 0
        %2468 = vmatpush1.bf16.msra.mxu0 0
        %2469 = vmatprep.subr.bf16.mxu0 0
        %2470 = vmatpush1.bf16.msra.mxu0 0
        %2471 = vmatprep.subr.bf16.mxu0 0
        %2472 = vmatpush1.bf16.msra.mxu0 0
        %2473 = vmatprep.subr.bf16.mxu0 0
        %2474 = vmatpush1.bf16.msra.mxu0 0
        %2475 = vmatprep.subr.bf16.mxu0 0
        %2476 = vmatpush1.bf16.msra.mxu0 0
        %2477 = vmatprep.subr.bf16.mxu0 0
        %2478 = vmatpush1.bf16.msra.mxu0 0
        %2479 = vmatprep.subr.bf16.mxu0 0
        %2480 = vmatpush1.bf16.msra.mxu0 0
        %2481 = vmatprep.subr.bf16.mxu0 0
        %2482 = vmatpush1.bf16.msra.mxu0 0
        %2483 = vmatprep.subr.bf16.mxu0 0
        %2484 = vmatpush1.bf16.msra.mxu0 0
        %2485 = vmatprep.subr.bf16.mxu0 0
        %2486 = vmatpush1.bf16.msra.mxu0 0
        %2487 = vmatprep.subr.bf16.mxu0 0
        %2488 = vmatpush1.bf16.msra.mxu0 0
        %2489 = vmatprep.mubr.bf16.mxu0 0
        %2490 = vmatmul.mubr.bf16.gmra.mrb[0].mxu0 %v2188
        %v2491 = vpop.f32.mrb[0].mxu0
        %v2492 = vadd.f32 0.0, %v2491
        %v2493 = vpop.f32.mrb[0].mxu0
        %v2494 = vpop.f32.mrb[0].mxu0
        %v2495 = vadd.f32 0.0, %v2494
        %v2496 = vpop.f32.mrb[0].mxu0
        %2497 = vdwg.mxu0
        %v2499 = vsel %vm637, %v590, 0
        %2501 = vmatprep.subr.bf16.mxu0 0
        %2502 = vmatpush1.bf16.msra.mxu0 %v2499
        %2503 = vmatprep.subr.bf16.mxu0 0
        %2504 = vmatpush1.bf16.msra.mxu0 0
        %2505 = vmatprep.subr.bf16.mxu0 0
        %2506 = vmatpush1.bf16.msra.mxu0 0
        %2507 = vmatprep.subr.bf16.mxu0 0
        %2508 = vmatpush1.bf16.msra.mxu0 0
        %2509 = vmatprep.subr.bf16.mxu0 0
        %2510 = vmatpush1.bf16.msra.mxu0 0
        %2511 = vmatprep.subr.bf16.mxu0 0
        %2512 = vmatpush1.bf16.msra.mxu0 0
        %2513 = vmatprep.subr.bf16.mxu0 0
        %2514 = vmatpush1.bf16.msra.mxu0 0
        %2515 = vmatprep.subr.bf16.mxu0 0
        %2516 = vmatpush1.bf16.msra.mxu0 0
        %2517 = vmatprep.subr.bf16.mxu0 0
        %2518 = vmatpush1.bf16.msra.mxu0 0
        %2519 = vmatprep.subr.bf16.mxu0 0
        %2520 = vmatpush1.bf16.msra.mxu0 0
        %2521 = vmatprep.subr.bf16.mxu0 0
        %2522 = vmatpush1.bf16.msra.mxu0 0
        %2523 = vmatprep.subr.bf16.mxu0 0
        %2524 = vmatpush1.bf16.msra.mxu0 0
        %2525 = vmatprep.subr.bf16.mxu0 0
        %2526 = vmatpush1.bf16.msra.mxu0 0
        %2527 = vmatprep.subr.bf16.mxu0 0
        %2528 = vmatpush1.bf16.msra.mxu0 0
        %2529 = vmatprep.subr.bf16.mxu0 0
        %2530 = vmatpush1.bf16.msra.mxu0 0
        %2531 = vmatprep.subr.bf16.mxu0 0
        %2532 = vmatpush1.bf16.msra.mxu0 0
        %2533 = vmatprep.mubr.bf16.mxu0 0
        %2534 = vmatmul.mubr.bf16.gmra.mrb[0].mxu0 %v2188
        %v2535 = vpop.f32.mrb[0].mxu0
        %v2536 = vadd.f32 0.0, %v2535
        %v2537 = vpop.f32.mrb[0].mxu0
        %v2538 = vpop.f32.mrb[0].mxu0
        %v2539 = vadd.f32 0.0, %v2538
        %v2540 = vpop.f32.mrb[0].mxu0
        %2541 = vdwg.mxu0
        %v2542 = vadd.f32 %v2166, %v2228
        %v2543 = vadd.f32 %v2167, %v2231
        %v2544 = vadd.f32 %v2168, %v2272
        %v2545 = vadd.f32 %v2169, %v2275
        %v2546 = vadd.f32 %v2170, %v2316
        %v2547 = vadd.f32 %v2171, %v2319
        %v2548 = vadd.f32 %v2172, %v2360
        %v2549 = vadd.f32 %v2173, %v2363
        %v2550 = vadd.f32 %v2174, %v2404
        %v2551 = vadd.f32 %v2175, %v2407
        %v2552 = vadd.f32 %v2176, %v2448
        %v2553 = vadd.f32 %v2177, %v2451
        %v2554 = vadd.f32 %v2178, %v2492
        %v2555 = vadd.f32 %v2179, %v2495
        %v2556 = vadd.f32 %v2180, %v2536
        %v2557 = vadd.f32 %v2181, %v2539
        %v2560 = vunpack.c.l.b16 %v620
        %v2561 = vunpack.c.l.b16 %v621
        %v2562 = vpack.c.b16 %v2561, %v2560
        %v2565 = vunpack.c.l.s4 1983009808
        %v2566 = vunpack.c.0.s8 %v2565
        %v2567 = vlaneseq
        %v2568 = vshrl.u32 %v2567, 7
        %v2569 = vsub.s32 %v2566, %v2568
        %v2570 = vrot.slane %v574, %v2569
        %2571 = vrot.lane.b32.xlu0 %v2570, 127
        %v2572 = vpop.permute.xlu0 %2571
        %v2574 = vsel %vm633, %v2562, 0
        %v2577 = vsel %vm637, %v2572, 0
        %2579 = vmatprep.subr.bf16.mxu0 0
        %2580 = vmatpush1.bf16.msra.mxu0 %v2577
        %2581 = vmatprep.subr.bf16.mxu0 0
        %2582 = vmatpush1.bf16.msra.mxu0 0
        %2583 = vmatprep.subr.bf16.mxu0 0
        %2584 = vmatpush1.bf16.msra.mxu0 0
        %2585 = vmatprep.subr.bf16.mxu0 0
        %2586 = vmatpush1.bf16.msra.mxu0 0
        %2587 = vmatprep.subr.bf16.mxu0 0
        %2588 = vmatpush1.bf16.msra.mxu0 0
        %2589 = vmatprep.subr.bf16.mxu0 0
        %2590 = vmatpush1.bf16.msra.mxu0 0
        %2591 = vmatprep.subr.bf16.mxu0 0
        %2592 = vmatpush1.bf16.msra.mxu0 0
        %2593 = vmatprep.subr.bf16.mxu0 0
        %2594 = vmatpush1.bf16.msra.mxu0 0
        %2595 = vmatprep.subr.bf16.mxu0 0
        %2596 = vmatpush1.bf16.msra.mxu0 0
        %2597 = vmatprep.subr.bf16.mxu0 0
        %2598 = vmatpush1.bf16.msra.mxu0 0
        %2599 = vmatprep.subr.bf16.mxu0 0
        %2600 = vmatpush1.bf16.msra.mxu0 0
        %2601 = vmatprep.subr.bf16.mxu0 0
        %2602 = vmatpush1.bf16.msra.mxu0 0
        %2603 = vmatprep.subr.bf16.mxu0 0
        %2604 = vmatpush1.bf16.msra.mxu0 0
        %2605 = vmatprep.subr.bf16.mxu0 0
        %2606 = vmatpush1.bf16.msra.mxu0 0
        %2607 = vmatprep.subr.bf16.mxu0 0
        %2608 = vmatpush1.bf16.msra.mxu0 0
        %2609 = vmatprep.subr.bf16.mxu0 0
        %2610 = vmatpush1.bf16.msra.mxu0 0
        %2611 = vmatprep.mubr.bf16.mxu0 0
        %2612 = vmatmul.mubr.bf16.gmra.mrb[0].mxu0 %v2574
        %v2613 = vpop.f32.mrb[0].mxu0
        %v2614 = vadd.f32 0.0, %v2613
        %v2615 = vpop.f32.mrb[0].mxu0
        %v2616 = vpop.f32.mrb[0].mxu0
        %v2617 = vadd.f32 0.0, %v2616
        %v2618 = vpop.f32.mrb[0].mxu0
        %2619 = vdwg.mxu0
        %v2622 = vunpack.c.l.s4 1983009808
        %v2623 = vunpack.c.0.s8 %v2622
        %v2624 = vlaneseq
        %v2625 = vshrl.u32 %v2624, 7
        %v2626 = vsub.s32 %v2623, %v2625
        %v2627 = vrot.slane %v575, %v2626
        %2628 = vrot.lane.b32.xlu0 %v2627, 127
        %v2629 = vpop.permute.xlu0 %2628
        %v2631 = vsel %vm637, %v2629, 0
        %2633 = vmatprep.subr.bf16.mxu0 0
        %2634 = vmatpush1.bf16.msra.mxu0 %v2631
        %2635 = vmatprep.subr.bf16.mxu0 0
        %2636 = vmatpush1.bf16.msra.mxu0 0
        %2637 = vmatprep.subr.bf16.mxu0 0
        %2638 = vmatpush1.bf16.msra.mxu0 0
        %2639 = vmatprep.subr.bf16.mxu0 0
        %2640 = vmatpush1.bf16.msra.mxu0 0
        %2641 = vmatprep.subr.bf16.mxu0 0
        %2642 = vmatpush1.bf16.msra.mxu0 0
        %2643 = vmatprep.subr.bf16.mxu0 0
        %2644 = vmatpush1.bf16.msra.mxu0 0
        %2645 = vmatprep.subr.bf16.mxu0 0
        %2646 = vmatpush1.bf16.msra.mxu0 0
        %2647 = vmatprep.subr.bf16.mxu0 0
        %2648 = vmatpush1.bf16.msra.mxu0 0
        %2649 = vmatprep.subr.bf16.mxu0 0
        %2650 = vmatpush1.bf16.msra.mxu0 0
        %2651 = vmatprep.subr.bf16.mxu0 0
        %2652 = vmatpush1.bf16.msra.mxu0 0
        %2653 = vmatprep.subr.bf16.mxu0 0
        %2654 = vmatpush1.bf16.msra.mxu0 0
        %2655 = vmatprep.subr.bf16.mxu0 0
        %2656 = vmatpush1.bf16.msra.mxu0 0
        %2657 = vmatprep.subr.bf16.mxu0 0
        %2658 = vmatpush1.bf16.msra.mxu0 0
        %2659 = vmatprep.subr.bf16.mxu0 0
        %2660 = vmatpush1.bf16.msra.mxu0 0
        %2661 = vmatprep.subr.bf16.mxu0 0
        %2662 = vmatpush1.bf16.msra.mxu0 0
        %2663 = vmatprep.subr.bf16.mxu0 0
        %2664 = vmatpush1.bf16.msra.mxu0 0
        %2665 = vmatprep.mubr.bf16.mxu0 0
        %2666 = vmatmul.mubr.bf16.gmra.mrb[0].mxu0 %v2574
        %v2667 = vpop.f32.mrb[0].mxu0
        %v2668 = vadd.f32 0.0, %v2667
        %v2669 = vpop.f32.mrb[0].mxu0
        %v2670 = vpop.f32.mrb[0].mxu0
        %v2671 = vadd.f32 0.0, %v2670
        %v2672 = vpop.f32.mrb[0].mxu0
        %2673 = vdwg.mxu0
        %v2676 = vunpack.c.l.s4 1983009808
        %v2677 = vunpack.c.0.s8 %v2676
        %v2678 = vlaneseq
        %v2679 = vshrl.u32 %v2678, 7
        %v2680 = vsub.s32 %v2677, %v2679
        %v2681 = vrot.slane %v576, %v2680
        %2682 = vrot.lane.b32.xlu0 %v2681, 127
        %v2683 = vpop.permute.xlu0 %2682
        %v2685 = vsel %vm637, %v2683, 0
        %2687 = vmatprep.subr.bf16.mxu0 0
        %2688 = vmatpush1.bf16.msra.mxu0 %v2685
        %2689 = vmatprep.subr.bf16.mxu0 0
        %2690 = vmatpush1.bf16.msra.mxu0 0
        %2691 = vmatprep.subr.bf16.mxu0 0
        %2692 = vmatpush1.bf16.msra.mxu0 0
        %2693 = vmatprep.subr.bf16.mxu0 0
        %2694 = vmatpush1.bf16.msra.mxu0 0
        %2695 = vmatprep.subr.bf16.mxu0 0
        %2696 = vmatpush1.bf16.msra.mxu0 0
        %2697 = vmatprep.subr.bf16.mxu0 0
        %2698 = vmatpush1.bf16.msra.mxu0 0
        %2699 = vmatprep.subr.bf16.mxu0 0
        %2700 = vmatpush1.bf16.msra.mxu0 0
        %2701 = vmatprep.subr.bf16.mxu0 0
        %2702 = vmatpush1.bf16.msra.mxu0 0
        %2703 = vmatprep.subr.bf16.mxu0 0
        %2704 = vmatpush1.bf16.msra.mxu0 0
        %2705 = vmatprep.subr.bf16.mxu0 0
        %2706 = vmatpush1.bf16.msra.mxu0 0
        %2707 = vmatprep.subr.bf16.mxu0 0
        %2708 = vmatpush1.bf16.msra.mxu0 0
        %2709 = vmatprep.subr.bf16.mxu0 0
        %2710 = vmatpush1.bf16.msra.mxu0 0
        %2711 = vmatprep.subr.bf16.mxu0 0
        %2712 = vmatpush1.bf16.msra.mxu0 0
        %2713 = vmatprep.subr.bf16.mxu0 0
        %2714 = vmatpush1.bf16.msra.mxu0 0
        %2715 = vmatprep.subr.bf16.mxu0 0
        %2716 = vmatpush1.bf16.msra.mxu0 0
        %2717 = vmatprep.subr.bf16.mxu0 0
        %2718 = vmatpush1.bf16.msra.mxu0 0
        %2719 = vmatprep.mubr.bf16.mxu0 0
        %2720 = vmatmul.mubr.bf16.gmra.mrb[0].mxu0 %v2574
        %v2721 = vpop.f32.mrb[0].mxu0
        %v2722 = vadd.f32 0.0, %v2721
        %v2723 = vpop.f32.mrb[0].mxu0
        %v2724 = vpop.f32.mrb[0].mxu0
        %v2725 = vadd.f32 0.0, %v2724
        %v2726 = vpop.f32.mrb[0].mxu0
        %2727 = vdwg.mxu0
        %v2730 = vunpack.c.l.s4 1983009808
        %v2731 = vunpack.c.0.s8 %v2730
        %v2732 = vlaneseq
        %v2733 = vshrl.u32 %v2732, 7
        %v2734 = vsub.s32 %v2731, %v2733
        %v2735 = vrot.slane %v577, %v2734
        %2736 = vrot.lane.b32.xlu0 %v2735, 127
        %v2737 = vpop.permute.xlu0 %2736
        %v2739 = vsel %vm637, %v2737, 0
        %2741 = vmatprep.subr.bf16.mxu0 0
        %2742 = vmatpush1.bf16.msra.mxu0 %v2739
        %2743 = vmatprep.subr.bf16.mxu0 0
        %2744 = vmatpush1.bf16.msra.mxu0 0
        %2745 = vmatprep.subr.bf16.mxu0 0
        %2746 = vmatpush1.bf16.msra.mxu0 0
        %2747 = vmatprep.subr.bf16.mxu0 0
        %2748 = vmatpush1.bf16.msra.mxu0 0
        %2749 = vmatprep.subr.bf16.mxu0 0
        %2750 = vmatpush1.bf16.msra.mxu0 0
        %2751 = vmatprep.subr.bf16.mxu0 0
        %2752 = vmatpush1.bf16.msra.mxu0 0
        %2753 = vmatprep.subr.bf16.mxu0 0
        %2754 = vmatpush1.bf16.msra.mxu0 0
        %2755 = vmatprep.subr.bf16.mxu0 0
        %2756 = vmatpush1.bf16.msra.mxu0 0
        %2757 = vmatprep.subr.bf16.mxu0 0
        %2758 = vmatpush1.bf16.msra.mxu0 0
        %2759 = vmatprep.subr.bf16.mxu0 0
        %2760 = vmatpush1.bf16.msra.mxu0 0
        %2761 = vmatprep.subr.bf16.mxu0 0
        %2762 = vmatpush1.bf16.msra.mxu0 0
        %2763 = vmatprep.subr.bf16.mxu0 0
        %2764 = vmatpush1.bf16.msra.mxu0 0
        %2765 = vmatprep.subr.bf16.mxu0 0
        %2766 = vmatpush1.bf16.msra.mxu0 0
        %2767 = vmatprep.subr.bf16.mxu0 0
        %2768 = vmatpush1.bf16.msra.mxu0 0
        %2769 = vmatprep.subr.bf16.mxu0 0
        %2770 = vmatpush1.bf16.msra.mxu0 0
        %2771 = vmatprep.subr.bf16.mxu0 0
        %2772 = vmatpush1.bf16.msra.mxu0 0
        %2773 = vmatprep.mubr.bf16.mxu0 0
        %2774 = vmatmul.mubr.bf16.gmra.mrb[0].mxu0 %v2574
        %v2775 = vpop.f32.mrb[0].mxu0
        %v2776 = vadd.f32 0.0, %v2775
        %v2777 = vpop.f32.mrb[0].mxu0
        %v2778 = vpop.f32.mrb[0].mxu0
        %v2779 = vadd.f32 0.0, %v2778
        %v2780 = vpop.f32.mrb[0].mxu0
        %2781 = vdwg.mxu0
        %v2784 = vunpack.c.l.s4 1983009808
        %v2785 = vunpack.c.0.s8 %v2784
        %v2786 = vlaneseq
        %v2787 = vshrl.u32 %v2786, 7
        %v2788 = vsub.s32 %v2785, %v2787
        %v2789 = vrot.slane %v578, %v2788
        %2790 = vrot.lane.b32.xlu0 %v2789, 127
        %v2791 = vpop.permute.xlu0 %2790
        %v2793 = vsel %vm637, %v2791, 0
        %2795 = vmatprep.subr.bf16.mxu0 0
        %2796 = vmatpush1.bf16.msra.mxu0 %v2793
        %2797 = vmatprep.subr.bf16.mxu0 0
        %2798 = vmatpush1.bf16.msra.mxu0 0
        %2799 = vmatprep.subr.bf16.mxu0 0
        %2800 = vmatpush1.bf16.msra.mxu0 0
        %2801 = vmatprep.subr.bf16.mxu0 0
        %2802 = vmatpush1.bf16.msra.mxu0 0
        %2803 = vmatprep.subr.bf16.mxu0 0
        %2804 = vmatpush1.bf16.msra.mxu0 0
        %2805 = vmatprep.subr.bf16.mxu0 0
        %2806 = vmatpush1.bf16.msra.mxu0 0
        %2807 = vmatprep.subr.bf16.mxu0 0
        %2808 = vmatpush1.bf16.msra.mxu0 0
        %2809 = vmatprep.subr.bf16.mxu0 0
        %2810 = vmatpush1.bf16.msra.mxu0 0
        %2811 = vmatprep.subr.bf16.mxu0 0
        %2812 = vmatpush1.bf16.msra.mxu0 0
        %2813 = vmatprep.subr.bf16.mxu0 0
        %2814 = vmatpush1.bf16.msra.mxu0 0
        %2815 = vmatprep.subr.bf16.mxu0 0
        %2816 = vmatpush1.bf16.msra.mxu0 0
        %2817 = vmatprep.subr.bf16.mxu0 0
        %2818 = vmatpush1.bf16.msra.mxu0 0
        %2819 = vmatprep.subr.bf16.mxu0 0
        %2820 = vmatpush1.bf16.msra.mxu0 0
        %2821 = vmatprep.subr.bf16.mxu0 0
        %2822 = vmatpush1.bf16.msra.mxu0 0
        %2823 = vmatprep.subr.bf16.mxu0 0
        %2824 = vmatpush1.bf16.msra.mxu0 0
        %2825 = vmatprep.subr.bf16.mxu0 0
        %2826 = vmatpush1.bf16.msra.mxu0 0
        %2827 = vmatprep.mubr.bf16.mxu0 0
        %2828 = vmatmul.mubr.bf16.gmra.mrb[0].mxu0 %v2574
        %v2829 = vpop.f32.mrb[0].mxu0
        %v2830 = vadd.f32 0.0, %v2829
        %v2831 = vpop.f32.mrb[0].mxu0
        %v2832 = vpop.f32.mrb[0].mxu0
        %v2833 = vadd.f32 0.0, %v2832
        %v2834 = vpop.f32.mrb[0].mxu0
        %2835 = vdwg.mxu0
        %v2838 = vunpack.c.l.s4 1983009808
        %v2839 = vunpack.c.0.s8 %v2838
        %v2840 = vlaneseq
        %v2841 = vshrl.u32 %v2840, 7
        %v2842 = vsub.s32 %v2839, %v2841
        %v2843 = vrot.slane %v579, %v2842
        %2844 = vrot.lane.b32.xlu0 %v2843, 127
        %v2845 = vpop.permute.xlu0 %2844
        %v2847 = vsel %vm637, %v2845, 0
        %2849 = vmatprep.subr.bf16.mxu0 0
        %2850 = vmatpush1.bf16.msra.mxu0 %v2847
        %2851 = vmatprep.subr.bf16.mxu0 0
        %2852 = vmatpush1.bf16.msra.mxu0 0
        %2853 = vmatprep.subr.bf16.mxu0 0
        %2854 = vmatpush1.bf16.msra.mxu0 0
        %2855 = vmatprep.subr.bf16.mxu0 0
        %2856 = vmatpush1.bf16.msra.mxu0 0
        %2857 = vmatprep.subr.bf16.mxu0 0
        %2858 = vmatpush1.bf16.msra.mxu0 0
        %2859 = vmatprep.subr.bf16.mxu0 0
        %2860 = vmatpush1.bf16.msra.mxu0 0
        %2861 = vmatprep.subr.bf16.mxu0 0
        %2862 = vmatpush1.bf16.msra.mxu0 0
        %2863 = vmatprep.subr.bf16.mxu0 0
        %2864 = vmatpush1.bf16.msra.mxu0 0
        %2865 = vmatprep.subr.bf16.mxu0 0
        %2866 = vmatpush1.bf16.msra.mxu0 0
        %2867 = vmatprep.subr.bf16.mxu0 0
        %2868 = vmatpush1.bf16.msra.mxu0 0
        %2869 = vmatprep.subr.bf16.mxu0 0
        %2870 = vmatpush1.bf16.msra.mxu0 0
        %2871 = vmatprep.subr.bf16.mxu0 0
        %2872 = vmatpush1.bf16.msra.mxu0 0
        %2873 = vmatprep.subr.bf16.mxu0 0
        %2874 = vmatpush1.bf16.msra.mxu0 0
        %2875 = vmatprep.subr.bf16.mxu0 0
        %2876 = vmatpush1.bf16.msra.mxu0 0
        %2877 = vmatprep.subr.bf16.mxu0 0
        %2878 = vmatpush1.bf16.msra.mxu0 0
        %2879 = vmatprep.subr.bf16.mxu0 0
        %2880 = vmatpush1.bf16.msra.mxu0 0
        %2881 = vmatprep.mubr.bf16.mxu0 0
        %2882 = vmatmul.mubr.bf16.gmra.mrb[0].mxu0 %v2574
        %v2883 = vpop.f32.mrb[0].mxu0
        %v2884 = vadd.f32 0.0, %v2883
        %v2885 = vpop.f32.mrb[0].mxu0
        %v2886 = vpop.f32.mrb[0].mxu0
        %v2887 = vadd.f32 0.0, %v2886
        %v2888 = vpop.f32.mrb[0].mxu0
        %2889 = vdwg.mxu0
        %v2892 = vunpack.c.l.s4 1983009808
        %v2893 = vunpack.c.0.s8 %v2892
        %v2894 = vlaneseq
        %v2895 = vshrl.u32 %v2894, 7
        %v2896 = vsub.s32 %v2893, %v2895
        %v2897 = vrot.slane %v580, %v2896
        %2898 = vrot.lane.b32.xlu0 %v2897, 127
        %v2899 = vpop.permute.xlu0 %2898
        %v2901 = vsel %vm637, %v2899, 0
        %2903 = vmatprep.subr.bf16.mxu0 0
        %2904 = vmatpush1.bf16.msra.mxu0 %v2901
        %2905 = vmatprep.subr.bf16.mxu0 0
        %2906 = vmatpush1.bf16.msra.mxu0 0
        %2907 = vmatprep.subr.bf16.mxu0 0
        %2908 = vmatpush1.bf16.msra.mxu0 0
        %2909 = vmatprep.subr.bf16.mxu0 0
        %2910 = vmatpush1.bf16.msra.mxu0 0
        %2911 = vmatprep.subr.bf16.mxu0 0
        %2912 = vmatpush1.bf16.msra.mxu0 0
        %2913 = vmatprep.subr.bf16.mxu0 0
        %2914 = vmatpush1.bf16.msra.mxu0 0
        %2915 = vmatprep.subr.bf16.mxu0 0
        %2916 = vmatpush1.bf16.msra.mxu0 0
        %2917 = vmatprep.subr.bf16.mxu0 0
        %2918 = vmatpush1.bf16.msra.mxu0 0
        %2919 = vmatprep.subr.bf16.mxu0 0
        %2920 = vmatpush1.bf16.msra.mxu0 0
        %2921 = vmatprep.subr.bf16.mxu0 0
        %2922 = vmatpush1.bf16.msra.mxu0 0
        %2923 = vmatprep.subr.bf16.mxu0 0
        %2924 = vmatpush1.bf16.msra.mxu0 0
        %2925 = vmatprep.subr.bf16.mxu0 0
        %2926 = vmatpush1.bf16.msra.mxu0 0
        %2927 = vmatprep.subr.bf16.mxu0 0
        %2928 = vmatpush1.bf16.msra.mxu0 0
        %2929 = vmatprep.subr.bf16.mxu0 0
        %2930 = vmatpush1.bf16.msra.mxu0 0
        %2931 = vmatprep.subr.bf16.mxu0 0
        %2932 = vmatpush1.bf16.msra.mxu0 0
        %2933 = vmatprep.subr.bf16.mxu0 0
        %2934 = vmatpush1.bf16.msra.mxu0 0
        %2935 = vmatprep.mubr.bf16.mxu0 0
        %2936 = vmatmul.mubr.bf16.gmra.mrb[0].mxu0 %v2574
        %v2937 = vpop.f32.mrb[0].mxu0
        %v2938 = vadd.f32 0.0, %v2937
        %v2939 = vpop.f32.mrb[0].mxu0
        %v2940 = vpop.f32.mrb[0].mxu0
        %v2941 = vadd.f32 0.0, %v2940
        %v2942 = vpop.f32.mrb[0].mxu0
        %2943 = vdwg.mxu0
        %v2946 = vunpack.c.l.s4 1983009808
        %v2947 = vunpack.c.0.s8 %v2946
        %v2948 = vlaneseq
        %v2949 = vshrl.u32 %v2948, 7
        %v2950 = vsub.s32 %v2947, %v2949
        %v2951 = vrot.slane %v581, %v2950
        %2952 = vrot.lane.b32.xlu0 %v2951, 127
        %v2953 = vpop.permute.xlu0 %2952
        %v2955 = vsel %vm637, %v2953, 0
        %2957 = vmatprep.subr.bf16.mxu0 0
        %2958 = vmatpush1.bf16.msra.mxu0 %v2955
        %2959 = vmatprep.subr.bf16.mxu0 0
        %2960 = vmatpush1.bf16.msra.mxu0 0
        %2961 = vmatprep.subr.bf16.mxu0 0
        %2962 = vmatpush1.bf16.msra.mxu0 0
        %2963 = vmatprep.subr.bf16.mxu0 0
        %2964 = vmatpush1.bf16.msra.mxu0 0
        %2965 = vmatprep.subr.bf16.mxu0 0
        %2966 = vmatpush1.bf16.msra.mxu0 0
        %2967 = vmatprep.subr.bf16.mxu0 0
        %2968 = vmatpush1.bf16.msra.mxu0 0
        %2969 = vmatprep.subr.bf16.mxu0 0
        %2970 = vmatpush1.bf16.msra.mxu0 0
        %2971 = vmatprep.subr.bf16.mxu0 0
        %2972 = vmatpush1.bf16.msra.mxu0 0
        %2973 = vmatprep.subr.bf16.mxu0 0
        %2974 = vmatpush1.bf16.msra.mxu0 0
        %2975 = vmatprep.subr.bf16.mxu0 0
        %2976 = vmatpush1.bf16.msra.mxu0 0
        %2977 = vmatprep.subr.bf16.mxu0 0
        %2978 = vmatpush1.bf16.msra.mxu0 0
        %2979 = vmatprep.subr.bf16.mxu0 0
        %2980 = vmatpush1.bf16.msra.mxu0 0
        %2981 = vmatprep.subr.bf16.mxu0 0
        %2982 = vmatpush1.bf16.msra.mxu0 0
        %2983 = vmatprep.subr.bf16.mxu0 0
        %2984 = vmatpush1.bf16.msra.mxu0 0
        %2985 = vmatprep.subr.bf16.mxu0 0
        %2986 = vmatpush1.bf16.msra.mxu0 0
        %2987 = vmatprep.subr.bf16.mxu0 0
        %2988 = vmatpush1.bf16.msra.mxu0 0
        %2989 = vmatprep.mubr.bf16.mxu0 0
        %2990 = vmatmul.mubr.bf16.gmra.mrb[0].mxu0 %v2574
        %v2991 = vpop.f32.mrb[0].mxu0
        %v2992 = vadd.f32 0.0, %v2991
        %v2993 = vpop.f32.mrb[0].mxu0
        %v2994 = vpop.f32.mrb[0].mxu0
        %v2995 = vadd.f32 0.0, %v2994
        %v2996 = vpop.f32.mrb[0].mxu0
        %2997 = vdwg.mxu0
        %v2998 = vadd.f32 %v2542, %v2614
        %v2999 = vadd.f32 %v2543, %v2617
        %v3000 = vadd.f32 %v2544, %v2668
        %v3001 = vadd.f32 %v2545, %v2671
        %v3002 = vadd.f32 %v2546, %v2722
        %v3003 = vadd.f32 %v2547, %v2725
        %v3004 = vadd.f32 %v2548, %v2776
        %v3005 = vadd.f32 %v2549, %v2779
        %v3006 = vadd.f32 %v2550, %v2830
        %v3007 = vadd.f32 %v2551, %v2833
        %v3008 = vadd.f32 %v2552, %v2884
        %v3009 = vadd.f32 %v2553, %v2887
        %v3010 = vadd.f32 %v2554, %v2938
        %v3011 = vadd.f32 %v2555, %v2941
        %v3012 = vadd.f32 %v2556, %v2992
        %v3013 = vadd.f32 %v2557, %v2995
        %v3016 = vunpack.c.l.b16 %v622
        %v3017 = vunpack.c.l.b16 %v623
        %v3018 = vpack.c.b16 %v3017, %v3016
        %v3020 = vsel %vm633, %v3018, 0
        %v3023 = vsel %vm637, %v595, 0
        %3025 = vmatprep.subr.bf16.mxu0 0
        %3026 = vmatpush1.bf16.msra.mxu0 %v3023
        %3027 = vmatprep.subr.bf16.mxu0 0
        %3028 = vmatpush1.bf16.msra.mxu0 0
        %3029 = vmatprep.subr.bf16.mxu0 0
        %3030 = vmatpush1.bf16.msra.mxu0 0
        %3031 = vmatprep.subr.bf16.mxu0 0
        %3032 = vmatpush1.bf16.msra.mxu0 0
        %3033 = vmatprep.subr.bf16.mxu0 0
        %3034 = vmatpush1.bf16.msra.mxu0 0
        %3035 = vmatprep.subr.bf16.mxu0 0
        %3036 = vmatpush1.bf16.msra.mxu0 0
        %3037 = vmatprep.subr.bf16.mxu0 0
        %3038 = vmatpush1.bf16.msra.mxu0 0
        %3039 = vmatprep.subr.bf16.mxu0 0
        %3040 = vmatpush1.bf16.msra.mxu0 0
        %3041 = vmatprep.subr.bf16.mxu0 0
        %3042 = vmatpush1.bf16.msra.mxu0 0
        %3043 = vmatprep.subr.bf16.mxu0 0
        %3044 = vmatpush1.bf16.msra.mxu0 0
        %3045 = vmatprep.subr.bf16.mxu0 0
        %3046 = vmatpush1.bf16.msra.mxu0 0
        %3047 = vmatprep.subr.bf16.mxu0 0
        %3048 = vmatpush1.bf16.msra.mxu0 0
        %3049 = vmatprep.subr.bf16.mxu0 0
        %3050 = vmatpush1.bf16.msra.mxu0 0
        %3051 = vmatprep.subr.bf16.mxu0 0
        %3052 = vmatpush1.bf16.msra.mxu0 0
        %3053 = vmatprep.subr.bf16.mxu0 0
        %3054 = vmatpush1.bf16.msra.mxu0 0
        %3055 = vmatprep.subr.bf16.mxu0 0
        %3056 = vmatpush1.bf16.msra.mxu0 0
        %3057 = vmatprep.mubr.bf16.mxu0 0
        %3058 = vmatmul.mubr.bf16.gmra.mrb[0].mxu0 %v3020
        %v3059 = vpop.f32.mrb[0].mxu0
        %v3060 = vadd.f32 0.0, %v3059
        %v3061 = vpop.f32.mrb[0].mxu0
        %v3062 = vpop.f32.mrb[0].mxu0
        %v3063 = vadd.f32 0.0, %v3062
        %v3064 = vpop.f32.mrb[0].mxu0
        %3065 = vdwg.mxu0
        %v3067 = vsel %vm637, %v596, 0
        %3069 = vmatprep.subr.bf16.mxu0 0
        %3070 = vmatpush1.bf16.msra.mxu0 %v3067
        %3071 = vmatprep.subr.bf16.mxu0 0
        %3072 = vmatpush1.bf16.msra.mxu0 0
        %3073 = vmatprep.subr.bf16.mxu0 0
        %3074 = vmatpush1.bf16.msra.mxu0 0
        %3075 = vmatprep.subr.bf16.mxu0 0
        %3076 = vmatpush1.bf16.msra.mxu0 0
        %3077 = vmatprep.subr.bf16.mxu0 0
        %3078 = vmatpush1.bf16.msra.mxu0 0
        %3079 = vmatprep.subr.bf16.mxu0 0
        %3080 = vmatpush1.bf16.msra.mxu0 0
        %3081 = vmatprep.subr.bf16.mxu0 0
        %3082 = vmatpush1.bf16.msra.mxu0 0
        %3083 = vmatprep.subr.bf16.mxu0 0
        %3084 = vmatpush1.bf16.msra.mxu0 0
        %3085 = vmatprep.subr.bf16.mxu0 0
        %3086 = vmatpush1.bf16.msra.mxu0 0
        %3087 = vmatprep.subr.bf16.mxu0 0
        %3088 = vmatpush1.bf16.msra.mxu0 0
        %3089 = vmatprep.subr.bf16.mxu0 0
        %3090 = vmatpush1.bf16.msra.mxu0 0
        %3091 = vmatprep.subr.bf16.mxu0 0
        %3092 = vmatpush1.bf16.msra.mxu0 0
        %3093 = vmatprep.subr.bf16.mxu0 0
        %3094 = vmatpush1.bf16.msra.mxu0 0
        %3095 = vmatprep.subr.bf16.mxu0 0
        %3096 = vmatpush1.bf16.msra.mxu0 0
        %3097 = vmatprep.subr.bf16.mxu0 0
        %3098 = vmatpush1.bf16.msra.mxu0 0
        %3099 = vmatprep.subr.bf16.mxu0 0
        %3100 = vmatpush1.bf16.msra.mxu0 0
        %3101 = vmatprep.mubr.bf16.mxu0 0
        %3102 = vmatmul.mubr.bf16.gmra.mrb[0].mxu0 %v3020
        %v3103 = vpop.f32.mrb[0].mxu0
        %v3104 = vadd.f32 0.0, %v3103
        %v3105 = vpop.f32.mrb[0].mxu0
        %v3106 = vpop.f32.mrb[0].mxu0
        %v3107 = vadd.f32 0.0, %v3106
        %v3108 = vpop.f32.mrb[0].mxu0
        %3109 = vdwg.mxu0
        %v3111 = vsel %vm637, %v597, 0
        %3113 = vmatprep.subr.bf16.mxu0 0
        %3114 = vmatpush1.bf16.msra.mxu0 %v3111
        %3115 = vmatprep.subr.bf16.mxu0 0
        %3116 = vmatpush1.bf16.msra.mxu0 0
        %3117 = vmatprep.subr.bf16.mxu0 0
        %3118 = vmatpush1.bf16.msra.mxu0 0
        %3119 = vmatprep.subr.bf16.mxu0 0
        %3120 = vmatpush1.bf16.msra.mxu0 0
        %3121 = vmatprep.subr.bf16.mxu0 0
        %3122 = vmatpush1.bf16.msra.mxu0 0
        %3123 = vmatprep.subr.bf16.mxu0 0
        %3124 = vmatpush1.bf16.msra.mxu0 0
        %3125 = vmatprep.subr.bf16.mxu0 0
        %3126 = vmatpush1.bf16.msra.mxu0 0
        %3127 = vmatprep.subr.bf16.mxu0 0
        %3128 = vmatpush1.bf16.msra.mxu0 0
        %3129 = vmatprep.subr.bf16.mxu0 0
        %3130 = vmatpush1.bf16.msra.mxu0 0
        %3131 = vmatprep.subr.bf16.mxu0 0
        %3132 = vmatpush1.bf16.msra.mxu0 0
        %3133 = vmatprep.subr.bf16.mxu0 0
        %3134 = vmatpush1.bf16.msra.mxu0 0
        %3135 = vmatprep.subr.bf16.mxu0 0
        %3136 = vmatpush1.bf16.msra.mxu0 0
        %3137 = vmatprep.subr.bf16.mxu0 0
        %3138 = vmatpush1.bf16.msra.mxu0 0
        %3139 = vmatprep.subr.bf16.mxu0 0
        %3140 = vmatpush1.bf16.msra.mxu0 0
        %3141 = vmatprep.subr.bf16.mxu0 0
        %3142 = vmatpush1.bf16.msra.mxu0 0
        %3143 = vmatprep.subr.bf16.mxu0 0
        %3144 = vmatpush1.bf16.msra.mxu0 0
        %3145 = vmatprep.mubr.bf16.mxu0 0
        %3146 = vmatmul.mubr.bf16.gmra.mrb[0].mxu0 %v3020
        %v3147 = vpop.f32.mrb[0].mxu0
        %v3148 = vadd.f32 0.0, %v3147
        %v3149 = vpop.f32.mrb[0].mxu0
        %v3150 = vpop.f32.mrb[0].mxu0
        %v3151 = vadd.f32 0.0, %v3150
        %v3152 = vpop.f32.mrb[0].mxu0
        %3153 = vdwg.mxu0
        %v3155 = vsel %vm637, %v598, 0
        %3157 = vmatprep.subr.bf16.mxu0 0
        %3158 = vmatpush1.bf16.msra.mxu0 %v3155
        %3159 = vmatprep.subr.bf16.mxu0 0
        %3160 = vmatpush1.bf16.msra.mxu0 0
        %3161 = vmatprep.subr.bf16.mxu0 0
        %3162 = vmatpush1.bf16.msra.mxu0 0
        %3163 = vmatprep.subr.bf16.mxu0 0
        %3164 = vmatpush1.bf16.msra.mxu0 0
        %3165 = vmatprep.subr.bf16.mxu0 0
        %3166 = vmatpush1.bf16.msra.mxu0 0
        %3167 = vmatprep.subr.bf16.mxu0 0
        %3168 = vmatpush1.bf16.msra.mxu0 0
        %3169 = vmatprep.subr.bf16.mxu0 0
        %3170 = vmatpush1.bf16.msra.mxu0 0
        %3171 = vmatprep.subr.bf16.mxu0 0
        %3172 = vmatpush1.bf16.msra.mxu0 0
        %3173 = vmatprep.subr.bf16.mxu0 0
        %3174 = vmatpush1.bf16.msra.mxu0 0
        %3175 = vmatprep.subr.bf16.mxu0 0
        %3176 = vmatpush1.bf16.msra.mxu0 0
        %3177 = vmatprep.subr.bf16.mxu0 0
        %3178 = vmatpush1.bf16.msra.mxu0 0
        %3179 = vmatprep.subr.bf16.mxu0 0
        %3180 = vmatpush1.bf16.msra.mxu0 0
        %3181 = vmatprep.subr.bf16.mxu0 0
        %3182 = vmatpush1.bf16.msra.mxu0 0
        %3183 = vmatprep.subr.bf16.mxu0 0
        %3184 = vmatpush1.bf16.msra.mxu0 0
        %3185 = vmatprep.subr.bf16.mxu0 0
        %3186 = vmatpush1.bf16.msra.mxu0 0
        %3187 = vmatprep.subr.bf16.mxu0 0
        %3188 = vmatpush1.bf16.msra.mxu0 0
        %3189 = vmatprep.mubr.bf16.mxu0 0
        %3190 = vmatmul.mubr.bf16.gmra.mrb[0].mxu0 %v3020
        %v3191 = vpop.f32.mrb[0].mxu0
        %v3192 = vadd.f32 0.0, %v3191
        %v3193 = vpop.f32.mrb[0].mxu0
        %v3194 = vpop.f32.mrb[0].mxu0
        %v3195 = vadd.f32 0.0, %v3194
        %v3196 = vpop.f32.mrb[0].mxu0
        %3197 = vdwg.mxu0
        %v3199 = vsel %vm637, %v599, 0
        %3201 = vmatprep.subr.bf16.mxu0 0
        %3202 = vmatpush1.bf16.msra.mxu0 %v3199
        %3203 = vmatprep.subr.bf16.mxu0 0
        %3204 = vmatpush1.bf16.msra.mxu0 0
        %3205 = vmatprep.subr.bf16.mxu0 0
        %3206 = vmatpush1.bf16.msra.mxu0 0
        %3207 = vmatprep.subr.bf16.mxu0 0
        %3208 = vmatpush1.bf16.msra.mxu0 0
        %3209 = vmatprep.subr.bf16.mxu0 0
        %3210 = vmatpush1.bf16.msra.mxu0 0
        %3211 = vmatprep.subr.bf16.mxu0 0
        %3212 = vmatpush1.bf16.msra.mxu0 0
        %3213 = vmatprep.subr.bf16.mxu0 0
        %3214 = vmatpush1.bf16.msra.mxu0 0
        %3215 = vmatprep.subr.bf16.mxu0 0
        %3216 = vmatpush1.bf16.msra.mxu0 0
        %3217 = vmatprep.subr.bf16.mxu0 0
        %3218 = vmatpush1.bf16.msra.mxu0 0
        %3219 = vmatprep.subr.bf16.mxu0 0
        %3220 = vmatpush1.bf16.msra.mxu0 0
        %3221 = vmatprep.subr.bf16.mxu0 0
        %3222 = vmatpush1.bf16.msra.mxu0 0
        %3223 = vmatprep.subr.bf16.mxu0 0
        %3224 = vmatpush1.bf16.msra.mxu0 0
        %3225 = vmatprep.subr.bf16.mxu0 0
        %3226 = vmatpush1.bf16.msra.mxu0 0
        %3227 = vmatprep.subr.bf16.mxu0 0
        %3228 = vmatpush1.bf16.msra.mxu0 0
        %3229 = vmatprep.subr.bf16.mxu0 0
        %3230 = vmatpush1.bf16.msra.mxu0 0
        %3231 = vmatprep.subr.bf16.mxu0 0
        %3232 = vmatpush1.bf16.msra.mxu0 0
        %3233 = vmatprep.mubr.bf16.mxu0 0
        %3234 = vmatmul.mubr.bf16.gmra.mrb[0].mxu0 %v3020
        %v3235 = vpop.f32.mrb[0].mxu0
        %v3236 = vadd.f32 0.0, %v3235
        %v3237 = vpop.f32.mrb[0].mxu0
        %v3238 = vpop.f32.mrb[0].mxu0
        %v3239 = vadd.f32 0.0, %v3238
        %v3240 = vpop.f32.mrb[0].mxu0
        %3241 = vdwg.mxu0
        %v3243 = vsel %vm637, %v600, 0
        %3245 = vmatprep.subr.bf16.mxu0 0
        %3246 = vmatpush1.bf16.msra.mxu0 %v3243
        %3247 = vmatprep.subr.bf16.mxu0 0
        %3248 = vmatpush1.bf16.msra.mxu0 0
        %3249 = vmatprep.subr.bf16.mxu0 0
        %3250 = vmatpush1.bf16.msra.mxu0 0
        %3251 = vmatprep.subr.bf16.mxu0 0
        %3252 = vmatpush1.bf16.msra.mxu0 0
        %3253 = vmatprep.subr.bf16.mxu0 0
        %3254 = vmatpush1.bf16.msra.mxu0 0
        %3255 = vmatprep.subr.bf16.mxu0 0
        %3256 = vmatpush1.bf16.msra.mxu0 0
        %3257 = vmatprep.subr.bf16.mxu0 0
        %3258 = vmatpush1.bf16.msra.mxu0 0
        %3259 = vmatprep.subr.bf16.mxu0 0
        %3260 = vmatpush1.bf16.msra.mxu0 0
        %3261 = vmatprep.subr.bf16.mxu0 0
        %3262 = vmatpush1.bf16.msra.mxu0 0
        %3263 = vmatprep.subr.bf16.mxu0 0
        %3264 = vmatpush1.bf16.msra.mxu0 0
        %3265 = vmatprep.subr.bf16.mxu0 0
        %3266 = vmatpush1.bf16.msra.mxu0 0
        %3267 = vmatprep.subr.bf16.mxu0 0
        %3268 = vmatpush1.bf16.msra.mxu0 0
        %3269 = vmatprep.subr.bf16.mxu0 0
        %3270 = vmatpush1.bf16.msra.mxu0 0
        %3271 = vmatprep.subr.bf16.mxu0 0
        %3272 = vmatpush1.bf16.msra.mxu0 0
        %3273 = vmatprep.subr.bf16.mxu0 0
        %3274 = vmatpush1.bf16.msra.mxu0 0
        %3275 = vmatprep.subr.bf16.mxu0 0
        %3276 = vmatpush1.bf16.msra.mxu0 0
        %3277 = vmatprep.mubr.bf16.mxu0 0
        %3278 = vmatmul.mubr.bf16.gmra.mrb[0].mxu0 %v3020
        %v3279 = vpop.f32.mrb[0].mxu0
        %v3280 = vadd.f32 0.0, %v3279
        %v3281 = vpop.f32.mrb[0].mxu0
        %v3282 = vpop.f32.mrb[0].mxu0
        %v3283 = vadd.f32 0.0, %v3282
        %v3284 = vpop.f32.mrb[0].mxu0
        %3285 = vdwg.mxu0
        %v3287 = vsel %vm637, %v601, 0
        %3289 = vmatprep.subr.bf16.mxu0 0
        %3290 = vmatpush1.bf16.msra.mxu0 %v3287
        %3291 = vmatprep.subr.bf16.mxu0 0
        %3292 = vmatpush1.bf16.msra.mxu0 0
        %3293 = vmatprep.subr.bf16.mxu0 0
        %3294 = vmatpush1.bf16.msra.mxu0 0
        %3295 = vmatprep.subr.bf16.mxu0 0
        %3296 = vmatpush1.bf16.msra.mxu0 0
        %3297 = vmatprep.subr.bf16.mxu0 0
        %3298 = vmatpush1.bf16.msra.mxu0 0
        %3299 = vmatprep.subr.bf16.mxu0 0
        %3300 = vmatpush1.bf16.msra.mxu0 0
        %3301 = vmatprep.subr.bf16.mxu0 0
        %3302 = vmatpush1.bf16.msra.mxu0 0
        %3303 = vmatprep.subr.bf16.mxu0 0
        %3304 = vmatpush1.bf16.msra.mxu0 0
        %3305 = vmatprep.subr.bf16.mxu0 0
        %3306 = vmatpush1.bf16.msra.mxu0 0
        %3307 = vmatprep.subr.bf16.mxu0 0
        %3308 = vmatpush1.bf16.msra.mxu0 0
        %3309 = vmatprep.subr.bf16.mxu0 0
        %3310 = vmatpush1.bf16.msra.mxu0 0
        %3311 = vmatprep.subr.bf16.mxu0 0
        %3312 = vmatpush1.bf16.msra.mxu0 0
        %3313 = vmatprep.subr.bf16.mxu0 0
        %3314 = vmatpush1.bf16.msra.mxu0 0
        %3315 = vmatprep.subr.bf16.mxu0 0
        %3316 = vmatpush1.bf16.msra.mxu0 0
        %3317 = vmatprep.subr.bf16.mxu0 0
        %3318 = vmatpush1.bf16.msra.mxu0 0
        %3319 = vmatprep.subr.bf16.mxu0 0
        %3320 = vmatpush1.bf16.msra.mxu0 0
        %3321 = vmatprep.mubr.bf16.mxu0 0
        %3322 = vmatmul.mubr.bf16.gmra.mrb[0].mxu0 %v3020
        %v3323 = vpop.f32.mrb[0].mxu0
        %v3324 = vadd.f32 0.0, %v3323
        %v3325 = vpop.f32.mrb[0].mxu0
        %v3326 = vpop.f32.mrb[0].mxu0
        %v3327 = vadd.f32 0.0, %v3326
        %v3328 = vpop.f32.mrb[0].mxu0
        %3329 = vdwg.mxu0
        %v3331 = vsel %vm637, %v591, 0
        %3333 = vmatprep.subr.bf16.mxu0 0
        %3334 = vmatpush1.bf16.msra.mxu0 %v3331
        %3335 = vmatprep.subr.bf16.mxu0 0
        %3336 = vmatpush1.bf16.msra.mxu0 0
        %3337 = vmatprep.subr.bf16.mxu0 0
        %3338 = vmatpush1.bf16.msra.mxu0 0
        %3339 = vmatprep.subr.bf16.mxu0 0
        %3340 = vmatpush1.bf16.msra.mxu0 0
        %3341 = vmatprep.subr.bf16.mxu0 0
        %3342 = vmatpush1.bf16.msra.mxu0 0
        %3343 = vmatprep.subr.bf16.mxu0 0
        %3344 = vmatpush1.bf16.msra.mxu0 0
        %3345 = vmatprep.subr.bf16.mxu0 0
        %3346 = vmatpush1.bf16.msra.mxu0 0
        %3347 = vmatprep.subr.bf16.mxu0 0
        %3348 = vmatpush1.bf16.msra.mxu0 0
        %3349 = vmatprep.subr.bf16.mxu0 0
        %3350 = vmatpush1.bf16.msra.mxu0 0
        %3351 = vmatprep.subr.bf16.mxu0 0
        %3352 = vmatpush1.bf16.msra.mxu0 0
        %3353 = vmatprep.subr.bf16.mxu0 0
        %3354 = vmatpush1.bf16.msra.mxu0 0
        %3355 = vmatprep.subr.bf16.mxu0 0
        %3356 = vmatpush1.bf16.msra.mxu0 0
        %3357 = vmatprep.subr.bf16.mxu0 0
        %3358 = vmatpush1.bf16.msra.mxu0 0
        %3359 = vmatprep.subr.bf16.mxu0 0
        %3360 = vmatpush1.bf16.msra.mxu0 0
        %3361 = vmatprep.subr.bf16.mxu0 0
        %3362 = vmatpush1.bf16.msra.mxu0 0
        %3363 = vmatprep.subr.bf16.mxu0 0
        %3364 = vmatpush1.bf16.msra.mxu0 0
        %3365 = vmatprep.mubr.bf16.mxu0 0
        %3366 = vmatmul.mubr.bf16.gmra.mrb[0].mxu0 %v3020
        %v3367 = vpop.f32.mrb[0].mxu0
        %v3368 = vadd.f32 0.0, %v3367
        %v3369 = vpop.f32.mrb[0].mxu0
        %v3370 = vpop.f32.mrb[0].mxu0
        %v3371 = vadd.f32 0.0, %v3370
        %v3372 = vpop.f32.mrb[0].mxu0
        %3373 = vdwg.mxu0
        %v3374 = vadd.f32 %v2998, %v3060
        %v3375 = vadd.f32 %v2999, %v3063
        %v3376 = vadd.f32 %v3000, %v3104
        %v3377 = vadd.f32 %v3001, %v3107
        %v3378 = vadd.f32 %v3002, %v3148
        %v3379 = vadd.f32 %v3003, %v3151
        %v3380 = vadd.f32 %v3004, %v3192
        %v3381 = vadd.f32 %v3005, %v3195
        %v3382 = vadd.f32 %v3006, %v3236
        %v3383 = vadd.f32 %v3007, %v3239
        %v3384 = vadd.f32 %v3008, %v3280
        %v3385 = vadd.f32 %v3009, %v3283
        %v3386 = vadd.f32 %v3010, %v3324
        %v3387 = vadd.f32 %v3011, %v3327
        %v3388 = vadd.f32 %v3012, %v3368
        %v3389 = vadd.f32 %v3013, %v3371
        %v3392 = vunpack.c.l.b16 %v624
        %v3393 = vunpack.c.l.b16 %v625
        %v3394 = vpack.c.b16 %v3393, %v3392
        %v3396 = vsel %vm633, %v3394, 0
        %v3399 = vsel %vm637, %v603, 0
        %3401 = vmatprep.subr.bf16.mxu0 0
        %3402 = vmatpush1.bf16.msra.mxu0 %v3399
        %3403 = vmatprep.subr.bf16.mxu0 0
        %3404 = vmatpush1.bf16.msra.mxu0 0
        %3405 = vmatprep.subr.bf16.mxu0 0
        %3406 = vmatpush1.bf16.msra.mxu0 0
        %3407 = vmatprep.subr.bf16.mxu0 0
        %3408 = vmatpush1.bf16.msra.mxu0 0
        %3409 = vmatprep.subr.bf16.mxu0 0
        %3410 = vmatpush1.bf16.msra.mxu0 0
        %3411 = vmatprep.subr.bf16.mxu0 0
        %3412 = vmatpush1.bf16.msra.mxu0 0
        %3413 = vmatprep.subr.bf16.mxu0 0
        %3414 = vmatpush1.bf16.msra.mxu0 0
        %3415 = vmatprep.subr.bf16.mxu0 0
        %3416 = vmatpush1.bf16.msra.mxu0 0
        %3417 = vmatprep.subr.bf16.mxu0 0
        %3418 = vmatpush1.bf16.msra.mxu0 0
        %3419 = vmatprep.subr.bf16.mxu0 0
        %3420 = vmatpush1.bf16.msra.mxu0 0
        %3421 = vmatprep.subr.bf16.mxu0 0
        %3422 = vmatpush1.bf16.msra.mxu0 0
        %3423 = vmatprep.subr.bf16.mxu0 0
        %3424 = vmatpush1.bf16.msra.mxu0 0
        %3425 = vmatprep.subr.bf16.mxu0 0
        %3426 = vmatpush1.bf16.msra.mxu0 0
        %3427 = vmatprep.subr.bf16.mxu0 0
        %3428 = vmatpush1.bf16.msra.mxu0 0
        %3429 = vmatprep.subr.bf16.mxu0 0
        %3430 = vmatpush1.bf16.msra.mxu0 0
        %3431 = vmatprep.subr.bf16.mxu0 0
        %3432 = vmatpush1.bf16.msra.mxu0 0
        %3433 = vmatprep.mubr.bf16.mxu0 0
        %3434 = vmatmul.mubr.bf16.gmra.mrb[0].mxu0 %v3396
        %v3435 = vpop.f32.mrb[0].mxu0
        %v3436 = vadd.f32 0.0, %v3435
        %v3437 = vpop.f32.mrb[0].mxu0
        %v3438 = vpop.f32.mrb[0].mxu0
        %v3439 = vadd.f32 0.0, %v3438
        %v3440 = vpop.f32.mrb[0].mxu0
        %3441 = vdwg.mxu0
        %v3443 = vsel %vm637, %v604, 0
        %3445 = vmatprep.subr.bf16.mxu0 0
        %3446 = vmatpush1.bf16.msra.mxu0 %v3443
        %3447 = vmatprep.subr.bf16.mxu0 0
        %3448 = vmatpush1.bf16.msra.mxu0 0
        %3449 = vmatprep.subr.bf16.mxu0 0
        %3450 = vmatpush1.bf16.msra.mxu0 0
        %3451 = vmatprep.subr.bf16.mxu0 0
        %3452 = vmatpush1.bf16.msra.mxu0 0
        %3453 = vmatprep.subr.bf16.mxu0 0
        %3454 = vmatpush1.bf16.msra.mxu0 0
        %3455 = vmatprep.subr.bf16.mxu0 0
        %3456 = vmatpush1.bf16.msra.mxu0 0
        %3457 = vmatprep.subr.bf16.mxu0 0
        %3458 = vmatpush1.bf16.msra.mxu0 0
        %3459 = vmatprep.subr.bf16.mxu0 0
        %3460 = vmatpush1.bf16.msra.mxu0 0
        %3461 = vmatprep.subr.bf16.mxu0 0
        %3462 = vmatpush1.bf16.msra.mxu0 0
        %3463 = vmatprep.subr.bf16.mxu0 0
        %3464 = vmatpush1.bf16.msra.mxu0 0
        %3465 = vmatprep.subr.bf16.mxu0 0
        %3466 = vmatpush1.bf16.msra.mxu0 0
        %3467 = vmatprep.subr.bf16.mxu0 0
        %3468 = vmatpush1.bf16.msra.mxu0 0
        %3469 = vmatprep.subr.bf16.mxu0 0
        %3470 = vmatpush1.bf16.msra.mxu0 0
        %3471 = vmatprep.subr.bf16.mxu0 0
        %3472 = vmatpush1.bf16.msra.mxu0 0
        %3473 = vmatprep.subr.bf16.mxu0 0
        %3474 = vmatpush1.bf16.msra.mxu0 0
        %3475 = vmatprep.subr.bf16.mxu0 0
        %3476 = vmatpush1.bf16.msra.mxu0 0
        %3477 = vmatprep.mubr.bf16.mxu0 0
        %3478 = vmatmul.mubr.bf16.gmra.mrb[0].mxu0 %v3396
        %v3479 = vpop.f32.mrb[0].mxu0
        %v3480 = vadd.f32 0.0, %v3479
        %v3481 = vpop.f32.mrb[0].mxu0
        %v3482 = vpop.f32.mrb[0].mxu0
        %v3483 = vadd.f32 0.0, %v3482
        %v3484 = vpop.f32.mrb[0].mxu0
        %3485 = vdwg.mxu0
        %v3487 = vsel %vm637, %v605, 0
        %3489 = vmatprep.subr.bf16.mxu0 0
        %3490 = vmatpush1.bf16.msra.mxu0 %v3487
        %3491 = vmatprep.subr.bf16.mxu0 0
        %3492 = vmatpush1.bf16.msra.mxu0 0
        %3493 = vmatprep.subr.bf16.mxu0 0
        %3494 = vmatpush1.bf16.msra.mxu0 0
        %3495 = vmatprep.subr.bf16.mxu0 0
        %3496 = vmatpush1.bf16.msra.mxu0 0
        %3497 = vmatprep.subr.bf16.mxu0 0
        %3498 = vmatpush1.bf16.msra.mxu0 0
        %3499 = vmatprep.subr.bf16.mxu0 0
        %3500 = vmatpush1.bf16.msra.mxu0 0
        %3501 = vmatprep.subr.bf16.mxu0 0
        %3502 = vmatpush1.bf16.msra.mxu0 0
        %3503 = vmatprep.subr.bf16.mxu0 0
        %3504 = vmatpush1.bf16.msra.mxu0 0
        %3505 = vmatprep.subr.bf16.mxu0 0
        %3506 = vmatpush1.bf16.msra.mxu0 0
        %3507 = vmatprep.subr.bf16.mxu0 0
        %3508 = vmatpush1.bf16.msra.mxu0 0
        %3509 = vmatprep.subr.bf16.mxu0 0
        %3510 = vmatpush1.bf16.msra.mxu0 0
        %3511 = vmatprep.subr.bf16.mxu0 0
        %3512 = vmatpush1.bf16.msra.mxu0 0
        %3513 = vmatprep.subr.bf16.mxu0 0
        %3514 = vmatpush1.bf16.msra.mxu0 0
        %3515 = vmatprep.subr.bf16.mxu0 0
        %3516 = vmatpush1.bf16.msra.mxu0 0
        %3517 = vmatprep.subr.bf16.mxu0 0
        %3518 = vmatpush1.bf16.msra.mxu0 0
        %3519 = vmatprep.subr.bf16.mxu0 0
        %3520 = vmatpush1.bf16.msra.mxu0 0
        %3521 = vmatprep.mubr.bf16.mxu0 0
        %3522 = vmatmul.mubr.bf16.gmra.mrb[0].mxu0 %v3396
        %v3523 = vpop.f32.mrb[0].mxu0
        %v3524 = vadd.f32 0.0, %v3523
        %v3525 = vpop.f32.mrb[0].mxu0
        %v3526 = vpop.f32.mrb[0].mxu0
        %v3527 = vadd.f32 0.0, %v3526
        %v3528 = vpop.f32.mrb[0].mxu0
        %3529 = vdwg.mxu0
        %v3531 = vsel %vm637, %v606, 0
        %3533 = vmatprep.subr.bf16.mxu0 0
        %3534 = vmatpush1.bf16.msra.mxu0 %v3531
        %3535 = vmatprep.subr.bf16.mxu0 0
        %3536 = vmatpush1.bf16.msra.mxu0 0
        %3537 = vmatprep.subr.bf16.mxu0 0
        %3538 = vmatpush1.bf16.msra.mxu0 0
        %3539 = vmatprep.subr.bf16.mxu0 0
        %3540 = vmatpush1.bf16.msra.mxu0 0
        %3541 = vmatprep.subr.bf16.mxu0 0
        %3542 = vmatpush1.bf16.msra.mxu0 0
        %3543 = vmatprep.subr.bf16.mxu0 0
        %3544 = vmatpush1.bf16.msra.mxu0 0
        %3545 = vmatprep.subr.bf16.mxu0 0
        %3546 = vmatpush1.bf16.msra.mxu0 0
        %3547 = vmatprep.subr.bf16.mxu0 0
        %3548 = vmatpush1.bf16.msra.mxu0 0
        %3549 = vmatprep.subr.bf16.mxu0 0
        %3550 = vmatpush1.bf16.msra.mxu0 0
        %3551 = vmatprep.subr.bf16.mxu0 0
        %3552 = vmatpush1.bf16.msra.mxu0 0
        %3553 = vmatprep.subr.bf16.mxu0 0
        %3554 = vmatpush1.bf16.msra.mxu0 0
        %3555 = vmatprep.subr.bf16.mxu0 0
        %3556 = vmatpush1.bf16.msra.mxu0 0
        %3557 = vmatprep.subr.bf16.mxu0 0
        %3558 = vmatpush1.bf16.msra.mxu0 0
        %3559 = vmatprep.subr.bf16.mxu0 0
        %3560 = vmatpush1.bf16.msra.mxu0 0
        %3561 = vmatprep.subr.bf16.mxu0 0
        %3562 = vmatpush1.bf16.msra.mxu0 0
        %3563 = vmatprep.subr.bf16.mxu0 0
        %3564 = vmatpush1.bf16.msra.mxu0 0
        %3565 = vmatprep.mubr.bf16.mxu0 0
        %3566 = vmatmul.mubr.bf16.gmra.mrb[0].mxu0 %v3396
        %v3567 = vpop.f32.mrb[0].mxu0
        %v3568 = vadd.f32 0.0, %v3567
        %v3569 = vpop.f32.mrb[0].mxu0
        %v3570 = vpop.f32.mrb[0].mxu0
        %v3571 = vadd.f32 0.0, %v3570
        %v3572 = vpop.f32.mrb[0].mxu0
        %3573 = vdwg.mxu0
        %v3575 = vsel %vm637, %v607, 0
        %3577 = vmatprep.subr.bf16.mxu0 0
        %3578 = vmatpush1.bf16.msra.mxu0 %v3575
        %3579 = vmatprep.subr.bf16.mxu0 0
        %3580 = vmatpush1.bf16.msra.mxu0 0
        %3581 = vmatprep.subr.bf16.mxu0 0
        %3582 = vmatpush1.bf16.msra.mxu0 0
        %3583 = vmatprep.subr.bf16.mxu0 0
        %3584 = vmatpush1.bf16.msra.mxu0 0
        %3585 = vmatprep.subr.bf16.mxu0 0
        %3586 = vmatpush1.bf16.msra.mxu0 0
        %3587 = vmatprep.subr.bf16.mxu0 0
        %3588 = vmatpush1.bf16.msra.mxu0 0
        %3589 = vmatprep.subr.bf16.mxu0 0
        %3590 = vmatpush1.bf16.msra.mxu0 0
        %3591 = vmatprep.subr.bf16.mxu0 0
        %3592 = vmatpush1.bf16.msra.mxu0 0
        %3593 = vmatprep.subr.bf16.mxu0 0
        %3594 = vmatpush1.bf16.msra.mxu0 0
        %3595 = vmatprep.subr.bf16.mxu0 0
        %3596 = vmatpush1.bf16.msra.mxu0 0
        %3597 = vmatprep.subr.bf16.mxu0 0
        %3598 = vmatpush1.bf16.msra.mxu0 0
        %3599 = vmatprep.subr.bf16.mxu0 0
        %3600 = vmatpush1.bf16.msra.mxu0 0
        %3601 = vmatprep.subr.bf16.mxu0 0
        %3602 = vmatpush1.bf16.msra.mxu0 0
        %3603 = vmatprep.subr.bf16.mxu0 0
        %3604 = vmatpush1.bf16.msra.mxu0 0
        %3605 = vmatprep.subr.bf16.mxu0 0
        %3606 = vmatpush1.bf16.msra.mxu0 0
        %3607 = vmatprep.subr.bf16.mxu0 0
        %3608 = vmatpush1.bf16.msra.mxu0 0
        %3609 = vmatprep.mubr.bf16.mxu0 0
        %3610 = vmatmul.mubr.bf16.gmra.mrb[0].mxu0 %v3396
        %v3611 = vpop.f32.mrb[0].mxu0
        %v3612 = vadd.f32 0.0, %v3611
        %v3613 = vpop.f32.mrb[0].mxu0
        %v3614 = vpop.f32.mrb[0].mxu0
        %v3615 = vadd.f32 0.0, %v3614
        %v3616 = vpop.f32.mrb[0].mxu0
        %3617 = vdwg.mxu0
        %v3619 = vsel %vm637, %v608, 0
        %3621 = vmatprep.subr.bf16.mxu0 0
        %3622 = vmatpush1.bf16.msra.mxu0 %v3619
        %3623 = vmatprep.subr.bf16.mxu0 0
        %3624 = vmatpush1.bf16.msra.mxu0 0
        %3625 = vmatprep.subr.bf16.mxu0 0
        %3626 = vmatpush1.bf16.msra.mxu0 0
        %3627 = vmatprep.subr.bf16.mxu0 0
        %3628 = vmatpush1.bf16.msra.mxu0 0
        %3629 = vmatprep.subr.bf16.mxu0 0
        %3630 = vmatpush1.bf16.msra.mxu0 0
        %3631 = vmatprep.subr.bf16.mxu0 0
        %3632 = vmatpush1.bf16.msra.mxu0 0
        %3633 = vmatprep.subr.bf16.mxu0 0
        %3634 = vmatpush1.bf16.msra.mxu0 0
        %3635 = vmatprep.subr.bf16.mxu0 0
        %3636 = vmatpush1.bf16.msra.mxu0 0
        %3637 = vmatprep.subr.bf16.mxu0 0
        %3638 = vmatpush1.bf16.msra.mxu0 0
        %3639 = vmatprep.subr.bf16.mxu0 0
        %3640 = vmatpush1.bf16.msra.mxu0 0
        %3641 = vmatprep.subr.bf16.mxu0 0
        %3642 = vmatpush1.bf16.msra.mxu0 0
        %3643 = vmatprep.subr.bf16.mxu0 0
        %3644 = vmatpush1.bf16.msra.mxu0 0
        %3645 = vmatprep.subr.bf16.mxu0 0
        %3646 = vmatpush1.bf16.msra.mxu0 0
        %3647 = vmatprep.subr.bf16.mxu0 0
        %3648 = vmatpush1.bf16.msra.mxu0 0
        %3649 = vmatprep.subr.bf16.mxu0 0
        %3650 = vmatpush1.bf16.msra.mxu0 0
        %3651 = vmatprep.subr.bf16.mxu0 0
        %3652 = vmatpush1.bf16.msra.mxu0 0
        %3653 = vmatprep.mubr.bf16.mxu0 0
        %3654 = vmatmul.mubr.bf16.gmra.mrb[0].mxu0 %v3396
        %v3655 = vpop.f32.mrb[0].mxu0
        %v3656 = vadd.f32 0.0, %v3655
        %v3657 = vpop.f32.mrb[0].mxu0
        %v3658 = vpop.f32.mrb[0].mxu0
        %v3659 = vadd.f32 0.0, %v3658
        %v3660 = vpop.f32.mrb[0].mxu0
        %3661 = vdwg.mxu0
        %v3663 = vsel %vm637, %v609, 0
        %3665 = vmatprep.subr.bf16.mxu0 0
        %3666 = vmatpush1.bf16.msra.mxu0 %v3663
        %3667 = vmatprep.subr.bf16.mxu0 0
        %3668 = vmatpush1.bf16.msra.mxu0 0
        %3669 = vmatprep.subr.bf16.mxu0 0
        %3670 = vmatpush1.bf16.msra.mxu0 0
        %3671 = vmatprep.subr.bf16.mxu0 0
        %3672 = vmatpush1.bf16.msra.mxu0 0
        %3673 = vmatprep.subr.bf16.mxu0 0
        %3674 = vmatpush1.bf16.msra.mxu0 0
        %3675 = vmatprep.subr.bf16.mxu0 0
        %3676 = vmatpush1.bf16.msra.mxu0 0
        %3677 = vmatprep.subr.bf16.mxu0 0
        %3678 = vmatpush1.bf16.msra.mxu0 0
        %3679 = vmatprep.subr.bf16.mxu0 0
        %3680 = vmatpush1.bf16.msra.mxu0 0
        %3681 = vmatprep.subr.bf16.mxu0 0
        %3682 = vmatpush1.bf16.msra.mxu0 0
        %3683 = vmatprep.subr.bf16.mxu0 0
        %3684 = vmatpush1.bf16.msra.mxu0 0
        %3685 = vmatprep.subr.bf16.mxu0 0
        %3686 = vmatpush1.bf16.msra.mxu0 0
        %3687 = vmatprep.subr.bf16.mxu0 0
        %3688 = vmatpush1.bf16.msra.mxu0 0
        %3689 = vmatprep.subr.bf16.mxu0 0
        %3690 = vmatpush1.bf16.msra.mxu0 0
        %3691 = vmatprep.subr.bf16.mxu0 0
        %3692 = vmatpush1.bf16.msra.mxu0 0
        %3693 = vmatprep.subr.bf16.mxu0 0
        %3694 = vmatpush1.bf16.msra.mxu0 0
        %3695 = vmatprep.subr.bf16.mxu0 0
        %3696 = vmatpush1.bf16.msra.mxu0 0
        %3697 = vmatprep.mubr.bf16.mxu0 0
        %3698 = vmatmul.mubr.bf16.gmra.mrb[0].mxu0 %v3396
        %v3699 = vpop.f32.mrb[0].mxu0
        %v3700 = vadd.f32 0.0, %v3699
        %v3701 = vpop.f32.mrb[0].mxu0
        %v3702 = vpop.f32.mrb[0].mxu0
        %v3703 = vadd.f32 0.0, %v3702
        %v3704 = vpop.f32.mrb[0].mxu0
        %3705 = vdwg.mxu0
        %v3707 = vsel %vm637, %v593, 0
        %3709 = vmatprep.subr.bf16.mxu0 0
        %3710 = vmatpush1.bf16.msra.mxu0 %v3707
        %3711 = vmatprep.subr.bf16.mxu0 0
        %3712 = vmatpush1.bf16.msra.mxu0 0
        %3713 = vmatprep.subr.bf16.mxu0 0
        %3714 = vmatpush1.bf16.msra.mxu0 0
        %3715 = vmatprep.subr.bf16.mxu0 0
        %3716 = vmatpush1.bf16.msra.mxu0 0
        %3717 = vmatprep.subr.bf16.mxu0 0
        %3718 = vmatpush1.bf16.msra.mxu0 0
        %3719 = vmatprep.subr.bf16.mxu0 0
        %3720 = vmatpush1.bf16.msra.mxu0 0
        %3721 = vmatprep.subr.bf16.mxu0 0
        %3722 = vmatpush1.bf16.msra.mxu0 0
        %3723 = vmatprep.subr.bf16.mxu0 0
        %3724 = vmatpush1.bf16.msra.mxu0 0
        %3725 = vmatprep.subr.bf16.mxu0 0
        %3726 = vmatpush1.bf16.msra.mxu0 0
        %3727 = vmatprep.subr.bf16.mxu0 0
        %3728 = vmatpush1.bf16.msra.mxu0 0
        %3729 = vmatprep.subr.bf16.mxu0 0
        %3730 = vmatpush1.bf16.msra.mxu0 0
        %3731 = vmatprep.subr.bf16.mxu0 0
        %3732 = vmatpush1.bf16.msra.mxu0 0
        %3733 = vmatprep.subr.bf16.mxu0 0
        %3734 = vmatpush1.bf16.msra.mxu0 0
        %3735 = vmatprep.subr.bf16.mxu0 0
        %3736 = vmatpush1.bf16.msra.mxu0 0
        %3737 = vmatprep.subr.bf16.mxu0 0
        %3738 = vmatpush1.bf16.msra.mxu0 0
        %3739 = vmatprep.subr.bf16.mxu0 0
        %3740 = vmatpush1.bf16.msra.mxu0 0
        %3741 = vmatprep.mubr.bf16.mxu0 0
        %3742 = vmatmul.mubr.bf16.gmra.mrb[0].mxu0 %v3396
        %v3743 = vpop.f32.mrb[0].mxu0
        %v3744 = vadd.f32 0.0, %v3743
        %v3745 = vpop.f32.mrb[0].mxu0
        %v3746 = vpop.f32.mrb[0].mxu0
        %v3747 = vadd.f32 0.0, %v3746
        %v3748 = vpop.f32.mrb[0].mxu0
        %3749 = vdwg.mxu0
        %v3750 = vadd.f32 %v3374, %v3436
        %v3751 = vadd.f32 %v3375, %v3439
        %v3752 = vadd.f32 %v3376, %v3480
        %v3753 = vadd.f32 %v3377, %v3483
        %v3754 = vadd.f32 %v3378, %v3524
        %v3755 = vadd.f32 %v3379, %v3527
        %v3756 = vadd.f32 %v3380, %v3568
        %v3757 = vadd.f32 %v3381, %v3571
        %v3758 = vadd.f32 %v3382, %v3612
        %v3759 = vadd.f32 %v3383, %v3615
        %v3760 = vadd.f32 %v3384, %v3656
        %v3761 = vadd.f32 %v3385, %v3659
        %v3762 = vadd.f32 %v3386, %v3700
        %v3763 = vadd.f32 %v3387, %v3703
        %v3764 = vadd.f32 %v3388, %v3744
        %v3765 = vadd.f32 %v3389, %v3747
        %v3768 = vunpack.c.l.b16 %v626
        %v3769 = vunpack.c.l.b16 %v627
        %v3770 = vpack.c.b16 %v3769, %v3768
        %v3773 = vunpack.c.l.s4 1983009808
        %v3774 = vunpack.c.0.s8 %v3773
        %v3775 = vlaneseq
        %v3776 = vshrl.u32 %v3775, 7
        %v3777 = vsub.s32 %v3774, %v3776
        %v3778 = vrot.slane %v595, %v3777
        %3779 = vrot.lane.b32.xlu0 %v3778, 127
        %v3780 = vpop.permute.xlu0 %3779
        %v3782 = vsel %vm633, %v3770, 0
        %v3785 = vsel %vm637, %v3780, 0
        %3787 = vmatprep.subr.bf16.mxu0 0
        %3788 = vmatpush1.bf16.msra.mxu0 %v3785
        %3789 = vmatprep.subr.bf16.mxu0 0
        %3790 = vmatpush1.bf16.msra.mxu0 0
        %3791 = vmatprep.subr.bf16.mxu0 0
        %3792 = vmatpush1.bf16.msra.mxu0 0
        %3793 = vmatprep.subr.bf16.mxu0 0
        %3794 = vmatpush1.bf16.msra.mxu0 0
        %3795 = vmatprep.subr.bf16.mxu0 0
        %3796 = vmatpush1.bf16.msra.mxu0 0
        %3797 = vmatprep.subr.bf16.mxu0 0
        %3798 = vmatpush1.bf16.msra.mxu0 0
        %3799 = vmatprep.subr.bf16.mxu0 0
        %3800 = vmatpush1.bf16.msra.mxu0 0
        %3801 = vmatprep.subr.bf16.mxu0 0
        %3802 = vmatpush1.bf16.msra.mxu0 0
        %3803 = vmatprep.subr.bf16.mxu0 0
        %3804 = vmatpush1.bf16.msra.mxu0 0
        %3805 = vmatprep.subr.bf16.mxu0 0
        %3806 = vmatpush1.bf16.msra.mxu0 0
        %3807 = vmatprep.subr.bf16.mxu0 0
        %3808 = vmatpush1.bf16.msra.mxu0 0
        %3809 = vmatprep.subr.bf16.mxu0 0
        %3810 = vmatpush1.bf16.msra.mxu0 0
        %3811 = vmatprep.subr.bf16.mxu0 0
        %3812 = vmatpush1.bf16.msra.mxu0 0
        %3813 = vmatprep.subr.bf16.mxu0 0
        %3814 = vmatpush1.bf16.msra.mxu0 0
        %3815 = vmatprep.subr.bf16.mxu0 0
        %3816 = vmatpush1.bf16.msra.mxu0 0
        %3817 = vmatprep.subr.bf16.mxu0 0
        %3818 = vmatpush1.bf16.msra.mxu0 0
        %3819 = vmatprep.mubr.bf16.mxu0 0
        %3820 = vmatmul.mubr.bf16.gmra.mrb[0].mxu0 %v3782
        %v3821 = vpop.f32.mrb[0].mxu0
        %v3822 = vadd.f32 0.0, %v3821
        %v3823 = vpop.f32.mrb[0].mxu0
        %v3824 = vpop.f32.mrb[0].mxu0
        %v3825 = vadd.f32 0.0, %v3824
        %v3826 = vpop.f32.mrb[0].mxu0
        %3827 = vdwg.mxu0
        %v3830 = vunpack.c.l.s4 1983009808
        %v3831 = vunpack.c.0.s8 %v3830
        %v3832 = vlaneseq
        %v3833 = vshrl.u32 %v3832, 7
        %v3834 = vsub.s32 %v3831, %v3833
        %v3835 = vrot.slane %v596, %v3834
        %3836 = vrot.lane.b32.xlu0 %v3835, 127
        %v3837 = vpop.permute.xlu0 %3836
        %v3839 = vsel %vm637, %v3837, 0
        %3841 = vmatprep.subr.bf16.mxu0 0
        %3842 = vmatpush1.bf16.msra.mxu0 %v3839
        %3843 = vmatprep.subr.bf16.mxu0 0
        %3844 = vmatpush1.bf16.msra.mxu0 0
        %3845 = vmatprep.subr.bf16.mxu0 0
        %3846 = vmatpush1.bf16.msra.mxu0 0
        %3847 = vmatprep.subr.bf16.mxu0 0
        %3848 = vmatpush1.bf16.msra.mxu0 0
        %3849 = vmatprep.subr.bf16.mxu0 0
        %3850 = vmatpush1.bf16.msra.mxu0 0
        %3851 = vmatprep.subr.bf16.mxu0 0
        %3852 = vmatpush1.bf16.msra.mxu0 0
        %3853 = vmatprep.subr.bf16.mxu0 0
        %3854 = vmatpush1.bf16.msra.mxu0 0
        %3855 = vmatprep.subr.bf16.mxu0 0
        %3856 = vmatpush1.bf16.msra.mxu0 0
        %3857 = vmatprep.subr.bf16.mxu0 0
        %3858 = vmatpush1.bf16.msra.mxu0 0
        %3859 = vmatprep.subr.bf16.mxu0 0
        %3860 = vmatpush1.bf16.msra.mxu0 0
        %3861 = vmatprep.subr.bf16.mxu0 0
        %3862 = vmatpush1.bf16.msra.mxu0 0
        %3863 = vmatprep.subr.bf16.mxu0 0
        %3864 = vmatpush1.bf16.msra.mxu0 0
        %3865 = vmatprep.subr.bf16.mxu0 0
        %3866 = vmatpush1.bf16.msra.mxu0 0
        %3867 = vmatprep.subr.bf16.mxu0 0
        %3868 = vmatpush1.bf16.msra.mxu0 0
        %3869 = vmatprep.subr.bf16.mxu0 0
        %3870 = vmatpush1.bf16.msra.mxu0 0
        %3871 = vmatprep.subr.bf16.mxu0 0
        %3872 = vmatpush1.bf16.msra.mxu0 0
        %3873 = vmatprep.mubr.bf16.mxu0 0
        %3874 = vmatmul.mubr.bf16.gmra.mrb[0].mxu0 %v3782
        %v3875 = vpop.f32.mrb[0].mxu0
        %v3876 = vadd.f32 0.0, %v3875
        %v3877 = vpop.f32.mrb[0].mxu0
        %v3878 = vpop.f32.mrb[0].mxu0
        %v3879 = vadd.f32 0.0, %v3878
        %v3880 = vpop.f32.mrb[0].mxu0
        %3881 = vdwg.mxu0
        %v3884 = vunpack.c.l.s4 1983009808
        %v3885 = vunpack.c.0.s8 %v3884
        %v3886 = vlaneseq
        %v3887 = vshrl.u32 %v3886, 7
        %v3888 = vsub.s32 %v3885, %v3887
        %v3889 = vrot.slane %v597, %v3888
        %3890 = vrot.lane.b32.xlu0 %v3889, 127
        %v3891 = vpop.permute.xlu0 %3890
        %v3893 = vsel %vm637, %v3891, 0
        %3895 = vmatprep.subr.bf16.mxu0 0
        %3896 = vmatpush1.bf16.msra.mxu0 %v3893
        %3897 = vmatprep.subr.bf16.mxu0 0
        %3898 = vmatpush1.bf16.msra.mxu0 0
        %3899 = vmatprep.subr.bf16.mxu0 0
        %3900 = vmatpush1.bf16.msra.mxu0 0
        %3901 = vmatprep.subr.bf16.mxu0 0
        %3902 = vmatpush1.bf16.msra.mxu0 0
        %3903 = vmatprep.subr.bf16.mxu0 0
        %3904 = vmatpush1.bf16.msra.mxu0 0
        %3905 = vmatprep.subr.bf16.mxu0 0
        %3906 = vmatpush1.bf16.msra.mxu0 0
        %3907 = vmatprep.subr.bf16.mxu0 0
        %3908 = vmatpush1.bf16.msra.mxu0 0
        %3909 = vmatprep.subr.bf16.mxu0 0
        %3910 = vmatpush1.bf16.msra.mxu0 0
        %3911 = vmatprep.subr.bf16.mxu0 0
        %3912 = vmatpush1.bf16.msra.mxu0 0
        %3913 = vmatprep.subr.bf16.mxu0 0
        %3914 = vmatpush1.bf16.msra.mxu0 0
        %3915 = vmatprep.subr.bf16.mxu0 0
        %3916 = vmatpush1.bf16.msra.mxu0 0
        %3917 = vmatprep.subr.bf16.mxu0 0
        %3918 = vmatpush1.bf16.msra.mxu0 0
        %3919 = vmatprep.subr.bf16.mxu0 0
        %3920 = vmatpush1.bf16.msra.mxu0 0
        %3921 = vmatprep.subr.bf16.mxu0 0
        %3922 = vmatpush1.bf16.msra.mxu0 0
        %3923 = vmatprep.subr.bf16.mxu0 0
        %3924 = vmatpush1.bf16.msra.mxu0 0
        %3925 = vmatprep.subr.bf16.mxu0 0
        %3926 = vmatpush1.bf16.msra.mxu0 0
        %3927 = vmatprep.mubr.bf16.mxu0 0
        %3928 = vmatmul.mubr.bf16.gmra.mrb[0].mxu0 %v3782
        %v3929 = vpop.f32.mrb[0].mxu0
        %v3930 = vadd.f32 0.0, %v3929
        %v3931 = vpop.f32.mrb[0].mxu0
        %v3932 = vpop.f32.mrb[0].mxu0
        %v3933 = vadd.f32 0.0, %v3932
        %v3934 = vpop.f32.mrb[0].mxu0
        %3935 = vdwg.mxu0
        %v3938 = vunpack.c.l.s4 1983009808
        %v3939 = vunpack.c.0.s8 %v3938
        %v3940 = vlaneseq
        %v3941 = vshrl.u32 %v3940, 7
        %v3942 = vsub.s32 %v3939, %v3941
        %v3943 = vrot.slane %v598, %v3942
        %3944 = vrot.lane.b32.xlu0 %v3943, 127
        %v3945 = vpop.permute.xlu0 %3944
        %v3947 = vsel %vm637, %v3945, 0
        %3949 = vmatprep.subr.bf16.mxu0 0
        %3950 = vmatpush1.bf16.msra.mxu0 %v3947
        %3951 = vmatprep.subr.bf16.mxu0 0
        %3952 = vmatpush1.bf16.msra.mxu0 0
        %3953 = vmatprep.subr.bf16.mxu0 0
        %3954 = vmatpush1.bf16.msra.mxu0 0
        %3955 = vmatprep.subr.bf16.mxu0 0
        %3956 = vmatpush1.bf16.msra.mxu0 0
        %3957 = vmatprep.subr.bf16.mxu0 0
        %3958 = vmatpush1.bf16.msra.mxu0 0
        %3959 = vmatprep.subr.bf16.mxu0 0
        %3960 = vmatpush1.bf16.msra.mxu0 0
        %3961 = vmatprep.subr.bf16.mxu0 0
        %3962 = vmatpush1.bf16.msra.mxu0 0
        %3963 = vmatprep.subr.bf16.mxu0 0
        %3964 = vmatpush1.bf16.msra.mxu0 0
        %3965 = vmatprep.subr.bf16.mxu0 0
        %3966 = vmatpush1.bf16.msra.mxu0 0
        %3967 = vmatprep.subr.bf16.mxu0 0
        %3968 = vmatpush1.bf16.msra.mxu0 0
        %3969 = vmatprep.subr.bf16.mxu0 0
        %3970 = vmatpush1.bf16.msra.mxu0 0
        %3971 = vmatprep.subr.bf16.mxu0 0
        %3972 = vmatpush1.bf16.msra.mxu0 0
        %3973 = vmatprep.subr.bf16.mxu0 0
        %3974 = vmatpush1.bf16.msra.mxu0 0
        %3975 = vmatprep.subr.bf16.mxu0 0
        %3976 = vmatpush1.bf16.msra.mxu0 0
        %3977 = vmatprep.subr.bf16.mxu0 0
        %3978 = vmatpush1.bf16.msra.mxu0 0
        %3979 = vmatprep.subr.bf16.mxu0 0
        %3980 = vmatpush1.bf16.msra.mxu0 0
        %3981 = vmatprep.mubr.bf16.mxu0 0
        %3982 = vmatmul.mubr.bf16.gmra.mrb[0].mxu0 %v3782
        %v3983 = vpop.f32.mrb[0].mxu0
        %v3984 = vadd.f32 0.0, %v3983
        %v3985 = vpop.f32.mrb[0].mxu0
        %v3986 = vpop.f32.mrb[0].mxu0
        %v3987 = vadd.f32 0.0, %v3986
        %v3988 = vpop.f32.mrb[0].mxu0
        %3989 = vdwg.mxu0
        %v3992 = vunpack.c.l.s4 1983009808
        %v3993 = vunpack.c.0.s8 %v3992
        %v3994 = vlaneseq
        %v3995 = vshrl.u32 %v3994, 7
        %v3996 = vsub.s32 %v3993, %v3995
        %v3997 = vrot.slane %v599, %v3996
        %3998 = vrot.lane.b32.xlu0 %v3997, 127
        %v3999 = vpop.permute.xlu0 %3998
        %v4001 = vsel %vm637, %v3999, 0
        %4003 = vmatprep.subr.bf16.mxu0 0
        %4004 = vmatpush1.bf16.msra.mxu0 %v4001
        %4005 = vmatprep.subr.bf16.mxu0 0
        %4006 = vmatpush1.bf16.msra.mxu0 0
        %4007 = vmatprep.subr.bf16.mxu0 0
        %4008 = vmatpush1.bf16.msra.mxu0 0
        %4009 = vmatprep.subr.bf16.mxu0 0
        %4010 = vmatpush1.bf16.msra.mxu0 0
        %4011 = vmatprep.subr.bf16.mxu0 0
        %4012 = vmatpush1.bf16.msra.mxu0 0
        %4013 = vmatprep.subr.bf16.mxu0 0
        %4014 = vmatpush1.bf16.msra.mxu0 0
        %4015 = vmatprep.subr.bf16.mxu0 0
        %4016 = vmatpush1.bf16.msra.mxu0 0
        %4017 = vmatprep.subr.bf16.mxu0 0
        %4018 = vmatpush1.bf16.msra.mxu0 0
        %4019 = vmatprep.subr.bf16.mxu0 0
        %4020 = vmatpush1.bf16.msra.mxu0 0
        %4021 = vmatprep.subr.bf16.mxu0 0
        %4022 = vmatpush1.bf16.msra.mxu0 0
        %4023 = vmatprep.subr.bf16.mxu0 0
        %4024 = vmatpush1.bf16.msra.mxu0 0
        %4025 = vmatprep.subr.bf16.mxu0 0
        %4026 = vmatpush1.bf16.msra.mxu0 0
        %4027 = vmatprep.subr.bf16.mxu0 0
        %4028 = vmatpush1.bf16.msra.mxu0 0
        %4029 = vmatprep.subr.bf16.mxu0 0
        %4030 = vmatpush1.bf16.msra.mxu0 0
        %4031 = vmatprep.subr.bf16.mxu0 0
        %4032 = vmatpush1.bf16.msra.mxu0 0
        %4033 = vmatprep.subr.bf16.mxu0 0
        %4034 = vmatpush1.bf16.msra.mxu0 0
        %4035 = vmatprep.mubr.bf16.mxu0 0
        %4036 = vmatmul.mubr.bf16.gmra.mrb[0].mxu0 %v3782
        %v4037 = vpop.f32.mrb[0].mxu0
        %v4038 = vadd.f32 0.0, %v4037
        %v4039 = vpop.f32.mrb[0].mxu0
        %v4040 = vpop.f32.mrb[0].mxu0
        %v4041 = vadd.f32 0.0, %v4040
        %v4042 = vpop.f32.mrb[0].mxu0
        %4043 = vdwg.mxu0
        %v4046 = vunpack.c.l.s4 1983009808
        %v4047 = vunpack.c.0.s8 %v4046
        %v4048 = vlaneseq
        %v4049 = vshrl.u32 %v4048, 7
        %v4050 = vsub.s32 %v4047, %v4049
        %v4051 = vrot.slane %v600, %v4050
        %4052 = vrot.lane.b32.xlu0 %v4051, 127
        %v4053 = vpop.permute.xlu0 %4052
        %v4055 = vsel %vm637, %v4053, 0
        %4057 = vmatprep.subr.bf16.mxu0 0
        %4058 = vmatpush1.bf16.msra.mxu0 %v4055
        %4059 = vmatprep.subr.bf16.mxu0 0
        %4060 = vmatpush1.bf16.msra.mxu0 0
        %4061 = vmatprep.subr.bf16.mxu0 0
        %4062 = vmatpush1.bf16.msra.mxu0 0
        %4063 = vmatprep.subr.bf16.mxu0 0
        %4064 = vmatpush1.bf16.msra.mxu0 0
        %4065 = vmatprep.subr.bf16.mxu0 0
        %4066 = vmatpush1.bf16.msra.mxu0 0
        %4067 = vmatprep.subr.bf16.mxu0 0
        %4068 = vmatpush1.bf16.msra.mxu0 0
        %4069 = vmatprep.subr.bf16.mxu0 0
        %4070 = vmatpush1.bf16.msra.mxu0 0
        %4071 = vmatprep.subr.bf16.mxu0 0
        %4072 = vmatpush1.bf16.msra.mxu0 0
        %4073 = vmatprep.subr.bf16.mxu0 0
        %4074 = vmatpush1.bf16.msra.mxu0 0
        %4075 = vmatprep.subr.bf16.mxu0 0
        %4076 = vmatpush1.bf16.msra.mxu0 0
        %4077 = vmatprep.subr.bf16.mxu0 0
        %4078 = vmatpush1.bf16.msra.mxu0 0
        %4079 = vmatprep.subr.bf16.mxu0 0
        %4080 = vmatpush1.bf16.msra.mxu0 0
        %4081 = vmatprep.subr.bf16.mxu0 0
        %4082 = vmatpush1.bf16.msra.mxu0 0
        %4083 = vmatprep.subr.bf16.mxu0 0
        %4084 = vmatpush1.bf16.msra.mxu0 0
        %4085 = vmatprep.subr.bf16.mxu0 0
        %4086 = vmatpush1.bf16.msra.mxu0 0
        %4087 = vmatprep.subr.bf16.mxu0 0
        %4088 = vmatpush1.bf16.msra.mxu0 0
        %4089 = vmatprep.mubr.bf16.mxu0 0
        %4090 = vmatmul.mubr.bf16.gmra.mrb[0].mxu0 %v3782
        %v4091 = vpop.f32.mrb[0].mxu0
        %v4092 = vadd.f32 0.0, %v4091
        %v4093 = vpop.f32.mrb[0].mxu0
        %v4094 = vpop.f32.mrb[0].mxu0
        %v4095 = vadd.f32 0.0, %v4094
        %v4096 = vpop.f32.mrb[0].mxu0
        %4097 = vdwg.mxu0
        %v4100 = vunpack.c.l.s4 1983009808
        %v4101 = vunpack.c.0.s8 %v4100
        %v4102 = vlaneseq
        %v4103 = vshrl.u32 %v4102, 7
        %v4104 = vsub.s32 %v4101, %v4103
        %v4105 = vrot.slane %v601, %v4104
        %4106 = vrot.lane.b32.xlu0 %v4105, 127
        %v4107 = vpop.permute.xlu0 %4106
        %v4109 = vsel %vm637, %v4107, 0
        %4111 = vmatprep.subr.bf16.mxu0 0
        %4112 = vmatpush1.bf16.msra.mxu0 %v4109
        %4113 = vmatprep.subr.bf16.mxu0 0
        %4114 = vmatpush1.bf16.msra.mxu0 0
        %4115 = vmatprep.subr.bf16.mxu0 0
        %4116 = vmatpush1.bf16.msra.mxu0 0
        %4117 = vmatprep.subr.bf16.mxu0 0
        %4118 = vmatpush1.bf16.msra.mxu0 0
        %4119 = vmatprep.subr.bf16.mxu0 0
        %4120 = vmatpush1.bf16.msra.mxu0 0
        %4121 = vmatprep.subr.bf16.mxu0 0
        %4122 = vmatpush1.bf16.msra.mxu0 0
        %4123 = vmatprep.subr.bf16.mxu0 0
        %4124 = vmatpush1.bf16.msra.mxu0 0
        %4125 = vmatprep.subr.bf16.mxu0 0
        %4126 = vmatpush1.bf16.msra.mxu0 0
        %4127 = vmatprep.subr.bf16.mxu0 0
        %4128 = vmatpush1.bf16.msra.mxu0 0
        %4129 = vmatprep.subr.bf16.mxu0 0
        %4130 = vmatpush1.bf16.msra.mxu0 0
        %4131 = vmatprep.subr.bf16.mxu0 0
        %4132 = vmatpush1.bf16.msra.mxu0 0
        %4133 = vmatprep.subr.bf16.mxu0 0
        %4134 = vmatpush1.bf16.msra.mxu0 0
        %4135 = vmatprep.subr.bf16.mxu0 0
        %4136 = vmatpush1.bf16.msra.mxu0 0
        %4137 = vmatprep.subr.bf16.mxu0 0
        %4138 = vmatpush1.bf16.msra.mxu0 0
        %4139 = vmatprep.subr.bf16.mxu0 0
        %4140 = vmatpush1.bf16.msra.mxu0 0
        %4141 = vmatprep.subr.bf16.mxu0 0
        %4142 = vmatpush1.bf16.msra.mxu0 0
        %4143 = vmatprep.mubr.bf16.mxu0 0
        %4144 = vmatmul.mubr.bf16.gmra.mrb[0].mxu0 %v3782
        %v4145 = vpop.f32.mrb[0].mxu0
        %v4146 = vadd.f32 0.0, %v4145
        %v4147 = vpop.f32.mrb[0].mxu0
        %v4148 = vpop.f32.mrb[0].mxu0
        %v4149 = vadd.f32 0.0, %v4148
        %v4150 = vpop.f32.mrb[0].mxu0
        %4151 = vdwg.mxu0
        %v4154 = vunpack.c.l.s4 1983009808
        %v4155 = vunpack.c.0.s8 %v4154
        %v4156 = vlaneseq
        %v4157 = vshrl.u32 %v4156, 7
        %v4158 = vsub.s32 %v4155, %v4157
        %v4159 = vrot.slane %v591, %v4158
        %4160 = vrot.lane.b32.xlu0 %v4159, 127
        %v4161 = vpop.permute.xlu0 %4160
        %v4163 = vsel %vm637, %v4161, 0
        %4165 = vmatprep.subr.bf16.mxu0 0
        %4166 = vmatpush1.bf16.msra.mxu0 %v4163
        %4167 = vmatprep.subr.bf16.mxu0 0
        %4168 = vmatpush1.bf16.msra.mxu0 0
        %4169 = vmatprep.subr.bf16.mxu0 0
        %4170 = vmatpush1.bf16.msra.mxu0 0
        %4171 = vmatprep.subr.bf16.mxu0 0
        %4172 = vmatpush1.bf16.msra.mxu0 0
        %4173 = vmatprep.subr.bf16.mxu0 0
        %4174 = vmatpush1.bf16.msra.mxu0 0
        %4175 = vmatprep.subr.bf16.mxu0 0
        %4176 = vmatpush1.bf16.msra.mxu0 0
        %4177 = vmatprep.subr.bf16.mxu0 0
        %4178 = vmatpush1.bf16.msra.mxu0 0
        %4179 = vmatprep.subr.bf16.mxu0 0
        %4180 = vmatpush1.bf16.msra.mxu0 0
        %4181 = vmatprep.subr.bf16.mxu0 0
        %4182 = vmatpush1.bf16.msra.mxu0 0
        %4183 = vmatprep.subr.bf16.mxu0 0
        %4184 = vmatpush1.bf16.msra.mxu0 0
        %4185 = vmatprep.subr.bf16.mxu0 0
        %4186 = vmatpush1.bf16.msra.mxu0 0
        %4187 = vmatprep.subr.bf16.mxu0 0
        %4188 = vmatpush1.bf16.msra.mxu0 0
        %4189 = vmatprep.subr.bf16.mxu0 0
        %4190 = vmatpush1.bf16.msra.mxu0 0
        %4191 = vmatprep.subr.bf16.mxu0 0
        %4192 = vmatpush1.bf16.msra.mxu0 0
        %4193 = vmatprep.subr.bf16.mxu0 0
        %4194 = vmatpush1.bf16.msra.mxu0 0
        %4195 = vmatprep.subr.bf16.mxu0 0
        %4196 = vmatpush1.bf16.msra.mxu0 0
        %4197 = vmatprep.mubr.bf16.mxu0 0
        %4198 = vmatmul.mubr.bf16.gmra.mrb[0].mxu0 %v3782
        %v4199 = vpop.f32.mrb[0].mxu0
        %v4200 = vadd.f32 0.0, %v4199
        %v4201 = vpop.f32.mrb[0].mxu0
        %v4202 = vpop.f32.mrb[0].mxu0
        %v4203 = vadd.f32 0.0, %v4202
        %v4204 = vpop.f32.mrb[0].mxu0
        %4205 = vdwg.mxu0
        %v4206 = vadd.f32 %v3750, %v3822
        %v4207 = vadd.f32 %v3751, %v3825
        %v4208 = vadd.f32 %v3752, %v3876
        %v4209 = vadd.f32 %v3753, %v3879
        %v4210 = vadd.f32 %v3754, %v3930
        %v4211 = vadd.f32 %v3755, %v3933
        %v4212 = vadd.f32 %v3756, %v3984
        %v4213 = vadd.f32 %v3757, %v3987
        %v4214 = vadd.f32 %v3758, %v4038
        %v4215 = vadd.f32 %v3759, %v4041
        %v4216 = vadd.f32 %v3760, %v4092
        %v4217 = vadd.f32 %v3761, %v4095
        %v4218 = vadd.f32 %v3762, %v4146
        %v4219 = vadd.f32 %v3763, %v4149
        %v4220 = vadd.f32 %v3764, %v4200
        %v4221 = vadd.f32 %v3765, %v4203
        %4222 = vrot.lane.b32.xlu0 %v574, 127
        %v4223 = vpop.permute.xlu0 %4222
        %4224 = vrot.lane.b32.xlu0 %v575, 127
        %v4225 = vpop.permute.xlu0 %4224
        %4226 = vrot.lane.b32.xlu0 %v576, 127
        %v4227 = vpop.permute.xlu0 %4226
        %4228 = vrot.lane.b32.xlu0 %v577, 127
        %v4229 = vpop.permute.xlu0 %4228
        %4230 = vrot.lane.b32.xlu0 %v578, 127
        %v4231 = vpop.permute.xlu0 %4230
        %4232 = vrot.lane.b32.xlu0 %v579, 127
        %v4233 = vpop.permute.xlu0 %4232
        %4234 = vrot.lane.b32.xlu0 %v580, 127
        %v4235 = vpop.permute.xlu0 %4234
        %4236 = vrot.lane.b32.xlu0 %v581, 127
        %v4237 = vpop.permute.xlu0 %4236
        %v4246 = vmax.bf16 %v583, %v4223
        %v4247 = vmax.bf16 %v584, %v4225
        %v4248 = vmax.bf16 %v585, %v4227
        %v4249 = vmax.bf16 %v586, %v4229
        %v4250 = vmax.bf16 %v587, %v4231
        %v4251 = vmax.bf16 %v588, %v4233
        %v4252 = vmax.bf16 %v589, %v4235
        %v4253 = vmax.bf16 %v590, %v4237
        %4254 = vrot.lane.b32.xlu0 %v595, 127
        %v4255 = vpop.permute.xlu0 %4254
        %4256 = vrot.lane.b32.xlu0 %v596, 127
        %v4257 = vpop.permute.xlu0 %4256
        %4258 = vrot.lane.b32.xlu0 %v597, 127
        %v4259 = vpop.permute.xlu0 %4258
        %4260 = vrot.lane.b32.xlu0 %v598, 127
        %v4261 = vpop.permute.xlu0 %4260
        %4262 = vrot.lane.b32.xlu0 %v599, 127
        %v4263 = vpop.permute.xlu0 %4262
        %4264 = vrot.lane.b32.xlu0 %v600, 127
        %v4265 = vpop.permute.xlu0 %4264
        %4266 = vrot.lane.b32.xlu0 %v601, 127
        %v4267 = vpop.permute.xlu0 %4266
        %4268 = vrot.lane.b32.xlu0 %v591, 127
        %v4269 = vpop.permute.xlu0 %4268
        %v4278 = vmax.bf16 %v603, %v4255
        %v4279 = vmax.bf16 %v604, %v4257
        %v4280 = vmax.bf16 %v605, %v4259
        %v4281 = vmax.bf16 %v606, %v4261
        %v4282 = vmax.bf16 %v607, %v4263
        %v4283 = vmax.bf16 %v608, %v4265
        %v4284 = vmax.bf16 %v609, %v4267
        %v4285 = vmax.bf16 %v593, %v4269
        %v4286 = vmax.bf16 %v4246, %v4278
        %v4287 = vmax.bf16 %v4247, %v4279
        %v4288 = vmax.bf16 %v4248, %v4280
        %v4289 = vmax.bf16 %v4249, %v4281
        %v4290 = vmax.bf16 %v4250, %v4282
        %v4291 = vmax.bf16 %v4251, %v4283
        %v4292 = vmax.bf16 %v4252, %v4284
        %v4293 = vmax.bf16 %v4253, %v4285
        %v4294 = vunpack.c.l.bf16 %v4286
        %v4295 = vunpack.c.l.bf16 %v4287
        %v4296 = vunpack.c.l.bf16 %v4288
        %v4297 = vunpack.c.l.bf16 %v4289
        %v4298 = vunpack.c.l.bf16 %v4290
        %v4299 = vunpack.c.l.bf16 %v4291
        %v4300 = vunpack.c.l.bf16 %v4292
        %v4301 = vunpack.c.l.bf16 %v4293
        %vm4302 = vcmask 64512
        %v4303 = vsel %vm4302, %v4206, 0.0
        %v4304 = vsel %vm4302, %v4208, 0.0
        %v4305 = vadd.f32 %v4303, %v4304
        %v4306 = vsel %vm4302, %v4210, 0.0
        %v4307 = vadd.f32 %v4305, %v4306
        %v4308 = vsel %vm4302, %v4212, 0.0
        %v4309 = vadd.f32 %v4307, %v4308
        %v4310 = vsel %vm4302, %v4214, 0.0
        %v4311 = vadd.f32 %v4309, %v4310
        %v4312 = vsel %vm4302, %v4216, 0.0
        %v4313 = vadd.f32 %v4311, %v4312
        %v4314 = vsel %vm4302, %v4218, 0.0
        %v4315 = vadd.f32 %v4313, %v4314
        %v4316 = vsel %vm4302, %v4220, 0.0
        %v4317 = vadd.f32 %v4315, %v4316
        %vm4318 = vcmask 60416
        %v4319 = vsel %vm4318, %v4207, 0.0
        %v4320 = vsel %vm4318, %v4209, 0.0
        %v4321 = vadd.f32 %v4319, %v4320
        %v4322 = vsel %vm4318, %v4211, 0.0
        %v4323 = vadd.f32 %v4321, %v4322
        %v4324 = vsel %vm4318, %v4213, 0.0
        %v4325 = vadd.f32 %v4323, %v4324
        %v4326 = vsel %vm4318, %v4215, 0.0
        %v4327 = vadd.f32 %v4325, %v4326
        %v4328 = vsel %vm4318, %v4217, 0.0
        %v4329 = vadd.f32 %v4327, %v4328
        %v4330 = vsel %vm4318, %v4219, 0.0
        %v4331 = vadd.f32 %v4329, %v4330
        %v4332 = vsel %vm4318, %v4221, 0.0
        %v4333 = vadd.f32 %v4331, %v4332
        %v4334 = vsel %vm4302, %v4317, 0.0
        %4335 = vadd.xlane.f32.xlu0 %v4334
        %v4336 = vpop.xlane.xlu0 %4335
        %v4337 = vsel %vm4318, %v4333, 0.0
        %4338 = vadd.xlane.f32.xlu0 %v4337
        %v4339 = vpop.xlane.xlu0 %4338
        %v4340 = vmul.f32 %v4206, %v4206
        %v4341 = vmul.f32 %v4207, %v4207
        %v4342 = vmul.f32 %v4208, %v4208
        %v4343 = vmul.f32 %v4209, %v4209
        %v4344 = vmul.f32 %v4210, %v4210
        %v4345 = vmul.f32 %v4211, %v4211
        %v4346 = vmul.f32 %v4212, %v4212
        %v4347 = vmul.f32 %v4213, %v4213
        %v4348 = vmul.f32 %v4214, %v4214
        %v4349 = vmul.f32 %v4215, %v4215
        %v4350 = vmul.f32 %v4216, %v4216
        %v4351 = vmul.f32 %v4217, %v4217
        %v4352 = vmul.f32 %v4218, %v4218
        %v4353 = vmul.f32 %v4219, %v4219
        %v4354 = vmul.f32 %v4220, %v4220
        %v4355 = vmul.f32 %v4221, %v4221
        %v4356 = vsel %vm4302, %v4340, 0.0
        %v4357 = vsel %vm4302, %v4342, 0.0
        %v4358 = vadd.f32 %v4356, %v4357
        %v4359 = vsel %vm4302, %v4344, 0.0
        %v4360 = vadd.f32 %v4358, %v4359
        %v4361 = vsel %vm4302, %v4346, 0.0
        %v4362 = vadd.f32 %v4360, %v4361
        %v4363 = vsel %vm4302, %v4348, 0.0
        %v4364 = vadd.f32 %v4362, %v4363
        %v4365 = vsel %vm4302, %v4350, 0.0
        %v4366 = vadd.f32 %v4364, %v4365
        %v4367 = vsel %vm4302, %v4352, 0.0
        %v4368 = vadd.f32 %v4366, %v4367
        %v4369 = vsel %vm4302, %v4354, 0.0
        %v4370 = vadd.f32 %v4368, %v4369
        %v4371 = vsel %vm4318, %v4341, 0.0
        %v4372 = vsel %vm4318, %v4343, 0.0
        %v4373 = vadd.f32 %v4371, %v4372
        %v4374 = vsel %vm4318, %v4345, 0.0
        %v4375 = vadd.f32 %v4373, %v4374
        %v4376 = vsel %vm4318, %v4347, 0.0
        %v4377 = vadd.f32 %v4375, %v4376
        %v4378 = vsel %vm4318, %v4349, 0.0
        %v4379 = vadd.f32 %v4377, %v4378
        %v4380 = vsel %vm4318, %v4351, 0.0
        %v4381 = vadd.f32 %v4379, %v4380
        %v4382 = vsel %vm4318, %v4353, 0.0
        %v4383 = vadd.f32 %v4381, %v4382
        %v4384 = vsel %vm4318, %v4355, 0.0
        %v4385 = vadd.f32 %v4383, %v4384
        %v4386 = vsel %vm4302, %v4370, 0.0
        %4387 = vadd.xlane.f32.xlu0 %v4386
        %v4388 = vpop.xlane.xlu0 %4387
        %v4389 = vsel %vm4318, %v4385, 0.0
        %4390 = vadd.xlane.f32.xlu0 %v4389
        %v4391 = vpop.xlane.xlu0 %4390
        %v4392 = vsel %vm4318, %v4294, 0.0
        %v4393 = vsel %vm4318, %v4295, 0.0
        %v4394 = vadd.f32 %v4392, %v4393
        %v4395 = vsel %vm4318, %v4296, 0.0
        %v4396 = vadd.f32 %v4394, %v4395
        %v4397 = vsel %vm4318, %v4297, 0.0
        %v4398 = vadd.f32 %v4396, %v4397
        %v4399 = vsel %vm4318, %v4298, 0.0
        %v4400 = vadd.f32 %v4398, %v4399
        %v4401 = vsel %vm4318, %v4299, 0.0
        %v4402 = vadd.f32 %v4400, %v4401
        %v4403 = vsel %vm4318, %v4300, 0.0
        %v4404 = vadd.f32 %v4402, %v4403
        %v4405 = vsel %vm4318, %v4301, 0.0
        %v4406 = vadd.f32 %v4404, %v4405
        %v4407 = vsel %vm4318, %v4406, 0.0
        %4408 = vadd.xlane.f32.xlu0 %v4407
        %v4409 = vpop.xlane.xlu0 %4408
        %v4410 = vmul.f32 %v4294, %v4294
        %v4411 = vmul.f32 %v4295, %v4295
        %v4412 = vmul.f32 %v4296, %v4296
        %v4413 = vmul.f32 %v4297, %v4297
        %v4414 = vmul.f32 %v4298, %v4298
        %v4415 = vmul.f32 %v4299, %v4299
        %v4416 = vmul.f32 %v4300, %v4300
        %v4417 = vmul.f32 %v4301, %v4301
        %v4418 = vsel %vm4318, %v4410, 0.0
        %v4419 = vsel %vm4318, %v4411, 0.0
        %v4420 = vadd.f32 %v4418, %v4419
        %v4421 = vsel %vm4318, %v4412, 0.0
        %v4422 = vadd.f32 %v4420, %v4421
        %v4423 = vsel %vm4318, %v4413, 0.0
        %v4424 = vadd.f32 %v4422, %v4423
        %v4425 = vsel %vm4318, %v4414, 0.0
        %v4426 = vadd.f32 %v4424, %v4425
        %v4427 = vsel %vm4318, %v4415, 0.0
        %v4428 = vadd.f32 %v4426, %v4427
        %v4429 = vsel %vm4318, %v4416, 0.0
        %v4430 = vadd.f32 %v4428, %v4429
        %v4431 = vsel %vm4318, %v4417, 0.0
        %v4432 = vadd.f32 %v4430, %v4431
        %v4433 = vsel %vm4318, %v4432, 0.0
        %4434 = vadd.xlane.f32.xlu0 %v4433
        %v4435 = vpop.xlane.xlu0 %4434
        %vm4436 = vcmask 7168
        %4437 = vst.msk [vmem:[%s554] sm:$0xff] %vm4436, %v4336
        %vm4438 = vcmask 3072
        %4439 = vst.msk [vmem:[%s554 + $0x8] sm:$0xf] %vm4438, %v4339
        %vm4440 = vcmask 15368
        %4441 = vst.msk [vmem:[%s554] sm:$0xff] %vm4440, %v4388
        %vm4442 = vcmask 11272
        %4443 = vst.msk [vmem:[%s554 + $0x8] sm:$0xf] %vm4442, %v4391
        %4444 = vst.msk [vmem:[%s554 + $0xc] sm:$0xf] %vm4438, %v4409
        %4445 = vst.msk [vmem:[%s554 + $0xc] sm:$0xf] %vm4442, %v4435
        %p4446 = scmp.lt.s32.totalorder %s18, 1
        %s4447 = scalar_select %p4446, %s18, 1
        %p4448 = scmp.lt.s32.totalorder %s19, 0
        %s4449 = scalar_select %p4448, %s19, 0
        %s4450 = smul.addr %s4449, 2
        %s4451 = smul.addr %s4447, 2
        %s4452 = sadd.s32 %s4450, %s4451
        %s4453 = smul.addr %s4452, 8
        %s4454 = scalar_lea.vmem %s3, %s4453
        // Predicated region
        $region129: #{downsampler_block.2} parent=119 // pred_check
          %p4455 = pneg %p127
        $region130: #{downsampler_block.2} parent=119 // pred_check_branch
          %4457 = sbr.rel (%p4455) target = $region132
        $region131: #{downsampler_block.2} parent=119 // pred_region
          _
        $region132: #{downsampler_block.2} parent=119 // pred_fallthru
          _
      $region120: #{downsampler_block.2} parent=5 // pred_fallthru
        _
      %p4458 = scmp.le.s32.totalorder 2, %s9
      // Predicated region
      $region133: #{downsampler_block.2} parent=5 // pred_check
        %p4459 = pneg %p4458
      $region134: #{downsampler_block.2} parent=5 // pred_check_branch
        %4461 = sbr.rel (%p4459) target = $region136
      $region135: #{downsampler_block.2} parent=5 // pred_region
        %s4462 = ssub.s32 %s9, 2
        // Predicated region
        $region137: #{downsampler_block.2} parent=135 // pred_check
          %p4463 = pneg %p133
        $region138: #{downsampler_block.2} parent=135 // pred_check_branch
          %4465 = sbr.rel (%p4463) target = $region140
        $region139: #{downsampler_block.2} parent=135 // pred_region
          %p4466 = scmp.lt.s32.totalorder %s20, 1
          %s4467 = scalar_select %p4466, %s20, 1
          %p4468 = scmp.lt.s32.totalorder %s21, 0
          %s4469 = scalar_select %p4468, %s21, 0
          %s4470 = smul.addr %s4469, 2
          %s4471 = smul.addr %s4467, 2
          %s4472 = sadd.s32 %s4470, %s4471
          %s4473 = smul.addr %s4472, 8
          %s4474 = scalar_lea.vmem %s3, %s4473
        $region140: #{downsampler_block.2} parent=135 // pred_fallthru
          _
      $region136: #{downsampler_block.2} parent=5 // pred_fallthru
        _
    $region6: #{downsampler_block.2} parent=1 // loop_footer
      %s13 = sadd.s32 1, %s9
    $region7: #{downsampler_block.2} parent=1 // loop_footer_branch
      %8 = sbr.rel target = $region3
    $region8: #{downsampler_block.2} parent=1 // loop_exit
      _

// kernel: downsampler_block.3
$region0: #{downsampler_block.3}
  #allocation0 [shape = 'u32[]', space=smem, size = 0x4, offset = 0x4, fixed_abs, tag = 'smem constant byte address 0x4 - core index']
  #allocation1 [shape = 'u32[144,128]{1,0:T(1,128)}', space=vmem, size = 0x12000, scoped, tag = 'internal scratch']
  %s0 = inlined_call_operand.vmem [shape: bf16[2,4,9,4,9], index: 0, kind: input, shape index: {}, may-alias: {0,1}]
  %s1 = inlined_call_operand.vmem [shape: bf16[2,4,9,4,9], index: 1, kind: input, shape index: {}, may-alias: {0,1}]
  %s2 = inlined_call_operand.vmem [shape: bf16[9,12,4], index: 2, kind: input, shape index: {}]
  %s3 = inlined_call_operand.vmem [shape: f32[16,2], index: 3, kind: input, shape index: {}]
  %s4 = inlined_call_operand.vmem [shape: f32[2,8,16,8], index: 4, kind: output, shape index: {}]
  %s5 = sld [smem:[#allocation0]]
  $region145: #{downsampler_block.3} parent=0
    _
  %s7 = ssub.s32 1, %s5
  %s8 = scalar_select 0, %s7, %s5
  $region1: #{downsampler_block.3} parent=0
    #allocation2 [shape = 'u8[65536]{0}', space=vmem, size = 0x10000, scoped, tag = 'input window, operand 0']
    #allocation3 [shape = 'u8[4096]{0}', space=vmem, size = 0x1000, scoped, tag = 'input window, operand 1']
    loop: start=0, step=1, limit=4
    $region2: #{downsampler_block.3} parent=1 // loop_pre_header
      _
    $region3: #{downsampler_block.3} parent=1 // loop_header
      %s10 = sphi 0, %s14
      %p11 = scmp.ge.s32.totalorder %s10, 4
      %s17 = sphi 0, %s29
      %s18 = sphi 0, %s25
      %s19 = sphi 0, %s17
      %s20 = sphi 0, %s18
      %s21 = sphi 0, %s19
      %s22 = sphi 0, %s20
      %s34 = sphi 0, %s36
      %s37 = sphi 0, %s34
      %s38 = sphi 0, %s37
      %s54 = sphi 0, %s38
      %s66 = sphi 0, %s68
      %s69 = sphi 0, %s66
      %s70 = sphi 0, %s69
      %s86 = sphi 0, %s70
      %s90 = sphi 0, %s90
      %s92 = sphi 0, %s90
      %s93 = sphi 0, %s92
      %s107 = sphi 0, %s93
      %s111 = sphi 0, %s111
      %s113 = sphi 0, %s111
      %s114 = sphi 0, %s113
      %s128 = sphi 0, %s114
      %s136 = sphi 0, %s138
      %s139 = sphi 0, %s136
      %s140 = sphi 0, %s139
      %s156 = sphi 0, %s140
    $region4: #{downsampler_block.3} parent=1 // loop_header_branch
      %13 = sbr.rel (%p11) target = $region8
    $region5: #{downsampler_block.3} parent=1 // loop_body
      %s15 = ssub.s32 %s10, 1
      %s16 = ssub.s32 %s10, 2
      %s23 = sadd.s32 1, %s18
      %p24 = scmp.ge.s32.totalorder %s23, 1
      %s25 = scalar_select %p24, 0, %s23
      %s26 = sadd.s32 1, %s17
      %s27 = scalar_select %p24, %s26, %s17
      %p28 = scmp.ge.s32.totalorder %s27, 2
      %s29 = scalar_select %p28, 0, %s27
      %s30 = ssub.s32 %s17, %s29
      %s31 = ssub.s32 %s18, %s25
      %s32 = sor.u32 %s30, %s31
      %p33 = scmp.eq.s32.totalorder %s32, 0
      %s35 = sadd.s32 %s34, 1
      %s36 = scalar_select %p33, %s34, %s35
      %p39 = pneg %p33
      %p40 = scmp.eq.s32.totalorder %s10, 1
      %p41 = por %p39, %p40
      %p42 = scmp.ne.s32.totalorder %s34, %s37
      %p43 = scmp.eq.s32.totalorder %s10, 0
      %p44 = por %p42, %p43
      %p45 = scmp.ne.s32.totalorder %s34, %s37
      %p46 = scmp.eq.s32.totalorder %s15, 1
      %p47 = por %p45, %p46
      %p48 = scmp.ne.s32.totalorder %s37, %s38
      %p49 = scmp.eq.s32.totalorder %s15, 0
      %p50 = por %p48, %p49
      %p51 = scmp.ne.s32.totalorder %s37, %s38
      %p52 = scmp.eq.s32.totalorder %s16, 1
      %p53 = por %p51, %p52
      %p55 = scmp.ne.s32.totalorder %s38, %s54
      %p56 = scmp.eq.s32.totalorder %s16, 0
      %p57 = por %p55, %p56
      %s58 = sadd.s32 %s18, 1
      %s59 = smul.u32 %s58, 8
      %s60 = sadd.s32 %s25, 1
      %s61 = smul.u32 %s60, 8
      %s62 = ssub.s32 %s17, %s29
      %s63 = ssub.s32 %s59, %s61
      %s64 = sor.u32 %s62, %s63
      %p65 = scmp.eq.s32.totalorder %s64, 0
      %s67 = sadd.s32 %s66, 1
      %s68 = scalar_select %p65, %s66, %s67
      %p71 = pneg %p65
      %p72 = scmp.eq.s32.totalorder %s10, 1
      %p73 = por %p71, %p72
      %p74 = scmp.ne.s32.totalorder %s66, %s69
      %p75 = scmp.eq.s32.totalorder %s10, 0
      %p76 = por %p74, %p75
      %p77 = scmp.ne.s32.totalorder %s66, %s69
      %p78 = scmp.eq.s32.totalorder %s15, 1
      %p79 = por %p77, %p78
      %p80 = scmp.ne.s32.totalorder %s69, %s70
      %p81 = scmp.eq.s32.totalorder %s15, 0
      %p82 = por %p80, %p81
      %p83 = scmp.ne.s32.totalorder %s69, %s70
      %p84 = scmp.eq.s32.totalorder %s16, 1
      %p85 = por %p83, %p84
      %p87 = scmp.ne.s32.totalorder %s70, %s86
      %p88 = scmp.eq.s32.totalorder %s16, 0
      %p89 = por %p87, %p88
      %s91 = sadd.s32 %s90, 1
      %p94 = scmp.eq.s32.totalorder %s10, 1
      %p95 = scmp.ne.s32.totalorder %s90, %s92
      %p96 = scmp.eq.s32.totalorder %s10, 0
      %p97 = por %p95, %p96
      %p98 = scmp.ne.s32.totalorder %s90, %s92
      %p99 = scmp.eq.s32.totalorder %s15, 1
      %p100 = por %p98, %p99
      %p101 = scmp.ne.s32.totalorder %s92, %s93
      %p102 = scmp.eq.s32.totalorder %s15, 0
      %p103 = por %p101, %p102
      %p104 = scmp.ne.s32.totalorder %s92, %s93
      %p105 = scmp.eq.s32.totalorder %s16, 1
      %p106 = por %p104, %p105
      %p108 = scmp.ne.s32.totalorder %s93, %s107
      %p109 = scmp.eq.s32.totalorder %s16, 0
      %p110 = por %p108, %p109
      %s112 = sadd.s32 %s111, 1
      %p115 = scmp.eq.s32.totalorder %s10, 1
      %p116 = scmp.ne.s32.totalorder %s111, %s113
      %p117 = scmp.eq.s32.totalorder %s10, 0
      %p118 = por %p116, %p117
      %p119 = scmp.ne.s32.totalorder %s111, %s113
      %p120 = scmp.eq.s32.totalorder %s15, 1
      %p121 = por %p119, %p120
      %p122 = scmp.ne.s32.totalorder %s113, %s114
      %p123 = scmp.eq.s32.totalorder %s15, 0
      %p124 = por %p122, %p123
      %p125 = scmp.ne.s32.totalorder %s113, %s114
      %p126 = scmp.eq.s32.totalorder %s16, 1
      %p127 = por %p125, %p126
      %p129 = scmp.ne.s32.totalorder %s114, %s128
      %p130 = scmp.eq.s32.totalorder %s16, 0
      %p131 = por %p129, %p130
      %s132 = ssub.s32 %s17, %s29
      %s133 = ssub.s32 %s18, %s25
      %s134 = sor.u32 %s132, %s133
      %p135 = scmp.eq.s32.totalorder %s134, 0
      %s137 = sadd.s32 %s136, 1
      %s138 = scalar_select %p135, %s136, %s137
      %p141 = pneg %p135
      %p142 = scmp.eq.s32.totalorder %s10, 1
      %p143 = por %p141, %p142
      %p144 = scmp.ne.s32.totalorder %s136, %s139
      %p145 = scmp.eq.s32.totalorder %s10, 0
      %p146 = por %p144, %p145
      %p147 = scmp.ne.s32.totalorder %s136, %s139
      %p148 = scmp.eq.s32.totalorder %s15, 1
      %p149 = por %p147, %p148
      %p150 = scmp.ne.s32.totalorder %s139, %s140
      %p151 = scmp.eq.s32.totalorder %s15, 0
      %p152 = por %p150, %p151
      %p153 = scmp.ne.s32.totalorder %s139, %s140
      %p154 = scmp.eq.s32.totalorder %s16, 1
      %p155 = por %p153, %p154
      %p157 = scmp.ne.s32.totalorder %s140, %s156
      %p158 = scmp.eq.s32.totalorder %s16, 0
      %p159 = por %p157, %p158
      %p160 = scmp.le.s32.totalorder 1, %s10
      %p161 = scmp.lt.s32.totalorder %s10, 3
      %p162 = pnand %p160, %p161
      %p163 = pneg %p162
      // Predicated region
      $region9: #{downsampler_block.3} parent=5 // pred_check
        _
      $region10: #{downsampler_block.3} parent=5 // pred_check_branch
        %165 = sbr.rel (%p162) target = $region12
      $region11: #{downsampler_block.3} parent=5 // pred_region
        %s166 = ssub.s32 %s10, 1
        // Predicated region
        $region13: #{downsampler_block.3} parent=11 // pred_check
          %p167 = pneg %p103
        $region14: #{downsampler_block.3} parent=11 // pred_check_branch
          %169 = sbr.rel (%p167) target = $region16
        $region15: #{downsampler_block.3} parent=11 // pred_region
          _
        $region16: #{downsampler_block.3} parent=11 // pred_fallthru
          _
        // Predicated region
        $region17: #{downsampler_block.3} parent=11 // pred_check
          %p170 = pneg %p124
        $region18: #{downsampler_block.3} parent=11 // pred_check_branch
          %172 = sbr.rel (%p170) target = $region20
        $region19: #{downsampler_block.3} parent=11 // pred_region
          _
        $region20: #{downsampler_block.3} parent=11 // pred_fallthru
          _
      $region12: #{downsampler_block.3} parent=5 // pred_fallthru
        _
      %p173 = scmp.lt.s32.totalorder %s10, 2
      // Predicated region
      $region21: #{downsampler_block.3} parent=5 // pred_check
        %p174 = pneg %p173
      $region22: #{downsampler_block.3} parent=5 // pred_check_branch
        %176 = sbr.rel (%p174) target = $region24
      $region23: #{downsampler_block.3} parent=5 // pred_region
        // Predicated region
        $region25: #{downsampler_block.3} parent=23 // pred_check
          %p177 = pneg %p44
        $region26: #{downsampler_block.3} parent=23 // pred_check_branch
          %179 = sbr.rel (%p177) target = $region28
        $region27: #{downsampler_block.3} parent=23 // pred_region
          %s180 = sand.u32 %s34, 1
          %s181 = sand.u32 %s34, 1
          %s182 = smul.addr %s181, 64
          %s183 = scalar_lea.vmem [#allocation2], %s182
          %s184 = smul.u32 8, %s18
          %s185 = ssub.s32 9, %s184
          %p186 = scmp.lt.s32.totalorder %s185, 8
          %s187 = scalar_select %p186, %s185, 8
          %s188 = smul.u32 128, %s187
          %p189 = scmp.ne.s32.totalorder 0, %s188
          %s190 = smul.addr %s17, 36
          %s191 = sadd.s32 %s184, %s190
          %s192 = smul.addr %s191, 2
          %s193 = scalar_lea.vmem %s0, %s192
          // Predicated region
          $region29: #{downsampler_block.3} parent=27 // pred_check
            %p194 = pneg %p189
          $region30: #{downsampler_block.3} parent=27 // pred_check_branch
            %196 = sbr.rel (%p194) target = $region32
          $region31: #{downsampler_block.3} parent=27 // pred_region
            // Predicated region
            $region33: #{downsampler_block.3} parent=31 // pred_check
              _
            $region34: #{downsampler_block.3} parent=31 // pred_check_branch
              %198 = sbr.rel target = $region36
            $region35: #{downsampler_block.3} parent=31 // pred_region
              // Predicated region
              $region55: #{downsampler_block.3} parent=35 // pred_check
                _
              $region56: #{downsampler_block.3} parent=35 // pred_check_branch
                %315 = sbr.rel (0) target = $region58
              $region57: #{downsampler_block.3} parent=35 // pred_region
                %s316 = sshrl.u32 %s187, 3
                // While loop
                $region59: #{downsampler_block.3} parent=57 // loop_pre_header
                  _
                $region60: #{downsampler_block.3} parent=57 // loop_header
                  %s318 = sphi 0, %s320
                  %p319 = scmp.ge.s32.totalorder %s318, %s316
                  %s323 = sphi 0, %s328
                  %s324 = sphi %s193, %s331
                  %s325 = sphi %s183, %s332
                $region61: #{downsampler_block.3} parent=57 // loop_header_branch
                  %322 = sbr.rel (%p319) target = $region65
                $region62: #{downsampler_block.3} parent=57 // loop_body
                  %s326 = sadd.s32 1, %s323
                  %p327 = scmp.ge.s32.totalorder %s326, %s316
                  %s328 = scalar_select %p327, 0, %s326
                  %s329 = smul.u32 %s328, 16
                  %s330 = smul.u32 %s328, 16
                  %s331 = scalar_lea.vmem %s193, %s329
                  %s332 = scalar_lea.vmem %s183, %s330 [#allocation2]
                $region63: #{downsampler_block.3} parent=57 // loop_footer
                  %s320 = sadd.s32 %s318, 1
                $region64: #{downsampler_block.3} parent=57 // loop_footer_branch
                  %317 = sbr.rel target = $region60
                $region65: #{downsampler_block.3} parent=57 // loop_exit
                  _
                %s333 = sshrl.u32 %s187, 3
                %s334 = sand.u32 %s187, 7
                %s335 = smul.u32 %s333, 8
                %s336 = smul.u32 2, %s335
                %s337 = scalar_lea.vmem %s193, %s336
                %s338 = smul.u32 2, %s335
                %s339 = scalar_lea.vmem %s183, %s338 [#allocation2]
                // While loop
                $region66: #{downsampler_block.3} parent=57 // loop_pre_header
                  _
                $region67: #{downsampler_block.3} parent=57 // loop_header
                  %s341 = sphi 0, %s343
                  %p342 = scmp.ge.s32.totalorder %s341, %s334
                  %s346 = sphi 0, %s351
                  %s347 = sphi %s337, %s354
                  %s348 = sphi %s339, %s355
                $region68: #{downsampler_block.3} parent=57 // loop_header_branch
                  %345 = sbr.rel (%p342) target = $region72
                $region69: #{downsampler_block.3} parent=57 // loop_body
                  %s349 = sadd.s32 1, %s346
                  %p350 = scmp.ge.s32.totalorder %s349, %s334
                  %s351 = scalar_select %p350, 0, %s349
                  %s352 = smul.u32 %s351, 2
                  %s353 = smul.u32 %s351, 2
                  %s354 = scalar_lea.vmem %s337, %s352
                  %s355 = scalar_lea.vmem %s339, %s353 [#allocation2]
                $region70: #{downsampler_block.3} parent=57 // loop_footer
                  %s343 = sadd.s32 %s341, 1
                $region71: #{downsampler_block.3} parent=57 // loop_footer_branch
                  %340 = sbr.rel target = $region67
                $region72: #{downsampler_block.3} parent=57 // loop_exit
                  _
                %s357 = sshrl.u32 %s187, 3
                // While loop
                $region73: #{downsampler_block.3} parent=57 // loop_pre_header
                  _
                $region74: #{downsampler_block.3} parent=57 // loop_header
                  %s359 = sphi 0, %s361
                  %p360 = scmp.ge.s32.totalorder %s359, %s357
                  %s364 = sphi 0, %s433
                  %s365 = sphi %s193, %s436
                  %s366 = sphi %s183, %s437
                $region75: #{downsampler_block.3} parent=57 // loop_header_branch
                  %363 = sbr.rel (%p360) target = $region79
                $region76: #{downsampler_block.3} parent=57 // loop_body
                  %v367 = vld [vmem:[%s365] sm:$0x3]
                  %368 = vst [vmem:[%s366] sm:$0x3] %v367
                  %v369 = vld [vmem:[%s365 + $0x2] sm:$0x3]
                  %370 = vst [vmem:[%s366 + $0x2] sm:$0x3] %v369
                  %v371 = vld [vmem:[%s365 + $0x4] sm:$0x3]
                  %372 = vst [vmem:[%s366 + $0x4] sm:$0x3] %v371
                  %v373 = vld [vmem:[%s365 + $0x6] sm:$0x3]
                  %374 = vst [vmem:[%s366 + $0x6] sm:$0x3] %v373
                  %v375 = vld [vmem:[%s365 + $0x8] sm:$0x3]
                  %376 = vst [vmem:[%s366 + $0x8] sm:$0x3] %v375
                  %v377 = vld [vmem:[%s365 + $0xa] sm:$0x3]
                  %378 = vst [vmem:[%s366 + $0xa] sm:$0x3] %v377
                  %v379 = vld [vmem:[%s365 + $0xc] sm:$0x3]
                  %380 = vst [vmem:[%s366 + $0xc] sm:$0x3] %v379
                  %v381 = vld [vmem:[%s365 + $0xe] sm:$0x3]
                  %382 = vst [vmem:[%s366 + $0xe] sm:$0x3] %v381
                  %v383 = vld [vmem:[%s365 + $0x12] sm:$0x3]
                  %384 = vst [vmem:[%s366 + $0x10] sm:$0x3] %v383
                  %v385 = vld [vmem:[%s365 + $0x14] sm:$0x3]
                  %386 = vst [vmem:[%s366 + $0x12] sm:$0x3] %v385
                  %v387 = vld [vmem:[%s365 + $0x16] sm:$0x3]
                  %388 = vst [vmem:[%s366 + $0x14] sm:$0x3] %v387
                  %v389 = vld [vmem:[%s365 + $0x18] sm:$0x3]
                  %390 = vst [vmem:[%s366 + $0x16] sm:$0x3] %v389
                  %v391 = vld [vmem:[%s365 + $0x1a] sm:$0x3]
                  %392 = vst [vmem:[%s366 + $0x18] sm:$0x3] %v391
                  %v393 = vld [vmem:[%s365 + $0x1c] sm:$0x3]
                  %394 = vst [vmem:[%s366 + $0x1a] sm:$0x3] %v393
                  %v395 = vld [vmem:[%s365 + $0x1e] sm:$0x3]
                  %396 = vst [vmem:[%s366 + $0x1c] sm:$0x3] %v395
                  %v397 = vld [vmem:[%s365 + $0x20] sm:$0x3]
                  %398 = vst [vmem:[%s366 + $0x1e] sm:$0x3] %v397
                  %v399 = vld [vmem:[%s365 + $0x24] sm:$0x3]
                  %400 = vst [vmem:[%s366 + $0x20] sm:$0x3] %v399
                  %v401 = vld [vmem:[%s365 + $0x26] sm:$0x3]
                  %402 = vst [vmem:[%s366 + $0x22] sm:$0x3] %v401
                  %v403 = vld [vmem:[%s365 + $0x28] sm:$0x3]
                  %404 = vst [vmem:[%s366 + $0x24] sm:$0x3] %v403
                  %v405 = vld [vmem:[%s365 + $0x2a] sm:$0x3]
                  %406 = vst [vmem:[%s366 + $0x26] sm:$0x3] %v405
                  %v407 = vld [vmem:[%s365 + $0x2c] sm:$0x3]
                  %408 = vst [vmem:[%s366 + $0x28] sm:$0x3] %v407
                  %v409 = vld [vmem:[%s365 + $0x2e] sm:$0x3]
                  %410 = vst [vmem:[%s366 + $0x2a] sm:$0x3] %v409
                  %v411 = vld [vmem:[%s365 + $0x30] sm:$0x3]
                  %412 = vst [vmem:[%s366 + $0x2c] sm:$0x3] %v411
                  %v413 = vld [vmem:[%s365 + $0x32] sm:$0x3]
                  %414 = vst [vmem:[%s366 + $0x2e] sm:$0x3] %v413
                  %v415 = vld [vmem:[%s365 + $0x36] sm:$0x3]
                  %416 = vst [vmem:[%s366 + $0x30] sm:$0x3] %v415
                  %v417 = vld [vmem:[%s365 + $0x38] sm:$0x3]
                  %418 = vst [vmem:[%s366 + $0x32] sm:$0x3] %v417
                  %v419 = vld [vmem:[%s365 + $0x3a] sm:$0x3]
                  %420 = vst [vmem:[%s366 + $0x34] sm:$0x3] %v419
                  %v421 = vld [vmem:[%s365 + $0x3c] sm:$0x3]
                  %422 = vst [vmem:[%s366 + $0x36] sm:$0x3] %v421
                  %v423 = vld [vmem:[%s365 + $0x3e] sm:$0x3]
                  %424 = vst [vmem:[%s366 + $0x38] sm:$0x3] %v423
                  %v425 = vld [vmem:[%s365 + $0x40] sm:$0x3]
                  %426 = vst [vmem:[%s366 + $0x3a] sm:$0x3] %v425
                  %v427 = vld [vmem:[%s365 + $0x42] sm:$0x3]
                  %428 = vst [vmem:[%s366 + $0x3c] sm:$0x3] %v427
                  %v429 = vld [vmem:[%s365 + $0x44] sm:$0x3]
                  %430 = vst [vmem:[%s366 + $0x3e] sm:$0x3] %v429
                  %s431 = sadd.s32 1, %s364
                  %p432 = scmp.ge.s32.totalorder %s431, %s357
                  %s433 = scalar_select %p432, 0, %s431
                  %s434 = smul.u32 %s433, 16
                  %s435 = smul.u32 %s433, 16
                  %s436 = scalar_lea.vmem %s193, %s434
                  %s437 = scalar_lea.vmem %s183, %s435 [#allocation2]
                $region77: #{downsampler_block.3} parent=57 // loop_footer
                  %s361 = sadd.s32 %s359, 1
                $region78: #{downsampler_block.3} parent=57 // loop_footer_branch
                  %358 = sbr.rel target = $region74
                $region79: #{downsampler_block.3} parent=57 // loop_exit
                  _
                %s438 = sshrl.u32 %s187, 3
                %s439 = sand.u32 %s187, 7
                %s440 = smul.u32 %s438, 8
                %s441 = smul.u32 2, %s440
                %s442 = scalar_lea.vmem %s193, %s441
                %s443 = smul.u32 2, %s440
                %s444 = scalar_lea.vmem %s183, %s443 [#allocation2]
                // While loop
                $region80: #{downsampler_block.3} parent=57 // loop_pre_header
                  _
                $region81: #{downsampler_block.3} parent=57 // loop_header
                  %s446 = sphi 0, %s448
                  %p447 = scmp.ge.s32.totalorder %s446, %s439
                  %s451 = sphi 0, %s464
                  %s452 = sphi %s442, %s467
                  %s453 = sphi %s444, %s468
                $region82: #{downsampler_block.3} parent=57 // loop_header_branch
                  %450 = sbr.rel (%p447) target = $region86
                $region83: #{downsampler_block.3} parent=57 // loop_body
                  %v454 = vld [vmem:[%s452] sm:$0x3]
                  %455 = vst [vmem:[%s453] sm:$0x3] %v454
                  %v456 = vld [vmem:[%s452 + $0x12] sm:$0x3]
                  %457 = vst [vmem:[%s453 + $0x10] sm:$0x3] %v456
                  %v458 = vld [vmem:[%s452 + $0x24] sm:$0x3]
                  %459 = vst [vmem:[%s453 + $0x20] sm:$0x3] %v458
                  %v460 = vld [vmem:[%s452 + $0x36] sm:$0x3]
                  %461 = vst [vmem:[%s453 + $0x30] sm:$0x3] %v460
                  %s462 = sadd.s32 1, %s451
                  %p463 = scmp.ge.s32.totalorder %s462, %s439
                  %s464 = scalar_select %p463, 0, %s462
                  %s465 = smul.u32 %s464, 2
                  %s466 = smul.u32 %s464, 2
                  %s467 = scalar_lea.vmem %s442, %s465
                  %s468 = scalar_lea.vmem %s444, %s466 [#allocation2]
                $region84: #{downsampler_block.3} parent=57 // loop_footer
                  %s448 = sadd.s32 %s446, 1
                $region85: #{downsampler_block.3} parent=57 // loop_footer_branch
                  %445 = sbr.rel target = $region81
                $region86: #{downsampler_block.3} parent=57 // loop_exit
                  _
              $region58: #{downsampler_block.3} parent=35 // pred_fallthru
                _
            $region36: #{downsampler_block.3} parent=31 // pred_fallthru
              _
            // Predicated region
            $region37: #{downsampler_block.3} parent=31 // pred_check
              _
            $region38: #{downsampler_block.3} parent=31 // pred_check_branch
              %200 = sbr.rel (0) target = $region40
            $region39: #{downsampler_block.3} parent=31 // pred_region
              %s202 = sshrl.u32 %s187, 3
              // While loop
              $region41: #{downsampler_block.3} parent=39 // loop_pre_header
                _
              $region42: #{downsampler_block.3} parent=39 // loop_header
                %s204 = sphi 0, %s206
                %p205 = scmp.ge.s32.totalorder %s204, %s202
                %s209 = sphi 0, %s278
                %s210 = sphi %s193, %s281
                %s211 = sphi %s183, %s282
              $region43: #{downsampler_block.3} parent=39 // loop_header_branch
                %208 = sbr.rel (%p205) target = $region47
              $region44: #{downsampler_block.3} parent=39 // loop_body
                %v212 = vld [vmem:[%s210] sm:$0x3]
                %213 = vst [vmem:[%s211] sm:$0x3] %v212
                %v214 = vld [vmem:[%s210 + $0x2] sm:$0x3]
                %215 = vst [vmem:[%s211 + $0x2] sm:$0x3] %v214
                %v216 = vld [vmem:[%s210 + $0x4] sm:$0x3]
                %217 = vst [vmem:[%s211 + $0x4] sm:$0x3] %v216
                %v218 = vld [vmem:[%s210 + $0x6] sm:$0x3]
                %219 = vst [vmem:[%s211 + $0x6] sm:$0x3] %v218
                %v220 = vld [vmem:[%s210 + $0x8] sm:$0x3]
                %221 = vst [vmem:[%s211 + $0x8] sm:$0x3] %v220
                %v222 = vld [vmem:[%s210 + $0xa] sm:$0x3]
                %223 = vst [vmem:[%s211 + $0xa] sm:$0x3] %v222
                %v224 = vld [vmem:[%s210 + $0xc] sm:$0x3]
                %225 = vst [vmem:[%s211 + $0xc] sm:$0x3] %v224
                %v226 = vld [vmem:[%s210 + $0xe] sm:$0x3]
                %227 = vst [vmem:[%s211 + $0xe] sm:$0x3] %v226
                %v228 = vld [vmem:[%s210 + $0x12] sm:$0x3]
                %229 = vst [vmem:[%s211 + $0x10] sm:$0x3] %v228
                %v230 = vld [vmem:[%s210 + $0x14] sm:$0x3]
                %231 = vst [vmem:[%s211 + $0x12] sm:$0x3] %v230
                %v232 = vld [vmem:[%s210 + $0x16] sm:$0x3]
                %233 = vst [vmem:[%s211 + $0x14] sm:$0x3] %v232
                %v234 = vld [vmem:[%s210 + $0x18] sm:$0x3]
                %235 = vst [vmem:[%s211 + $0x16] sm:$0x3] %v234
                %v236 = vld [vmem:[%s210 + $0x1a] sm:$0x3]
                %237 = vst [vmem:[%s211 + $0x18] sm:$0x3] %v236
                %v238 = vld [vmem:[%s210 + $0x1c] sm:$0x3]
                %239 = vst [vmem:[%s211 + $0x1a] sm:$0x3] %v238
                %v240 = vld [vmem:[%s210 + $0x1e] sm:$0x3]
                %241 = vst [vmem:[%s211 + $0x1c] sm:$0x3] %v240
                %v242 = vld [vmem:[%s210 + $0x20] sm:$0x3]
                %243 = vst [vmem:[%s211 + $0x1e] sm:$0x3] %v242
                %v244 = vld [vmem:[%s210 + $0x24] sm:$0x3]
                %245 = vst [vmem:[%s211 + $0x20] sm:$0x3] %v244
                %v246 = vld [vmem:[%s210 + $0x26] sm:$0x3]
                %247 = vst [vmem:[%s211 + $0x22] sm:$0x3] %v246
                %v248 = vld [vmem:[%s210 + $0x28] sm:$0x3]
                %249 = vst [vmem:[%s211 + $0x24] sm:$0x3] %v248
                %v250 = vld [vmem:[%s210 + $0x2a] sm:$0x3]
                %251 = vst [vmem:[%s211 + $0x26] sm:$0x3] %v250
                %v252 = vld [vmem:[%s210 + $0x2c] sm:$0x3]
                %253 = vst [vmem:[%s211 + $0x28] sm:$0x3] %v252
                %v254 = vld [vmem:[%s210 + $0x2e] sm:$0x3]
                %255 = vst [vmem:[%s211 + $0x2a] sm:$0x3] %v254
                %v256 = vld [vmem:[%s210 + $0x30] sm:$0x3]
                %257 = vst [vmem:[%s211 + $0x2c] sm:$0x3] %v256
                %v258 = vld [vmem:[%s210 + $0x32] sm:$0x3]
                %259 = vst [vmem:[%s211 + $0x2e] sm:$0x3] %v258
                %v260 = vld [vmem:[%s210 + $0x36] sm:$0x3]
                %261 = vst [vmem:[%s211 + $0x30] sm:$0x3] %v260
                %v262 = vld [vmem:[%s210 + $0x38] sm:$0x3]
                %263 = vst [vmem:[%s211 + $0x32] sm:$0x3] %v262
                %v264 = vld [vmem:[%s210 + $0x3a] sm:$0x3]
                %265 = vst [vmem:[%s211 + $0x34] sm:$0x3] %v264
                %v266 = vld [vmem:[%s210 + $0x3c] sm:$0x3]
                %267 = vst [vmem:[%s211 + $0x36] sm:$0x3] %v266
                %v268 = vld [vmem:[%s210 + $0x3e] sm:$0x3]
                %269 = vst [vmem:[%s211 + $0x38] sm:$0x3] %v268
                %v270 = vld [vmem:[%s210 + $0x40] sm:$0x3]
                %271 = vst [vmem:[%s211 + $0x3a] sm:$0x3] %v270
                %v272 = vld [vmem:[%s210 + $0x42] sm:$0x3]
                %273 = vst [vmem:[%s211 + $0x3c] sm:$0x3] %v272
                %v274 = vld [vmem:[%s210 + $0x44] sm:$0x3]
                %275 = vst [vmem:[%s211 + $0x3e] sm:$0x3] %v274
                %s276 = sadd.s32 1, %s209
                %p277 = scmp.ge.s32.totalorder %s276, %s202
                %s278 = scalar_select %p277, 0, %s276
                %s279 = smul.u32 %s278, 16
                %s280 = smul.u32 %s278, 16
                %s281 = scalar_lea.vmem %s193, %s279
                %s282 = scalar_lea.vmem %s183, %s280 [#allocation2]
              $region45: #{downsampler_block.3} parent=39 // loop_footer
                %s206 = sadd.s32 %s204, 1
              $region46: #{downsampler_block.3} parent=39 // loop_footer_branch
                %203 = sbr.rel target = $region42
              $region47: #{downsampler_block.3} parent=39 // loop_exit
                _
              %s283 = sshrl.u32 %s187, 3
              %s284 = sand.u32 %s187, 7
              %s285 = smul.u32 %s283, 8
              %s286 = smul.u32 2, %s285
              %s287 = scalar_lea.vmem %s193, %s286
              %s288 = smul.u32 2, %s285
              %s289 = scalar_lea.vmem %s183, %s288 [#allocation2]
              // While loop
              $region48: #{downsampler_block.3} parent=39 // loop_pre_header
                _
              $region49: #{downsampler_block.3} parent=39 // loop_header
                %s291 = sphi 0, %s293
                %p292 = scmp.ge.s32.totalorder %s291, %s284
                %s296 = sphi 0, %s309
                %s297 = sphi %s287, %s312
                %s298 = sphi %s289, %s313
              $region50: #{downsampler_block.3} parent=39 // loop_header_branch
                %295 = sbr.rel (%p292) target = $region54
              $region51: #{downsampler_block.3} parent=39 // loop_body
                %v299 = vld [vmem:[%s297] sm:$0x3]
                %300 = vst [vmem:[%s298] sm:$0x3] %v299
                %v301 = vld [vmem:[%s297 + $0x12] sm:$0x3]
                %302 = vst [vmem:[%s298 + $0x10] sm:$0x3] %v301
                %v303 = vld [vmem:[%s297 + $0x24] sm:$0x3]
                %304 = vst [vmem:[%s298 + $0x20] sm:$0x3] %v303
                %v305 = vld [vmem:[%s297 + $0x36] sm:$0x3]
                %306 = vst [vmem:[%s298 + $0x30] sm:$0x3] %v305
                %s307 = sadd.s32 1, %s296
                %p308 = scmp.ge.s32.totalorder %s307, %s284
                %s309 = scalar_select %p308, 0, %s307
                %s310 = smul.u32 %s309, 2
                %s311 = smul.u32 %s309, 2
                %s312 = scalar_lea.vmem %s287, %s310
                %s313 = scalar_lea.vmem %s289, %s311 [#allocation2]
              $region52: #{downsampler_block.3} parent=39 // loop_footer
                %s293 = sadd.s32 %s291, 1
              $region53: #{downsampler_block.3} parent=39 // loop_footer_branch
                %290 = sbr.rel target = $region49
              $region54: #{downsampler_block.3} parent=39 // loop_exit
                _
            $region40: #{downsampler_block.3} parent=31 // pred_fallthru
              _
          $region32: #{downsampler_block.3} parent=27 // pred_fallthru
            _
          %469 = vnop
        $region28: #{downsampler_block.3} parent=23 // pred_fallthru
          _
        // Predicated region
        $region87: #{downsampler_block.3} parent=23 // pred_check
          %p470 = pneg %p76
        $region88: #{downsampler_block.3} parent=23 // pred_check_branch
          %472 = sbr.rel (%p470) target = $region90
        $region89: #{downsampler_block.3} parent=23 // pred_region
          %s473 = sand.u32 %s66, 1
          %s474 = sand.u32 %s66, 1
          %s475 = smul.addr %s474, 4
          %s476 = scalar_lea.vmem [#allocation3], %s475
          %s477 = sadd.s32 %s18, 1
          %s478 = smul.u32 %s477, 8
          %s479 = smul.addr %s17, 36
          %s480 = sadd.s32 %s478, %s479
          %s481 = smul.addr %s480, 2
          %s482 = scalar_lea.vmem %s1, %s481
          // Predicated region
          $region91: #{downsampler_block.3} parent=89 // pred_check
            _
          $region92: #{downsampler_block.3} parent=89 // pred_check_branch
            %484 = sbr.rel (0) target = $region94
          $region93: #{downsampler_block.3} parent=89 // pred_region
            // Predicated region
            $region95: #{downsampler_block.3} parent=93 // pred_check
              _
            $region96: #{downsampler_block.3} parent=93 // pred_check_branch
              %486 = sbr.rel target = $region98
            $region97: #{downsampler_block.3} parent=93 // pred_region
              // Predicated region
              $region110: #{downsampler_block.3} parent=97 // pred_check
                _
              $region111: #{downsampler_block.3} parent=97 // pred_check_branch
                %503 = sbr.rel (0) target = $region113
              $region112: #{downsampler_block.3} parent=97 // pred_region
                loop: start=0, step=1, limit=1
                $region114: #{downsampler_block.3} parent=112 // loop_pre_header
                  _
                $region115: #{downsampler_block.3} parent=112 // loop_header
                  %s506 = sphi 0, %s510
                  %p507 = scmp.ge.s32.totalorder %s506, 1
                  %s511 = sphi %s482, %s482
                  %s512 = sphi %s476, %s476
                $region116: #{downsampler_block.3} parent=112 // loop_header_branch
                  %509 = sbr.rel (%p507) target = $region120
                $region117: #{downsampler_block.3} parent=112 // loop_body
                  %v513 = vld [vmem:[%s511] sm:$0x3]
                  %514 = vst [vmem:[%s512] sm:$0x3] %v513
                  %v515 = vld [vmem:[%s511 + $0x12] sm:$0x3]
                  %516 = vst [vmem:[%s512 + $0x2] sm:$0x3] %v515
                $region118: #{downsampler_block.3} parent=112 // loop_footer
                  %s510 = sadd.s32 1, %s506
                $region119: #{downsampler_block.3} parent=112 // loop_footer_branch
                  %505 = sbr.rel target = $region115
                $region120: #{downsampler_block.3} parent=112 // loop_exit
                  _
              $region113: #{downsampler_block.3} parent=97 // pred_fallthru
                _
            $region98: #{downsampler_block.3} parent=93 // pred_fallthru
              _
            // Predicated region
            $region99: #{downsampler_block.3} parent=93 // pred_check
              _
            $region100: #{downsampler_block.3} parent=93 // pred_check_branch
              %488 = sbr.rel (0) target = $region102
            $region101: #{downsampler_block.3} parent=93 // pred_region
              loop: start=0, step=1, limit=1
              $region103: #{downsampler_block.3} parent=101 // loop_pre_header
                _
              $region104: #{downsampler_block.3} parent=101 // loop_header
                %s491 = sphi 0, %s495
                %p492 = scmp.ge.s32.totalorder %s491, 1
                %s496 = sphi %s482, %s482
                %s497 = sphi %s476, %s476
              $region105: #{downsampler_block.3} parent=101 // loop_header_branch
                %494 = sbr.rel (%p492) target = $region109
              $region106: #{downsampler_block.3} parent=101 // loop_body
                %v498 = vld [vmem:[%s496] sm:$0x3]
                %499 = vst [vmem:[%s497] sm:$0x3] %v498
                %v500 = vld [vmem:[%s496 + $0x12] sm:$0x3]
                %501 = vst [vmem:[%s497 + $0x2] sm:$0x3] %v500
              $region107: #{downsampler_block.3} parent=101 // loop_footer
                %s495 = sadd.s32 1, %s491
              $region108: #{downsampler_block.3} parent=101 // loop_footer_branch
                %490 = sbr.rel target = $region104
              $region109: #{downsampler_block.3} parent=101 // loop_exit
                _
            $region102: #{downsampler_block.3} parent=93 // pred_fallthru
              _
          $region94: #{downsampler_block.3} parent=89 // pred_fallthru
            _
          %517 = vnop
        $region90: #{downsampler_block.3} parent=23 // pred_fallthru
          _
      $region24: #{downsampler_block.3} parent=5 // pred_fallthru
        _
      %p518 = scmp.le.s32.totalorder 1, %s10
      %p519 = scmp.lt.s32.totalorder %s10, 3
      %p520 = pnand %p518, %p519
      %p521 = pneg %p520
      // Predicated region
      $region121: #{downsampler_block.3} parent=5 // pred_check
        _
      $region122: #{downsampler_block.3} parent=5 // pred_check_branch
        %523 = sbr.rel (%p520) target = $region124
      $region123: #{downsampler_block.3} parent=5 // pred_region
        %s524 = ssub.s32 %s10, 1
        %s525 = sand.u32 %s37, 1
        %s526 = sand.u32 %s37, 1
        %s527 = smul.addr %s526, 64
        %s528 = scalar_lea.vmem [#allocation2], %s527
        // Predicated region
        $region125: #{downsampler_block.3} parent=123 // pred_check
          %p529 = pneg %p50
        $region126: #{downsampler_block.3} parent=123 // pred_check_branch
          %531 = sbr.rel (%p529) target = $region128
        $region127: #{downsampler_block.3} parent=123 // pred_region
          _
        $region128: #{downsampler_block.3} parent=123 // pred_fallthru
          _
        %s532 = sand.u32 %s69, 1
        %s533 = sand.u32 %s69, 1
        %s534 = smul.addr %s533, 4
        %s535 = scalar_lea.vmem [#allocation3], %s534
        // Predicated region
        $region129: #{downsampler_block.3} parent=123 // pred_check
          %p536 = pneg %p82
        $region130: #{downsampler_block.3} parent=123 // pred_check_branch
          %538 = sbr.rel (%p536) target = $region132
        $region131: #{downsampler_block.3} parent=123 // pred_region
          _
        $region132: #{downsampler_block.3} parent=123 // pred_fallthru
          _
        %s539 = sand.u32 %s37, 1
        %s540 = sand.u32 %s37, 1
        %s541 = smul.addr %s540, 64
        %s542 = scalar_lea.vmem [#allocation2], %s541
        %p543 = pneg %p50
        %p544 = pneg %p47
        %s545 = sand.u32 %s69, 1
        %s546 = sand.u32 %s69, 1
        %s547 = smul.addr %s546, 4
        %s548 = scalar_lea.vmem [#allocation3], %s547
        %p549 = pneg %p82
        %p550 = pneg %p79
        %p551 = pneg %p103
        %p552 = pneg %p100
        %p553 = pneg %p124
        %p554 = pneg %p121
        %p555 = pneg %p152
        %p556 = pneg %p149
        %s557 = smul.u32 8, %s20
        %p558 = scmp.lt.s32.totalorder %s19, 1
        %s559 = scalar_select %p558, %s19, 1
        %p560 = scmp.lt.s32.totalorder %s557, 7
        %s561 = scalar_select %p560, %s557, 7
        %s562 = smul.addr %s561, 2
        %s563 = smul.addr %s559, 16
        %s564 = sadd.s32 %s562, %s563
        %s565 = smul.addr %s564, 8
        %s566 = scalar_lea.vmem %s4, %s565
        %s567 = smul.u32 8, %s20
        %s568 = ssub.s32 9, %s567
        %p569 = scmp.lt.s32.totalorder %s568, 8
        %s570 = scalar_select %p569, %s568, 8
        %s571 = smul.u32 128, %s570
        %s572 = sadd.s32 %s20, 1
        %s573 = smul.u32 %s572, 8
        %s574 = smul.u32 8, %s20
        %p575 = scmp.lt.s32.totalorder %s19, 1
        %s576 = scalar_select %p575, %s19, 1
        %p577 = scmp.lt.s32.totalorder %s574, 7
        %s578 = scalar_select %p577, %s574, 7
        %s579 = smul.addr %s578, 2
        %s580 = smul.addr %s576, 16
        %s581 = sadd.s32 %s579, %s580
        %s582 = smul.addr %s581, 8
        %s583 = scalar_lea.vmem %s4, %s582
        %s584 = smul.u32 8, %s20
        %v586 = vld [vmem:[%s528] sm:$0x3]
        %v587 = vld [vmem:[%s528 + $0x2] sm:$0x3]
        %v588 = vld [vmem:[%s528 + $0x4] sm:$0x3]
        %v589 = vld [vmem:[%s528 + $0x6] sm:$0x3]
        %v590 = vld [vmem:[%s528 + $0x8] sm:$0x3]
        %v591 = vld [vmem:[%s528 + $0xa] sm:$0x3]
        %v592 = vld [vmem:[%s528 + $0xc] sm:$0x3]
        %v593 = vld [vmem:[%s528 + $0xe] sm:$0x3]
        %s594 = scalar_lea.vmem %s528, 16 [#allocation2]
        %v595 = vld [vmem:[%s594] sm:$0x3]
        %v596 = vld [vmem:[%s594 + $0x2] sm:$0x3]
        %v597 = vld [vmem:[%s594 + $0x4] sm:$0x3]
        %v598 = vld [vmem:[%s594 + $0x6] sm:$0x3]
        %v599 = vld [vmem:[%s594 + $0x8] sm:$0x3]
        %v600 = vld [vmem:[%s594 + $0xa] sm:$0x3]
        %v601 = vld [vmem:[%s594 + $0xc] sm:$0x3]
        %v602 = vld [vmem:[%s594 + $0xe] sm:$0x3]
        %s603 = scalar_lea.vmem %s528, 32 [#allocation2]
        %v604 = vld [vmem:[%s603] sm:$0x3]
        %v605 = vld [vmem:[%s603 + $0x2] sm:$0x3]
        %v606 = vld [vmem:[%s603 + $0x4] sm:$0x3]
        %v607 = vld [vmem:[%s603 + $0x6] sm:$0x3]
        %v608 = vld [vmem:[%s603 + $0x8] sm:$0x3]
        %v609 = vld [vmem:[%s603 + $0xa] sm:$0x3]
        %v610 = vld [vmem:[%s603 + $0xc] sm:$0x3]
        %v611 = vld [vmem:[%s603 + $0xe] sm:$0x3]
        %s612 = scalar_lea.vmem %s528, 48 [#allocation2]
        %v613 = vld [vmem:[%s612] sm:$0x3]
        %v614 = vld [vmem:[%s612 + $0x2] sm:$0x3]
        %v615 = vld [vmem:[%s612 + $0x4] sm:$0x3]
        %v616 = vld [vmem:[%s612 + $0x6] sm:$0x3]
        %v617 = vld [vmem:[%s612 + $0x8] sm:$0x3]
        %v618 = vld [vmem:[%s612 + $0xa] sm:$0x3]
        %v619 = vld [vmem:[%s612 + $0xc] sm:$0x3]
        %v620 = vld [vmem:[%s612 + $0xe] sm:$0x3]
        %v621 = vld [vmem:[%s535] sm:$0x3]
        %s622 = scalar_lea.vmem %s535, 2 [#allocation3]
        %v623 = vld [vmem:[%s622] sm:$0x3]
        %s624 = scalar_lea.vmem %s528, 2 [#allocation2]
        %v625 = vld [vmem:[%s624] sm:$0x3]
        %v626 = vld [vmem:[%s624 + $0x2] sm:$0x3]
        %v627 = vld [vmem:[%s624 + $0x4] sm:$0x3]
        %v628 = vld [vmem:[%s624 + $0x6] sm:$0x3]
        %v629 = vld [vmem:[%s624 + $0x8] sm:$0x3]
        %v630 = vld [vmem:[%s624 + $0xa] sm:$0x3]
        %v631 = vld [vmem:[%s624 + $0xc] sm:$0x3]
        %s632 = scalar_lea.vmem %s528, 18 [#allocation2]
        %v633 = vld [vmem:[%s632] sm:$0x3]
        %v634 = vld [vmem:[%s632 + $0x2] sm:$0x3]
        %v635 = vld [vmem:[%s632 + $0x4] sm:$0x3]
        %v636 = vld [vmem:[%s632 + $0x6] sm:$0x3]
        %v637 = vld [vmem:[%s632 + $0x8] sm:$0x3]
        %v638 = vld [vmem:[%s632 + $0xa] sm:$0x3]
        %v639 = vld [vmem:[%s632 + $0xc] sm:$0x3]
        %v640 = vld [vmem:[%s2] sm:$0xf]
        %v641 = vld [vmem:[%s2 + $0x4] sm:$0x3]
        %v642 = vld [vmem:[%s2 + $0x8] sm:$0xf]
        %v643 = vld [vmem:[%s2 + $0xc] sm:$0x3]
        %v644 = vld [vmem:[%s2 + $0x10] sm:$0xf]
        %v645 = vld [vmem:[%s2 + $0x14] sm:$0x3]
        %v646 = vld [vmem:[%s2 + $0x18] sm:$0xf]
        %v647 = vld [vmem:[%s2 + $0x1c] sm:$0x3]
        %v648 = vld [vmem:[%s2 + $0x20] sm:$0xf]
        %v649 = vld [vmem:[%s2 + $0x24] sm:$0x3]
        %v650 = vld [vmem:[%s2 + $0x28] sm:$0xf]
        %v651 = vld [vmem:[%s2 + $0x2c] sm:$0x3]
        %v652 = vld [vmem:[%s2 + $0x30] sm:$0xf]
        %v653 = vld [vmem:[%s2 + $0x34] sm:$0x3]
        %v654 = vld [vmem:[%s2 + $0x38] sm:$0xf]
        %v655 = vld [vmem:[%s2 + $0x3c] sm:$0x3]
        %v656 = vld [vmem:[%s2 + $0x40] sm:$0xf]
        %v657 = vld [vmem:[%s2 + $0x44] sm:$0x3]
        %v660 = vunpack.c.l.b16 %v642
        %v661 = vunpack.c.l.b16 %v643
        %v662 = vpack.c.b16 %v661, %v660
        %vm663 = vcmask 31744
        %v665 = vsel %vm663, %v662, 0
        %vm667 = vcmask 1041408
        %v669 = vsel %vm667, %v595, 0
        %671 = vmatprep.subr.bf16.mxu0 0
        %672 = vmatpush1.bf16.msra.mxu0 %v669
        %673 = vmatprep.subr.bf16.mxu0 0
        %674 = vmatpush1.bf16.msra.mxu0 0
        %675 = vmatprep.subr.bf16.mxu0 0
        %676 = vmatpush1.bf16.msra.mxu0 0
        %677 = vmatprep.subr.bf16.mxu0 0
        %678 = vmatpush1.bf16.msra.mxu0 0
        %679 = vmatprep.subr.bf16.mxu0 0
        %680 = vmatpush1.bf16.msra.mxu0 0
        %681 = vmatprep.subr.bf16.mxu0 0
        %682 = vmatpush1.bf16.msra.mxu0 0
        %683 = vmatprep.subr.bf16.mxu0 0
        %684 = vmatpush1.bf16.msra.mxu0 0
        %685 = vmatprep.subr.bf16.mxu0 0
        %686 = vmatpush1.bf16.msra.mxu0 0
        %687 = vmatprep.subr.bf16.mxu0 0
        %688 = vmatpush1.bf16.msra.mxu0 0
        %689 = vmatprep.subr.bf16.mxu0 0
        %690 = vmatpush1.bf16.msra.mxu0 0
        %691 = vmatprep.subr.bf16.mxu0 0
        %692 = vmatpush1.bf16.msra.mxu0 0
        %693 = vmatprep.subr.bf16.mxu0 0
        %694 = vmatpush1.bf16.msra.mxu0 0
        %695 = vmatprep.subr.bf16.mxu0 0
        %696 = vmatpush1.bf16.msra.mxu0 0
        %697 = vmatprep.subr.bf16.mxu0 0
        %698 = vmatpush1.bf16.msra.mxu0 0
        %699 = vmatprep.subr.bf16.mxu0 0
        %700 = vmatpush1.bf16.msra.mxu0 0
        %701 = vmatprep.subr.bf16.mxu0 0
        %702 = vmatpush1.bf16.msra.mxu0 0
        %703 = vmatprep.mubr.bf16.mxu0 0
        %704 = vmatmul.mubr.bf16.gmra.mrb[0].mxu0 %v665
        %v705 = vpop.f32.mrb[0].mxu0
        %v706 = vadd.f32 0.0, %v705
        %v707 = vpop.f32.mrb[0].mxu0
        %v708 = vpop.f32.mrb[0].mxu0
        %v709 = vadd.f32 0.0, %v708
        %v710 = vpop.f32.mrb[0].mxu0
        %711 = vdwg.mxu0
        %v713 = vsel %vm667, %v596, 0
        %715 = vmatprep.subr.bf16.mxu0 0
        %716 = vmatpush1.bf16.msra.mxu0 %v713
        %717 = vmatprep.subr.bf16.mxu0 0
        %718 = vmatpush1.bf16.msra.mxu0 0
        %719 = vmatprep.subr.bf16.mxu0 0
        %720 = vmatpush1.bf16.msra.mxu0 0
        %721 = vmatprep.subr.bf16.mxu0 0
        %722 = vmatpush1.bf16.msra.mxu0 0
        %723 = vmatprep.subr.bf16.mxu0 0
        %724 = vmatpush1.bf16.msra.mxu0 0
        %725 = vmatprep.subr.bf16.mxu0 0
        %726 = vmatpush1.bf16.msra.mxu0 0
        %727 = vmatprep.subr.bf16.mxu0 0
        %728 = vmatpush1.bf16.msra.mxu0 0
        %729 = vmatprep.subr.bf16.mxu0 0
        %730 = vmatpush1.bf16.msra.mxu0 0
        %731 = vmatprep.subr.bf16.mxu0 0
        %732 = vmatpush1.bf16.msra.mxu0 0
        %733 = vmatprep.subr.bf16.mxu0 0
        %734 = vmatpush1.bf16.msra.mxu0 0
        %735 = vmatprep.subr.bf16.mxu0 0
        %736 = vmatpush1.bf16.msra.mxu0 0
        %737 = vmatprep.subr.bf16.mxu0 0
        %738 = vmatpush1.bf16.msra.mxu0 0
        %739 = vmatprep.subr.bf16.mxu0 0
        %740 = vmatpush1.bf16.msra.mxu0 0
        %741 = vmatprep.subr.bf16.mxu0 0
        %742 = vmatpush1.bf16.msra.mxu0 0
        %743 = vmatprep.subr.bf16.mxu0 0
        %744 = vmatpush1.bf16.msra.mxu0 0
        %745 = vmatprep.subr.bf16.mxu0 0
        %746 = vmatpush1.bf16.msra.mxu0 0
        %747 = vmatprep.mubr.bf16.mxu0 0
        %748 = vmatmul.mubr.bf16.gmra.mrb[0].mxu0 %v665
        %v749 = vpop.f32.mrb[0].mxu0
        %v750 = vadd.f32 0.0, %v749
        %v751 = vpop.f32.mrb[0].mxu0
        %v752 = vpop.f32.mrb[0].mxu0
        %v753 = vadd.f32 0.0, %v752
        %v754 = vpop.f32.mrb[0].mxu0
        %755 = vdwg.mxu0
        %v757 = vsel %vm667, %v597, 0
        %759 = vmatprep.subr.bf16.mxu0 0
        %760 = vmatpush1.bf16.msra.mxu0 %v757
        %761 = vmatprep.subr.bf16.mxu0 0
        %762 = vmatpush1.bf16.msra.mxu0 0
        %763 = vmatprep.subr.bf16.mxu0 0
        %764 = vmatpush1.bf16.msra.mxu0 0
        %765 = vmatprep.subr.bf16.mxu0 0
        %766 = vmatpush1.bf16.msra.mxu0 0
        %767 = vmatprep.subr.bf16.mxu0 0
        %768 = vmatpush1.bf16.msra.mxu0 0
        %769 = vmatprep.subr.bf16.mxu0 0
        %770 = vmatpush1.bf16.msra.mxu0 0
        %771 = vmatprep.subr.bf16.mxu0 0
        %772 = vmatpush1.bf16.msra.mxu0 0
        %773 = vmatprep.subr.bf16.mxu0 0
        %774 = vmatpush1.bf16.msra.mxu0 0
        %775 = vmatprep.subr.bf16.mxu0 0
        %776 = vmatpush1.bf16.msra.mxu0 0
        %777 = vmatprep.subr.bf16.mxu0 0
        %778 = vmatpush1.bf16.msra.mxu0 0
        %779 = vmatprep.subr.bf16.mxu0 0
        %780 = vmatpush1.bf16.msra.mxu0 0
        %781 = vmatprep.subr.bf16.mxu0 0
        %782 = vmatpush1.bf16.msra.mxu0 0
        %783 = vmatprep.subr.bf16.mxu0 0
        %784 = vmatpush1.bf16.msra.mxu0 0
        %785 = vmatprep.subr.bf16.mxu0 0
        %786 = vmatpush1.bf16.msra.mxu0 0
        %787 = vmatprep.subr.bf16.mxu0 0
        %788 = vmatpush1.bf16.msra.mxu0 0
        %789 = vmatprep.subr.bf16.mxu0 0
        %790 = vmatpush1.bf16.msra.mxu0 0
        %791 = vmatprep.mubr.bf16.mxu0 0
        %792 = vmatmul.mubr.bf16.gmra.mrb[0].mxu0 %v665
        %v793 = vpop.f32.mrb[0].mxu0
        %v794 = vadd.f32 0.0, %v793
        %v795 = vpop.f32.mrb[0].mxu0
        %v796 = vpop.f32.mrb[0].mxu0
        %v797 = vadd.f32 0.0, %v796
        %v798 = vpop.f32.mrb[0].mxu0
        %799 = vdwg.mxu0
        %v801 = vsel %vm667, %v598, 0
        %803 = vmatprep.subr.bf16.mxu0 0
        %804 = vmatpush1.bf16.msra.mxu0 %v801
        %805 = vmatprep.subr.bf16.mxu0 0
        %806 = vmatpush1.bf16.msra.mxu0 0
        %807 = vmatprep.subr.bf16.mxu0 0
        %808 = vmatpush1.bf16.msra.mxu0 0
        %809 = vmatprep.subr.bf16.mxu0 0
        %810 = vmatpush1.bf16.msra.mxu0 0
        %811 = vmatprep.subr.bf16.mxu0 0
        %812 = vmatpush1.bf16.msra.mxu0 0
        %813 = vmatprep.subr.bf16.mxu0 0
        %814 = vmatpush1.bf16.msra.mxu0 0
        %815 = vmatprep.subr.bf16.mxu0 0
        %816 = vmatpush1.bf16.msra.mxu0 0
        %817 = vmatprep.subr.bf16.mxu0 0
        %818 = vmatpush1.bf16.msra.mxu0 0
        %819 = vmatprep.subr.bf16.mxu0 0
        %820 = vmatpush1.bf16.msra.mxu0 0
        %821 = vmatprep.subr.bf16.mxu0 0
        %822 = vmatpush1.bf16.msra.mxu0 0
        %823 = vmatprep.subr.bf16.mxu0 0
        %824 = vmatpush1.bf16.msra.mxu0 0
        %825 = vmatprep.subr.bf16.mxu0 0
        %826 = vmatpush1.bf16.msra.mxu0 0
        %827 = vmatprep.subr.bf16.mxu0 0
        %828 = vmatpush1.bf16.msra.mxu0 0
        %829 = vmatprep.subr.bf16.mxu0 0
        %830 = vmatpush1.bf16.msra.mxu0 0
        %831 = vmatprep.subr.bf16.mxu0 0
        %832 = vmatpush1.bf16.msra.mxu0 0
        %833 = vmatprep.subr.bf16.mxu0 0
        %834 = vmatpush1.bf16.msra.mxu0 0
        %835 = vmatprep.mubr.bf16.mxu0 0
        %836 = vmatmul.mubr.bf16.gmra.mrb[0].mxu0 %v665
        %v837 = vpop.f32.mrb[0].mxu0
        %v838 = vadd.f32 0.0, %v837
        %v839 = vpop.f32.mrb[0].mxu0
        %v840 = vpop.f32.mrb[0].mxu0
        %v841 = vadd.f32 0.0, %v840
        %v842 = vpop.f32.mrb[0].mxu0
        %843 = vdwg.mxu0
        %v845 = vsel %vm667, %v599, 0
        %847 = vmatprep.subr.bf16.mxu0 0
        %848 = vmatpush1.bf16.msra.mxu0 %v845
        %849 = vmatprep.subr.bf16.mxu0 0
        %850 = vmatpush1.bf16.msra.mxu0 0
        %851 = vmatprep.subr.bf16.mxu0 0
        %852 = vmatpush1.bf16.msra.mxu0 0
        %853 = vmatprep.subr.bf16.mxu0 0
        %854 = vmatpush1.bf16.msra.mxu0 0
        %855 = vmatprep.subr.bf16.mxu0 0
        %856 = vmatpush1.bf16.msra.mxu0 0
        %857 = vmatprep.subr.bf16.mxu0 0
        %858 = vmatpush1.bf16.msra.mxu0 0
        %859 = vmatprep.subr.bf16.mxu0 0
        %860 = vmatpush1.bf16.msra.mxu0 0
        %861 = vmatprep.subr.bf16.mxu0 0
        %862 = vmatpush1.bf16.msra.mxu0 0
        %863 = vmatprep.subr.bf16.mxu0 0
        %864 = vmatpush1.bf16.msra.mxu0 0
        %865 = vmatprep.subr.bf16.mxu0 0
        %866 = vmatpush1.bf16.msra.mxu0 0
        %867 = vmatprep.subr.bf16.mxu0 0
        %868 = vmatpush1.bf16.msra.mxu0 0
        %869 = vmatprep.subr.bf16.mxu0 0
        %870 = vmatpush1.bf16.msra.mxu0 0
        %871 = vmatprep.subr.bf16.mxu0 0
        %872 = vmatpush1.bf16.msra.mxu0 0
        %873 = vmatprep.subr.bf16.mxu0 0
        %874 = vmatpush1.bf16.msra.mxu0 0
        %875 = vmatprep.subr.bf16.mxu0 0
        %876 = vmatpush1.bf16.msra.mxu0 0
        %877 = vmatprep.subr.bf16.mxu0 0
        %878 = vmatpush1.bf16.msra.mxu0 0
        %879 = vmatprep.mubr.bf16.mxu0 0
        %880 = vmatmul.mubr.bf16.gmra.mrb[0].mxu0 %v665
        %v881 = vpop.f32.mrb[0].mxu0
        %v882 = vadd.f32 0.0, %v881
        %v883 = vpop.f32.mrb[0].mxu0
        %v884 = vpop.f32.mrb[0].mxu0
        %v885 = vadd.f32 0.0, %v884
        %v886 = vpop.f32.mrb[0].mxu0
        %887 = vdwg.mxu0
        %v889 = vsel %vm667, %v600, 0
        %891 = vmatprep.subr.bf16.mxu0 0
        %892 = vmatpush1.bf16.msra.mxu0 %v889
        %893 = vmatprep.subr.bf16.mxu0 0
        %894 = vmatpush1.bf16.msra.mxu0 0
        %895 = vmatprep.subr.bf16.mxu0 0
        %896 = vmatpush1.bf16.msra.mxu0 0
        %897 = vmatprep.subr.bf16.mxu0 0
        %898 = vmatpush1.bf16.msra.mxu0 0
        %899 = vmatprep.subr.bf16.mxu0 0
        %900 = vmatpush1.bf16.msra.mxu0 0
        %901 = vmatprep.subr.bf16.mxu0 0
        %902 = vmatpush1.bf16.msra.mxu0 0
        %903 = vmatprep.subr.bf16.mxu0 0
        %904 = vmatpush1.bf16.msra.mxu0 0
        %905 = vmatprep.subr.bf16.mxu0 0
        %906 = vmatpush1.bf16.msra.mxu0 0
        %907 = vmatprep.subr.bf16.mxu0 0
        %908 = vmatpush1.bf16.msra.mxu0 0
        %909 = vmatprep.subr.bf16.mxu0 0
        %910 = vmatpush1.bf16.msra.mxu0 0
        %911 = vmatprep.subr.bf16.mxu0 0
        %912 = vmatpush1.bf16.msra.mxu0 0
        %913 = vmatprep.subr.bf16.mxu0 0
        %914 = vmatpush1.bf16.msra.mxu0 0
        %915 = vmatprep.subr.bf16.mxu0 0
        %916 = vmatpush1.bf16.msra.mxu0 0
        %917 = vmatprep.subr.bf16.mxu0 0
        %918 = vmatpush1.bf16.msra.mxu0 0
        %919 = vmatprep.subr.bf16.mxu0 0
        %920 = vmatpush1.bf16.msra.mxu0 0
        %921 = vmatprep.subr.bf16.mxu0 0
        %922 = vmatpush1.bf16.msra.mxu0 0
        %923 = vmatprep.mubr.bf16.mxu0 0
        %924 = vmatmul.mubr.bf16.gmra.mrb[0].mxu0 %v665
        %v925 = vpop.f32.mrb[0].mxu0
        %v926 = vadd.f32 0.0, %v925
        %v927 = vpop.f32.mrb[0].mxu0
        %v928 = vpop.f32.mrb[0].mxu0
        %v929 = vadd.f32 0.0, %v928
        %v930 = vpop.f32.mrb[0].mxu0
        %931 = vdwg.mxu0
        %v933 = vsel %vm667, %v601, 0
        %935 = vmatprep.subr.bf16.mxu0 0
        %936 = vmatpush1.bf16.msra.mxu0 %v933
        %937 = vmatprep.subr.bf16.mxu0 0
        %938 = vmatpush1.bf16.msra.mxu0 0
        %939 = vmatprep.subr.bf16.mxu0 0
        %940 = vmatpush1.bf16.msra.mxu0 0
        %941 = vmatprep.subr.bf16.mxu0 0
        %942 = vmatpush1.bf16.msra.mxu0 0
        %943 = vmatprep.subr.bf16.mxu0 0
        %944 = vmatpush1.bf16.msra.mxu0 0
        %945 = vmatprep.subr.bf16.mxu0 0
        %946 = vmatpush1.bf16.msra.mxu0 0
        %947 = vmatprep.subr.bf16.mxu0 0
        %948 = vmatpush1.bf16.msra.mxu0 0
        %949 = vmatprep.subr.bf16.mxu0 0
        %950 = vmatpush1.bf16.msra.mxu0 0
        %951 = vmatprep.subr.bf16.mxu0 0
        %952 = vmatpush1.bf16.msra.mxu0 0
        %953 = vmatprep.subr.bf16.mxu0 0
        %954 = vmatpush1.bf16.msra.mxu0 0
        %955 = vmatprep.subr.bf16.mxu0 0
        %956 = vmatpush1.bf16.msra.mxu0 0
        %957 = vmatprep.subr.bf16.mxu0 0
        %958 = vmatpush1.bf16.msra.mxu0 0
        %959 = vmatprep.subr.bf16.mxu0 0
        %960 = vmatpush1.bf16.msra.mxu0 0
        %961 = vmatprep.subr.bf16.mxu0 0
        %962 = vmatpush1.bf16.msra.mxu0 0
        %963 = vmatprep.subr.bf16.mxu0 0
        %964 = vmatpush1.bf16.msra.mxu0 0
        %965 = vmatprep.subr.bf16.mxu0 0
        %966 = vmatpush1.bf16.msra.mxu0 0
        %967 = vmatprep.mubr.bf16.mxu0 0
        %968 = vmatmul.mubr.bf16.gmra.mrb[0].mxu0 %v665
        %v969 = vpop.f32.mrb[0].mxu0
        %v970 = vadd.f32 0.0, %v969
        %v971 = vpop.f32.mrb[0].mxu0
        %v972 = vpop.f32.mrb[0].mxu0
        %v973 = vadd.f32 0.0, %v972
        %v974 = vpop.f32.mrb[0].mxu0
        %975 = vdwg.mxu0
        %v977 = vsel %vm667, %v602, 0
        %979 = vmatprep.subr.bf16.mxu0 0
        %980 = vmatpush1.bf16.msra.mxu0 %v977
        %981 = vmatprep.subr.bf16.mxu0 0
        %982 = vmatpush1.bf16.msra.mxu0 0
        %983 = vmatprep.subr.bf16.mxu0 0
        %984 = vmatpush1.bf16.msra.mxu0 0
        %985 = vmatprep.subr.bf16.mxu0 0
        %986 = vmatpush1.bf16.msra.mxu0 0
        %987 = vmatprep.subr.bf16.mxu0 0
        %988 = vmatpush1.bf16.msra.mxu0 0
        %989 = vmatprep.subr.bf16.mxu0 0
        %990 = vmatpush1.bf16.msra.mxu0 0
        %991 = vmatprep.subr.bf16.mxu0 0
        %992 = vmatpush1.bf16.msra.mxu0 0
        %993 = vmatprep.subr.bf16.mxu0 0
        %994 = vmatpush1.bf16.msra.mxu0 0
        %995 = vmatprep.subr.bf16.mxu0 0
        %996 = vmatpush1.bf16.msra.mxu0 0
        %997 = vmatprep.subr.bf16.mxu0 0
        %998 = vmatpush1.bf16.msra.mxu0 0
        %999 = vmatprep.subr.bf16.mxu0 0
        %1000 = vmatpush1.bf16.msra.mxu0 0
        %1001 = vmatprep.subr.bf16.mxu0 0
        %1002 = vmatpush1.bf16.msra.mxu0 0
        %1003 = vmatprep.subr.bf16.mxu0 0
        %1004 = vmatpush1.bf16.msra.mxu0 0
        %1005 = vmatprep.subr.bf16.mxu0 0
        %1006 = vmatpush1.bf16.msra.mxu0 0
        %1007 = vmatprep.subr.bf16.mxu0 0
        %1008 = vmatpush1.bf16.msra.mxu0 0
        %1009 = vmatprep.subr.bf16.mxu0 0
        %1010 = vmatpush1.bf16.msra.mxu0 0
        %1011 = vmatprep.mubr.bf16.mxu0 0
        %1012 = vmatmul.mubr.bf16.gmra.mrb[0].mxu0 %v665
        %v1013 = vpop.f32.mrb[0].mxu0
        %v1014 = vadd.f32 0.0, %v1013
        %v1015 = vpop.f32.mrb[0].mxu0
        %v1016 = vpop.f32.mrb[0].mxu0
        %v1017 = vadd.f32 0.0, %v1016
        %v1018 = vpop.f32.mrb[0].mxu0
        %1019 = vdwg.mxu0
        %v1022 = vunpack.c.l.b16 %v640
        %v1023 = vunpack.c.l.b16 %v641
        %v1024 = vpack.c.b16 %v1023, %v1022
        %v1026 = vsel %vm663, %v1024, 0
        %v1029 = vsel %vm667, %v586, 0
        %1031 = vmatprep.subr.bf16.mxu0 0
        %1032 = vmatpush1.bf16.msra.mxu0 %v1029
        %1033 = vmatprep.subr.bf16.mxu0 0
        %1034 = vmatpush1.bf16.msra.mxu0 0
        %1035 = vmatprep.subr.bf16.mxu0 0
        %1036 = vmatpush1.bf16.msra.mxu0 0
        %1037 = vmatprep.subr.bf16.mxu0 0
        %1038 = vmatpush1.bf16.msra.mxu0 0
        %1039 = vmatprep.subr.bf16.mxu0 0
        %1040 = vmatpush1.bf16.msra.mxu0 0
        %1041 = vmatprep.subr.bf16.mxu0 0
        %1042 = vmatpush1.bf16.msra.mxu0 0
        %1043 = vmatprep.subr.bf16.mxu0 0
        %1044 = vmatpush1.bf16.msra.mxu0 0
        %1045 = vmatprep.subr.bf16.mxu0 0
        %1046 = vmatpush1.bf16.msra.mxu0 0
        %1047 = vmatprep.subr.bf16.mxu0 0
        %1048 = vmatpush1.bf16.msra.mxu0 0
        %1049 = vmatprep.subr.bf16.mxu0 0
        %1050 = vmatpush1.bf16.msra.mxu0 0
        %1051 = vmatprep.subr.bf16.mxu0 0
        %1052 = vmatpush1.bf16.msra.mxu0 0
        %1053 = vmatprep.subr.bf16.mxu0 0
        %1054 = vmatpush1.bf16.msra.mxu0 0
        %1055 = vmatprep.subr.bf16.mxu0 0
        %1056 = vmatpush1.bf16.msra.mxu0 0
        %1057 = vmatprep.subr.bf16.mxu0 0
        %1058 = vmatpush1.bf16.msra.mxu0 0
        %1059 = vmatprep.subr.bf16.mxu0 0
        %1060 = vmatpush1.bf16.msra.mxu0 0
        %1061 = vmatprep.subr.bf16.mxu0 0
        %1062 = vmatpush1.bf16.msra.mxu0 0
        %1063 = vmatprep.mubr.bf16.mxu0 0
        %1064 = vmatmul.mubr.bf16.gmra.mrb[0].mxu0 %v1026
        %v1065 = vpop.f32.mrb[0].mxu0
        %v1066 = vadd.f32 %v706, %v1065
        %v1067 = vpop.f32.mrb[0].mxu0
        %v1068 = vpop.f32.mrb[0].mxu0
        %v1069 = vadd.f32 %v709, %v1068
        %v1070 = vpop.f32.mrb[0].mxu0
        %1071 = vdwg.mxu0
        %v1073 = vsel %vm667, %v587, 0
        %1075 = vmatprep.subr.bf16.mxu0 0
        %1076 = vmatpush1.bf16.msra.mxu0 %v1073
        %1077 = vmatprep.subr.bf16.mxu0 0
        %1078 = vmatpush1.bf16.msra.mxu0 0
        %1079 = vmatprep.subr.bf16.mxu0 0
        %1080 = vmatpush1.bf16.msra.mxu0 0
        %1081 = vmatprep.subr.bf16.mxu0 0
        %1082 = vmatpush1.bf16.msra.mxu0 0
        %1083 = vmatprep.subr.bf16.mxu0 0
        %1084 = vmatpush1.bf16.msra.mxu0 0
        %1085 = vmatprep.subr.bf16.mxu0 0
        %1086 = vmatpush1.bf16.msra.mxu0 0
        %1087 = vmatprep.subr.bf16.mxu0 0
        %1088 = vmatpush1.bf16.msra.mxu0 0
        %1089 = vmatprep.subr.bf16.mxu0 0
        %1090 = vmatpush1.bf16.msra.mxu0 0
        %1091 = vmatprep.subr.bf16.mxu0 0
        %1092 = vmatpush1.bf16.msra.mxu0 0
        %1093 = vmatprep.subr.bf16.mxu0 0
        %1094 = vmatpush1.bf16.msra.mxu0 0
        %1095 = vmatprep.subr.bf16.mxu0 0
        %1096 = vmatpush1.bf16.msra.mxu0 0
        %1097 = vmatprep.subr.bf16.mxu0 0
        %1098 = vmatpush1.bf16.msra.mxu0 0
        %1099 = vmatprep.subr.bf16.mxu0 0
        %1100 = vmatpush1.bf16.msra.mxu0 0
        %1101 = vmatprep.subr.bf16.mxu0 0
        %1102 = vmatpush1.bf16.msra.mxu0 0
        %1103 = vmatprep.subr.bf16.mxu0 0
        %1104 = vmatpush1.bf16.msra.mxu0 0
        %1105 = vmatprep.subr.bf16.mxu0 0
        %1106 = vmatpush1.bf16.msra.mxu0 0
        %1107 = vmatprep.mubr.bf16.mxu0 0
        %1108 = vmatmul.mubr.bf16.gmra.mrb[0].mxu0 %v1026
        %v1109 = vpop.f32.mrb[0].mxu0
        %v1110 = vadd.f32 %v750, %v1109
        %v1111 = vpop.f32.mrb[0].mxu0
        %v1112 = vpop.f32.mrb[0].mxu0
        %v1113 = vadd.f32 %v753, %v1112
        %v1114 = vpop.f32.mrb[0].mxu0
        %1115 = vdwg.mxu0
        %v1117 = vsel %vm667, %v588, 0
        %1119 = vmatprep.subr.bf16.mxu0 0
        %1120 = vmatpush1.bf16.msra.mxu0 %v1117
        %1121 = vmatprep.subr.bf16.mxu0 0
        %1122 = vmatpush1.bf16.msra.mxu0 0
        %1123 = vmatprep.subr.bf16.mxu0 0
        %1124 = vmatpush1.bf16.msra.mxu0 0
        %1125 = vmatprep.subr.bf16.mxu0 0
        %1126 = vmatpush1.bf16.msra.mxu0 0
        %1127 = vmatprep.subr.bf16.mxu0 0
        %1128 = vmatpush1.bf16.msra.mxu0 0
        %1129 = vmatprep.subr.bf16.mxu0 0
        %1130 = vmatpush1.bf16.msra.mxu0 0
        %1131 = vmatprep.subr.bf16.mxu0 0
        %1132 = vmatpush1.bf16.msra.mxu0 0
        %1133 = vmatprep.subr.bf16.mxu0 0
        %1134 = vmatpush1.bf16.msra.mxu0 0
        %1135 = vmatprep.subr.bf16.mxu0 0
        %1136 = vmatpush1.bf16.msra.mxu0 0
        %1137 = vmatprep.subr.bf16.mxu0 0
        %1138 = vmatpush1.bf16.msra.mxu0 0
        %1139 = vmatprep.subr.bf16.mxu0 0
        %1140 = vmatpush1.bf16.msra.mxu0 0
        %1141 = vmatprep.subr.bf16.mxu0 0
        %1142 = vmatpush1.bf16.msra.mxu0 0
        %1143 = vmatprep.subr.bf16.mxu0 0
        %1144 = vmatpush1.bf16.msra.mxu0 0
        %1145 = vmatprep.subr.bf16.mxu0 0
        %1146 = vmatpush1.bf16.msra.mxu0 0
        %1147 = vmatprep.subr.bf16.mxu0 0
        %1148 = vmatpush1.bf16.msra.mxu0 0
        %1149 = vmatprep.subr.bf16.mxu0 0
        %1150 = vmatpush1.bf16.msra.mxu0 0
        %1151 = vmatprep.mubr.bf16.mxu0 0
        %1152 = vmatmul.mubr.bf16.gmra.mrb[0].mxu0 %v1026
        %v1153 = vpop.f32.mrb[0].mxu0
        %v1154 = vadd.f32 %v794, %v1153
        %v1155 = vpop.f32.mrb[0].mxu0
        %v1156 = vpop.f32.mrb[0].mxu0
        %v1157 = vadd.f32 %v797, %v1156
        %v1158 = vpop.f32.mrb[0].mxu0
        %1159 = vdwg.mxu0
        %v1161 = vsel %vm667, %v589, 0
        %1163 = vmatprep.subr.bf16.mxu0 0
        %1164 = vmatpush1.bf16.msra.mxu0 %v1161
        %1165 = vmatprep.subr.bf16.mxu0 0
        %1166 = vmatpush1.bf16.msra.mxu0 0
        %1167 = vmatprep.subr.bf16.mxu0 0
        %1168 = vmatpush1.bf16.msra.mxu0 0
        %1169 = vmatprep.subr.bf16.mxu0 0
        %1170 = vmatpush1.bf16.msra.mxu0 0
        %1171 = vmatprep.subr.bf16.mxu0 0
        %1172 = vmatpush1.bf16.msra.mxu0 0
        %1173 = vmatprep.subr.bf16.mxu0 0
        %1174 = vmatpush1.bf16.msra.mxu0 0
        %1175 = vmatprep.subr.bf16.mxu0 0
        %1176 = vmatpush1.bf16.msra.mxu0 0
        %1177 = vmatprep.subr.bf16.mxu0 0
        %1178 = vmatpush1.bf16.msra.mxu0 0
        %1179 = vmatprep.subr.bf16.mxu0 0
        %1180 = vmatpush1.bf16.msra.mxu0 0
        %1181 = vmatprep.subr.bf16.mxu0 0
        %1182 = vmatpush1.bf16.msra.mxu0 0
        %1183 = vmatprep.subr.bf16.mxu0 0
        %1184 = vmatpush1.bf16.msra.mxu0 0
        %1185 = vmatprep.subr.bf16.mxu0 0
        %1186 = vmatpush1.bf16.msra.mxu0 0
        %1187 = vmatprep.subr.bf16.mxu0 0
        %1188 = vmatpush1.bf16.msra.mxu0 0
        %1189 = vmatprep.subr.bf16.mxu0 0
        %1190 = vmatpush1.bf16.msra.mxu0 0
        %1191 = vmatprep.subr.bf16.mxu0 0
        %1192 = vmatpush1.bf16.msra.mxu0 0
        %1193 = vmatprep.subr.bf16.mxu0 0
        %1194 = vmatpush1.bf16.msra.mxu0 0
        %1195 = vmatprep.mubr.bf16.mxu0 0
        %1196 = vmatmul.mubr.bf16.gmra.mrb[0].mxu0 %v1026
        %v1197 = vpop.f32.mrb[0].mxu0
        %v1198 = vadd.f32 %v838, %v1197
        %v1199 = vpop.f32.mrb[0].mxu0
        %v1200 = vpop.f32.mrb[0].mxu0
        %v1201 = vadd.f32 %v841, %v1200
        %v1202 = vpop.f32.mrb[0].mxu0
        %1203 = vdwg.mxu0
        %v1205 = vsel %vm667, %v590, 0
        %1207 = vmatprep.subr.bf16.mxu0 0
        %1208 = vmatpush1.bf16.msra.mxu0 %v1205
        %1209 = vmatprep.subr.bf16.mxu0 0
        %1210 = vmatpush1.bf16.msra.mxu0 0
        %1211 = vmatprep.subr.bf16.mxu0 0
        %1212 = vmatpush1.bf16.msra.mxu0 0
        %1213 = vmatprep.subr.bf16.mxu0 0
        %1214 = vmatpush1.bf16.msra.mxu0 0
        %1215 = vmatprep.subr.bf16.mxu0 0
        %1216 = vmatpush1.bf16.msra.mxu0 0
        %1217 = vmatprep.subr.bf16.mxu0 0
        %1218 = vmatpush1.bf16.msra.mxu0 0
        %1219 = vmatprep.subr.bf16.mxu0 0
        %1220 = vmatpush1.bf16.msra.mxu0 0
        %1221 = vmatprep.subr.bf16.mxu0 0
        %1222 = vmatpush1.bf16.msra.mxu0 0
        %1223 = vmatprep.subr.bf16.mxu0 0
        %1224 = vmatpush1.bf16.msra.mxu0 0
        %1225 = vmatprep.subr.bf16.mxu0 0
        %1226 = vmatpush1.bf16.msra.mxu0 0
        %1227 = vmatprep.subr.bf16.mxu0 0
        %1228 = vmatpush1.bf16.msra.mxu0 0
        %1229 = vmatprep.subr.bf16.mxu0 0
        %1230 = vmatpush1.bf16.msra.mxu0 0
        %1231 = vmatprep.subr.bf16.mxu0 0
        %1232 = vmatpush1.bf16.msra.mxu0 0
        %1233 = vmatprep.subr.bf16.mxu0 0
        %1234 = vmatpush1.bf16.msra.mxu0 0
        %1235 = vmatprep.subr.bf16.mxu0 0
        %1236 = vmatpush1.bf16.msra.mxu0 0
        %1237 = vmatprep.subr.bf16.mxu0 0
        %1238 = vmatpush1.bf16.msra.mxu0 0
        %1239 = vmatprep.mubr.bf16.mxu0 0
        %1240 = vmatmul.mubr.bf16.gmra.mrb[0].mxu0 %v1026
        %v1241 = vpop.f32.mrb[0].mxu0
        %v1242 = vadd.f32 %v882, %v1241
        %v1243 = vpop.f32.mrb[0].mxu0
        %v1244 = vpop.f32.mrb[0].mxu0
        %v1245 = vadd.f32 %v885, %v1244
        %v1246 = vpop.f32.mrb[0].mxu0
        %1247 = vdwg.mxu0
        %v1249 = vsel %vm667, %v591, 0
        %1251 = vmatprep.subr.bf16.mxu0 0
        %1252 = vmatpush1.bf16.msra.mxu0 %v1249
        %1253 = vmatprep.subr.bf16.mxu0 0
        %1254 = vmatpush1.bf16.msra.mxu0 0
        %1255 = vmatprep.subr.bf16.mxu0 0
        %1256 = vmatpush1.bf16.msra.mxu0 0
        %1257 = vmatprep.subr.bf16.mxu0 0
        %1258 = vmatpush1.bf16.msra.mxu0 0
        %1259 = vmatprep.subr.bf16.mxu0 0
        %1260 = vmatpush1.bf16.msra.mxu0 0
        %1261 = vmatprep.subr.bf16.mxu0 0
        %1262 = vmatpush1.bf16.msra.mxu0 0
        %1263 = vmatprep.subr.bf16.mxu0 0
        %1264 = vmatpush1.bf16.msra.mxu0 0
        %1265 = vmatprep.subr.bf16.mxu0 0
        %1266 = vmatpush1.bf16.msra.mxu0 0
        %1267 = vmatprep.subr.bf16.mxu0 0
        %1268 = vmatpush1.bf16.msra.mxu0 0
        %1269 = vmatprep.subr.bf16.mxu0 0
        %1270 = vmatpush1.bf16.msra.mxu0 0
        %1271 = vmatprep.subr.bf16.mxu0 0
        %1272 = vmatpush1.bf16.msra.mxu0 0
        %1273 = vmatprep.subr.bf16.mxu0 0
        %1274 = vmatpush1.bf16.msra.mxu0 0
        %1275 = vmatprep.subr.bf16.mxu0 0
        %1276 = vmatpush1.bf16.msra.mxu0 0
        %1277 = vmatprep.subr.bf16.mxu0 0
        %1278 = vmatpush1.bf16.msra.mxu0 0
        %1279 = vmatprep.subr.bf16.mxu0 0
        %1280 = vmatpush1.bf16.msra.mxu0 0
        %1281 = vmatprep.subr.bf16.mxu0 0
        %1282 = vmatpush1.bf16.msra.mxu0 0
        %1283 = vmatprep.mubr.bf16.mxu0 0
        %1284 = vmatmul.mubr.bf16.gmra.mrb[0].mxu0 %v1026
        %v1285 = vpop.f32.mrb[0].mxu0
        %v1286 = vadd.f32 %v926, %v1285
        %v1287 = vpop.f32.mrb[0].mxu0
        %v1288 = vpop.f32.mrb[0].mxu0
        %v1289 = vadd.f32 %v929, %v1288
        %v1290 = vpop.f32.mrb[0].mxu0
        %1291 = vdwg.mxu0
        %v1293 = vsel %vm667, %v592, 0
        %1295 = vmatprep.subr.bf16.mxu0 0
        %1296 = vmatpush1.bf16.msra.mxu0 %v1293
        %1297 = vmatprep.subr.bf16.mxu0 0
        %1298 = vmatpush1.bf16.msra.mxu0 0
        %1299 = vmatprep.subr.bf16.mxu0 0
        %1300 = vmatpush1.bf16.msra.mxu0 0
        %1301 = vmatprep.subr.bf16.mxu0 0
        %1302 = vmatpush1.bf16.msra.mxu0 0
        %1303 = vmatprep.subr.bf16.mxu0 0
        %1304 = vmatpush1.bf16.msra.mxu0 0
        %1305 = vmatprep.subr.bf16.mxu0 0
        %1306 = vmatpush1.bf16.msra.mxu0 0
        %1307 = vmatprep.subr.bf16.mxu0 0
        %1308 = vmatpush1.bf16.msra.mxu0 0
        %1309 = vmatprep.subr.bf16.mxu0 0
        %1310 = vmatpush1.bf16.msra.mxu0 0
        %1311 = vmatprep.subr.bf16.mxu0 0
        %1312 = vmatpush1.bf16.msra.mxu0 0
        %1313 = vmatprep.subr.bf16.mxu0 0
        %1314 = vmatpush1.bf16.msra.mxu0 0
        %1315 = vmatprep.subr.bf16.mxu0 0
        %1316 = vmatpush1.bf16.msra.mxu0 0
        %1317 = vmatprep.subr.bf16.mxu0 0
        %1318 = vmatpush1.bf16.msra.mxu0 0
        %1319 = vmatprep.subr.bf16.mxu0 0
        %1320 = vmatpush1.bf16.msra.mxu0 0
        %1321 = vmatprep.subr.bf16.mxu0 0
        %1322 = vmatpush1.bf16.msra.mxu0 0
        %1323 = vmatprep.subr.bf16.mxu0 0
        %1324 = vmatpush1.bf16.msra.mxu0 0
        %1325 = vmatprep.subr.bf16.mxu0 0
        %1326 = vmatpush1.bf16.msra.mxu0 0
        %1327 = vmatprep.mubr.bf16.mxu0 0
        %1328 = vmatmul.mubr.bf16.gmra.mrb[0].mxu0 %v1026
        %v1329 = vpop.f32.mrb[0].mxu0
        %v1330 = vadd.f32 %v970, %v1329
        %v1331 = vpop.f32.mrb[0].mxu0
        %v1332 = vpop.f32.mrb[0].mxu0
        %v1333 = vadd.f32 %v973, %v1332
        %v1334 = vpop.f32.mrb[0].mxu0
        %1335 = vdwg.mxu0
        %v1337 = vsel %vm667, %v593, 0
        %1339 = vmatprep.subr.bf16.mxu0 0
        %1340 = vmatpush1.bf16.msra.mxu0 %v1337
        %1341 = vmatprep.subr.bf16.mxu0 0
        %1342 = vmatpush1.bf16.msra.mxu0 0
        %1343 = vmatprep.subr.bf16.mxu0 0
        %1344 = vmatpush1.bf16.msra.mxu0 0
        %1345 = vmatprep.subr.bf16.mxu0 0
        %1346 = vmatpush1.bf16.msra.mxu0 0
        %1347 = vmatprep.subr.bf16.mxu0 0
        %1348 = vmatpush1.bf16.msra.mxu0 0
        %1349 = vmatprep.subr.bf16.mxu0 0
        %1350 = vmatpush1.bf16.msra.mxu0 0
        %1351 = vmatprep.subr.bf16.mxu0 0
        %1352 = vmatpush1.bf16.msra.mxu0 0
        %1353 = vmatprep.subr.bf16.mxu0 0
        %1354 = vmatpush1.bf16.msra.mxu0 0
        %1355 = vmatprep.subr.bf16.mxu0 0
        %1356 = vmatpush1.bf16.msra.mxu0 0
        %1357 = vmatprep.subr.bf16.mxu0 0
        %1358 = vmatpush1.bf16.msra.mxu0 0
        %1359 = vmatprep.subr.bf16.mxu0 0
        %1360 = vmatpush1.bf16.msra.mxu0 0
        %1361 = vmatprep.subr.bf16.mxu0 0
        %1362 = vmatpush1.bf16.msra.mxu0 0
        %1363 = vmatprep.subr.bf16.mxu0 0
        %1364 = vmatpush1.bf16.msra.mxu0 0
        %1365 = vmatprep.subr.bf16.mxu0 0
        %1366 = vmatpush1.bf16.msra.mxu0 0
        %1367 = vmatprep.subr.bf16.mxu0 0
        %1368 = vmatpush1.bf16.msra.mxu0 0
        %1369 = vmatprep.subr.bf16.mxu0 0
        %1370 = vmatpush1.bf16.msra.mxu0 0
        %1371 = vmatprep.mubr.bf16.mxu0 0
        %1372 = vmatmul.mubr.bf16.gmra.mrb[0].mxu0 %v1026
        %v1373 = vpop.f32.mrb[0].mxu0
        %v1374 = vadd.f32 %v1014, %v1373
        %v1375 = vpop.f32.mrb[0].mxu0
        %v1376 = vpop.f32.mrb[0].mxu0
        %v1377 = vadd.f32 %v1017, %v1376
        %v1378 = vpop.f32.mrb[0].mxu0
        %1379 = vdwg.mxu0
        %v1382 = vunpack.c.l.b16 %v644
        %v1383 = vunpack.c.l.b16 %v645
        %v1384 = vpack.c.b16 %v1383, %v1382
        %v1387 = vunpack.c.l.s4 1983009808
        %v1388 = vunpack.c.0.s8 %v1387
        %v1389 = vlaneseq
        %v1390 = vshrl.u32 %v1389, 7
        %v1391 = vsub.s32 %v1388, %v1390
        %v1392 = vrot.slane %v586, %v1391
        %1393 = vrot.lane.b32.xlu0 %v1392, 127
        %v1394 = vpop.permute.xlu0 %1393
        %v1396 = vsel %vm663, %v1384, 0
        %v1399 = vsel %vm667, %v1394, 0
        %1401 = vmatprep.subr.bf16.mxu0 0
        %1402 = vmatpush1.bf16.msra.mxu0 %v1399
        %1403 = vmatprep.subr.bf16.mxu0 0
        %1404 = vmatpush1.bf16.msra.mxu0 0
        %1405 = vmatprep.subr.bf16.mxu0 0
        %1406 = vmatpush1.bf16.msra.mxu0 0
        %1407 = vmatprep.subr.bf16.mxu0 0
        %1408 = vmatpush1.bf16.msra.mxu0 0
        %1409 = vmatprep.subr.bf16.mxu0 0
        %1410 = vmatpush1.bf16.msra.mxu0 0
        %1411 = vmatprep.subr.bf16.mxu0 0
        %1412 = vmatpush1.bf16.msra.mxu0 0
        %1413 = vmatprep.subr.bf16.mxu0 0
        %1414 = vmatpush1.bf16.msra.mxu0 0
        %1415 = vmatprep.subr.bf16.mxu0 0
        %1416 = vmatpush1.bf16.msra.mxu0 0
        %1417 = vmatprep.subr.bf16.mxu0 0
        %1418 = vmatpush1.bf16.msra.mxu0 0
        %1419 = vmatprep.subr.bf16.mxu0 0
        %1420 = vmatpush1.bf16.msra.mxu0 0
        %1421 = vmatprep.subr.bf16.mxu0 0
        %1422 = vmatpush1.bf16.msra.mxu0 0
        %1423 = vmatprep.subr.bf16.mxu0 0
        %1424 = vmatpush1.bf16.msra.mxu0 0
        %1425 = vmatprep.subr.bf16.mxu0 0
        %1426 = vmatpush1.bf16.msra.mxu0 0
        %1427 = vmatprep.subr.bf16.mxu0 0
        %1428 = vmatpush1.bf16.msra.mxu0 0
        %1429 = vmatprep.subr.bf16.mxu0 0
        %1430 = vmatpush1.bf16.msra.mxu0 0
        %1431 = vmatprep.subr.bf16.mxu0 0
        %1432 = vmatpush1.bf16.msra.mxu0 0
        %1433 = vmatprep.mubr.bf16.mxu0 0
        %1434 = vmatmul.mubr.bf16.gmra.mrb[0].mxu0 %v1396
        %v1435 = vpop.f32.mrb[0].mxu0
        %v1436 = vadd.f32 0.0, %v1435
        %v1437 = vpop.f32.mrb[0].mxu0
        %v1438 = vpop.f32.mrb[0].mxu0
        %v1439 = vadd.f32 0.0, %v1438
        %v1440 = vpop.f32.mrb[0].mxu0
        %1441 = vdwg.mxu0
        %v1444 = vunpack.c.l.s4 1983009808
        %v1445 = vunpack.c.0.s8 %v1444
        %v1446 = vlaneseq
        %v1447 = vshrl.u32 %v1446, 7
        %v1448 = vsub.s32 %v1445, %v1447
        %v1449 = vrot.slane %v587, %v1448
        %1450 = vrot.lane.b32.xlu0 %v1449, 127
        %v1451 = vpop.permute.xlu0 %1450
        %v1453 = vsel %vm667, %v1451, 0
        %1455 = vmatprep.subr.bf16.mxu0 0
        %1456 = vmatpush1.bf16.msra.mxu0 %v1453
        %1457 = vmatprep.subr.bf16.mxu0 0
        %1458 = vmatpush1.bf16.msra.mxu0 0
        %1459 = vmatprep.subr.bf16.mxu0 0
        %1460 = vmatpush1.bf16.msra.mxu0 0
        %1461 = vmatprep.subr.bf16.mxu0 0
        %1462 = vmatpush1.bf16.msra.mxu0 0
        %1463 = vmatprep.subr.bf16.mxu0 0
        %1464 = vmatpush1.bf16.msra.mxu0 0
        %1465 = vmatprep.subr.bf16.mxu0 0
        %1466 = vmatpush1.bf16.msra.mxu0 0
        %1467 = vmatprep.subr.bf16.mxu0 0
        %1468 = vmatpush1.bf16.msra.mxu0 0
        %1469 = vmatprep.subr.bf16.mxu0 0
        %1470 = vmatpush1.bf16.msra.mxu0 0
        %1471 = vmatprep.subr.bf16.mxu0 0
        %1472 = vmatpush1.bf16.msra.mxu0 0
        %1473 = vmatprep.subr.bf16.mxu0 0
        %1474 = vmatpush1.bf16.msra.mxu0 0
        %1475 = vmatprep.subr.bf16.mxu0 0
        %1476 = vmatpush1.bf16.msra.mxu0 0
        %1477 = vmatprep.subr.bf16.mxu0 0
        %1478 = vmatpush1.bf16.msra.mxu0 0
        %1479 = vmatprep.subr.bf16.mxu0 0
        %1480 = vmatpush1.bf16.msra.mxu0 0
        %1481 = vmatprep.subr.bf16.mxu0 0
        %1482 = vmatpush1.bf16.msra.mxu0 0
        %1483 = vmatprep.subr.bf16.mxu0 0
        %1484 = vmatpush1.bf16.msra.mxu0 0
        %1485 = vmatprep.subr.bf16.mxu0 0
        %1486 = vmatpush1.bf16.msra.mxu0 0
        %1487 = vmatprep.mubr.bf16.mxu0 0
        %1488 = vmatmul.mubr.bf16.gmra.mrb[0].mxu0 %v1396
        %v1489 = vpop.f32.mrb[0].mxu0
        %v1490 = vadd.f32 0.0, %v1489
        %v1491 = vpop.f32.mrb[0].mxu0
        %v1492 = vpop.f32.mrb[0].mxu0
        %v1493 = vadd.f32 0.0, %v1492
        %v1494 = vpop.f32.mrb[0].mxu0
        %1495 = vdwg.mxu0
        %v1498 = vunpack.c.l.s4 1983009808
        %v1499 = vunpack.c.0.s8 %v1498
        %v1500 = vlaneseq
        %v1501 = vshrl.u32 %v1500, 7
        %v1502 = vsub.s32 %v1499, %v1501
        %v1503 = vrot.slane %v588, %v1502
        %1504 = vrot.lane.b32.xlu0 %v1503, 127
        %v1505 = vpop.permute.xlu0 %1504
        %v1507 = vsel %vm667, %v1505, 0
        %1509 = vmatprep.subr.bf16.mxu0 0
        %1510 = vmatpush1.bf16.msra.mxu0 %v1507
        %1511 = vmatprep.subr.bf16.mxu0 0
        %1512 = vmatpush1.bf16.msra.mxu0 0
        %1513 = vmatprep.subr.bf16.mxu0 0
        %1514 = vmatpush1.bf16.msra.mxu0 0
        %1515 = vmatprep.subr.bf16.mxu0 0
        %1516 = vmatpush1.bf16.msra.mxu0 0
        %1517 = vmatprep.subr.bf16.mxu0 0
        %1518 = vmatpush1.bf16.msra.mxu0 0
        %1519 = vmatprep.subr.bf16.mxu0 0
        %1520 = vmatpush1.bf16.msra.mxu0 0
        %1521 = vmatprep.subr.bf16.mxu0 0
        %1522 = vmatpush1.bf16.msra.mxu0 0
        %1523 = vmatprep.subr.bf16.mxu0 0
        %1524 = vmatpush1.bf16.msra.mxu0 0
        %1525 = vmatprep.subr.bf16.mxu0 0
        %1526 = vmatpush1.bf16.msra.mxu0 0
        %1527 = vmatprep.subr.bf16.mxu0 0
        %1528 = vmatpush1.bf16.msra.mxu0 0
        %1529 = vmatprep.subr.bf16.mxu0 0
        %1530 = vmatpush1.bf16.msra.mxu0 0
        %1531 = vmatprep.subr.bf16.mxu0 0
        %1532 = vmatpush1.bf16.msra.mxu0 0
        %1533 = vmatprep.subr.bf16.mxu0 0
        %1534 = vmatpush1.bf16.msra.mxu0 0
        %1535 = vmatprep.subr.bf16.mxu0 0
        %1536 = vmatpush1.bf16.msra.mxu0 0
        %1537 = vmatprep.subr.bf16.mxu0 0
        %1538 = vmatpush1.bf16.msra.mxu0 0
        %1539 = vmatprep.subr.bf16.mxu0 0
        %1540 = vmatpush1.bf16.msra.mxu0 0
        %1541 = vmatprep.mubr.bf16.mxu0 0
        %1542 = vmatmul.mubr.bf16.gmra.mrb[0].mxu0 %v1396
        %v1543 = vpop.f32.mrb[0].mxu0
        %v1544 = vadd.f32 0.0, %v1543
        %v1545 = vpop.f32.mrb[0].mxu0
        %v1546 = vpop.f32.mrb[0].mxu0
        %v1547 = vadd.f32 0.0, %v1546
        %v1548 = vpop.f32.mrb[0].mxu0
        %1549 = vdwg.mxu0
        %v1552 = vunpack.c.l.s4 1983009808
        %v1553 = vunpack.c.0.s8 %v1552
        %v1554 = vlaneseq
        %v1555 = vshrl.u32 %v1554, 7
        %v1556 = vsub.s32 %v1553, %v1555
        %v1557 = vrot.slane %v589, %v1556
        %1558 = vrot.lane.b32.xlu0 %v1557, 127
        %v1559 = vpop.permute.xlu0 %1558
        %v1561 = vsel %vm667, %v1559, 0
        %1563 = vmatprep.subr.bf16.mxu0 0
        %1564 = vmatpush1.bf16.msra.mxu0 %v1561
        %1565 = vmatprep.subr.bf16.mxu0 0
        %1566 = vmatpush1.bf16.msra.mxu0 0
        %1567 = vmatprep.subr.bf16.mxu0 0
        %1568 = vmatpush1.bf16.msra.mxu0 0
        %1569 = vmatprep.subr.bf16.mxu0 0
        %1570 = vmatpush1.bf16.msra.mxu0 0
        %1571 = vmatprep.subr.bf16.mxu0 0
        %1572 = vmatpush1.bf16.msra.mxu0 0
        %1573 = vmatprep.subr.bf16.mxu0 0
        %1574 = vmatpush1.bf16.msra.mxu0 0
        %1575 = vmatprep.subr.bf16.mxu0 0
        %1576 = vmatpush1.bf16.msra.mxu0 0
        %1577 = vmatprep.subr.bf16.mxu0 0
        %1578 = vmatpush1.bf16.msra.mxu0 0
        %1579 = vmatprep.subr.bf16.mxu0 0
        %1580 = vmatpush1.bf16.msra.mxu0 0
        %1581 = vmatprep.subr.bf16.mxu0 0
        %1582 = vmatpush1.bf16.msra.mxu0 0
        %1583 = vmatprep.subr.bf16.mxu0 0
        %1584 = vmatpush1.bf16.msra.mxu0 0
        %1585 = vmatprep.subr.bf16.mxu0 0
        %1586 = vmatpush1.bf16.msra.mxu0 0
        %1587 = vmatprep.subr.bf16.mxu0 0
        %1588 = vmatpush1.bf16.msra.mxu0 0
        %1589 = vmatprep.subr.bf16.mxu0 0
        %1590 = vmatpush1.bf16.msra.mxu0 0
        %1591 = vmatprep.subr.bf16.mxu0 0
        %1592 = vmatpush1.bf16.msra.mxu0 0
        %1593 = vmatprep.subr.bf16.mxu0 0
        %1594 = vmatpush1.bf16.msra.mxu0 0
        %1595 = vmatprep.mubr.bf16.mxu0 0
        %1596 = vmatmul.mubr.bf16.gmra.mrb[0].mxu0 %v1396
        %v1597 = vpop.f32.mrb[0].mxu0
        %v1598 = vadd.f32 0.0, %v1597
        %v1599 = vpop.f32.mrb[0].mxu0
        %v1600 = vpop.f32.mrb[0].mxu0
        %v1601 = vadd.f32 0.0, %v1600
        %v1602 = vpop.f32.mrb[0].mxu0
        %1603 = vdwg.mxu0
        %v1606 = vunpack.c.l.s4 1983009808
        %v1607 = vunpack.c.0.s8 %v1606
        %v1608 = vlaneseq
        %v1609 = vshrl.u32 %v1608, 7
        %v1610 = vsub.s32 %v1607, %v1609
        %v1611 = vrot.slane %v590, %v1610
        %1612 = vrot.lane.b32.xlu0 %v1611, 127
        %v1613 = vpop.permute.xlu0 %1612
        %v1615 = vsel %vm667, %v1613, 0
        %1617 = vmatprep.subr.bf16.mxu0 0
        %1618 = vmatpush1.bf16.msra.mxu0 %v1615
        %1619 = vmatprep.subr.bf16.mxu0 0
        %1620 = vmatpush1.bf16.msra.mxu0 0
        %1621 = vmatprep.subr.bf16.mxu0 0
        %1622 = vmatpush1.bf16.msra.mxu0 0
        %1623 = vmatprep.subr.bf16.mxu0 0
        %1624 = vmatpush1.bf16.msra.mxu0 0
        %1625 = vmatprep.subr.bf16.mxu0 0
        %1626 = vmatpush1.bf16.msra.mxu0 0
        %1627 = vmatprep.subr.bf16.mxu0 0
        %1628 = vmatpush1.bf16.msra.mxu0 0
        %1629 = vmatprep.subr.bf16.mxu0 0
        %1630 = vmatpush1.bf16.msra.mxu0 0
        %1631 = vmatprep.subr.bf16.mxu0 0
        %1632 = vmatpush1.bf16.msra.mxu0 0
        %1633 = vmatprep.subr.bf16.mxu0 0
        %1634 = vmatpush1.bf16.msra.mxu0 0
        %1635 = vmatprep.subr.bf16.mxu0 0
        %1636 = vmatpush1.bf16.msra.mxu0 0
        %1637 = vmatprep.subr.bf16.mxu0 0
        %1638 = vmatpush1.bf16.msra.mxu0 0
        %1639 = vmatprep.subr.bf16.mxu0 0
        %1640 = vmatpush1.bf16.msra.mxu0 0
        %1641 = vmatprep.subr.bf16.mxu0 0
        %1642 = vmatpush1.bf16.msra.mxu0 0
        %1643 = vmatprep.subr.bf16.mxu0 0
        %1644 = vmatpush1.bf16.msra.mxu0 0
        %1645 = vmatprep.subr.bf16.mxu0 0
        %1646 = vmatpush1.bf16.msra.mxu0 0
        %1647 = vmatprep.subr.bf16.mxu0 0
        %1648 = vmatpush1.bf16.msra.mxu0 0
        %1649 = vmatprep.mubr.bf16.mxu0 0
        %1650 = vmatmul.mubr.bf16.gmra.mrb[0].mxu0 %v1396
        %v1651 = vpop.f32.mrb[0].mxu0
        %v1652 = vadd.f32 0.0, %v1651
        %v1653 = vpop.f32.mrb[0].mxu0
        %v1654 = vpop.f32.mrb[0].mxu0
        %v1655 = vadd.f32 0.0, %v1654
        %v1656 = vpop.f32.mrb[0].mxu0
        %1657 = vdwg.mxu0
        %v1660 = vunpack.c.l.s4 1983009808
        %v1661 = vunpack.c.0.s8 %v1660
        %v1662 = vlaneseq
        %v1663 = vshrl.u32 %v1662, 7
        %v1664 = vsub.s32 %v1661, %v1663
        %v1665 = vrot.slane %v591, %v1664
        %1666 = vrot.lane.b32.xlu0 %v1665, 127
        %v1667 = vpop.permute.xlu0 %1666
        %v1669 = vsel %vm667, %v1667, 0
        %1671 = vmatprep.subr.bf16.mxu0 0
        %1672 = vmatpush1.bf16.msra.mxu0 %v1669
        %1673 = vmatprep.subr.bf16.mxu0 0
        %1674 = vmatpush1.bf16.msra.mxu0 0
        %1675 = vmatprep.subr.bf16.mxu0 0
        %1676 = vmatpush1.bf16.msra.mxu0 0
        %1677 = vmatprep.subr.bf16.mxu0 0
        %1678 = vmatpush1.bf16.msra.mxu0 0
        %1679 = vmatprep.subr.bf16.mxu0 0
        %1680 = vmatpush1.bf16.msra.mxu0 0
        %1681 = vmatprep.subr.bf16.mxu0 0
        %1682 = vmatpush1.bf16.msra.mxu0 0
        %1683 = vmatprep.subr.bf16.mxu0 0
        %1684 = vmatpush1.bf16.msra.mxu0 0
        %1685 = vmatprep.subr.bf16.mxu0 0
        %1686 = vmatpush1.bf16.msra.mxu0 0
        %1687 = vmatprep.subr.bf16.mxu0 0
        %1688 = vmatpush1.bf16.msra.mxu0 0
        %1689 = vmatprep.subr.bf16.mxu0 0
        %1690 = vmatpush1.bf16.msra.mxu0 0
        %1691 = vmatprep.subr.bf16.mxu0 0
        %1692 = vmatpush1.bf16.msra.mxu0 0
        %1693 = vmatprep.subr.bf16.mxu0 0
        %1694 = vmatpush1.bf16.msra.mxu0 0
        %1695 = vmatprep.subr.bf16.mxu0 0
        %1696 = vmatpush1.bf16.msra.mxu0 0
        %1697 = vmatprep.subr.bf16.mxu0 0
        %1698 = vmatpush1.bf16.msra.mxu0 0
        %1699 = vmatprep.subr.bf16.mxu0 0
        %1700 = vmatpush1.bf16.msra.mxu0 0
        %1701 = vmatprep.subr.bf16.mxu0 0
        %1702 = vmatpush1.bf16.msra.mxu0 0
        %1703 = vmatprep.mubr.bf16.mxu0 0
        %1704 = vmatmul.mubr.bf16.gmra.mrb[0].mxu0 %v1396
        %v1705 = vpop.f32.mrb[0].mxu0
        %v1706 = vadd.f32 0.0, %v1705
        %v1707 = vpop.f32.mrb[0].mxu0
        %v1708 = vpop.f32.mrb[0].mxu0
        %v1709 = vadd.f32 0.0, %v1708
        %v1710 = vpop.f32.mrb[0].mxu0
        %1711 = vdwg.mxu0
        %v1714 = vunpack.c.l.s4 1983009808
        %v1715 = vunpack.c.0.s8 %v1714
        %v1716 = vlaneseq
        %v1717 = vshrl.u32 %v1716, 7
        %v1718 = vsub.s32 %v1715, %v1717
        %v1719 = vrot.slane %v592, %v1718
        %1720 = vrot.lane.b32.xlu0 %v1719, 127
        %v1721 = vpop.permute.xlu0 %1720
        %v1723 = vsel %vm667, %v1721, 0
        %1725 = vmatprep.subr.bf16.mxu0 0
        %1726 = vmatpush1.bf16.msra.mxu0 %v1723
        %1727 = vmatprep.subr.bf16.mxu0 0
        %1728 = vmatpush1.bf16.msra.mxu0 0
        %1729 = vmatprep.subr.bf16.mxu0 0
        %1730 = vmatpush1.bf16.msra.mxu0 0
        %1731 = vmatprep.subr.bf16.mxu0 0
        %1732 = vmatpush1.bf16.msra.mxu0 0
        %1733 = vmatprep.subr.bf16.mxu0 0
        %1734 = vmatpush1.bf16.msra.mxu0 0
        %1735 = vmatprep.subr.bf16.mxu0 0
        %1736 = vmatpush1.bf16.msra.mxu0 0
        %1737 = vmatprep.subr.bf16.mxu0 0
        %1738 = vmatpush1.bf16.msra.mxu0 0
        %1739 = vmatprep.subr.bf16.mxu0 0
        %1740 = vmatpush1.bf16.msra.mxu0 0
        %1741 = vmatprep.subr.bf16.mxu0 0
        %1742 = vmatpush1.bf16.msra.mxu0 0
        %1743 = vmatprep.subr.bf16.mxu0 0
        %1744 = vmatpush1.bf16.msra.mxu0 0
        %1745 = vmatprep.subr.bf16.mxu0 0
        %1746 = vmatpush1.bf16.msra.mxu0 0
        %1747 = vmatprep.subr.bf16.mxu0 0
        %1748 = vmatpush1.bf16.msra.mxu0 0
        %1749 = vmatprep.subr.bf16.mxu0 0
        %1750 = vmatpush1.bf16.msra.mxu0 0
        %1751 = vmatprep.subr.bf16.mxu0 0
        %1752 = vmatpush1.bf16.msra.mxu0 0
        %1753 = vmatprep.subr.bf16.mxu0 0
        %1754 = vmatpush1.bf16.msra.mxu0 0
        %1755 = vmatprep.subr.bf16.mxu0 0
        %1756 = vmatpush1.bf16.msra.mxu0 0
        %1757 = vmatprep.mubr.bf16.mxu0 0
        %1758 = vmatmul.mubr.bf16.gmra.mrb[0].mxu0 %v1396
        %v1759 = vpop.f32.mrb[0].mxu0
        %v1760 = vadd.f32 0.0, %v1759
        %v1761 = vpop.f32.mrb[0].mxu0
        %v1762 = vpop.f32.mrb[0].mxu0
        %v1763 = vadd.f32 0.0, %v1762
        %v1764 = vpop.f32.mrb[0].mxu0
        %1765 = vdwg.mxu0
        %v1768 = vunpack.c.l.s4 1983009808
        %v1769 = vunpack.c.0.s8 %v1768
        %v1770 = vlaneseq
        %v1771 = vshrl.u32 %v1770, 7
        %v1772 = vsub.s32 %v1769, %v1771
        %v1773 = vrot.slane %v593, %v1772
        %1774 = vrot.lane.b32.xlu0 %v1773, 127
        %v1775 = vpop.permute.xlu0 %1774
        %v1777 = vsel %vm667, %v1775, 0
        %1779 = vmatprep.subr.bf16.mxu0 0
        %1780 = vmatpush1.bf16.msra.mxu0 %v1777
        %1781 = vmatprep.subr.bf16.mxu0 0
        %1782 = vmatpush1.bf16.msra.mxu0 0
        %1783 = vmatprep.subr.bf16.mxu0 0
        %1784 = vmatpush1.bf16.msra.mxu0 0
        %1785 = vmatprep.subr.bf16.mxu0 0
        %1786 = vmatpush1.bf16.msra.mxu0 0
        %1787 = vmatprep.subr.bf16.mxu0 0
        %1788 = vmatpush1.bf16.msra.mxu0 0
        %1789 = vmatprep.subr.bf16.mxu0 0
        %1790 = vmatpush1.bf16.msra.mxu0 0
        %1791 = vmatprep.subr.bf16.mxu0 0
        %1792 = vmatpush1.bf16.msra.mxu0 0
        %1793 = vmatprep.subr.bf16.mxu0 0
        %1794 = vmatpush1.bf16.msra.mxu0 0
        %1795 = vmatprep.subr.bf16.mxu0 0
        %1796 = vmatpush1.bf16.msra.mxu0 0
        %1797 = vmatprep.subr.bf16.mxu0 0
        %1798 = vmatpush1.bf16.msra.mxu0 0
        %1799 = vmatprep.subr.bf16.mxu0 0
        %1800 = vmatpush1.bf16.msra.mxu0 0
        %1801 = vmatprep.subr.bf16.mxu0 0
        %1802 = vmatpush1.bf16.msra.mxu0 0
        %1803 = vmatprep.subr.bf16.mxu0 0
        %1804 = vmatpush1.bf16.msra.mxu0 0
        %1805 = vmatprep.subr.bf16.mxu0 0
        %1806 = vmatpush1.bf16.msra.mxu0 0
        %1807 = vmatprep.subr.bf16.mxu0 0
        %1808 = vmatpush1.bf16.msra.mxu0 0
        %1809 = vmatprep.subr.bf16.mxu0 0
        %1810 = vmatpush1.bf16.msra.mxu0 0
        %1811 = vmatprep.mubr.bf16.mxu0 0
        %1812 = vmatmul.mubr.bf16.gmra.mrb[0].mxu0 %v1396
        %v1813 = vpop.f32.mrb[0].mxu0
        %v1814 = vadd.f32 0.0, %v1813
        %v1815 = vpop.f32.mrb[0].mxu0
        %v1816 = vpop.f32.mrb[0].mxu0
        %v1817 = vadd.f32 0.0, %v1816
        %v1818 = vpop.f32.mrb[0].mxu0
        %1819 = vdwg.mxu0
        %v1820 = vadd.f32 %v1066, %v1436
        %v1821 = vadd.f32 %v1069, %v1439
        %v1822 = vadd.f32 %v1110, %v1490
        %v1823 = vadd.f32 %v1113, %v1493
        %v1824 = vadd.f32 %v1154, %v1544
        %v1825 = vadd.f32 %v1157, %v1547
        %v1826 = vadd.f32 %v1198, %v1598
        %v1827 = vadd.f32 %v1201, %v1601
        %v1828 = vadd.f32 %v1242, %v1652
        %v1829 = vadd.f32 %v1245, %v1655
        %v1830 = vadd.f32 %v1286, %v1706
        %v1831 = vadd.f32 %v1289, %v1709
        %v1832 = vadd.f32 %v1330, %v1760
        %v1833 = vadd.f32 %v1333, %v1763
        %v1834 = vadd.f32 %v1374, %v1814
        %v1835 = vadd.f32 %v1377, %v1817
        %v1838 = vunpack.c.l.b16 %v646
        %v1839 = vunpack.c.l.b16 %v647
        %v1840 = vpack.c.b16 %v1839, %v1838
        %v1842 = vsel %vm663, %v1840, 0
        %v1845 = vsel %vm667, %v604, 0
        %1847 = vmatprep.subr.bf16.mxu0 0
        %1848 = vmatpush1.bf16.msra.mxu0 %v1845
        %1849 = vmatprep.subr.bf16.mxu0 0
        %1850 = vmatpush1.bf16.msra.mxu0 0
        %1851 = vmatprep.subr.bf16.mxu0 0
        %1852 = vmatpush1.bf16.msra.mxu0 0
        %1853 = vmatprep.subr.bf16.mxu0 0
        %1854 = vmatpush1.bf16.msra.mxu0 0
        %1855 = vmatprep.subr.bf16.mxu0 0
        %1856 = vmatpush1.bf16.msra.mxu0 0
        %1857 = vmatprep.subr.bf16.mxu0 0
        %1858 = vmatpush1.bf16.msra.mxu0 0
        %1859 = vmatprep.subr.bf16.mxu0 0
        %1860 = vmatpush1.bf16.msra.mxu0 0
        %1861 = vmatprep.subr.bf16.mxu0 0
        %1862 = vmatpush1.bf16.msra.mxu0 0
        %1863 = vmatprep.subr.bf16.mxu0 0
        %1864 = vmatpush1.bf16.msra.mxu0 0
        %1865 = vmatprep.subr.bf16.mxu0 0
        %1866 = vmatpush1.bf16.msra.mxu0 0
        %1867 = vmatprep.subr.bf16.mxu0 0
        %1868 = vmatpush1.bf16.msra.mxu0 0
        %1869 = vmatprep.subr.bf16.mxu0 0
        %1870 = vmatpush1.bf16.msra.mxu0 0
        %1871 = vmatprep.subr.bf16.mxu0 0
        %1872 = vmatpush1.bf16.msra.mxu0 0
        %1873 = vmatprep.subr.bf16.mxu0 0
        %1874 = vmatpush1.bf16.msra.mxu0 0
        %1875 = vmatprep.subr.bf16.mxu0 0
        %1876 = vmatpush1.bf16.msra.mxu0 0
        %1877 = vmatprep.subr.bf16.mxu0 0
        %1878 = vmatpush1.bf16.msra.mxu0 0
        %1879 = vmatprep.mubr.bf16.mxu0 0
        %1880 = vmatmul.mubr.bf16.gmra.mrb[0].mxu0 %v1842
        %v1881 = vpop.f32.mrb[0].mxu0
        %v1882 = vadd.f32 0.0, %v1881
        %v1883 = vpop.f32.mrb[0].mxu0
        %v1884 = vpop.f32.mrb[0].mxu0
        %v1885 = vadd.f32 0.0, %v1884
        %v1886 = vpop.f32.mrb[0].mxu0
        %1887 = vdwg.mxu0
        %v1889 = vsel %vm667, %v605, 0
        %1891 = vmatprep.subr.bf16.mxu0 0
        %1892 = vmatpush1.bf16.msra.mxu0 %v1889
        %1893 = vmatprep.subr.bf16.mxu0 0
        %1894 = vmatpush1.bf16.msra.mxu0 0
        %1895 = vmatprep.subr.bf16.mxu0 0
        %1896 = vmatpush1.bf16.msra.mxu0 0
        %1897 = vmatprep.subr.bf16.mxu0 0
        %1898 = vmatpush1.bf16.msra.mxu0 0
        %1899 = vmatprep.subr.bf16.mxu0 0
        %1900 = vmatpush1.bf16.msra.mxu0 0
        %1901 = vmatprep.subr.bf16.mxu0 0
        %1902 = vmatpush1.bf16.msra.mxu0 0
        %1903 = vmatprep.subr.bf16.mxu0 0
        %1904 = vmatpush1.bf16.msra.mxu0 0
        %1905 = vmatprep.subr.bf16.mxu0 0
        %1906 = vmatpush1.bf16.msra.mxu0 0
        %1907 = vmatprep.subr.bf16.mxu0 0
        %1908 = vmatpush1.bf16.msra.mxu0 0
        %1909 = vmatprep.subr.bf16.mxu0 0
        %1910 = vmatpush1.bf16.msra.mxu0 0
        %1911 = vmatprep.subr.bf16.mxu0 0
        %1912 = vmatpush1.bf16.msra.mxu0 0
        %1913 = vmatprep.subr.bf16.mxu0 0
        %1914 = vmatpush1.bf16.msra.mxu0 0
        %1915 = vmatprep.subr.bf16.mxu0 0
        %1916 = vmatpush1.bf16.msra.mxu0 0
        %1917 = vmatprep.subr.bf16.mxu0 0
        %1918 = vmatpush1.bf16.msra.mxu0 0
        %1919 = vmatprep.subr.bf16.mxu0 0
        %1920 = vmatpush1.bf16.msra.mxu0 0
        %1921 = vmatprep.subr.bf16.mxu0 0
        %1922 = vmatpush1.bf16.msra.mxu0 0
        %1923 = vmatprep.mubr.bf16.mxu0 0
        %1924 = vmatmul.mubr.bf16.gmra.mrb[0].mxu0 %v1842
        %v1925 = vpop.f32.mrb[0].mxu0
        %v1926 = vadd.f32 0.0, %v1925
        %v1927 = vpop.f32.mrb[0].mxu0
        %v1928 = vpop.f32.mrb[0].mxu0
        %v1929 = vadd.f32 0.0, %v1928
        %v1930 = vpop.f32.mrb[0].mxu0
        %1931 = vdwg.mxu0
        %v1933 = vsel %vm667, %v606, 0
        %1935 = vmatprep.subr.bf16.mxu0 0
        %1936 = vmatpush1.bf16.msra.mxu0 %v1933
        %1937 = vmatprep.subr.bf16.mxu0 0
        %1938 = vmatpush1.bf16.msra.mxu0 0
        %1939 = vmatprep.subr.bf16.mxu0 0
        %1940 = vmatpush1.bf16.msra.mxu0 0
        %1941 = vmatprep.subr.bf16.mxu0 0
        %1942 = vmatpush1.bf16.msra.mxu0 0
        %1943 = vmatprep.subr.bf16.mxu0 0
        %1944 = vmatpush1.bf16.msra.mxu0 0
        %1945 = vmatprep.subr.bf16.mxu0 0
        %1946 = vmatpush1.bf16.msra.mxu0 0
        %1947 = vmatprep.subr.bf16.mxu0 0
        %1948 = vmatpush1.bf16.msra.mxu0 0
        %1949 = vmatprep.subr.bf16.mxu0 0
        %1950 = vmatpush1.bf16.msra.mxu0 0
        %1951 = vmatprep.subr.bf16.mxu0 0
        %1952 = vmatpush1.bf16.msra.mxu0 0
        %1953 = vmatprep.subr.bf16.mxu0 0
        %1954 = vmatpush1.bf16.msra.mxu0 0
        %1955 = vmatprep.subr.bf16.mxu0 0
        %1956 = vmatpush1.bf16.msra.mxu0 0
        %1957 = vmatprep.subr.bf16.mxu0 0
        %1958 = vmatpush1.bf16.msra.mxu0 0
        %1959 = vmatprep.subr.bf16.mxu0 0
        %1960 = vmatpush1.bf16.msra.mxu0 0
        %1961 = vmatprep.subr.bf16.mxu0 0
        %1962 = vmatpush1.bf16.msra.mxu0 0
        %1963 = vmatprep.subr.bf16.mxu0 0
        %1964 = vmatpush1.bf16.msra.mxu0 0
        %1965 = vmatprep.subr.bf16.mxu0 0
        %1966 = vmatpush1.bf16.msra.mxu0 0
        %1967 = vmatprep.mubr.bf16.mxu0 0
        %1968 = vmatmul.mubr.bf16.gmra.mrb[0].mxu0 %v1842
        %v1969 = vpop.f32.mrb[0].mxu0
        %v1970 = vadd.f32 0.0, %v1969
        %v1971 = vpop.f32.mrb[0].mxu0
        %v1972 = vpop.f32.mrb[0].mxu0
        %v1973 = vadd.f32 0.0, %v1972
        %v1974 = vpop.f32.mrb[0].mxu0
        %1975 = vdwg.mxu0
        %v1977 = vsel %vm667, %v607, 0
        %1979 = vmatprep.subr.bf16.mxu0 0
        %1980 = vmatpush1.bf16.msra.mxu0 %v1977
        %1981 = vmatprep.subr.bf16.mxu0 0
        %1982 = vmatpush1.bf16.msra.mxu0 0
        %1983 = vmatprep.subr.bf16.mxu0 0
        %1984 = vmatpush1.bf16.msra.mxu0 0
        %1985 = vmatprep.subr.bf16.mxu0 0
        %1986 = vmatpush1.bf16.msra.mxu0 0
        %1987 = vmatprep.subr.bf16.mxu0 0
        %1988 = vmatpush1.bf16.msra.mxu0 0
        %1989 = vmatprep.subr.bf16.mxu0 0
        %1990 = vmatpush1.bf16.msra.mxu0 0
        %1991 = vmatprep.subr.bf16.mxu0 0
        %1992 = vmatpush1.bf16.msra.mxu0 0
        %1993 = vmatprep.subr.bf16.mxu0 0
        %1994 = vmatpush1.bf16.msra.mxu0 0
        %1995 = vmatprep.subr.bf16.mxu0 0
        %1996 = vmatpush1.bf16.msra.mxu0 0
        %1997 = vmatprep.subr.bf16.mxu0 0
        %1998 = vmatpush1.bf16.msra.mxu0 0
        %1999 = vmatprep.subr.bf16.mxu0 0
        %2000 = vmatpush1.bf16.msra.mxu0 0
        %2001 = vmatprep.subr.bf16.mxu0 0
        %2002 = vmatpush1.bf16.msra.mxu0 0
        %2003 = vmatprep.subr.bf16.mxu0 0
        %2004 = vmatpush1.bf16.msra.mxu0 0
        %2005 = vmatprep.subr.bf16.mxu0 0
        %2006 = vmatpush1.bf16.msra.mxu0 0
        %2007 = vmatprep.subr.bf16.mxu0 0
        %2008 = vmatpush1.bf16.msra.mxu0 0
        %2009 = vmatprep.subr.bf16.mxu0 0
        %2010 = vmatpush1.bf16.msra.mxu0 0
        %2011 = vmatprep.mubr.bf16.mxu0 0
        %2012 = vmatmul.mubr.bf16.gmra.mrb[0].mxu0 %v1842
        %v2013 = vpop.f32.mrb[0].mxu0
        %v2014 = vadd.f32 0.0, %v2013
        %v2015 = vpop.f32.mrb[0].mxu0
        %v2016 = vpop.f32.mrb[0].mxu0
        %v2017 = vadd.f32 0.0, %v2016
        %v2018 = vpop.f32.mrb[0].mxu0
        %2019 = vdwg.mxu0
        %v2021 = vsel %vm667, %v608, 0
        %2023 = vmatprep.subr.bf16.mxu0 0
        %2024 = vmatpush1.bf16.msra.mxu0 %v2021
        %2025 = vmatprep.subr.bf16.mxu0 0
        %2026 = vmatpush1.bf16.msra.mxu0 0
        %2027 = vmatprep.subr.bf16.mxu0 0
        %2028 = vmatpush1.bf16.msra.mxu0 0
        %2029 = vmatprep.subr.bf16.mxu0 0
        %2030 = vmatpush1.bf16.msra.mxu0 0
        %2031 = vmatprep.subr.bf16.mxu0 0
        %2032 = vmatpush1.bf16.msra.mxu0 0
        %2033 = vmatprep.subr.bf16.mxu0 0
        %2034 = vmatpush1.bf16.msra.mxu0 0
        %2035 = vmatprep.subr.bf16.mxu0 0
        %2036 = vmatpush1.bf16.msra.mxu0 0
        %2037 = vmatprep.subr.bf16.mxu0 0
        %2038 = vmatpush1.bf16.msra.mxu0 0
        %2039 = vmatprep.subr.bf16.mxu0 0
        %2040 = vmatpush1.bf16.msra.mxu0 0
        %2041 = vmatprep.subr.bf16.mxu0 0
        %2042 = vmatpush1.bf16.msra.mxu0 0
        %2043 = vmatprep.subr.bf16.mxu0 0
        %2044 = vmatpush1.bf16.msra.mxu0 0
        %2045 = vmatprep.subr.bf16.mxu0 0
        %2046 = vmatpush1.bf16.msra.mxu0 0
        %2047 = vmatprep.subr.bf16.mxu0 0
        %2048 = vmatpush1.bf16.msra.mxu0 0
        %2049 = vmatprep.subr.bf16.mxu0 0
        %2050 = vmatpush1.bf16.msra.mxu0 0
        %2051 = vmatprep.subr.bf16.mxu0 0
        %2052 = vmatpush1.bf16.msra.mxu0 0
        %2053 = vmatprep.subr.bf16.mxu0 0
        %2054 = vmatpush1.bf16.msra.mxu0 0
        %2055 = vmatprep.mubr.bf16.mxu0 0
        %2056 = vmatmul.mubr.bf16.gmra.mrb[0].mxu0 %v1842
        %v2057 = vpop.f32.mrb[0].mxu0
        %v2058 = vadd.f32 0.0, %v2057
        %v2059 = vpop.f32.mrb[0].mxu0
        %v2060 = vpop.f32.mrb[0].mxu0
        %v2061 = vadd.f32 0.0, %v2060
        %v2062 = vpop.f32.mrb[0].mxu0
        %2063 = vdwg.mxu0
        %v2065 = vsel %vm667, %v609, 0
        %2067 = vmatprep.subr.bf16.mxu0 0
        %2068 = vmatpush1.bf16.msra.mxu0 %v2065
        %2069 = vmatprep.subr.bf16.mxu0 0
        %2070 = vmatpush1.bf16.msra.mxu0 0
        %2071 = vmatprep.subr.bf16.mxu0 0
        %2072 = vmatpush1.bf16.msra.mxu0 0
        %2073 = vmatprep.subr.bf16.mxu0 0
        %2074 = vmatpush1.bf16.msra.mxu0 0
        %2075 = vmatprep.subr.bf16.mxu0 0
        %2076 = vmatpush1.bf16.msra.mxu0 0
        %2077 = vmatprep.subr.bf16.mxu0 0
        %2078 = vmatpush1.bf16.msra.mxu0 0
        %2079 = vmatprep.subr.bf16.mxu0 0
        %2080 = vmatpush1.bf16.msra.mxu0 0
        %2081 = vmatprep.subr.bf16.mxu0 0
        %2082 = vmatpush1.bf16.msra.mxu0 0
        %2083 = vmatprep.subr.bf16.mxu0 0
        %2084 = vmatpush1.bf16.msra.mxu0 0
        %2085 = vmatprep.subr.bf16.mxu0 0
        %2086 = vmatpush1.bf16.msra.mxu0 0
        %2087 = vmatprep.subr.bf16.mxu0 0
        %2088 = vmatpush1.bf16.msra.mxu0 0
        %2089 = vmatprep.subr.bf16.mxu0 0
        %2090 = vmatpush1.bf16.msra.mxu0 0
        %2091 = vmatprep.subr.bf16.mxu0 0
        %2092 = vmatpush1.bf16.msra.mxu0 0
        %2093 = vmatprep.subr.bf16.mxu0 0
        %2094 = vmatpush1.bf16.msra.mxu0 0
        %2095 = vmatprep.subr.bf16.mxu0 0
        %2096 = vmatpush1.bf16.msra.mxu0 0
        %2097 = vmatprep.subr.bf16.mxu0 0
        %2098 = vmatpush1.bf16.msra.mxu0 0
        %2099 = vmatprep.mubr.bf16.mxu0 0
        %2100 = vmatmul.mubr.bf16.gmra.mrb[0].mxu0 %v1842
        %v2101 = vpop.f32.mrb[0].mxu0
        %v2102 = vadd.f32 0.0, %v2101
        %v2103 = vpop.f32.mrb[0].mxu0
        %v2104 = vpop.f32.mrb[0].mxu0
        %v2105 = vadd.f32 0.0, %v2104
        %v2106 = vpop.f32.mrb[0].mxu0
        %2107 = vdwg.mxu0
        %v2109 = vsel %vm667, %v610, 0
        %2111 = vmatprep.subr.bf16.mxu0 0
        %2112 = vmatpush1.bf16.msra.mxu0 %v2109
        %2113 = vmatprep.subr.bf16.mxu0 0
        %2114 = vmatpush1.bf16.msra.mxu0 0
        %2115 = vmatprep.subr.bf16.mxu0 0
        %2116 = vmatpush1.bf16.msra.mxu0 0
        %2117 = vmatprep.subr.bf16.mxu0 0
        %2118 = vmatpush1.bf16.msra.mxu0 0
        %2119 = vmatprep.subr.bf16.mxu0 0
        %2120 = vmatpush1.bf16.msra.mxu0 0
        %2121 = vmatprep.subr.bf16.mxu0 0
        %2122 = vmatpush1.bf16.msra.mxu0 0
        %2123 = vmatprep.subr.bf16.mxu0 0
        %2124 = vmatpush1.bf16.msra.mxu0 0
        %2125 = vmatprep.subr.bf16.mxu0 0
        %2126 = vmatpush1.bf16.msra.mxu0 0
        %2127 = vmatprep.subr.bf16.mxu0 0
        %2128 = vmatpush1.bf16.msra.mxu0 0
        %2129 = vmatprep.subr.bf16.mxu0 0
        %2130 = vmatpush1.bf16.msra.mxu0 0
        %2131 = vmatprep.subr.bf16.mxu0 0
        %2132 = vmatpush1.bf16.msra.mxu0 0
        %2133 = vmatprep.subr.bf16.mxu0 0
        %2134 = vmatpush1.bf16.msra.mxu0 0
        %2135 = vmatprep.subr.bf16.mxu0 0
        %2136 = vmatpush1.bf16.msra.mxu0 0
        %2137 = vmatprep.subr.bf16.mxu0 0
        %2138 = vmatpush1.bf16.msra.mxu0 0
        %2139 = vmatprep.subr.bf16.mxu0 0
        %2140 = vmatpush1.bf16.msra.mxu0 0
        %2141 = vmatprep.subr.bf16.mxu0 0
        %2142 = vmatpush1.bf16.msra.mxu0 0
        %2143 = vmatprep.mubr.bf16.mxu0 0
        %2144 = vmatmul.mubr.bf16.gmra.mrb[0].mxu0 %v1842
        %v2145 = vpop.f32.mrb[0].mxu0
        %v2146 = vadd.f32 0.0, %v2145
        %v2147 = vpop.f32.mrb[0].mxu0
        %v2148 = vpop.f32.mrb[0].mxu0
        %v2149 = vadd.f32 0.0, %v2148
        %v2150 = vpop.f32.mrb[0].mxu0
        %2151 = vdwg.mxu0
        %v2153 = vsel %vm667, %v611, 0
        %2155 = vmatprep.subr.bf16.mxu0 0
        %2156 = vmatpush1.bf16.msra.mxu0 %v2153
        %2157 = vmatprep.subr.bf16.mxu0 0
        %2158 = vmatpush1.bf16.msra.mxu0 0
        %2159 = vmatprep.subr.bf16.mxu0 0
        %2160 = vmatpush1.bf16.msra.mxu0 0
        %2161 = vmatprep.subr.bf16.mxu0 0
        %2162 = vmatpush1.bf16.msra.mxu0 0
        %2163 = vmatprep.subr.bf16.mxu0 0
        %2164 = vmatpush1.bf16.msra.mxu0 0
        %2165 = vmatprep.subr.bf16.mxu0 0
        %2166 = vmatpush1.bf16.msra.mxu0 0
        %2167 = vmatprep.subr.bf16.mxu0 0
        %2168 = vmatpush1.bf16.msra.mxu0 0
        %2169 = vmatprep.subr.bf16.mxu0 0
        %2170 = vmatpush1.bf16.msra.mxu0 0
        %2171 = vmatprep.subr.bf16.mxu0 0
        %2172 = vmatpush1.bf16.msra.mxu0 0
        %2173 = vmatprep.subr.bf16.mxu0 0
        %2174 = vmatpush1.bf16.msra.mxu0 0
        %2175 = vmatprep.subr.bf16.mxu0 0
        %2176 = vmatpush1.bf16.msra.mxu0 0
        %2177 = vmatprep.subr.bf16.mxu0 0
        %2178 = vmatpush1.bf16.msra.mxu0 0
        %2179 = vmatprep.subr.bf16.mxu0 0
        %2180 = vmatpush1.bf16.msra.mxu0 0
        %2181 = vmatprep.subr.bf16.mxu0 0
        %2182 = vmatpush1.bf16.msra.mxu0 0
        %2183 = vmatprep.subr.bf16.mxu0 0
        %2184 = vmatpush1.bf16.msra.mxu0 0
        %2185 = vmatprep.subr.bf16.mxu0 0
        %2186 = vmatpush1.bf16.msra.mxu0 0
        %2187 = vmatprep.mubr.bf16.mxu0 0
        %2188 = vmatmul.mubr.bf16.gmra.mrb[0].mxu0 %v1842
        %v2189 = vpop.f32.mrb[0].mxu0
        %v2190 = vadd.f32 0.0, %v2189
        %v2191 = vpop.f32.mrb[0].mxu0
        %v2192 = vpop.f32.mrb[0].mxu0
        %v2193 = vadd.f32 0.0, %v2192
        %v2194 = vpop.f32.mrb[0].mxu0
        %2195 = vdwg.mxu0
        %v2196 = vadd.f32 %v1820, %v1882
        %v2197 = vadd.f32 %v1821, %v1885
        %v2198 = vadd.f32 %v1822, %v1926
        %v2199 = vadd.f32 %v1823, %v1929
        %v2200 = vadd.f32 %v1824, %v1970
        %v2201 = vadd.f32 %v1825, %v1973
        %v2202 = vadd.f32 %v1826, %v2014
        %v2203 = vadd.f32 %v1827, %v2017
        %v2204 = vadd.f32 %v1828, %v2058
        %v2205 = vadd.f32 %v1829, %v2061
        %v2206 = vadd.f32 %v1830, %v2102
        %v2207 = vadd.f32 %v1831, %v2105
        %v2208 = vadd.f32 %v1832, %v2146
        %v2209 = vadd.f32 %v1833, %v2149
        %v2210 = vadd.f32 %v1834, %v2190
        %v2211 = vadd.f32 %v1835, %v2193
        %v2214 = vunpack.c.l.b16 %v648
        %v2215 = vunpack.c.l.b16 %v649
        %v2216 = vpack.c.b16 %v2215, %v2214
        %v2218 = vsel %vm663, %v2216, 0
        %v2221 = vsel %vm667, %v613, 0
        %2223 = vmatprep.subr.bf16.mxu0 0
        %2224 = vmatpush1.bf16.msra.mxu0 %v2221
        %2225 = vmatprep.subr.bf16.mxu0 0
        %2226 = vmatpush1.bf16.msra.mxu0 0
        %2227 = vmatprep.subr.bf16.mxu0 0
        %2228 = vmatpush1.bf16.msra.mxu0 0
        %2229 = vmatprep.subr.bf16.mxu0 0
        %2230 = vmatpush1.bf16.msra.mxu0 0
        %2231 = vmatprep.subr.bf16.mxu0 0
        %2232 = vmatpush1.bf16.msra.mxu0 0
        %2233 = vmatprep.subr.bf16.mxu0 0
        %2234 = vmatpush1.bf16.msra.mxu0 0
        %2235 = vmatprep.subr.bf16.mxu0 0
        %2236 = vmatpush1.bf16.msra.mxu0 0
        %2237 = vmatprep.subr.bf16.mxu0 0
        %2238 = vmatpush1.bf16.msra.mxu0 0
        %2239 = vmatprep.subr.bf16.mxu0 0
        %2240 = vmatpush1.bf16.msra.mxu0 0
        %2241 = vmatprep.subr.bf16.mxu0 0
        %2242 = vmatpush1.bf16.msra.mxu0 0
        %2243 = vmatprep.subr.bf16.mxu0 0
        %2244 = vmatpush1.bf16.msra.mxu0 0
        %2245 = vmatprep.subr.bf16.mxu0 0
        %2246 = vmatpush1.bf16.msra.mxu0 0
        %2247 = vmatprep.subr.bf16.mxu0 0
        %2248 = vmatpush1.bf16.msra.mxu0 0
        %2249 = vmatprep.subr.bf16.mxu0 0
        %2250 = vmatpush1.bf16.msra.mxu0 0
        %2251 = vmatprep.subr.bf16.mxu0 0
        %2252 = vmatpush1.bf16.msra.mxu0 0
        %2253 = vmatprep.subr.bf16.mxu0 0
        %2254 = vmatpush1.bf16.msra.mxu0 0
        %2255 = vmatprep.mubr.bf16.mxu0 0
        %2256 = vmatmul.mubr.bf16.gmra.mrb[0].mxu0 %v2218
        %v2257 = vpop.f32.mrb[0].mxu0
        %v2258 = vadd.f32 0.0, %v2257
        %v2259 = vpop.f32.mrb[0].mxu0
        %v2260 = vpop.f32.mrb[0].mxu0
        %v2261 = vadd.f32 0.0, %v2260
        %v2262 = vpop.f32.mrb[0].mxu0
        %2263 = vdwg.mxu0
        %v2265 = vsel %vm667, %v614, 0
        %2267 = vmatprep.subr.bf16.mxu0 0
        %2268 = vmatpush1.bf16.msra.mxu0 %v2265
        %2269 = vmatprep.subr.bf16.mxu0 0
        %2270 = vmatpush1.bf16.msra.mxu0 0
        %2271 = vmatprep.subr.bf16.mxu0 0
        %2272 = vmatpush1.bf16.msra.mxu0 0
        %2273 = vmatprep.subr.bf16.mxu0 0
        %2274 = vmatpush1.bf16.msra.mxu0 0
        %2275 = vmatprep.subr.bf16.mxu0 0
        %2276 = vmatpush1.bf16.msra.mxu0 0
        %2277 = vmatprep.subr.bf16.mxu0 0
        %2278 = vmatpush1.bf16.msra.mxu0 0
        %2279 = vmatprep.subr.bf16.mxu0 0
        %2280 = vmatpush1.bf16.msra.mxu0 0
        %2281 = vmatprep.subr.bf16.mxu0 0
        %2282 = vmatpush1.bf16.msra.mxu0 0
        %2283 = vmatprep.subr.bf16.mxu0 0
        %2284 = vmatpush1.bf16.msra.mxu0 0
        %2285 = vmatprep.subr.bf16.mxu0 0
        %2286 = vmatpush1.bf16.msra.mxu0 0
        %2287 = vmatprep.subr.bf16.mxu0 0
        %2288 = vmatpush1.bf16.msra.mxu0 0
        %2289 = vmatprep.subr.bf16.mxu0 0
        %2290 = vmatpush1.bf16.msra.mxu0 0
        %2291 = vmatprep.subr.bf16.mxu0 0
        %2292 = vmatpush1.bf16.msra.mxu0 0
        %2293 = vmatprep.subr.bf16.mxu0 0
        %2294 = vmatpush1.bf16.msra.mxu0 0
        %2295 = vmatprep.subr.bf16.mxu0 0
        %2296 = vmatpush1.bf16.msra.mxu0 0
        %2297 = vmatprep.subr.bf16.mxu0 0
        %2298 = vmatpush1.bf16.msra.mxu0 0
        %2299 = vmatprep.mubr.bf16.mxu0 0
        %2300 = vmatmul.mubr.bf16.gmra.mrb[0].mxu0 %v2218
        %v2301 = vpop.f32.mrb[0].mxu0
        %v2302 = vadd.f32 0.0, %v2301
        %v2303 = vpop.f32.mrb[0].mxu0
        %v2304 = vpop.f32.mrb[0].mxu0
        %v2305 = vadd.f32 0.0, %v2304
        %v2306 = vpop.f32.mrb[0].mxu0
        %2307 = vdwg.mxu0
        %v2309 = vsel %vm667, %v615, 0
        %2311 = vmatprep.subr.bf16.mxu0 0
        %2312 = vmatpush1.bf16.msra.mxu0 %v2309
        %2313 = vmatprep.subr.bf16.mxu0 0
        %2314 = vmatpush1.bf16.msra.mxu0 0
        %2315 = vmatprep.subr.bf16.mxu0 0
        %2316 = vmatpush1.bf16.msra.mxu0 0
        %2317 = vmatprep.subr.bf16.mxu0 0
        %2318 = vmatpush1.bf16.msra.mxu0 0
        %2319 = vmatprep.subr.bf16.mxu0 0
        %2320 = vmatpush1.bf16.msra.mxu0 0
        %2321 = vmatprep.subr.bf16.mxu0 0
        %2322 = vmatpush1.bf16.msra.mxu0 0
        %2323 = vmatprep.subr.bf16.mxu0 0
        %2324 = vmatpush1.bf16.msra.mxu0 0
        %2325 = vmatprep.subr.bf16.mxu0 0
        %2326 = vmatpush1.bf16.msra.mxu0 0
        %2327 = vmatprep.subr.bf16.mxu0 0
        %2328 = vmatpush1.bf16.msra.mxu0 0
        %2329 = vmatprep.subr.bf16.mxu0 0
        %2330 = vmatpush1.bf16.msra.mxu0 0
        %2331 = vmatprep.subr.bf16.mxu0 0
        %2332 = vmatpush1.bf16.msra.mxu0 0
        %2333 = vmatprep.subr.bf16.mxu0 0
        %2334 = vmatpush1.bf16.msra.mxu0 0
        %2335 = vmatprep.subr.bf16.mxu0 0
        %2336 = vmatpush1.bf16.msra.mxu0 0
        %2337 = vmatprep.subr.bf16.mxu0 0
        %2338 = vmatpush1.bf16.msra.mxu0 0
        %2339 = vmatprep.subr.bf16.mxu0 0
        %2340 = vmatpush1.bf16.msra.mxu0 0
        %2341 = vmatprep.subr.bf16.mxu0 0
        %2342 = vmatpush1.bf16.msra.mxu0 0
        %2343 = vmatprep.mubr.bf16.mxu0 0
        %2344 = vmatmul.mubr.bf16.gmra.mrb[0].mxu0 %v2218
        %v2345 = vpop.f32.mrb[0].mxu0
        %v2346 = vadd.f32 0.0, %v2345
        %v2347 = vpop.f32.mrb[0].mxu0
        %v2348 = vpop.f32.mrb[0].mxu0
        %v2349 = vadd.f32 0.0, %v2348
        %v2350 = vpop.f32.mrb[0].mxu0
        %2351 = vdwg.mxu0
        %v2353 = vsel %vm667, %v616, 0
        %2355 = vmatprep.subr.bf16.mxu0 0
        %2356 = vmatpush1.bf16.msra.mxu0 %v2353
        %2357 = vmatprep.subr.bf16.mxu0 0
        %2358 = vmatpush1.bf16.msra.mxu0 0
        %2359 = vmatprep.subr.bf16.mxu0 0
        %2360 = vmatpush1.bf16.msra.mxu0 0
        %2361 = vmatprep.subr.bf16.mxu0 0
        %2362 = vmatpush1.bf16.msra.mxu0 0
        %2363 = vmatprep.subr.bf16.mxu0 0
        %2364 = vmatpush1.bf16.msra.mxu0 0
        %2365 = vmatprep.subr.bf16.mxu0 0
        %2366 = vmatpush1.bf16.msra.mxu0 0
        %2367 = vmatprep.subr.bf16.mxu0 0
        %2368 = vmatpush1.bf16.msra.mxu0 0
        %2369 = vmatprep.subr.bf16.mxu0 0
        %2370 = vmatpush1.bf16.msra.mxu0 0
        %2371 = vmatprep.subr.bf16.mxu0 0
        %2372 = vmatpush1.bf16.msra.mxu0 0
        %2373 = vmatprep.subr.bf16.mxu0 0
        %2374 = vmatpush1.bf16.msra.mxu0 0
        %2375 = vmatprep.subr.bf16.mxu0 0
        %2376 = vmatpush1.bf16.msra.mxu0 0
        %2377 = vmatprep.subr.bf16.mxu0 0
        %2378 = vmatpush1.bf16.msra.mxu0 0
        %2379 = vmatprep.subr.bf16.mxu0 0
        %2380 = vmatpush1.bf16.msra.mxu0 0
        %2381 = vmatprep.subr.bf16.mxu0 0
        %2382 = vmatpush1.bf16.msra.mxu0 0
        %2383 = vmatprep.subr.bf16.mxu0 0
        %2384 = vmatpush1.bf16.msra.mxu0 0
        %2385 = vmatprep.subr.bf16.mxu0 0
        %2386 = vmatpush1.bf16.msra.mxu0 0
        %2387 = vmatprep.mubr.bf16.mxu0 0
        %2388 = vmatmul.mubr.bf16.gmra.mrb[0].mxu0 %v2218
        %v2389 = vpop.f32.mrb[0].mxu0
        %v2390 = vadd.f32 0.0, %v2389
        %v2391 = vpop.f32.mrb[0].mxu0
        %v2392 = vpop.f32.mrb[0].mxu0
        %v2393 = vadd.f32 0.0, %v2392
        %v2394 = vpop.f32.mrb[0].mxu0
        %2395 = vdwg.mxu0
        %v2397 = vsel %vm667, %v617, 0
        %2399 = vmatprep.subr.bf16.mxu0 0
        %2400 = vmatpush1.bf16.msra.mxu0 %v2397
        %2401 = vmatprep.subr.bf16.mxu0 0
        %2402 = vmatpush1.bf16.msra.mxu0 0
        %2403 = vmatprep.subr.bf16.mxu0 0
        %2404 = vmatpush1.bf16.msra.mxu0 0
        %2405 = vmatprep.subr.bf16.mxu0 0
        %2406 = vmatpush1.bf16.msra.mxu0 0
        %2407 = vmatprep.subr.bf16.mxu0 0
        %2408 = vmatpush1.bf16.msra.mxu0 0
        %2409 = vmatprep.subr.bf16.mxu0 0
        %2410 = vmatpush1.bf16.msra.mxu0 0
        %2411 = vmatprep.subr.bf16.mxu0 0
        %2412 = vmatpush1.bf16.msra.mxu0 0
        %2413 = vmatprep.subr.bf16.mxu0 0
        %2414 = vmatpush1.bf16.msra.mxu0 0
        %2415 = vmatprep.subr.bf16.mxu0 0
        %2416 = vmatpush1.bf16.msra.mxu0 0
        %2417 = vmatprep.subr.bf16.mxu0 0
        %2418 = vmatpush1.bf16.msra.mxu0 0
        %2419 = vmatprep.subr.bf16.mxu0 0
        %2420 = vmatpush1.bf16.msra.mxu0 0
        %2421 = vmatprep.subr.bf16.mxu0 0
        %2422 = vmatpush1.bf16.msra.mxu0 0
        %2423 = vmatprep.subr.bf16.mxu0 0
        %2424 = vmatpush1.bf16.msra.mxu0 0
        %2425 = vmatprep.subr.bf16.mxu0 0
        %2426 = vmatpush1.bf16.msra.mxu0 0
        %2427 = vmatprep.subr.bf16.mxu0 0
        %2428 = vmatpush1.bf16.msra.mxu0 0
        %2429 = vmatprep.subr.bf16.mxu0 0
        %2430 = vmatpush1.bf16.msra.mxu0 0
        %2431 = vmatprep.mubr.bf16.mxu0 0
        %2432 = vmatmul.mubr.bf16.gmra.mrb[0].mxu0 %v2218
        %v2433 = vpop.f32.mrb[0].mxu0
        %v2434 = vadd.f32 0.0, %v2433
        %v2435 = vpop.f32.mrb[0].mxu0
        %v2436 = vpop.f32.mrb[0].mxu0
        %v2437 = vadd.f32 0.0, %v2436
        %v2438 = vpop.f32.mrb[0].mxu0
        %2439 = vdwg.mxu0
        %v2441 = vsel %vm667, %v618, 0
        %2443 = vmatprep.subr.bf16.mxu0 0
        %2444 = vmatpush1.bf16.msra.mxu0 %v2441
        %2445 = vmatprep.subr.bf16.mxu0 0
        %2446 = vmatpush1.bf16.msra.mxu0 0
        %2447 = vmatprep.subr.bf16.mxu0 0
        %2448 = vmatpush1.bf16.msra.mxu0 0
        %2449 = vmatprep.subr.bf16.mxu0 0
        %2450 = vmatpush1.bf16.msra.mxu0 0
        %2451 = vmatprep.subr.bf16.mxu0 0
        %2452 = vmatpush1.bf16.msra.mxu0 0
        %2453 = vmatprep.subr.bf16.mxu0 0
        %2454 = vmatpush1.bf16.msra.mxu0 0
        %2455 = vmatprep.subr.bf16.mxu0 0
        %2456 = vmatpush1.bf16.msra.mxu0 0
        %2457 = vmatprep.subr.bf16.mxu0 0
        %2458 = vmatpush1.bf16.msra.mxu0 0
        %2459 = vmatprep.subr.bf16.mxu0 0
        %2460 = vmatpush1.bf16.msra.mxu0 0
        %2461 = vmatprep.subr.bf16.mxu0 0
        %2462 = vmatpush1.bf16.msra.mxu0 0
        %2463 = vmatprep.subr.bf16.mxu0 0
        %2464 = vmatpush1.bf16.msra.mxu0 0
        %2465 = vmatprep.subr.bf16.mxu0 0
        %2466 = vmatpush1.bf16.msra.mxu0 0
        %2467 = vmatprep.subr.bf16.mxu0 0
        %2468 = vmatpush1.bf16.msra.mxu0 0
        %2469 = vmatprep.subr.bf16.mxu0 0
        %2470 = vmatpush1.bf16.msra.mxu0 0
        %2471 = vmatprep.subr.bf16.mxu0 0
        %2472 = vmatpush1.bf16.msra.mxu0 0
        %2473 = vmatprep.subr.bf16.mxu0 0
        %2474 = vmatpush1.bf16.msra.mxu0 0
        %2475 = vmatprep.mubr.bf16.mxu0 0
        %2476 = vmatmul.mubr.bf16.gmra.mrb[0].mxu0 %v2218
        %v2477 = vpop.f32.mrb[0].mxu0
        %v2478 = vadd.f32 0.0, %v2477
        %v2479 = vpop.f32.mrb[0].mxu0
        %v2480 = vpop.f32.mrb[0].mxu0
        %v2481 = vadd.f32 0.0, %v2480
        %v2482 = vpop.f32.mrb[0].mxu0
        %2483 = vdwg.mxu0
        %v2485 = vsel %vm667, %v619, 0
        %2487 = vmatprep.subr.bf16.mxu0 0
        %2488 = vmatpush1.bf16.msra.mxu0 %v2485
        %2489 = vmatprep.subr.bf16.mxu0 0
        %2490 = vmatpush1.bf16.msra.mxu0 0
        %2491 = vmatprep.subr.bf16.mxu0 0
        %2492 = vmatpush1.bf16.msra.mxu0 0
        %2493 = vmatprep.subr.bf16.mxu0 0
        %2494 = vmatpush1.bf16.msra.mxu0 0
        %2495 = vmatprep.subr.bf16.mxu0 0
        %2496 = vmatpush1.bf16.msra.mxu0 0
        %2497 = vmatprep.subr.bf16.mxu0 0
        %2498 = vmatpush1.bf16.msra.mxu0 0
        %2499 = vmatprep.subr.bf16.mxu0 0
        %2500 = vmatpush1.bf16.msra.mxu0 0
        %2501 = vmatprep.subr.bf16.mxu0 0
        %2502 = vmatpush1.bf16.msra.mxu0 0
        %2503 = vmatprep.subr.bf16.mxu0 0
        %2504 = vmatpush1.bf16.msra.mxu0 0
        %2505 = vmatprep.subr.bf16.mxu0 0
        %2506 = vmatpush1.bf16.msra.mxu0 0
        %2507 = vmatprep.subr.bf16.mxu0 0
        %2508 = vmatpush1.bf16.msra.mxu0 0
        %2509 = vmatprep.subr.bf16.mxu0 0
        %2510 = vmatpush1.bf16.msra.mxu0 0
        %2511 = vmatprep.subr.bf16.mxu0 0
        %2512 = vmatpush1.bf16.msra.mxu0 0
        %2513 = vmatprep.subr.bf16.mxu0 0
        %2514 = vmatpush1.bf16.msra.mxu0 0
        %2515 = vmatprep.subr.bf16.mxu0 0
        %2516 = vmatpush1.bf16.msra.mxu0 0
        %2517 = vmatprep.subr.bf16.mxu0 0
        %2518 = vmatpush1.bf16.msra.mxu0 0
        %2519 = vmatprep.mubr.bf16.mxu0 0
        %2520 = vmatmul.mubr.bf16.gmra.mrb[0].mxu0 %v2218
        %v2521 = vpop.f32.mrb[0].mxu0
        %v2522 = vadd.f32 0.0, %v2521
        %v2523 = vpop.f32.mrb[0].mxu0
        %v2524 = vpop.f32.mrb[0].mxu0
        %v2525 = vadd.f32 0.0, %v2524
        %v2526 = vpop.f32.mrb[0].mxu0
        %2527 = vdwg.mxu0
        %v2529 = vsel %vm667, %v620, 0
        %2531 = vmatprep.subr.bf16.mxu0 0
        %2532 = vmatpush1.bf16.msra.mxu0 %v2529
        %2533 = vmatprep.subr.bf16.mxu0 0
        %2534 = vmatpush1.bf16.msra.mxu0 0
        %2535 = vmatprep.subr.bf16.mxu0 0
        %2536 = vmatpush1.bf16.msra.mxu0 0
        %2537 = vmatprep.subr.bf16.mxu0 0
        %2538 = vmatpush1.bf16.msra.mxu0 0
        %2539 = vmatprep.subr.bf16.mxu0 0
        %2540 = vmatpush1.bf16.msra.mxu0 0
        %2541 = vmatprep.subr.bf16.mxu0 0
        %2542 = vmatpush1.bf16.msra.mxu0 0
        %2543 = vmatprep.subr.bf16.mxu0 0
        %2544 = vmatpush1.bf16.msra.mxu0 0
        %2545 = vmatprep.subr.bf16.mxu0 0
        %2546 = vmatpush1.bf16.msra.mxu0 0
        %2547 = vmatprep.subr.bf16.mxu0 0
        %2548 = vmatpush1.bf16.msra.mxu0 0
        %2549 = vmatprep.subr.bf16.mxu0 0
        %2550 = vmatpush1.bf16.msra.mxu0 0
        %2551 = vmatprep.subr.bf16.mxu0 0
        %2552 = vmatpush1.bf16.msra.mxu0 0
        %2553 = vmatprep.subr.bf16.mxu0 0
        %2554 = vmatpush1.bf16.msra.mxu0 0
        %2555 = vmatprep.subr.bf16.mxu0 0
        %2556 = vmatpush1.bf16.msra.mxu0 0
        %2557 = vmatprep.subr.bf16.mxu0 0
        %2558 = vmatpush1.bf16.msra.mxu0 0
        %2559 = vmatprep.subr.bf16.mxu0 0
        %2560 = vmatpush1.bf16.msra.mxu0 0
        %2561 = vmatprep.subr.bf16.mxu0 0
        %2562 = vmatpush1.bf16.msra.mxu0 0
        %2563 = vmatprep.mubr.bf16.mxu0 0
        %2564 = vmatmul.mubr.bf16.gmra.mrb[0].mxu0 %v2218
        %v2565 = vpop.f32.mrb[0].mxu0
        %v2566 = vadd.f32 0.0, %v2565
        %v2567 = vpop.f32.mrb[0].mxu0
        %v2568 = vpop.f32.mrb[0].mxu0
        %v2569 = vadd.f32 0.0, %v2568
        %v2570 = vpop.f32.mrb[0].mxu0
        %2571 = vdwg.mxu0
        %v2572 = vadd.f32 %v2196, %v2258
        %v2573 = vadd.f32 %v2197, %v2261
        %v2574 = vadd.f32 %v2198, %v2302
        %v2575 = vadd.f32 %v2199, %v2305
        %v2576 = vadd.f32 %v2200, %v2346
        %v2577 = vadd.f32 %v2201, %v2349
        %v2578 = vadd.f32 %v2202, %v2390
        %v2579 = vadd.f32 %v2203, %v2393
        %v2580 = vadd.f32 %v2204, %v2434
        %v2581 = vadd.f32 %v2205, %v2437
        %v2582 = vadd.f32 %v2206, %v2478
        %v2583 = vadd.f32 %v2207, %v2481
        %v2584 = vadd.f32 %v2208, %v2522
        %v2585 = vadd.f32 %v2209, %v2525
        %v2586 = vadd.f32 %v2210, %v2566
        %v2587 = vadd.f32 %v2211, %v2569
        %v2590 = vunpack.c.l.b16 %v650
        %v2591 = vunpack.c.l.b16 %v651
        %v2592 = vpack.c.b16 %v2591, %v2590
        %v2595 = vunpack.c.l.s4 1983009808
        %v2596 = vunpack.c.0.s8 %v2595
        %v2597 = vlaneseq
        %v2598 = vshrl.u32 %v2597, 7
        %v2599 = vsub.s32 %v2596, %v2598
        %v2600 = vrot.slane %v604, %v2599
        %2601 = vrot.lane.b32.xlu0 %v2600, 127
        %v2602 = vpop.permute.xlu0 %2601
        %v2604 = vsel %vm663, %v2592, 0
        %v2607 = vsel %vm667, %v2602, 0
        %2609 = vmatprep.subr.bf16.mxu0 0
        %2610 = vmatpush1.bf16.msra.mxu0 %v2607
        %2611 = vmatprep.subr.bf16.mxu0 0
        %2612 = vmatpush1.bf16.msra.mxu0 0
        %2613 = vmatprep.subr.bf16.mxu0 0
        %2614 = vmatpush1.bf16.msra.mxu0 0
        %2615 = vmatprep.subr.bf16.mxu0 0
        %2616 = vmatpush1.bf16.msra.mxu0 0
        %2617 = vmatprep.subr.bf16.mxu0 0
        %2618 = vmatpush1.bf16.msra.mxu0 0
        %2619 = vmatprep.subr.bf16.mxu0 0
        %2620 = vmatpush1.bf16.msra.mxu0 0
        %2621 = vmatprep.subr.bf16.mxu0 0
        %2622 = vmatpush1.bf16.msra.mxu0 0
        %2623 = vmatprep.subr.bf16.mxu0 0
        %2624 = vmatpush1.bf16.msra.mxu0 0
        %2625 = vmatprep.subr.bf16.mxu0 0
        %2626 = vmatpush1.bf16.msra.mxu0 0
        %2627 = vmatprep.subr.bf16.mxu0 0
        %2628 = vmatpush1.bf16.msra.mxu0 0
        %2629 = vmatprep.subr.bf16.mxu0 0
        %2630 = vmatpush1.bf16.msra.mxu0 0
        %2631 = vmatprep.subr.bf16.mxu0 0
        %2632 = vmatpush1.bf16.msra.mxu0 0
        %2633 = vmatprep.subr.bf16.mxu0 0
        %2634 = vmatpush1.bf16.msra.mxu0 0
        %2635 = vmatprep.subr.bf16.mxu0 0
        %2636 = vmatpush1.bf16.msra.mxu0 0
        %2637 = vmatprep.subr.bf16.mxu0 0
        %2638 = vmatpush1.bf16.msra.mxu0 0
        %2639 = vmatprep.subr.bf16.mxu0 0
        %2640 = vmatpush1.bf16.msra.mxu0 0
        %2641 = vmatprep.mubr.bf16.mxu0 0
        %2642 = vmatmul.mubr.bf16.gmra.mrb[0].mxu0 %v2604
        %v2643 = vpop.f32.mrb[0].mxu0
        %v2644 = vadd.f32 0.0, %v2643
        %v2645 = vpop.f32.mrb[0].mxu0
        %v2646 = vpop.f32.mrb[0].mxu0
        %v2647 = vadd.f32 0.0, %v2646
        %v2648 = vpop.f32.mrb[0].mxu0
        %2649 = vdwg.mxu0
        %v2652 = vunpack.c.l.s4 1983009808
        %v2653 = vunpack.c.0.s8 %v2652
        %v2654 = vlaneseq
        %v2655 = vshrl.u32 %v2654, 7
        %v2656 = vsub.s32 %v2653, %v2655
        %v2657 = vrot.slane %v605, %v2656
        %2658 = vrot.lane.b32.xlu0 %v2657, 127
        %v2659 = vpop.permute.xlu0 %2658
        %v2661 = vsel %vm667, %v2659, 0
        %2663 = vmatprep.subr.bf16.mxu0 0
        %2664 = vmatpush1.bf16.msra.mxu0 %v2661
        %2665 = vmatprep.subr.bf16.mxu0 0
        %2666 = vmatpush1.bf16.msra.mxu0 0
        %2667 = vmatprep.subr.bf16.mxu0 0
        %2668 = vmatpush1.bf16.msra.mxu0 0
        %2669 = vmatprep.subr.bf16.mxu0 0
        %2670 = vmatpush1.bf16.msra.mxu0 0
        %2671 = vmatprep.subr.bf16.mxu0 0
        %2672 = vmatpush1.bf16.msra.mxu0 0
        %2673 = vmatprep.subr.bf16.mxu0 0
        %2674 = vmatpush1.bf16.msra.mxu0 0
        %2675 = vmatprep.subr.bf16.mxu0 0
        %2676 = vmatpush1.bf16.msra.mxu0 0
        %2677 = vmatprep.subr.bf16.mxu0 0
        %2678 = vmatpush1.bf16.msra.mxu0 0
        %2679 = vmatprep.subr.bf16.mxu0 0
        %2680 = vmatpush1.bf16.msra.mxu0 0
        %2681 = vmatprep.subr.bf16.mxu0 0
        %2682 = vmatpush1.bf16.msra.mxu0 0
        %2683 = vmatprep.subr.bf16.mxu0 0
        %2684 = vmatpush1.bf16.msra.mxu0 0
        %2685 = vmatprep.subr.bf16.mxu0 0
        %2686 = vmatpush1.bf16.msra.mxu0 0
        %2687 = vmatprep.subr.bf16.mxu0 0
        %2688 = vmatpush1.bf16.msra.mxu0 0
        %2689 = vmatprep.subr.bf16.mxu0 0
        %2690 = vmatpush1.bf16.msra.mxu0 0
        %2691 = vmatprep.subr.bf16.mxu0 0
        %2692 = vmatpush1.bf16.msra.mxu0 0
        %2693 = vmatprep.subr.bf16.mxu0 0
        %2694 = vmatpush1.bf16.msra.mxu0 0
        %2695 = vmatprep.mubr.bf16.mxu0 0
        %2696 = vmatmul.mubr.bf16.gmra.mrb[0].mxu0 %v2604
        %v2697 = vpop.f32.mrb[0].mxu0
        %v2698 = vadd.f32 0.0, %v2697
        %v2699 = vpop.f32.mrb[0].mxu0
        %v2700 = vpop.f32.mrb[0].mxu0
        %v2701 = vadd.f32 0.0, %v2700
        %v2702 = vpop.f32.mrb[0].mxu0
        %2703 = vdwg.mxu0
        %v2706 = vunpack.c.l.s4 1983009808
        %v2707 = vunpack.c.0.s8 %v2706
        %v2708 = vlaneseq
        %v2709 = vshrl.u32 %v2708, 7
        %v2710 = vsub.s32 %v2707, %v2709
        %v2711 = vrot.slane %v606, %v2710
        %2712 = vrot.lane.b32.xlu0 %v2711, 127
        %v2713 = vpop.permute.xlu0 %2712
        %v2715 = vsel %vm667, %v2713, 0
        %2717 = vmatprep.subr.bf16.mxu0 0
        %2718 = vmatpush1.bf16.msra.mxu0 %v2715
        %2719 = vmatprep.subr.bf16.mxu0 0
        %2720 = vmatpush1.bf16.msra.mxu0 0
        %2721 = vmatprep.subr.bf16.mxu0 0
        %2722 = vmatpush1.bf16.msra.mxu0 0
        %2723 = vmatprep.subr.bf16.mxu0 0
        %2724 = vmatpush1.bf16.msra.mxu0 0
        %2725 = vmatprep.subr.bf16.mxu0 0
        %2726 = vmatpush1.bf16.msra.mxu0 0
        %2727 = vmatprep.subr.bf16.mxu0 0
        %2728 = vmatpush1.bf16.msra.mxu0 0
        %2729 = vmatprep.subr.bf16.mxu0 0
        %2730 = vmatpush1.bf16.msra.mxu0 0
        %2731 = vmatprep.subr.bf16.mxu0 0
        %2732 = vmatpush1.bf16.msra.mxu0 0
        %2733 = vmatprep.subr.bf16.mxu0 0
        %2734 = vmatpush1.bf16.msra.mxu0 0
        %2735 = vmatprep.subr.bf16.mxu0 0
        %2736 = vmatpush1.bf16.msra.mxu0 0
        %2737 = vmatprep.subr.bf16.mxu0 0
        %2738 = vmatpush1.bf16.msra.mxu0 0
        %2739 = vmatprep.subr.bf16.mxu0 0
        %2740 = vmatpush1.bf16.msra.mxu0 0
        %2741 = vmatprep.subr.bf16.mxu0 0
        %2742 = vmatpush1.bf16.msra.mxu0 0
        %2743 = vmatprep.subr.bf16.mxu0 0
        %2744 = vmatpush1.bf16.msra.mxu0 0
        %2745 = vmatprep.subr.bf16.mxu0 0
        %2746 = vmatpush1.bf16.msra.mxu0 0
        %2747 = vmatprep.subr.bf16.mxu0 0
        %2748 = vmatpush1.bf16.msra.mxu0 0
        %2749 = vmatprep.mubr.bf16.mxu0 0
        %2750 = vmatmul.mubr.bf16.gmra.mrb[0].mxu0 %v2604
        %v2751 = vpop.f32.mrb[0].mxu0
        %v2752 = vadd.f32 0.0, %v2751
        %v2753 = vpop.f32.mrb[0].mxu0
        %v2754 = vpop.f32.mrb[0].mxu0
        %v2755 = vadd.f32 0.0, %v2754
        %v2756 = vpop.f32.mrb[0].mxu0
        %2757 = vdwg.mxu0
        %v2760 = vunpack.c.l.s4 1983009808
        %v2761 = vunpack.c.0.s8 %v2760
        %v2762 = vlaneseq
        %v2763 = vshrl.u32 %v2762, 7
        %v2764 = vsub.s32 %v2761, %v2763
        %v2765 = vrot.slane %v607, %v2764
        %2766 = vrot.lane.b32.xlu0 %v2765, 127
        %v2767 = vpop.permute.xlu0 %2766
        %v2769 = vsel %vm667, %v2767, 0
        %2771 = vmatprep.subr.bf16.mxu0 0
        %2772 = vmatpush1.bf16.msra.mxu0 %v2769
        %2773 = vmatprep.subr.bf16.mxu0 0
        %2774 = vmatpush1.bf16.msra.mxu0 0
        %2775 = vmatprep.subr.bf16.mxu0 0
        %2776 = vmatpush1.bf16.msra.mxu0 0
        %2777 = vmatprep.subr.bf16.mxu0 0
        %2778 = vmatpush1.bf16.msra.mxu0 0
        %2779 = vmatprep.subr.bf16.mxu0 0
        %2780 = vmatpush1.bf16.msra.mxu0 0
        %2781 = vmatprep.subr.bf16.mxu0 0
        %2782 = vmatpush1.bf16.msra.mxu0 0
        %2783 = vmatprep.subr.bf16.mxu0 0
        %2784 = vmatpush1.bf16.msra.mxu0 0
        %2785 = vmatprep.subr.bf16.mxu0 0
        %2786 = vmatpush1.bf16.msra.mxu0 0
        %2787 = vmatprep.subr.bf16.mxu0 0
        %2788 = vmatpush1.bf16.msra.mxu0 0
        %2789 = vmatprep.subr.bf16.mxu0 0
        %2790 = vmatpush1.bf16.msra.mxu0 0
        %2791 = vmatprep.subr.bf16.mxu0 0
        %2792 = vmatpush1.bf16.msra.mxu0 0
        %2793 = vmatprep.subr.bf16.mxu0 0
        %2794 = vmatpush1.bf16.msra.mxu0 0
        %2795 = vmatprep.subr.bf16.mxu0 0
        %2796 = vmatpush1.bf16.msra.mxu0 0
        %2797 = vmatprep.subr.bf16.mxu0 0
        %2798 = vmatpush1.bf16.msra.mxu0 0
        %2799 = vmatprep.subr.bf16.mxu0 0
        %2800 = vmatpush1.bf16.msra.mxu0 0
        %2801 = vmatprep.subr.bf16.mxu0 0
        %2802 = vmatpush1.bf16.msra.mxu0 0
        %2803 = vmatprep.mubr.bf16.mxu0 0
        %2804 = vmatmul.mubr.bf16.gmra.mrb[0].mxu0 %v2604
        %v2805 = vpop.f32.mrb[0].mxu0
        %v2806 = vadd.f32 0.0, %v2805
        %v2807 = vpop.f32.mrb[0].mxu0
        %v2808 = vpop.f32.mrb[0].mxu0
        %v2809 = vadd.f32 0.0, %v2808
        %v2810 = vpop.f32.mrb[0].mxu0
        %2811 = vdwg.mxu0
        %v2814 = vunpack.c.l.s4 1983009808
        %v2815 = vunpack.c.0.s8 %v2814
        %v2816 = vlaneseq
        %v2817 = vshrl.u32 %v2816, 7
        %v2818 = vsub.s32 %v2815, %v2817
        %v2819 = vrot.slane %v608, %v2818
        %2820 = vrot.lane.b32.xlu0 %v2819, 127
        %v2821 = vpop.permute.xlu0 %2820
        %v2823 = vsel %vm667, %v2821, 0
        %2825 = vmatprep.subr.bf16.mxu0 0
        %2826 = vmatpush1.bf16.msra.mxu0 %v2823
        %2827 = vmatprep.subr.bf16.mxu0 0
        %2828 = vmatpush1.bf16.msra.mxu0 0
        %2829 = vmatprep.subr.bf16.mxu0 0
        %2830 = vmatpush1.bf16.msra.mxu0 0
        %2831 = vmatprep.subr.bf16.mxu0 0
        %2832 = vmatpush1.bf16.msra.mxu0 0
        %2833 = vmatprep.subr.bf16.mxu0 0
        %2834 = vmatpush1.bf16.msra.mxu0 0
        %2835 = vmatprep.subr.bf16.mxu0 0
        %2836 = vmatpush1.bf16.msra.mxu0 0
        %2837 = vmatprep.subr.bf16.mxu0 0
        %2838 = vmatpush1.bf16.msra.mxu0 0
        %2839 = vmatprep.subr.bf16.mxu0 0
        %2840 = vmatpush1.bf16.msra.mxu0 0
        %2841 = vmatprep.subr.bf16.mxu0 0
        %2842 = vmatpush1.bf16.msra.mxu0 0
        %2843 = vmatprep.subr.bf16.mxu0 0
        %2844 = vmatpush1.bf16.msra.mxu0 0
        %2845 = vmatprep.subr.bf16.mxu0 0
        %2846 = vmatpush1.bf16.msra.mxu0 0
        %2847 = vmatprep.subr.bf16.mxu0 0
        %2848 = vmatpush1.bf16.msra.mxu0 0
        %2849 = vmatprep.subr.bf16.mxu0 0
        %2850 = vmatpush1.bf16.msra.mxu0 0
        %2851 = vmatprep.subr.bf16.mxu0 0
        %2852 = vmatpush1.bf16.msra.mxu0 0
        %2853 = vmatprep.subr.bf16.mxu0 0
        %2854 = vmatpush1.bf16.msra.mxu0 0
        %2855 = vmatprep.subr.bf16.mxu0 0
        %2856 = vmatpush1.bf16.msra.mxu0 0
        %2857 = vmatprep.mubr.bf16.mxu0 0
        %2858 = vmatmul.mubr.bf16.gmra.mrb[0].mxu0 %v2604
        %v2859 = vpop.f32.mrb[0].mxu0
        %v2860 = vadd.f32 0.0, %v2859
        %v2861 = vpop.f32.mrb[0].mxu0
        %v2862 = vpop.f32.mrb[0].mxu0
        %v2863 = vadd.f32 0.0, %v2862
        %v2864 = vpop.f32.mrb[0].mxu0
        %2865 = vdwg.mxu0
        %v2868 = vunpack.c.l.s4 1983009808
        %v2869 = vunpack.c.0.s8 %v2868
        %v2870 = vlaneseq
        %v2871 = vshrl.u32 %v2870, 7
        %v2872 = vsub.s32 %v2869, %v2871
        %v2873 = vrot.slane %v609, %v2872
        %2874 = vrot.lane.b32.xlu0 %v2873, 127
        %v2875 = vpop.permute.xlu0 %2874
        %v2877 = vsel %vm667, %v2875, 0
        %2879 = vmatprep.subr.bf16.mxu0 0
        %2880 = vmatpush1.bf16.msra.mxu0 %v2877
        %2881 = vmatprep.subr.bf16.mxu0 0
        %2882 = vmatpush1.bf16.msra.mxu0 0
        %2883 = vmatprep.subr.bf16.mxu0 0
        %2884 = vmatpush1.bf16.msra.mxu0 0
        %2885 = vmatprep.subr.bf16.mxu0 0
        %2886 = vmatpush1.bf16.msra.mxu0 0
        %2887 = vmatprep.subr.bf16.mxu0 0
        %2888 = vmatpush1.bf16.msra.mxu0 0
        %2889 = vmatprep.subr.bf16.mxu0 0
        %2890 = vmatpush1.bf16.msra.mxu0 0
        %2891 = vmatprep.subr.bf16.mxu0 0
        %2892 = vmatpush1.bf16.msra.mxu0 0
        %2893 = vmatprep.subr.bf16.mxu0 0
        %2894 = vmatpush1.bf16.msra.mxu0 0
        %2895 = vmatprep.subr.bf16.mxu0 0
        %2896 = vmatpush1.bf16.msra.mxu0 0
        %2897 = vmatprep.subr.bf16.mxu0 0
        %2898 = vmatpush1.bf16.msra.mxu0 0
        %2899 = vmatprep.subr.bf16.mxu0 0
        %2900 = vmatpush1.bf16.msra.mxu0 0
        %2901 = vmatprep.subr.bf16.mxu0 0
        %2902 = vmatpush1.bf16.msra.mxu0 0
        %2903 = vmatprep.subr.bf16.mxu0 0
        %2904 = vmatpush1.bf16.msra.mxu0 0
        %2905 = vmatprep.subr.bf16.mxu0 0
        %2906 = vmatpush1.bf16.msra.mxu0 0
        %2907 = vmatprep.subr.bf16.mxu0 0
        %2908 = vmatpush1.bf16.msra.mxu0 0
        %2909 = vmatprep.subr.bf16.mxu0 0
        %2910 = vmatpush1.bf16.msra.mxu0 0
        %2911 = vmatprep.mubr.bf16.mxu0 0
        %2912 = vmatmul.mubr.bf16.gmra.mrb[0].mxu0 %v2604
        %v2913 = vpop.f32.mrb[0].mxu0
        %v2914 = vadd.f32 0.0, %v2913
        %v2915 = vpop.f32.mrb[0].mxu0
        %v2916 = vpop.f32.mrb[0].mxu0
        %v2917 = vadd.f32 0.0, %v2916
        %v2918 = vpop.f32.mrb[0].mxu0
        %2919 = vdwg.mxu0
        %v2922 = vunpack.c.l.s4 1983009808
        %v2923 = vunpack.c.0.s8 %v2922
        %v2924 = vlaneseq
        %v2925 = vshrl.u32 %v2924, 7
        %v2926 = vsub.s32 %v2923, %v2925
        %v2927 = vrot.slane %v610, %v2926
        %2928 = vrot.lane.b32.xlu0 %v2927, 127
        %v2929 = vpop.permute.xlu0 %2928
        %v2931 = vsel %vm667, %v2929, 0
        %2933 = vmatprep.subr.bf16.mxu0 0
        %2934 = vmatpush1.bf16.msra.mxu0 %v2931
        %2935 = vmatprep.subr.bf16.mxu0 0
        %2936 = vmatpush1.bf16.msra.mxu0 0
        %2937 = vmatprep.subr.bf16.mxu0 0
        %2938 = vmatpush1.bf16.msra.mxu0 0
        %2939 = vmatprep.subr.bf16.mxu0 0
        %2940 = vmatpush1.bf16.msra.mxu0 0
        %2941 = vmatprep.subr.bf16.mxu0 0
        %2942 = vmatpush1.bf16.msra.mxu0 0
        %2943 = vmatprep.subr.bf16.mxu0 0
        %2944 = vmatpush1.bf16.msra.mxu0 0
        %2945 = vmatprep.subr.bf16.mxu0 0
        %2946 = vmatpush1.bf16.msra.mxu0 0
        %2947 = vmatprep.subr.bf16.mxu0 0
        %2948 = vmatpush1.bf16.msra.mxu0 0
        %2949 = vmatprep.subr.bf16.mxu0 0
        %2950 = vmatpush1.bf16.msra.mxu0 0
        %2951 = vmatprep.subr.bf16.mxu0 0
        %2952 = vmatpush1.bf16.msra.mxu0 0
        %2953 = vmatprep.subr.bf16.mxu0 0
        %2954 = vmatpush1.bf16.msra.mxu0 0
        %2955 = vmatprep.subr.bf16.mxu0 0
        %2956 = vmatpush1.bf16.msra.mxu0 0
        %2957 = vmatprep.subr.bf16.mxu0 0
        %2958 = vmatpush1.bf16.msra.mxu0 0
        %2959 = vmatprep.subr.bf16.mxu0 0
        %2960 = vmatpush1.bf16.msra.mxu0 0
        %2961 = vmatprep.subr.bf16.mxu0 0
        %2962 = vmatpush1.bf16.msra.mxu0 0
        %2963 = vmatprep.subr.bf16.mxu0 0
        %2964 = vmatpush1.bf16.msra.mxu0 0
        %2965 = vmatprep.mubr.bf16.mxu0 0
        %2966 = vmatmul.mubr.bf16.gmra.mrb[0].mxu0 %v2604
        %v2967 = vpop.f32.mrb[0].mxu0
        %v2968 = vadd.f32 0.0, %v2967
        %v2969 = vpop.f32.mrb[0].mxu0
        %v2970 = vpop.f32.mrb[0].mxu0
        %v2971 = vadd.f32 0.0, %v2970
        %v2972 = vpop.f32.mrb[0].mxu0
        %2973 = vdwg.mxu0
        %v2976 = vunpack.c.l.s4 1983009808
        %v2977 = vunpack.c.0.s8 %v2976
        %v2978 = vlaneseq
        %v2979 = vshrl.u32 %v2978, 7
        %v2980 = vsub.s32 %v2977, %v2979
        %v2981 = vrot.slane %v611, %v2980
        %2982 = vrot.lane.b32.xlu0 %v2981, 127
        %v2983 = vpop.permute.xlu0 %2982
        %v2985 = vsel %vm667, %v2983, 0
        %2987 = vmatprep.subr.bf16.mxu0 0
        %2988 = vmatpush1.bf16.msra.mxu0 %v2985
        %2989 = vmatprep.subr.bf16.mxu0 0
        %2990 = vmatpush1.bf16.msra.mxu0 0
        %2991 = vmatprep.subr.bf16.mxu0 0
        %2992 = vmatpush1.bf16.msra.mxu0 0
        %2993 = vmatprep.subr.bf16.mxu0 0
        %2994 = vmatpush1.bf16.msra.mxu0 0
        %2995 = vmatprep.subr.bf16.mxu0 0
        %2996 = vmatpush1.bf16.msra.mxu0 0
        %2997 = vmatprep.subr.bf16.mxu0 0
        %2998 = vmatpush1.bf16.msra.mxu0 0
        %2999 = vmatprep.subr.bf16.mxu0 0
        %3000 = vmatpush1.bf16.msra.mxu0 0
        %3001 = vmatprep.subr.bf16.mxu0 0
        %3002 = vmatpush1.bf16.msra.mxu0 0
        %3003 = vmatprep.subr.bf16.mxu0 0
        %3004 = vmatpush1.bf16.msra.mxu0 0
        %3005 = vmatprep.subr.bf16.mxu0 0
        %3006 = vmatpush1.bf16.msra.mxu0 0
        %3007 = vmatprep.subr.bf16.mxu0 0
        %3008 = vmatpush1.bf16.msra.mxu0 0
        %3009 = vmatprep.subr.bf16.mxu0 0
        %3010 = vmatpush1.bf16.msra.mxu0 0
        %3011 = vmatprep.subr.bf16.mxu0 0
        %3012 = vmatpush1.bf16.msra.mxu0 0
        %3013 = vmatprep.subr.bf16.mxu0 0
        %3014 = vmatpush1.bf16.msra.mxu0 0
        %3015 = vmatprep.subr.bf16.mxu0 0
        %3016 = vmatpush1.bf16.msra.mxu0 0
        %3017 = vmatprep.subr.bf16.mxu0 0
        %3018 = vmatpush1.bf16.msra.mxu0 0
        %3019 = vmatprep.mubr.bf16.mxu0 0
        %3020 = vmatmul.mubr.bf16.gmra.mrb[0].mxu0 %v2604
        %v3021 = vpop.f32.mrb[0].mxu0
        %v3022 = vadd.f32 0.0, %v3021
        %v3023 = vpop.f32.mrb[0].mxu0
        %v3024 = vpop.f32.mrb[0].mxu0
        %v3025 = vadd.f32 0.0, %v3024
        %v3026 = vpop.f32.mrb[0].mxu0
        %3027 = vdwg.mxu0
        %v3028 = vadd.f32 %v2572, %v2644
        %v3029 = vadd.f32 %v2573, %v2647
        %v3030 = vadd.f32 %v2574, %v2698
        %v3031 = vadd.f32 %v2575, %v2701
        %v3032 = vadd.f32 %v2576, %v2752
        %v3033 = vadd.f32 %v2577, %v2755
        %v3034 = vadd.f32 %v2578, %v2806
        %v3035 = vadd.f32 %v2579, %v2809
        %v3036 = vadd.f32 %v2580, %v2860
        %v3037 = vadd.f32 %v2581, %v2863
        %v3038 = vadd.f32 %v2582, %v2914
        %v3039 = vadd.f32 %v2583, %v2917
        %v3040 = vadd.f32 %v2584, %v2968
        %v3041 = vadd.f32 %v2585, %v2971
        %v3042 = vadd.f32 %v2586, %v3022
        %v3043 = vadd.f32 %v2587, %v3025
        %v3046 = vunpack.c.l.b16 %v652
        %v3047 = vunpack.c.l.b16 %v653
        %v3048 = vpack.c.b16 %v3047, %v3046
        %v3050 = vsel %vm663, %v3048, 0
        %v3053 = vsel %vm667, %v625, 0
        %3055 = vmatprep.subr.bf16.mxu0 0
        %3056 = vmatpush1.bf16.msra.mxu0 %v3053
        %3057 = vmatprep.subr.bf16.mxu0 0
        %3058 = vmatpush1.bf16.msra.mxu0 0
        %3059 = vmatprep.subr.bf16.mxu0 0
        %3060 = vmatpush1.bf16.msra.mxu0 0
        %3061 = vmatprep.subr.bf16.mxu0 0
        %3062 = vmatpush1.bf16.msra.mxu0 0
        %3063 = vmatprep.subr.bf16.mxu0 0
        %3064 = vmatpush1.bf16.msra.mxu0 0
        %3065 = vmatprep.subr.bf16.mxu0 0
        %3066 = vmatpush1.bf16.msra.mxu0 0
        %3067 = vmatprep.subr.bf16.mxu0 0
        %3068 = vmatpush1.bf16.msra.mxu0 0
        %3069 = vmatprep.subr.bf16.mxu0 0
        %3070 = vmatpush1.bf16.msra.mxu0 0
        %3071 = vmatprep.subr.bf16.mxu0 0
        %3072 = vmatpush1.bf16.msra.mxu0 0
        %3073 = vmatprep.subr.bf16.mxu0 0
        %3074 = vmatpush1.bf16.msra.mxu0 0
        %3075 = vmatprep.subr.bf16.mxu0 0
        %3076 = vmatpush1.bf16.msra.mxu0 0
        %3077 = vmatprep.subr.bf16.mxu0 0
        %3078 = vmatpush1.bf16.msra.mxu0 0
        %3079 = vmatprep.subr.bf16.mxu0 0
        %3080 = vmatpush1.bf16.msra.mxu0 0
        %3081 = vmatprep.subr.bf16.mxu0 0
        %3082 = vmatpush1.bf16.msra.mxu0 0
        %3083 = vmatprep.subr.bf16.mxu0 0
        %3084 = vmatpush1.bf16.msra.mxu0 0
        %3085 = vmatprep.subr.bf16.mxu0 0
        %3086 = vmatpush1.bf16.msra.mxu0 0
        %3087 = vmatprep.mubr.bf16.mxu0 0
        %3088 = vmatmul.mubr.bf16.gmra.mrb[0].mxu0 %v3050
        %v3089 = vpop.f32.mrb[0].mxu0
        %v3090 = vadd.f32 0.0, %v3089
        %v3091 = vpop.f32.mrb[0].mxu0
        %v3092 = vpop.f32.mrb[0].mxu0
        %v3093 = vadd.f32 0.0, %v3092
        %v3094 = vpop.f32.mrb[0].mxu0
        %3095 = vdwg.mxu0
        %v3097 = vsel %vm667, %v626, 0
        %3099 = vmatprep.subr.bf16.mxu0 0
        %3100 = vmatpush1.bf16.msra.mxu0 %v3097
        %3101 = vmatprep.subr.bf16.mxu0 0
        %3102 = vmatpush1.bf16.msra.mxu0 0
        %3103 = vmatprep.subr.bf16.mxu0 0
        %3104 = vmatpush1.bf16.msra.mxu0 0
        %3105 = vmatprep.subr.bf16.mxu0 0
        %3106 = vmatpush1.bf16.msra.mxu0 0
        %3107 = vmatprep.subr.bf16.mxu0 0
        %3108 = vmatpush1.bf16.msra.mxu0 0
        %3109 = vmatprep.subr.bf16.mxu0 0
        %3110 = vmatpush1.bf16.msra.mxu0 0
        %3111 = vmatprep.subr.bf16.mxu0 0
        %3112 = vmatpush1.bf16.msra.mxu0 0
        %3113 = vmatprep.subr.bf16.mxu0 0
        %3114 = vmatpush1.bf16.msra.mxu0 0
        %3115 = vmatprep.subr.bf16.mxu0 0
        %3116 = vmatpush1.bf16.msra.mxu0 0
        %3117 = vmatprep.subr.bf16.mxu0 0
        %3118 = vmatpush1.bf16.msra.mxu0 0
        %3119 = vmatprep.subr.bf16.mxu0 0
        %3120 = vmatpush1.bf16.msra.mxu0 0
        %3121 = vmatprep.subr.bf16.mxu0 0
        %3122 = vmatpush1.bf16.msra.mxu0 0
        %3123 = vmatprep.subr.bf16.mxu0 0
        %3124 = vmatpush1.bf16.msra.mxu0 0
        %3125 = vmatprep.subr.bf16.mxu0 0
        %3126 = vmatpush1.bf16.msra.mxu0 0
        %3127 = vmatprep.subr.bf16.mxu0 0
        %3128 = vmatpush1.bf16.msra.mxu0 0
        %3129 = vmatprep.subr.bf16.mxu0 0
        %3130 = vmatpush1.bf16.msra.mxu0 0
        %3131 = vmatprep.mubr.bf16.mxu0 0
        %3132 = vmatmul.mubr.bf16.gmra.mrb[0].mxu0 %v3050
        %v3133 = vpop.f32.mrb[0].mxu0
        %v3134 = vadd.f32 0.0, %v3133
        %v3135 = vpop.f32.mrb[0].mxu0
        %v3136 = vpop.f32.mrb[0].mxu0
        %v3137 = vadd.f32 0.0, %v3136
        %v3138 = vpop.f32.mrb[0].mxu0
        %3139 = vdwg.mxu0
        %v3141 = vsel %vm667, %v627, 0
        %3143 = vmatprep.subr.bf16.mxu0 0
        %3144 = vmatpush1.bf16.msra.mxu0 %v3141
        %3145 = vmatprep.subr.bf16.mxu0 0
        %3146 = vmatpush1.bf16.msra.mxu0 0
        %3147 = vmatprep.subr.bf16.mxu0 0
        %3148 = vmatpush1.bf16.msra.mxu0 0
        %3149 = vmatprep.subr.bf16.mxu0 0
        %3150 = vmatpush1.bf16.msra.mxu0 0
        %3151 = vmatprep.subr.bf16.mxu0 0
        %3152 = vmatpush1.bf16.msra.mxu0 0
        %3153 = vmatprep.subr.bf16.mxu0 0
        %3154 = vmatpush1.bf16.msra.mxu0 0
        %3155 = vmatprep.subr.bf16.mxu0 0
        %3156 = vmatpush1.bf16.msra.mxu0 0
        %3157 = vmatprep.subr.bf16.mxu0 0
        %3158 = vmatpush1.bf16.msra.mxu0 0
        %3159 = vmatprep.subr.bf16.mxu0 0
        %3160 = vmatpush1.bf16.msra.mxu0 0
        %3161 = vmatprep.subr.bf16.mxu0 0
        %3162 = vmatpush1.bf16.msra.mxu0 0
        %3163 = vmatprep.subr.bf16.mxu0 0
        %3164 = vmatpush1.bf16.msra.mxu0 0
        %3165 = vmatprep.subr.bf16.mxu0 0
        %3166 = vmatpush1.bf16.msra.mxu0 0
        %3167 = vmatprep.subr.bf16.mxu0 0
        %3168 = vmatpush1.bf16.msra.mxu0 0
        %3169 = vmatprep.subr.bf16.mxu0 0
        %3170 = vmatpush1.bf16.msra.mxu0 0
        %3171 = vmatprep.subr.bf16.mxu0 0
        %3172 = vmatpush1.bf16.msra.mxu0 0
        %3173 = vmatprep.subr.bf16.mxu0 0
        %3174 = vmatpush1.bf16.msra.mxu0 0
        %3175 = vmatprep.mubr.bf16.mxu0 0
        %3176 = vmatmul.mubr.bf16.gmra.mrb[0].mxu0 %v3050
        %v3177 = vpop.f32.mrb[0].mxu0
        %v3178 = vadd.f32 0.0, %v3177
        %v3179 = vpop.f32.mrb[0].mxu0
        %v3180 = vpop.f32.mrb[0].mxu0
        %v3181 = vadd.f32 0.0, %v3180
        %v3182 = vpop.f32.mrb[0].mxu0
        %3183 = vdwg.mxu0
        %v3185 = vsel %vm667, %v628, 0
        %3187 = vmatprep.subr.bf16.mxu0 0
        %3188 = vmatpush1.bf16.msra.mxu0 %v3185
        %3189 = vmatprep.subr.bf16.mxu0 0
        %3190 = vmatpush1.bf16.msra.mxu0 0
        %3191 = vmatprep.subr.bf16.mxu0 0
        %3192 = vmatpush1.bf16.msra.mxu0 0
        %3193 = vmatprep.subr.bf16.mxu0 0
        %3194 = vmatpush1.bf16.msra.mxu0 0
        %3195 = vmatprep.subr.bf16.mxu0 0
        %3196 = vmatpush1.bf16.msra.mxu0 0
        %3197 = vmatprep.subr.bf16.mxu0 0
        %3198 = vmatpush1.bf16.msra.mxu0 0
        %3199 = vmatprep.subr.bf16.mxu0 0
        %3200 = vmatpush1.bf16.msra.mxu0 0
        %3201 = vmatprep.subr.bf16.mxu0 0
        %3202 = vmatpush1.bf16.msra.mxu0 0
        %3203 = vmatprep.subr.bf16.mxu0 0
        %3204 = vmatpush1.bf16.msra.mxu0 0
        %3205 = vmatprep.subr.bf16.mxu0 0
        %3206 = vmatpush1.bf16.msra.mxu0 0
        %3207 = vmatprep.subr.bf16.mxu0 0
        %3208 = vmatpush1.bf16.msra.mxu0 0
        %3209 = vmatprep.subr.bf16.mxu0 0
        %3210 = vmatpush1.bf16.msra.mxu0 0
        %3211 = vmatprep.subr.bf16.mxu0 0
        %3212 = vmatpush1.bf16.msra.mxu0 0
        %3213 = vmatprep.subr.bf16.mxu0 0
        %3214 = vmatpush1.bf16.msra.mxu0 0
        %3215 = vmatprep.subr.bf16.mxu0 0
        %3216 = vmatpush1.bf16.msra.mxu0 0
        %3217 = vmatprep.subr.bf16.mxu0 0
        %3218 = vmatpush1.bf16.msra.mxu0 0
        %3219 = vmatprep.mubr.bf16.mxu0 0
        %3220 = vmatmul.mubr.bf16.gmra.mrb[0].mxu0 %v3050
        %v3221 = vpop.f32.mrb[0].mxu0
        %v3222 = vadd.f32 0.0, %v3221
        %v3223 = vpop.f32.mrb[0].mxu0
        %v3224 = vpop.f32.mrb[0].mxu0
        %v3225 = vadd.f32 0.0, %v3224
        %v3226 = vpop.f32.mrb[0].mxu0
        %3227 = vdwg.mxu0
        %v3229 = vsel %vm667, %v629, 0
        %3231 = vmatprep.subr.bf16.mxu0 0
        %3232 = vmatpush1.bf16.msra.mxu0 %v3229
        %3233 = vmatprep.subr.bf16.mxu0 0
        %3234 = vmatpush1.bf16.msra.mxu0 0
        %3235 = vmatprep.subr.bf16.mxu0 0
        %3236 = vmatpush1.bf16.msra.mxu0 0
        %3237 = vmatprep.subr.bf16.mxu0 0
        %3238 = vmatpush1.bf16.msra.mxu0 0
        %3239 = vmatprep.subr.bf16.mxu0 0
        %3240 = vmatpush1.bf16.msra.mxu0 0
        %3241 = vmatprep.subr.bf16.mxu0 0
        %3242 = vmatpush1.bf16.msra.mxu0 0
        %3243 = vmatprep.subr.bf16.mxu0 0
        %3244 = vmatpush1.bf16.msra.mxu0 0
        %3245 = vmatprep.subr.bf16.mxu0 0
        %3246 = vmatpush1.bf16.msra.mxu0 0
        %3247 = vmatprep.subr.bf16.mxu0 0
        %3248 = vmatpush1.bf16.msra.mxu0 0
        %3249 = vmatprep.subr.bf16.mxu0 0
        %3250 = vmatpush1.bf16.msra.mxu0 0
        %3251 = vmatprep.subr.bf16.mxu0 0
        %3252 = vmatpush1.bf16.msra.mxu0 0
        %3253 = vmatprep.subr.bf16.mxu0 0
        %3254 = vmatpush1.bf16.msra.mxu0 0
        %3255 = vmatprep.subr.bf16.mxu0 0
        %3256 = vmatpush1.bf16.msra.mxu0 0
        %3257 = vmatprep.subr.bf16.mxu0 0
        %3258 = vmatpush1.bf16.msra.mxu0 0
        %3259 = vmatprep.subr.bf16.mxu0 0
        %3260 = vmatpush1.bf16.msra.mxu0 0
        %3261 = vmatprep.subr.bf16.mxu0 0
        %3262 = vmatpush1.bf16.msra.mxu0 0
        %3263 = vmatprep.mubr.bf16.mxu0 0
        %3264 = vmatmul.mubr.bf16.gmra.mrb[0].mxu0 %v3050
        %v3265 = vpop.f32.mrb[0].mxu0
        %v3266 = vadd.f32 0.0, %v3265
        %v3267 = vpop.f32.mrb[0].mxu0
        %v3268 = vpop.f32.mrb[0].mxu0
        %v3269 = vadd.f32 0.0, %v3268
        %v3270 = vpop.f32.mrb[0].mxu0
        %3271 = vdwg.mxu0
        %v3273 = vsel %vm667, %v630, 0
        %3275 = vmatprep.subr.bf16.mxu0 0
        %3276 = vmatpush1.bf16.msra.mxu0 %v3273
        %3277 = vmatprep.subr.bf16.mxu0 0
        %3278 = vmatpush1.bf16.msra.mxu0 0
        %3279 = vmatprep.subr.bf16.mxu0 0
        %3280 = vmatpush1.bf16.msra.mxu0 0
        %3281 = vmatprep.subr.bf16.mxu0 0
        %3282 = vmatpush1.bf16.msra.mxu0 0
        %3283 = vmatprep.subr.bf16.mxu0 0
        %3284 = vmatpush1.bf16.msra.mxu0 0
        %3285 = vmatprep.subr.bf16.mxu0 0
        %3286 = vmatpush1.bf16.msra.mxu0 0
        %3287 = vmatprep.subr.bf16.mxu0 0
        %3288 = vmatpush1.bf16.msra.mxu0 0
        %3289 = vmatprep.subr.bf16.mxu0 0
        %3290 = vmatpush1.bf16.msra.mxu0 0
        %3291 = vmatprep.subr.bf16.mxu0 0
        %3292 = vmatpush1.bf16.msra.mxu0 0
        %3293 = vmatprep.subr.bf16.mxu0 0
        %3294 = vmatpush1.bf16.msra.mxu0 0
        %3295 = vmatprep.subr.bf16.mxu0 0
        %3296 = vmatpush1.bf16.msra.mxu0 0
        %3297 = vmatprep.subr.bf16.mxu0 0
        %3298 = vmatpush1.bf16.msra.mxu0 0
        %3299 = vmatprep.subr.bf16.mxu0 0
        %3300 = vmatpush1.bf16.msra.mxu0 0
        %3301 = vmatprep.subr.bf16.mxu0 0
        %3302 = vmatpush1.bf16.msra.mxu0 0
        %3303 = vmatprep.subr.bf16.mxu0 0
        %3304 = vmatpush1.bf16.msra.mxu0 0
        %3305 = vmatprep.subr.bf16.mxu0 0
        %3306 = vmatpush1.bf16.msra.mxu0 0
        %3307 = vmatprep.mubr.bf16.mxu0 0
        %3308 = vmatmul.mubr.bf16.gmra.mrb[0].mxu0 %v3050
        %v3309 = vpop.f32.mrb[0].mxu0
        %v3310 = vadd.f32 0.0, %v3309
        %v3311 = vpop.f32.mrb[0].mxu0
        %v3312 = vpop.f32.mrb[0].mxu0
        %v3313 = vadd.f32 0.0, %v3312
        %v3314 = vpop.f32.mrb[0].mxu0
        %3315 = vdwg.mxu0
        %v3317 = vsel %vm667, %v631, 0
        %3319 = vmatprep.subr.bf16.mxu0 0
        %3320 = vmatpush1.bf16.msra.mxu0 %v3317
        %3321 = vmatprep.subr.bf16.mxu0 0
        %3322 = vmatpush1.bf16.msra.mxu0 0
        %3323 = vmatprep.subr.bf16.mxu0 0
        %3324 = vmatpush1.bf16.msra.mxu0 0
        %3325 = vmatprep.subr.bf16.mxu0 0
        %3326 = vmatpush1.bf16.msra.mxu0 0
        %3327 = vmatprep.subr.bf16.mxu0 0
        %3328 = vmatpush1.bf16.msra.mxu0 0
        %3329 = vmatprep.subr.bf16.mxu0 0
        %3330 = vmatpush1.bf16.msra.mxu0 0
        %3331 = vmatprep.subr.bf16.mxu0 0
        %3332 = vmatpush1.bf16.msra.mxu0 0
        %3333 = vmatprep.subr.bf16.mxu0 0
        %3334 = vmatpush1.bf16.msra.mxu0 0
        %3335 = vmatprep.subr.bf16.mxu0 0
        %3336 = vmatpush1.bf16.msra.mxu0 0
        %3337 = vmatprep.subr.bf16.mxu0 0
        %3338 = vmatpush1.bf16.msra.mxu0 0
        %3339 = vmatprep.subr.bf16.mxu0 0
        %3340 = vmatpush1.bf16.msra.mxu0 0
        %3341 = vmatprep.subr.bf16.mxu0 0
        %3342 = vmatpush1.bf16.msra.mxu0 0
        %3343 = vmatprep.subr.bf16.mxu0 0
        %3344 = vmatpush1.bf16.msra.mxu0 0
        %3345 = vmatprep.subr.bf16.mxu0 0
        %3346 = vmatpush1.bf16.msra.mxu0 0
        %3347 = vmatprep.subr.bf16.mxu0 0
        %3348 = vmatpush1.bf16.msra.mxu0 0
        %3349 = vmatprep.subr.bf16.mxu0 0
        %3350 = vmatpush1.bf16.msra.mxu0 0
        %3351 = vmatprep.mubr.bf16.mxu0 0
        %3352 = vmatmul.mubr.bf16.gmra.mrb[0].mxu0 %v3050
        %v3353 = vpop.f32.mrb[0].mxu0
        %v3354 = vadd.f32 0.0, %v3353
        %v3355 = vpop.f32.mrb[0].mxu0
        %v3356 = vpop.f32.mrb[0].mxu0
        %v3357 = vadd.f32 0.0, %v3356
        %v3358 = vpop.f32.mrb[0].mxu0
        %3359 = vdwg.mxu0
        %v3361 = vsel %vm667, %v621, 0
        %3363 = vmatprep.subr.bf16.mxu0 0
        %3364 = vmatpush1.bf16.msra.mxu0 %v3361
        %3365 = vmatprep.subr.bf16.mxu0 0
        %3366 = vmatpush1.bf16.msra.mxu0 0
        %3367 = vmatprep.subr.bf16.mxu0 0
        %3368 = vmatpush1.bf16.msra.mxu0 0
        %3369 = vmatprep.subr.bf16.mxu0 0
        %3370 = vmatpush1.bf16.msra.mxu0 0
        %3371 = vmatprep.subr.bf16.mxu0 0
        %3372 = vmatpush1.bf16.msra.mxu0 0
        %3373 = vmatprep.subr.bf16.mxu0 0
        %3374 = vmatpush1.bf16.msra.mxu0 0
        %3375 = vmatprep.subr.bf16.mxu0 0
        %3376 = vmatpush1.bf16.msra.mxu0 0
        %3377 = vmatprep.subr.bf16.mxu0 0
        %3378 = vmatpush1.bf16.msra.mxu0 0
        %3379 = vmatprep.subr.bf16.mxu0 0
        %3380 = vmatpush1.bf16.msra.mxu0 0
        %3381 = vmatprep.subr.bf16.mxu0 0
        %3382 = vmatpush1.bf16.msra.mxu0 0
        %3383 = vmatprep.subr.bf16.mxu0 0
        %3384 = vmatpush1.bf16.msra.mxu0 0
        %3385 = vmatprep.subr.bf16.mxu0 0
        %3386 = vmatpush1.bf16.msra.mxu0 0
        %3387 = vmatprep.subr.bf16.mxu0 0
        %3388 = vmatpush1.bf16.msra.mxu0 0
        %3389 = vmatprep.subr.bf16.mxu0 0
        %3390 = vmatpush1.bf16.msra.mxu0 0
        %3391 = vmatprep.subr.bf16.mxu0 0
        %3392 = vmatpush1.bf16.msra.mxu0 0
        %3393 = vmatprep.subr.bf16.mxu0 0
        %3394 = vmatpush1.bf16.msra.mxu0 0
        %3395 = vmatprep.mubr.bf16.mxu0 0
        %3396 = vmatmul.mubr.bf16.gmra.mrb[0].mxu0 %v3050
        %v3397 = vpop.f32.mrb[0].mxu0
        %v3398 = vadd.f32 0.0, %v3397
        %v3399 = vpop.f32.mrb[0].mxu0
        %v3400 = vpop.f32.mrb[0].mxu0
        %v3401 = vadd.f32 0.0, %v3400
        %v3402 = vpop.f32.mrb[0].mxu0
        %3403 = vdwg.mxu0
        %v3404 = vadd.f32 %v3028, %v3090
        %v3405 = vadd.f32 %v3029, %v3093
        %v3406 = vadd.f32 %v3030, %v3134
        %v3407 = vadd.f32 %v3031, %v3137
        %v3408 = vadd.f32 %v3032, %v3178
        %v3409 = vadd.f32 %v3033, %v3181
        %v3410 = vadd.f32 %v3034, %v3222
        %v3411 = vadd.f32 %v3035, %v3225
        %v3412 = vadd.f32 %v3036, %v3266
        %v3413 = vadd.f32 %v3037, %v3269
        %v3414 = vadd.f32 %v3038, %v3310
        %v3415 = vadd.f32 %v3039, %v3313
        %v3416 = vadd.f32 %v3040, %v3354
        %v3417 = vadd.f32 %v3041, %v3357
        %v3418 = vadd.f32 %v3042, %v3398
        %v3419 = vadd.f32 %v3043, %v3401
        %v3422 = vunpack.c.l.b16 %v654
        %v3423 = vunpack.c.l.b16 %v655
        %v3424 = vpack.c.b16 %v3423, %v3422
        %v3426 = vsel %vm663, %v3424, 0
        %v3429 = vsel %vm667, %v633, 0
        %3431 = vmatprep.subr.bf16.mxu0 0
        %3432 = vmatpush1.bf16.msra.mxu0 %v3429
        %3433 = vmatprep.subr.bf16.mxu0 0
        %3434 = vmatpush1.bf16.msra.mxu0 0
        %3435 = vmatprep.subr.bf16.mxu0 0
        %3436 = vmatpush1.bf16.msra.mxu0 0
        %3437 = vmatprep.subr.bf16.mxu0 0
        %3438 = vmatpush1.bf16.msra.mxu0 0
        %3439 = vmatprep.subr.bf16.mxu0 0
        %3440 = vmatpush1.bf16.msra.mxu0 0
        %3441 = vmatprep.subr.bf16.mxu0 0
        %3442 = vmatpush1.bf16.msra.mxu0 0
        %3443 = vmatprep.subr.bf16.mxu0 0
        %3444 = vmatpush1.bf16.msra.mxu0 0
        %3445 = vmatprep.subr.bf16.mxu0 0
        %3446 = vmatpush1.bf16.msra.mxu0 0
        %3447 = vmatprep.subr.bf16.mxu0 0
        %3448 = vmatpush1.bf16.msra.mxu0 0
        %3449 = vmatprep.subr.bf16.mxu0 0
        %3450 = vmatpush1.bf16.msra.mxu0 0
        %3451 = vmatprep.subr.bf16.mxu0 0
        %3452 = vmatpush1.bf16.msra.mxu0 0
        %3453 = vmatprep.subr.bf16.mxu0 0
        %3454 = vmatpush1.bf16.msra.mxu0 0
        %3455 = vmatprep.subr.bf16.mxu0 0
        %3456 = vmatpush1.bf16.msra.mxu0 0
        %3457 = vmatprep.subr.bf16.mxu0 0
        %3458 = vmatpush1.bf16.msra.mxu0 0
        %3459 = vmatprep.subr.bf16.mxu0 0
        %3460 = vmatpush1.bf16.msra.mxu0 0
        %3461 = vmatprep.subr.bf16.mxu0 0
        %3462 = vmatpush1.bf16.msra.mxu0 0
        %3463 = vmatprep.mubr.bf16.mxu0 0
        %3464 = vmatmul.mubr.bf16.gmra.mrb[0].mxu0 %v3426
        %v3465 = vpop.f32.mrb[0].mxu0
        %v3466 = vadd.f32 0.0, %v3465
        %v3467 = vpop.f32.mrb[0].mxu0
        %v3468 = vpop.f32.mrb[0].mxu0
        %v3469 = vadd.f32 0.0, %v3468
        %v3470 = vpop.f32.mrb[0].mxu0
        %3471 = vdwg.mxu0
        %v3473 = vsel %vm667, %v634, 0
        %3475 = vmatprep.subr.bf16.mxu0 0
        %3476 = vmatpush1.bf16.msra.mxu0 %v3473
        %3477 = vmatprep.subr.bf16.mxu0 0
        %3478 = vmatpush1.bf16.msra.mxu0 0
        %3479 = vmatprep.subr.bf16.mxu0 0
        %3480 = vmatpush1.bf16.msra.mxu0 0
        %3481 = vmatprep.subr.bf16.mxu0 0
        %3482 = vmatpush1.bf16.msra.mxu0 0
        %3483 = vmatprep.subr.bf16.mxu0 0
        %3484 = vmatpush1.bf16.msra.mxu0 0
        %3485 = vmatprep.subr.bf16.mxu0 0
        %3486 = vmatpush1.bf16.msra.mxu0 0
        %3487 = vmatprep.subr.bf16.mxu0 0
        %3488 = vmatpush1.bf16.msra.mxu0 0
        %3489 = vmatprep.subr.bf16.mxu0 0
        %3490 = vmatpush1.bf16.msra.mxu0 0
        %3491 = vmatprep.subr.bf16.mxu0 0
        %3492 = vmatpush1.bf16.msra.mxu0 0
        %3493 = vmatprep.subr.bf16.mxu0 0
        %3494 = vmatpush1.bf16.msra.mxu0 0
        %3495 = vmatprep.subr.bf16.mxu0 0
        %3496 = vmatpush1.bf16.msra.mxu0 0
        %3497 = vmatprep.subr.bf16.mxu0 0
        %3498 = vmatpush1.bf16.msra.mxu0 0
        %3499 = vmatprep.subr.bf16.mxu0 0
        %3500 = vmatpush1.bf16.msra.mxu0 0
        %3501 = vmatprep.subr.bf16.mxu0 0
        %3502 = vmatpush1.bf16.msra.mxu0 0
        %3503 = vmatprep.subr.bf16.mxu0 0
        %3504 = vmatpush1.bf16.msra.mxu0 0
        %3505 = vmatprep.subr.bf16.mxu0 0
        %3506 = vmatpush1.bf16.msra.mxu0 0
        %3507 = vmatprep.mubr.bf16.mxu0 0
        %3508 = vmatmul.mubr.bf16.gmra.mrb[0].mxu0 %v3426
        %v3509 = vpop.f32.mrb[0].mxu0
        %v3510 = vadd.f32 0.0, %v3509
        %v3511 = vpop.f32.mrb[0].mxu0
        %v3512 = vpop.f32.mrb[0].mxu0
        %v3513 = vadd.f32 0.0, %v3512
        %v3514 = vpop.f32.mrb[0].mxu0
        %3515 = vdwg.mxu0
        %v3517 = vsel %vm667, %v635, 0
        %3519 = vmatprep.subr.bf16.mxu0 0
        %3520 = vmatpush1.bf16.msra.mxu0 %v3517
        %3521 = vmatprep.subr.bf16.mxu0 0
        %3522 = vmatpush1.bf16.msra.mxu0 0
        %3523 = vmatprep.subr.bf16.mxu0 0
        %3524 = vmatpush1.bf16.msra.mxu0 0
        %3525 = vmatprep.subr.bf16.mxu0 0
        %3526 = vmatpush1.bf16.msra.mxu0 0
        %3527 = vmatprep.subr.bf16.mxu0 0
        %3528 = vmatpush1.bf16.msra.mxu0 0
        %3529 = vmatprep.subr.bf16.mxu0 0
        %3530 = vmatpush1.bf16.msra.mxu0 0
        %3531 = vmatprep.subr.bf16.mxu0 0
        %3532 = vmatpush1.bf16.msra.mxu0 0
        %3533 = vmatprep.subr.bf16.mxu0 0
        %3534 = vmatpush1.bf16.msra.mxu0 0
        %3535 = vmatprep.subr.bf16.mxu0 0
        %3536 = vmatpush1.bf16.msra.mxu0 0
        %3537 = vmatprep.subr.bf16.mxu0 0
        %3538 = vmatpush1.bf16.msra.mxu0 0
        %3539 = vmatprep.subr.bf16.mxu0 0
        %3540 = vmatpush1.bf16.msra.mxu0 0
        %3541 = vmatprep.subr.bf16.mxu0 0
        %3542 = vmatpush1.bf16.msra.mxu0 0
        %3543 = vmatprep.subr.bf16.mxu0 0
        %3544 = vmatpush1.bf16.msra.mxu0 0
        %3545 = vmatprep.subr.bf16.mxu0 0
        %3546 = vmatpush1.bf16.msra.mxu0 0
        %3547 = vmatprep.subr.bf16.mxu0 0
        %3548 = vmatpush1.bf16.msra.mxu0 0
        %3549 = vmatprep.subr.bf16.mxu0 0
        %3550 = vmatpush1.bf16.msra.mxu0 0
        %3551 = vmatprep.mubr.bf16.mxu0 0
        %3552 = vmatmul.mubr.bf16.gmra.mrb[0].mxu0 %v3426
        %v3553 = vpop.f32.mrb[0].mxu0
        %v3554 = vadd.f32 0.0, %v3553
        %v3555 = vpop.f32.mrb[0].mxu0
        %v3556 = vpop.f32.mrb[0].mxu0
        %v3557 = vadd.f32 0.0, %v3556
        %v3558 = vpop.f32.mrb[0].mxu0
        %3559 = vdwg.mxu0
        %v3561 = vsel %vm667, %v636, 0
        %3563 = vmatprep.subr.bf16.mxu0 0
        %3564 = vmatpush1.bf16.msra.mxu0 %v3561
        %3565 = vmatprep.subr.bf16.mxu0 0
        %3566 = vmatpush1.bf16.msra.mxu0 0
        %3567 = vmatprep.subr.bf16.mxu0 0
        %3568 = vmatpush1.bf16.msra.mxu0 0
        %3569 = vmatprep.subr.bf16.mxu0 0
        %3570 = vmatpush1.bf16.msra.mxu0 0
        %3571 = vmatprep.subr.bf16.mxu0 0
        %3572 = vmatpush1.bf16.msra.mxu0 0
        %3573 = vmatprep.subr.bf16.mxu0 0
        %3574 = vmatpush1.bf16.msra.mxu0 0
        %3575 = vmatprep.subr.bf16.mxu0 0
        %3576 = vmatpush1.bf16.msra.mxu0 0
        %3577 = vmatprep.subr.bf16.mxu0 0
        %3578 = vmatpush1.bf16.msra.mxu0 0
        %3579 = vmatprep.subr.bf16.mxu0 0
        %3580 = vmatpush1.bf16.msra.mxu0 0
        %3581 = vmatprep.subr.bf16.mxu0 0
        %3582 = vmatpush1.bf16.msra.mxu0 0
        %3583 = vmatprep.subr.bf16.mxu0 0
        %3584 = vmatpush1.bf16.msra.mxu0 0
        %3585 = vmatprep.subr.bf16.mxu0 0
        %3586 = vmatpush1.bf16.msra.mxu0 0
        %3587 = vmatprep.subr.bf16.mxu0 0
        %3588 = vmatpush1.bf16.msra.mxu0 0
        %3589 = vmatprep.subr.bf16.mxu0 0
        %3590 = vmatpush1.bf16.msra.mxu0 0
        %3591 = vmatprep.subr.bf16.mxu0 0
        %3592 = vmatpush1.bf16.msra.mxu0 0
        %3593 = vmatprep.subr.bf16.mxu0 0
        %3594 = vmatpush1.bf16.msra.mxu0 0
        %3595 = vmatprep.mubr.bf16.mxu0 0
        %3596 = vmatmul.mubr.bf16.gmra.mrb[0].mxu0 %v3426
        %v3597 = vpop.f32.mrb[0].mxu0
        %v3598 = vadd.f32 0.0, %v3597
        %v3599 = vpop.f32.mrb[0].mxu0
        %v3600 = vpop.f32.mrb[0].mxu0
        %v3601 = vadd.f32 0.0, %v3600
        %v3602 = vpop.f32.mrb[0].mxu0
        %3603 = vdwg.mxu0
        %v3605 = vsel %vm667, %v637, 0
        %3607 = vmatprep.subr.bf16.mxu0 0
        %3608 = vmatpush1.bf16.msra.mxu0 %v3605
        %3609 = vmatprep.subr.bf16.mxu0 0
        %3610 = vmatpush1.bf16.msra.mxu0 0
        %3611 = vmatprep.subr.bf16.mxu0 0
        %3612 = vmatpush1.bf16.msra.mxu0 0
        %3613 = vmatprep.subr.bf16.mxu0 0
        %3614 = vmatpush1.bf16.msra.mxu0 0
        %3615 = vmatprep.subr.bf16.mxu0 0
        %3616 = vmatpush1.bf16.msra.mxu0 0
        %3617 = vmatprep.subr.bf16.mxu0 0
        %3618 = vmatpush1.bf16.msra.mxu0 0
        %3619 = vmatprep.subr.bf16.mxu0 0
        %3620 = vmatpush1.bf16.msra.mxu0 0
        %3621 = vmatprep.subr.bf16.mxu0 0
        %3622 = vmatpush1.bf16.msra.mxu0 0
        %3623 = vmatprep.subr.bf16.mxu0 0
        %3624 = vmatpush1.bf16.msra.mxu0 0
        %3625 = vmatprep.subr.bf16.mxu0 0
        %3626 = vmatpush1.bf16.msra.mxu0 0
        %3627 = vmatprep.subr.bf16.mxu0 0
        %3628 = vmatpush1.bf16.msra.mxu0 0
        %3629 = vmatprep.subr.bf16.mxu0 0
        %3630 = vmatpush1.bf16.msra.mxu0 0
        %3631 = vmatprep.subr.bf16.mxu0 0
        %3632 = vmatpush1.bf16.msra.mxu0 0
        %3633 = vmatprep.subr.bf16.mxu0 0
        %3634 = vmatpush1.bf16.msra.mxu0 0
        %3635 = vmatprep.subr.bf16.mxu0 0
        %3636 = vmatpush1.bf16.msra.mxu0 0
        %3637 = vmatprep.subr.bf16.mxu0 0
        %3638 = vmatpush1.bf16.msra.mxu0 0
        %3639 = vmatprep.mubr.bf16.mxu0 0
        %3640 = vmatmul.mubr.bf16.gmra.mrb[0].mxu0 %v3426
        %v3641 = vpop.f32.mrb[0].mxu0
        %v3642 = vadd.f32 0.0, %v3641
        %v3643 = vpop.f32.mrb[0].mxu0
        %v3644 = vpop.f32.mrb[0].mxu0
        %v3645 = vadd.f32 0.0, %v3644
        %v3646 = vpop.f32.mrb[0].mxu0
        %3647 = vdwg.mxu0
        %v3649 = vsel %vm667, %v638, 0
        %3651 = vmatprep.subr.bf16.mxu0 0
        %3652 = vmatpush1.bf16.msra.mxu0 %v3649
        %3653 = vmatprep.subr.bf16.mxu0 0
        %3654 = vmatpush1.bf16.msra.mxu0 0
        %3655 = vmatprep.subr.bf16.mxu0 0
        %3656 = vmatpush1.bf16.msra.mxu0 0
        %3657 = vmatprep.subr.bf16.mxu0 0
        %3658 = vmatpush1.bf16.msra.mxu0 0
        %3659 = vmatprep.subr.bf16.mxu0 0
        %3660 = vmatpush1.bf16.msra.mxu0 0
        %3661 = vmatprep.subr.bf16.mxu0 0
        %3662 = vmatpush1.bf16.msra.mxu0 0
        %3663 = vmatprep.subr.bf16.mxu0 0
        %3664 = vmatpush1.bf16.msra.mxu0 0
        %3665 = vmatprep.subr.bf16.mxu0 0
        %3666 = vmatpush1.bf16.msra.mxu0 0
        %3667 = vmatprep.subr.bf16.mxu0 0
        %3668 = vmatpush1.bf16.msra.mxu0 0
        %3669 = vmatprep.subr.bf16.mxu0 0
        %3670 = vmatpush1.bf16.msra.mxu0 0
        %3671 = vmatprep.subr.bf16.mxu0 0
        %3672 = vmatpush1.bf16.msra.mxu0 0
        %3673 = vmatprep.subr.bf16.mxu0 0
        %3674 = vmatpush1.bf16.msra.mxu0 0
        %3675 = vmatprep.subr.bf16.mxu0 0
        %3676 = vmatpush1.bf16.msra.mxu0 0
        %3677 = vmatprep.subr.bf16.mxu0 0
        %3678 = vmatpush1.bf16.msra.mxu0 0
        %3679 = vmatprep.subr.bf16.mxu0 0
        %3680 = vmatpush1.bf16.msra.mxu0 0
        %3681 = vmatprep.subr.bf16.mxu0 0
        %3682 = vmatpush1.bf16.msra.mxu0 0
        %3683 = vmatprep.mubr.bf16.mxu0 0
        %3684 = vmatmul.mubr.bf16.gmra.mrb[0].mxu0 %v3426
        %v3685 = vpop.f32.mrb[0].mxu0
        %v3686 = vadd.f32 0.0, %v3685
        %v3687 = vpop.f32.mrb[0].mxu0
        %v3688 = vpop.f32.mrb[0].mxu0
        %v3689 = vadd.f32 0.0, %v3688
        %v3690 = vpop.f32.mrb[0].mxu0
        %3691 = vdwg.mxu0
        %v3693 = vsel %vm667, %v639, 0
        %3695 = vmatprep.subr.bf16.mxu0 0
        %3696 = vmatpush1.bf16.msra.mxu0 %v3693
        %3697 = vmatprep.subr.bf16.mxu0 0
        %3698 = vmatpush1.bf16.msra.mxu0 0
        %3699 = vmatprep.subr.bf16.mxu0 0
        %3700 = vmatpush1.bf16.msra.mxu0 0
        %3701 = vmatprep.subr.bf16.mxu0 0
        %3702 = vmatpush1.bf16.msra.mxu0 0
        %3703 = vmatprep.subr.bf16.mxu0 0
        %3704 = vmatpush1.bf16.msra.mxu0 0
        %3705 = vmatprep.subr.bf16.mxu0 0
        %3706 = vmatpush1.bf16.msra.mxu0 0
        %3707 = vmatprep.subr.bf16.mxu0 0
        %3708 = vmatpush1.bf16.msra.mxu0 0
        %3709 = vmatprep.subr.bf16.mxu0 0
        %3710 = vmatpush1.bf16.msra.mxu0 0
        %3711 = vmatprep.subr.bf16.mxu0 0
        %3712 = vmatpush1.bf16.msra.mxu0 0
        %3713 = vmatprep.subr.bf16.mxu0 0
        %3714 = vmatpush1.bf16.msra.mxu0 0
        %3715 = vmatprep.subr.bf16.mxu0 0
        %3716 = vmatpush1.bf16.msra.mxu0 0
        %3717 = vmatprep.subr.bf16.mxu0 0
        %3718 = vmatpush1.bf16.msra.mxu0 0
        %3719 = vmatprep.subr.bf16.mxu0 0
        %3720 = vmatpush1.bf16.msra.mxu0 0
        %3721 = vmatprep.subr.bf16.mxu0 0
        %3722 = vmatpush1.bf16.msra.mxu0 0
        %3723 = vmatprep.subr.bf16.mxu0 0
        %3724 = vmatpush1.bf16.msra.mxu0 0
        %3725 = vmatprep.subr.bf16.mxu0 0
        %3726 = vmatpush1.bf16.msra.mxu0 0
        %3727 = vmatprep.mubr.bf16.mxu0 0
        %3728 = vmatmul.mubr.bf16.gmra.mrb[0].mxu0 %v3426
        %v3729 = vpop.f32.mrb[0].mxu0
        %v3730 = vadd.f32 0.0, %v3729
        %v3731 = vpop.f32.mrb[0].mxu0
        %v3732 = vpop.f32.mrb[0].mxu0
        %v3733 = vadd.f32 0.0, %v3732
        %v3734 = vpop.f32.mrb[0].mxu0
        %3735 = vdwg.mxu0
        %v3737 = vsel %vm667, %v623, 0
        %3739 = vmatprep.subr.bf16.mxu0 0
        %3740 = vmatpush1.bf16.msra.mxu0 %v3737
        %3741 = vmatprep.subr.bf16.mxu0 0
        %3742 = vmatpush1.bf16.msra.mxu0 0
        %3743 = vmatprep.subr.bf16.mxu0 0
        %3744 = vmatpush1.bf16.msra.mxu0 0
        %3745 = vmatprep.subr.bf16.mxu0 0
        %3746 = vmatpush1.bf16.msra.mxu0 0
        %3747 = vmatprep.subr.bf16.mxu0 0
        %3748 = vmatpush1.bf16.msra.mxu0 0
        %3749 = vmatprep.subr.bf16.mxu0 0
        %3750 = vmatpush1.bf16.msra.mxu0 0
        %3751 = vmatprep.subr.bf16.mxu0 0
        %3752 = vmatpush1.bf16.msra.mxu0 0
        %3753 = vmatprep.subr.bf16.mxu0 0
        %3754 = vmatpush1.bf16.msra.mxu0 0
        %3755 = vmatprep.subr.bf16.mxu0 0
        %3756 = vmatpush1.bf16.msra.mxu0 0
        %3757 = vmatprep.subr.bf16.mxu0 0
        %3758 = vmatpush1.bf16.msra.mxu0 0
        %3759 = vmatprep.subr.bf16.mxu0 0
        %3760 = vmatpush1.bf16.msra.mxu0 0
        %3761 = vmatprep.subr.bf16.mxu0 0
        %3762 = vmatpush1.bf16.msra.mxu0 0
        %3763 = vmatprep.subr.bf16.mxu0 0
        %3764 = vmatpush1.bf16.msra.mxu0 0
        %3765 = vmatprep.subr.bf16.mxu0 0
        %3766 = vmatpush1.bf16.msra.mxu0 0
        %3767 = vmatprep.subr.bf16.mxu0 0
        %3768 = vmatpush1.bf16.msra.mxu0 0
        %3769 = vmatprep.subr.bf16.mxu0 0
        %3770 = vmatpush1.bf16.msra.mxu0 0
        %3771 = vmatprep.mubr.bf16.mxu0 0
        %3772 = vmatmul.mubr.bf16.gmra.mrb[0].mxu0 %v3426
        %v3773 = vpop.f32.mrb[0].mxu0
        %v3774 = vadd.f32 0.0, %v3773
        %v3775 = vpop.f32.mrb[0].mxu0
        %v3776 = vpop.f32.mrb[0].mxu0
        %v3777 = vadd.f32 0.0, %v3776
        %v3778 = vpop.f32.mrb[0].mxu0
        %3779 = vdwg.mxu0
        %v3780 = vadd.f32 %v3404, %v3466
        %v3781 = vadd.f32 %v3405, %v3469
        %v3782 = vadd.f32 %v3406, %v3510
        %v3783 = vadd.f32 %v3407, %v3513
        %v3784 = vadd.f32 %v3408, %v3554
        %v3785 = vadd.f32 %v3409, %v3557
        %v3786 = vadd.f32 %v3410, %v3598
        %v3787 = vadd.f32 %v3411, %v3601
        %v3788 = vadd.f32 %v3412, %v3642
        %v3789 = vadd.f32 %v3413, %v3645
        %v3790 = vadd.f32 %v3414, %v3686
        %v3791 = vadd.f32 %v3415, %v3689
        %v3792 = vadd.f32 %v3416, %v3730
        %v3793 = vadd.f32 %v3417, %v3733
        %v3794 = vadd.f32 %v3418, %v3774
        %v3795 = vadd.f32 %v3419, %v3777
        %v3798 = vunpack.c.l.b16 %v656
        %v3799 = vunpack.c.l.b16 %v657
        %v3800 = vpack.c.b16 %v3799, %v3798
        %v3803 = vunpack.c.l.s4 1983009808
        %v3804 = vunpack.c.0.s8 %v3803
        %v3805 = vlaneseq
        %v3806 = vshrl.u32 %v3805, 7
        %v3807 = vsub.s32 %v3804, %v3806
        %v3808 = vrot.slane %v625, %v3807
        %3809 = vrot.lane.b32.xlu0 %v3808, 127
        %v3810 = vpop.permute.xlu0 %3809
        %v3812 = vsel %vm663, %v3800, 0
        %v3815 = vsel %vm667, %v3810, 0
        %3817 = vmatprep.subr.bf16.mxu0 0
        %3818 = vmatpush1.bf16.msra.mxu0 %v3815
        %3819 = vmatprep.subr.bf16.mxu0 0
        %3820 = vmatpush1.bf16.msra.mxu0 0
        %3821 = vmatprep.subr.bf16.mxu0 0
        %3822 = vmatpush1.bf16.msra.mxu0 0
        %3823 = vmatprep.subr.bf16.mxu0 0
        %3824 = vmatpush1.bf16.msra.mxu0 0
        %3825 = vmatprep.subr.bf16.mxu0 0
        %3826 = vmatpush1.bf16.msra.mxu0 0
        %3827 = vmatprep.subr.bf16.mxu0 0
        %3828 = vmatpush1.bf16.msra.mxu0 0
        %3829 = vmatprep.subr.bf16.mxu0 0
        %3830 = vmatpush1.bf16.msra.mxu0 0
        %3831 = vmatprep.subr.bf16.mxu0 0
        %3832 = vmatpush1.bf16.msra.mxu0 0
        %3833 = vmatprep.subr.bf16.mxu0 0
        %3834 = vmatpush1.bf16.msra.mxu0 0
        %3835 = vmatprep.subr.bf16.mxu0 0
        %3836 = vmatpush1.bf16.msra.mxu0 0
        %3837 = vmatprep.subr.bf16.mxu0 0
        %3838 = vmatpush1.bf16.msra.mxu0 0
        %3839 = vmatprep.subr.bf16.mxu0 0
        %3840 = vmatpush1.bf16.msra.mxu0 0
        %3841 = vmatprep.subr.bf16.mxu0 0
        %3842 = vmatpush1.bf16.msra.mxu0 0
        %3843 = vmatprep.subr.bf16.mxu0 0
        %3844 = vmatpush1.bf16.msra.mxu0 0
        %3845 = vmatprep.subr.bf16.mxu0 0
        %3846 = vmatpush1.bf16.msra.mxu0 0
        %3847 = vmatprep.subr.bf16.mxu0 0
        %3848 = vmatpush1.bf16.msra.mxu0 0
        %3849 = vmatprep.mubr.bf16.mxu0 0
        %3850 = vmatmul.mubr.bf16.gmra.mrb[0].mxu0 %v3812
        %v3851 = vpop.f32.mrb[0].mxu0
        %v3852 = vadd.f32 0.0, %v3851
        %v3853 = vpop.f32.mrb[0].mxu0
        %v3854 = vpop.f32.mrb[0].mxu0
        %v3855 = vadd.f32 0.0, %v3854
        %v3856 = vpop.f32.mrb[0].mxu0
        %3857 = vdwg.mxu0
        %v3860 = vunpack.c.l.s4 1983009808
        %v3861 = vunpack.c.0.s8 %v3860
        %v3862 = vlaneseq
        %v3863 = vshrl.u32 %v3862, 7
        %v3864 = vsub.s32 %v3861, %v3863
        %v3865 = vrot.slane %v626, %v3864
        %3866 = vrot.lane.b32.xlu0 %v3865, 127
        %v3867 = vpop.permute.xlu0 %3866
        %v3869 = vsel %vm667, %v3867, 0
        %3871 = vmatprep.subr.bf16.mxu0 0
        %3872 = vmatpush1.bf16.msra.mxu0 %v3869
        %3873 = vmatprep.subr.bf16.mxu0 0
        %3874 = vmatpush1.bf16.msra.mxu0 0
        %3875 = vmatprep.subr.bf16.mxu0 0
        %3876 = vmatpush1.bf16.msra.mxu0 0
        %3877 = vmatprep.subr.bf16.mxu0 0
        %3878 = vmatpush1.bf16.msra.mxu0 0
        %3879 = vmatprep.subr.bf16.mxu0 0
        %3880 = vmatpush1.bf16.msra.mxu0 0
        %3881 = vmatprep.subr.bf16.mxu0 0
        %3882 = vmatpush1.bf16.msra.mxu0 0
        %3883 = vmatprep.subr.bf16.mxu0 0
        %3884 = vmatpush1.bf16.msra.mxu0 0
        %3885 = vmatprep.subr.bf16.mxu0 0
        %3886 = vmatpush1.bf16.msra.mxu0 0
        %3887 = vmatprep.subr.bf16.mxu0 0
        %3888 = vmatpush1.bf16.msra.mxu0 0
        %3889 = vmatprep.subr.bf16.mxu0 0
        %3890 = vmatpush1.bf16.msra.mxu0 0
        %3891 = vmatprep.subr.bf16.mxu0 0
        %3892 = vmatpush1.bf16.msra.mxu0 0
        %3893 = vmatprep.subr.bf16.mxu0 0
        %3894 = vmatpush1.bf16.msra.mxu0 0
        %3895 = vmatprep.subr.bf16.mxu0 0
        %3896 = vmatpush1.bf16.msra.mxu0 0
        %3897 = vmatprep.subr.bf16.mxu0 0
        %3898 = vmatpush1.bf16.msra.mxu0 0
        %3899 = vmatprep.subr.bf16.mxu0 0
        %3900 = vmatpush1.bf16.msra.mxu0 0
        %3901 = vmatprep.subr.bf16.mxu0 0
        %3902 = vmatpush1.bf16.msra.mxu0 0
        %3903 = vmatprep.mubr.bf16.mxu0 0
        %3904 = vmatmul.mubr.bf16.gmra.mrb[0].mxu0 %v3812
        %v3905 = vpop.f32.mrb[0].mxu0
        %v3906 = vadd.f32 0.0, %v3905
        %v3907 = vpop.f32.mrb[0].mxu0
        %v3908 = vpop.f32.mrb[0].mxu0
        %v3909 = vadd.f32 0.0, %v3908
        %v3910 = vpop.f32.mrb[0].mxu0
        %3911 = vdwg.mxu0
        %v3914 = vunpack.c.l.s4 1983009808
        %v3915 = vunpack.c.0.s8 %v3914
        %v3916 = vlaneseq
        %v3917 = vshrl.u32 %v3916, 7
        %v3918 = vsub.s32 %v3915, %v3917
        %v3919 = vrot.slane %v627, %v3918
        %3920 = vrot.lane.b32.xlu0 %v3919, 127
        %v3921 = vpop.permute.xlu0 %3920
        %v3923 = vsel %vm667, %v3921, 0
        %3925 = vmatprep.subr.bf16.mxu0 0
        %3926 = vmatpush1.bf16.msra.mxu0 %v3923
        %3927 = vmatprep.subr.bf16.mxu0 0
        %3928 = vmatpush1.bf16.msra.mxu0 0
        %3929 = vmatprep.subr.bf16.mxu0 0
        %3930 = vmatpush1.bf16.msra.mxu0 0
        %3931 = vmatprep.subr.bf16.mxu0 0
        %3932 = vmatpush1.bf16.msra.mxu0 0
        %3933 = vmatprep.subr.bf16.mxu0 0
        %3934 = vmatpush1.bf16.msra.mxu0 0
        %3935 = vmatprep.subr.bf16.mxu0 0
        %3936 = vmatpush1.bf16.msra.mxu0 0
        %3937 = vmatprep.subr.bf16.mxu0 0
        %3938 = vmatpush1.bf16.msra.mxu0 0
        %3939 = vmatprep.subr.bf16.mxu0 0
        %3940 = vmatpush1.bf16.msra.mxu0 0
        %3941 = vmatprep.subr.bf16.mxu0 0
        %3942 = vmatpush1.bf16.msra.mxu0 0
        %3943 = vmatprep.subr.bf16.mxu0 0
        %3944 = vmatpush1.bf16.msra.mxu0 0
        %3945 = vmatprep.subr.bf16.mxu0 0
        %3946 = vmatpush1.bf16.msra.mxu0 0
        %3947 = vmatprep.subr.bf16.mxu0 0
        %3948 = vmatpush1.bf16.msra.mxu0 0
        %3949 = vmatprep.subr.bf16.mxu0 0
        %3950 = vmatpush1.bf16.msra.mxu0 0
        %3951 = vmatprep.subr.bf16.mxu0 0
        %3952 = vmatpush1.bf16.msra.mxu0 0
        %3953 = vmatprep.subr.bf16.mxu0 0
        %3954 = vmatpush1.bf16.msra.mxu0 0
        %3955 = vmatprep.subr.bf16.mxu0 0
        %3956 = vmatpush1.bf16.msra.mxu0 0
        %3957 = vmatprep.mubr.bf16.mxu0 0
        %3958 = vmatmul.mubr.bf16.gmra.mrb[0].mxu0 %v3812
        %v3959 = vpop.f32.mrb[0].mxu0
        %v3960 = vadd.f32 0.0, %v3959
        %v3961 = vpop.f32.mrb[0].mxu0
        %v3962 = vpop.f32.mrb[0].mxu0
        %v3963 = vadd.f32 0.0, %v3962
        %v3964 = vpop.f32.mrb[0].mxu0
        %3965 = vdwg.mxu0
        %v3968 = vunpack.c.l.s4 1983009808
        %v3969 = vunpack.c.0.s8 %v3968
        %v3970 = vlaneseq
        %v3971 = vshrl.u32 %v3970, 7
        %v3972 = vsub.s32 %v3969, %v3971
        %v3973 = vrot.slane %v628, %v3972
        %3974 = vrot.lane.b32.xlu0 %v3973, 127
        %v3975 = vpop.permute.xlu0 %3974
        %v3977 = vsel %vm667, %v3975, 0
        %3979 = vmatprep.subr.bf16.mxu0 0
        %3980 = vmatpush1.bf16.msra.mxu0 %v3977
        %3981 = vmatprep.subr.bf16.mxu0 0
        %3982 = vmatpush1.bf16.msra.mxu0 0
        %3983 = vmatprep.subr.bf16.mxu0 0
        %3984 = vmatpush1.bf16.msra.mxu0 0
        %3985 = vmatprep.subr.bf16.mxu0 0
        %3986 = vmatpush1.bf16.msra.mxu0 0
        %3987 = vmatprep.subr.bf16.mxu0 0
        %3988 = vmatpush1.bf16.msra.mxu0 0
        %3989 = vmatprep.subr.bf16.mxu0 0
        %3990 = vmatpush1.bf16.msra.mxu0 0
        %3991 = vmatprep.subr.bf16.mxu0 0
        %3992 = vmatpush1.bf16.msra.mxu0 0
        %3993 = vmatprep.subr.bf16.mxu0 0
        %3994 = vmatpush1.bf16.msra.mxu0 0
        %3995 = vmatprep.subr.bf16.mxu0 0
        %3996 = vmatpush1.bf16.msra.mxu0 0
        %3997 = vmatprep.subr.bf16.mxu0 0
        %3998 = vmatpush1.bf16.msra.mxu0 0
        %3999 = vmatprep.subr.bf16.mxu0 0
        %4000 = vmatpush1.bf16.msra.mxu0 0
        %4001 = vmatprep.subr.bf16.mxu0 0
        %4002 = vmatpush1.bf16.msra.mxu0 0
        %4003 = vmatprep.subr.bf16.mxu0 0
        %4004 = vmatpush1.bf16.msra.mxu0 0
        %4005 = vmatprep.subr.bf16.mxu0 0
        %4006 = vmatpush1.bf16.msra.mxu0 0
        %4007 = vmatprep.subr.bf16.mxu0 0
        %4008 = vmatpush1.bf16.msra.mxu0 0
        %4009 = vmatprep.subr.bf16.mxu0 0
        %4010 = vmatpush1.bf16.msra.mxu0 0
        %4011 = vmatprep.mubr.bf16.mxu0 0
        %4012 = vmatmul.mubr.bf16.gmra.mrb[0].mxu0 %v3812
        %v4013 = vpop.f32.mrb[0].mxu0
        %v4014 = vadd.f32 0.0, %v4013
        %v4015 = vpop.f32.mrb[0].mxu0
        %v4016 = vpop.f32.mrb[0].mxu0
        %v4017 = vadd.f32 0.0, %v4016
        %v4018 = vpop.f32.mrb[0].mxu0
        %4019 = vdwg.mxu0
        %v4022 = vunpack.c.l.s4 1983009808
        %v4023 = vunpack.c.0.s8 %v4022
        %v4024 = vlaneseq
        %v4025 = vshrl.u32 %v4024, 7
        %v4026 = vsub.s32 %v4023, %v4025
        %v4027 = vrot.slane %v629, %v4026
        %4028 = vrot.lane.b32.xlu0 %v4027, 127
        %v4029 = vpop.permute.xlu0 %4028
        %v4031 = vsel %vm667, %v4029, 0
        %4033 = vmatprep.subr.bf16.mxu0 0
        %4034 = vmatpush1.bf16.msra.mxu0 %v4031
        %4035 = vmatprep.subr.bf16.mxu0 0
        %4036 = vmatpush1.bf16.msra.mxu0 0
        %4037 = vmatprep.subr.bf16.mxu0 0
        %4038 = vmatpush1.bf16.msra.mxu0 0
        %4039 = vmatprep.subr.bf16.mxu0 0
        %4040 = vmatpush1.bf16.msra.mxu0 0
        %4041 = vmatprep.subr.bf16.mxu0 0
        %4042 = vmatpush1.bf16.msra.mxu0 0
        %4043 = vmatprep.subr.bf16.mxu0 0
        %4044 = vmatpush1.bf16.msra.mxu0 0
        %4045 = vmatprep.subr.bf16.mxu0 0
        %4046 = vmatpush1.bf16.msra.mxu0 0
        %4047 = vmatprep.subr.bf16.mxu0 0
        %4048 = vmatpush1.bf16.msra.mxu0 0
        %4049 = vmatprep.subr.bf16.mxu0 0
        %4050 = vmatpush1.bf16.msra.mxu0 0
        %4051 = vmatprep.subr.bf16.mxu0 0
        %4052 = vmatpush1.bf16.msra.mxu0 0
        %4053 = vmatprep.subr.bf16.mxu0 0
        %4054 = vmatpush1.bf16.msra.mxu0 0
        %4055 = vmatprep.subr.bf16.mxu0 0
        %4056 = vmatpush1.bf16.msra.mxu0 0
        %4057 = vmatprep.subr.bf16.mxu0 0
        %4058 = vmatpush1.bf16.msra.mxu0 0
        %4059 = vmatprep.subr.bf16.mxu0 0
        %4060 = vmatpush1.bf16.msra.mxu0 0
        %4061 = vmatprep.subr.bf16.mxu0 0
        %4062 = vmatpush1.bf16.msra.mxu0 0
        %4063 = vmatprep.subr.bf16.mxu0 0
        %4064 = vmatpush1.bf16.msra.mxu0 0
        %4065 = vmatprep.mubr.bf16.mxu0 0
        %4066 = vmatmul.mubr.bf16.gmra.mrb[0].mxu0 %v3812
        %v4067 = vpop.f32.mrb[0].mxu0
        %v4068 = vadd.f32 0.0, %v4067
        %v4069 = vpop.f32.mrb[0].mxu0
        %v4070 = vpop.f32.mrb[0].mxu0
        %v4071 = vadd.f32 0.0, %v4070
        %v4072 = vpop.f32.mrb[0].mxu0
        %4073 = vdwg.mxu0
        %v4076 = vunpack.c.l.s4 1983009808
        %v4077 = vunpack.c.0.s8 %v4076
        %v4078 = vlaneseq
        %v4079 = vshrl.u32 %v4078, 7
        %v4080 = vsub.s32 %v4077, %v4079
        %v4081 = vrot.slane %v630, %v4080
        %4082 = vrot.lane.b32.xlu0 %v4081, 127
        %v4083 = vpop.permute.xlu0 %4082
        %v4085 = vsel %vm667, %v4083, 0
        %4087 = vmatprep.subr.bf16.mxu0 0
        %4088 = vmatpush1.bf16.msra.mxu0 %v4085
        %4089 = vmatprep.subr.bf16.mxu0 0
        %4090 = vmatpush1.bf16.msra.mxu0 0
        %4091 = vmatprep.subr.bf16.mxu0 0
        %4092 = vmatpush1.bf16.msra.mxu0 0
        %4093 = vmatprep.subr.bf16.mxu0 0
        %4094 = vmatpush1.bf16.msra.mxu0 0
        %4095 = vmatprep.subr.bf16.mxu0 0
        %4096 = vmatpush1.bf16.msra.mxu0 0
        %4097 = vmatprep.subr.bf16.mxu0 0
        %4098 = vmatpush1.bf16.msra.mxu0 0
        %4099 = vmatprep.subr.bf16.mxu0 0
        %4100 = vmatpush1.bf16.msra.mxu0 0
        %4101 = vmatprep.subr.bf16.mxu0 0
        %4102 = vmatpush1.bf16.msra.mxu0 0
        %4103 = vmatprep.subr.bf16.mxu0 0
        %4104 = vmatpush1.bf16.msra.mxu0 0
        %4105 = vmatprep.subr.bf16.mxu0 0
        %4106 = vmatpush1.bf16.msra.mxu0 0
        %4107 = vmatprep.subr.bf16.mxu0 0
        %4108 = vmatpush1.bf16.msra.mxu0 0
        %4109 = vmatprep.subr.bf16.mxu0 0
        %4110 = vmatpush1.bf16.msra.mxu0 0
        %4111 = vmatprep.subr.bf16.mxu0 0
        %4112 = vmatpush1.bf16.msra.mxu0 0
        %4113 = vmatprep.subr.bf16.mxu0 0
        %4114 = vmatpush1.bf16.msra.mxu0 0
        %4115 = vmatprep.subr.bf16.mxu0 0
        %4116 = vmatpush1.bf16.msra.mxu0 0
        %4117 = vmatprep.subr.bf16.mxu0 0
        %4118 = vmatpush1.bf16.msra.mxu0 0
        %4119 = vmatprep.mubr.bf16.mxu0 0
        %4120 = vmatmul.mubr.bf16.gmra.mrb[0].mxu0 %v3812
        %v4121 = vpop.f32.mrb[0].mxu0
        %v4122 = vadd.f32 0.0, %v4121
        %v4123 = vpop.f32.mrb[0].mxu0
        %v4124 = vpop.f32.mrb[0].mxu0
        %v4125 = vadd.f32 0.0, %v4124
        %v4126 = vpop.f32.mrb[0].mxu0
        %4127 = vdwg.mxu0
        %v4130 = vunpack.c.l.s4 1983009808
        %v4131 = vunpack.c.0.s8 %v4130
        %v4132 = vlaneseq
        %v4133 = vshrl.u32 %v4132, 7
        %v4134 = vsub.s32 %v4131, %v4133
        %v4135 = vrot.slane %v631, %v4134
        %4136 = vrot.lane.b32.xlu0 %v4135, 127
        %v4137 = vpop.permute.xlu0 %4136
        %v4139 = vsel %vm667, %v4137, 0
        %4141 = vmatprep.subr.bf16.mxu0 0
        %4142 = vmatpush1.bf16.msra.mxu0 %v4139
        %4143 = vmatprep.subr.bf16.mxu0 0
        %4144 = vmatpush1.bf16.msra.mxu0 0
        %4145 = vmatprep.subr.bf16.mxu0 0
        %4146 = vmatpush1.bf16.msra.mxu0 0
        %4147 = vmatprep.subr.bf16.mxu0 0
        %4148 = vmatpush1.bf16.msra.mxu0 0
        %4149 = vmatprep.subr.bf16.mxu0 0
        %4150 = vmatpush1.bf16.msra.mxu0 0
        %4151 = vmatprep.subr.bf16.mxu0 0
        %4152 = vmatpush1.bf16.msra.mxu0 0
        %4153 = vmatprep.subr.bf16.mxu0 0
        %4154 = vmatpush1.bf16.msra.mxu0 0
        %4155 = vmatprep.subr.bf16.mxu0 0
        %4156 = vmatpush1.bf16.msra.mxu0 0
        %4157 = vmatprep.subr.bf16.mxu0 0
        %4158 = vmatpush1.bf16.msra.mxu0 0
        %4159 = vmatprep.subr.bf16.mxu0 0
        %4160 = vmatpush1.bf16.msra.mxu0 0
        %4161 = vmatprep.subr.bf16.mxu0 0
        %4162 = vmatpush1.bf16.msra.mxu0 0
        %4163 = vmatprep.subr.bf16.mxu0 0
        %4164 = vmatpush1.bf16.msra.mxu0 0
        %4165 = vmatprep.subr.bf16.mxu0 0
        %4166 = vmatpush1.bf16.msra.mxu0 0
        %4167 = vmatprep.subr.bf16.mxu0 0
        %4168 = vmatpush1.bf16.msra.mxu0 0
        %4169 = vmatprep.subr.bf16.mxu0 0
        %4170 = vmatpush1.bf16.msra.mxu0 0
        %4171 = vmatprep.subr.bf16.mxu0 0
        %4172 = vmatpush1.bf16.msra.mxu0 0
        %4173 = vmatprep.mubr.bf16.mxu0 0
        %4174 = vmatmul.mubr.bf16.gmra.mrb[0].mxu0 %v3812
        %v4175 = vpop.f32.mrb[0].mxu0
        %v4176 = vadd.f32 0.0, %v4175
        %v4177 = vpop.f32.mrb[0].mxu0
        %v4178 = vpop.f32.mrb[0].mxu0
        %v4179 = vadd.f32 0.0, %v4178
        %v4180 = vpop.f32.mrb[0].mxu0
        %4181 = vdwg.mxu0
        %v4184 = vunpack.c.l.s4 1983009808
        %v4185 = vunpack.c.0.s8 %v4184
        %v4186 = vlaneseq
        %v4187 = vshrl.u32 %v4186, 7
        %v4188 = vsub.s32 %v4185, %v4187
        %v4189 = vrot.slane %v621, %v4188
        %4190 = vrot.lane.b32.xlu0 %v4189, 127
        %v4191 = vpop.permute.xlu0 %4190
        %v4193 = vsel %vm667, %v4191, 0
        %4195 = vmatprep.subr.bf16.mxu0 0
        %4196 = vmatpush1.bf16.msra.mxu0 %v4193
        %4197 = vmatprep.subr.bf16.mxu0 0
        %4198 = vmatpush1.bf16.msra.mxu0 0
        %4199 = vmatprep.subr.bf16.mxu0 0
        %4200 = vmatpush1.bf16.msra.mxu0 0
        %4201 = vmatprep.subr.bf16.mxu0 0
        %4202 = vmatpush1.bf16.msra.mxu0 0
        %4203 = vmatprep.subr.bf16.mxu0 0
        %4204 = vmatpush1.bf16.msra.mxu0 0
        %4205 = vmatprep.subr.bf16.mxu0 0
        %4206 = vmatpush1.bf16.msra.mxu0 0
        %4207 = vmatprep.subr.bf16.mxu0 0
        %4208 = vmatpush1.bf16.msra.mxu0 0
        %4209 = vmatprep.subr.bf16.mxu0 0
        %4210 = vmatpush1.bf16.msra.mxu0 0
        %4211 = vmatprep.subr.bf16.mxu0 0
        %4212 = vmatpush1.bf16.msra.mxu0 0
        %4213 = vmatprep.subr.bf16.mxu0 0
        %4214 = vmatpush1.bf16.msra.mxu0 0
        %4215 = vmatprep.subr.bf16.mxu0 0
        %4216 = vmatpush1.bf16.msra.mxu0 0
        %4217 = vmatprep.subr.bf16.mxu0 0
        %4218 = vmatpush1.bf16.msra.mxu0 0
        %4219 = vmatprep.subr.bf16.mxu0 0
        %4220 = vmatpush1.bf16.msra.mxu0 0
        %4221 = vmatprep.subr.bf16.mxu0 0
        %4222 = vmatpush1.bf16.msra.mxu0 0
        %4223 = vmatprep.subr.bf16.mxu0 0
        %4224 = vmatpush1.bf16.msra.mxu0 0
        %4225 = vmatprep.subr.bf16.mxu0 0
        %4226 = vmatpush1.bf16.msra.mxu0 0
        %4227 = vmatprep.mubr.bf16.mxu0 0
        %4228 = vmatmul.mubr.bf16.gmra.mrb[0].mxu0 %v3812
        %v4229 = vpop.f32.mrb[0].mxu0
        %v4230 = vadd.f32 0.0, %v4229
        %v4231 = vpop.f32.mrb[0].mxu0
        %v4232 = vpop.f32.mrb[0].mxu0
        %v4233 = vadd.f32 0.0, %v4232
        %v4234 = vpop.f32.mrb[0].mxu0
        %4235 = vdwg.mxu0
        %v4236 = vadd.f32 %v3780, %v3852
        %v4237 = vadd.f32 %v3781, %v3855
        %v4238 = vadd.f32 %v3782, %v3906
        %v4239 = vadd.f32 %v3783, %v3909
        %v4240 = vadd.f32 %v3784, %v3960
        %v4241 = vadd.f32 %v3785, %v3963
        %v4242 = vadd.f32 %v3786, %v4014
        %v4243 = vadd.f32 %v3787, %v4017
        %v4244 = vadd.f32 %v3788, %v4068
        %v4245 = vadd.f32 %v3789, %v4071
        %v4246 = vadd.f32 %v3790, %v4122
        %v4247 = vadd.f32 %v3791, %v4125
        %v4248 = vadd.f32 %v3792, %v4176
        %v4249 = vadd.f32 %v3793, %v4179
        %v4250 = vadd.f32 %v3794, %v4230
        %v4251 = vadd.f32 %v3795, %v4233
        %4252 = vrot.lane.b32.xlu0 %v604, 127
        %v4253 = vpop.permute.xlu0 %4252
        %4254 = vrot.lane.b32.xlu0 %v605, 127
        %v4255 = vpop.permute.xlu0 %4254
        %4256 = vrot.lane.b32.xlu0 %v606, 127
        %v4257 = vpop.permute.xlu0 %4256
        %4258 = vrot.lane.b32.xlu0 %v607, 127
        %v4259 = vpop.permute.xlu0 %4258
        %4260 = vrot.lane.b32.xlu0 %v608, 127
        %v4261 = vpop.permute.xlu0 %4260
        %4262 = vrot.lane.b32.xlu0 %v609, 127
        %v4263 = vpop.permute.xlu0 %4262
        %4264 = vrot.lane.b32.xlu0 %v610, 127
        %v4265 = vpop.permute.xlu0 %4264
        %4266 = vrot.lane.b32.xlu0 %v611, 127
        %v4267 = vpop.permute.xlu0 %4266
        %v4276 = vmax.bf16 %v613, %v4253
        %v4277 = vmax.bf16 %v614, %v4255
        %v4278 = vmax.bf16 %v615, %v4257
        %v4279 = vmax.bf16 %v616, %v4259
        %v4280 = vmax.bf16 %v617, %v4261
        %v4281 = vmax.bf16 %v618, %v4263
        %v4282 = vmax.bf16 %v619, %v4265
        %v4283 = vmax.bf16 %v620, %v4267
        %4284 = vrot.lane.b32.xlu0 %v625, 127
        %v4285 = vpop.permute.xlu0 %4284
        %4286 = vrot.lane.b32.xlu0 %v626, 127
        %v4287 = vpop.permute.xlu0 %4286
        %4288 = vrot.lane.b32.xlu0 %v627, 127
        %v4289 = vpop.permute.xlu0 %4288
        %4290 = vrot.lane.b32.xlu0 %v628, 127
        %v4291 = vpop.permute.xlu0 %4290
        %4292 = vrot.lane.b32.xlu0 %v629, 127
        %v4293 = vpop.permute.xlu0 %4292
        %4294 = vrot.lane.b32.xlu0 %v630, 127
        %v4295 = vpop.permute.xlu0 %4294
        %4296 = vrot.lane.b32.xlu0 %v631, 127
        %v4297 = vpop.permute.xlu0 %4296
        %4298 = vrot.lane.b32.xlu0 %v621, 127
        %v4299 = vpop.permute.xlu0 %4298
        %v4308 = vmax.bf16 %v633, %v4285
        %v4309 = vmax.bf16 %v634, %v4287
        %v4310 = vmax.bf16 %v635, %v4289
        %v4311 = vmax.bf16 %v636, %v4291
        %v4312 = vmax.bf16 %v637, %v4293
        %v4313 = vmax.bf16 %v638, %v4295
        %v4314 = vmax.bf16 %v639, %v4297
        %v4315 = vmax.bf16 %v623, %v4299
        %v4316 = vmax.bf16 %v4276, %v4308
        %v4317 = vmax.bf16 %v4277, %v4309
        %v4318 = vmax.bf16 %v4278, %v4310
        %v4319 = vmax.bf16 %v4279, %v4311
        %v4320 = vmax.bf16 %v4280, %v4312
        %v4321 = vmax.bf16 %v4281, %v4313
        %v4322 = vmax.bf16 %v4282, %v4314
        %v4323 = vmax.bf16 %v4283, %v4315
        %v4324 = vunpack.c.l.bf16 %v4316
        %v4325 = vunpack.c.l.bf16 %v4317
        %v4326 = vunpack.c.l.bf16 %v4318
        %v4327 = vunpack.c.l.bf16 %v4319
        %v4328 = vunpack.c.l.bf16 %v4320
        %v4329 = vunpack.c.l.bf16 %v4321
        %v4330 = vunpack.c.l.bf16 %v4322
        %v4331 = vunpack.c.l.bf16 %v4323
        %v4332 = vld [vmem:[%s3] sm:$0xff]
        %v4333 = vld [vmem:[%s3 + $0x8] sm:$0xf]
        %v4334 = vld [vmem:[%s3 + $0xc] sm:$0xf]
        %4336 = vset.pattern.permute.xlu0 0
        %4337 = vperm.xlu0 %4336, %v4332
        %v4338 = vpop.permute.xlu0 %4337
        %4341 = vset.pattern.permute.xlu0 0
        %4342 = vperm.xlu0 %4341, %v4333
        %v4343 = vpop.permute.xlu0 %4342
        %v4345 = vmul.f32 %v4236, %v4338
        %v4346 = vmul.f32 %v4237, %v4343
        %v4347 = vmul.f32 %v4238, %v4338
        %v4348 = vmul.f32 %v4239, %v4343
        %v4349 = vmul.f32 %v4240, %v4338
        %v4350 = vmul.f32 %v4241, %v4343
        %v4351 = vmul.f32 %v4242, %v4338
        %v4352 = vmul.f32 %v4243, %v4343
        %v4353 = vmul.f32 %v4244, %v4338
        %v4354 = vmul.f32 %v4245, %v4343
        %v4355 = vmul.f32 %v4246, %v4338
        %v4356 = vmul.f32 %v4247, %v4343
        %v4357 = vmul.f32 %v4248, %v4338
        %v4358 = vmul.f32 %v4249, %v4343
        %v4359 = vmul.f32 %v4250, %v4338
        %v4360 = vmul.f32 %v4251, %v4343
        %4361 = vset.pattern.permute.xlu0 1
        %4362 = vperm.xlu0 %4361, %v4332
        %v4363 = vpop.permute.xlu0 %4362
        %4365 = vset.pattern.permute.xlu0 1
        %4366 = vperm.xlu0 %4365, %v4333
        %v4367 = vpop.permute.xlu0 %4366
        %v4369 = vadd.f32 %v4345, %v4363
        %v4370 = vadd.f32 %v4346, %v4367
        %v4371 = vadd.f32 %v4347, %v4363
        %v4372 = vadd.f32 %v4348, %v4367
        %v4373 = vadd.f32 %v4349, %v4363
        %v4374 = vadd.f32 %v4350, %v4367
        %v4375 = vadd.f32 %v4351, %v4363
        %v4376 = vadd.f32 %v4352, %v4367
        %v4377 = vadd.f32 %v4353, %v4363
        %v4378 = vadd.f32 %v4354, %v4367
        %v4379 = vadd.f32 %v4355, %v4363
        %v4380 = vadd.f32 %v4356, %v4367
        %v4381 = vadd.f32 %v4357, %v4363
        %v4382 = vadd.f32 %v4358, %v4367
        %v4383 = vadd.f32 %v4359, %v4363
        %v4384 = vadd.f32 %v4360, %v4367
        %v4385 = vmax.f32 %v4369, 0.0
        %v4386 = vmax.f32 %v4370, 0.0
        %v4387 = vmax.f32 %v4371, 0.0
        %v4388 = vmax.f32 %v4372, 0.0
        %v4389 = vmax.f32 %v4373, 0.0
        %v4390 = vmax.f32 %v4374, 0.0
        %v4391 = vmax.f32 %v4375, 0.0
        %v4392 = vmax.f32 %v4376, 0.0
        %v4393 = vmax.f32 %v4377, 0.0
        %v4394 = vmax.f32 %v4378, 0.0
        %v4395 = vmax.f32 %v4379, 0.0
        %v4396 = vmax.f32 %v4380, 0.0
        %v4397 = vmax.f32 %v4381, 0.0
        %v4398 = vmax.f32 %v4382, 0.0
        %v4399 = vmax.f32 %v4383, 0.0
        %v4400 = vmax.f32 %v4384, 0.0
        %vm4401 = vcmask 64512
        %4402 = vst.msk [vmem:[%s583] sm:$0xff] %vm4401, %v4385
        %vm4403 = vcmask 60416
        %4404 = vst.msk [vmem:[%s583 + $0x8] sm:$0xf] %vm4403, %v4386
        %4405 = vst.msk [vmem:[%s583 + $0x10] sm:$0xff] %vm4401, %v4387
        %4406 = vst.msk [vmem:[%s583 + $0x18] sm:$0xf] %vm4403, %v4388
        %4407 = vst.msk [vmem:[%s583 + $0x20] sm:$0xff] %vm4401, %v4389
        %4408 = vst.msk [vmem:[%s583 + $0x28] sm:$0xf] %vm4403, %v4390
        %4409 = vst.msk [vmem:[%s583 + $0x30] sm:$0xff] %vm4401, %v4391
        %4410 = vst.msk [vmem:[%s583 + $0x38] sm:$0xf] %vm4403, %v4392
        %4411 = vst.msk [vmem:[%s583 + $0x40] sm:$0xff] %vm4401, %v4393
        %4412 = vst.msk [vmem:[%s583 + $0x48] sm:$0xf] %vm4403, %v4394
        %4413 = vst.msk [vmem:[%s583 + $0x50] sm:$0xff] %vm4401, %v4395
        %4414 = vst.msk [vmem:[%s583 + $0x58] sm:$0xf] %vm4403, %v4396
        %4415 = vst.msk [vmem:[%s583 + $0x60] sm:$0xff] %vm4401, %v4397
        %4416 = vst.msk [vmem:[%s583 + $0x68] sm:$0xf] %vm4403, %v4398
        %4417 = vst.msk [vmem:[%s583 + $0x70] sm:$0xff] %vm4401, %v4399
        %4418 = vst.msk [vmem:[%s583 + $0x78] sm:$0xf] %vm4403, %v4400
        %4420 = vset.pattern.permute.xlu0 0
        %4421 = vperm.xlu0 %4420, %v4334
        %v4422 = vpop.permute.xlu0 %4421
        %v4424 = vmul.f32 %v4324, %v4422
        %v4425 = vmul.f32 %v4325, %v4422
        %v4426 = vmul.f32 %v4326, %v4422
        %v4427 = vmul.f32 %v4327, %v4422
        %v4428 = vmul.f32 %v4328, %v4422
        %v4429 = vmul.f32 %v4329, %v4422
        %v4430 = vmul.f32 %v4330, %v4422
        %v4431 = vmul.f32 %v4331, %v4422
        %4432 = vset.pattern.permute.xlu0 1
        %4433 = vperm.xlu0 %4432, %v4334
        %v4434 = vpop.permute.xlu0 %4433
        %v4436 = vadd.f32 %v4424, %v4434
        %v4437 = vadd.f32 %v4425, %v4434
        %v4438 = vadd.f32 %v4426, %v4434
        %v4439 = vadd.f32 %v4427, %v4434
        %v4440 = vadd.f32 %v4428, %v4434
        %v4441 = vadd.f32 %v4429, %v4434
        %v4442 = vadd.f32 %v4430, %v4434
        %v4443 = vadd.f32 %v4431, %v4434
        %v4444 = vmax.f32 %v4436, 0.0
        %v4445 = vmax.f32 %v4437, 0.0
        %v4446 = vmax.f32 %v4438, 0.0
        %v4447 = vmax.f32 %v4439, 0.0
        %v4448 = vmax.f32 %v4440, 0.0
        %v4449 = vmax.f32 %v4441, 0.0
        %v4450 = vmax.f32 %v4442, 0.0
        %v4451 = vmax.f32 %v4443, 0.0
        %4452 = vst.msk [vmem:[%s583 + $0xc] sm:$0xf] %vm4403, %v4444
        %4453 = vst.msk [vmem:[%s583 + $0x1c] sm:$0xf] %vm4403, %v4445
        %4454 = vst.msk [vmem:[%s583 + $0x2c] sm:$0xf] %vm4403, %v4446
        %4455 = vst.msk [vmem:[%s583 + $0x3c] sm:$0xf] %vm4403, %v4447
        %4456 = vst.msk [vmem:[%s583 + $0x4c] sm:$0xf] %vm4403, %v4448
        %4457 = vst.msk [vmem:[%s583 + $0x5c] sm:$0xf] %vm4403, %v4449
        %4458 = vst.msk [vmem:[%s583 + $0x6c] sm:$0xf] %vm4403, %v4450
        %4459 = vst.msk [vmem:[%s583 + $0x7c] sm:$0xf] %vm4403, %v4451
        %s4460 = smul.u32 8, %s20
        %p4461 = scmp.lt.s32.totalorder %s19, 1
        %s4462 = scalar_select %p4461, %s19, 1
        %p4463 = scmp.lt.s32.totalorder %s4460, 7
        %s4464 = scalar_select %p4463, %s4460, 7
        %s4465 = smul.addr %s4464, 2
        %s4466 = smul.addr %s4462, 16
        %s4467 = sadd.s32 %s4465, %s4466
        %s4468 = smul.addr %s4467, 8
        %s4469 = scalar_lea.vmem %s4, %s4468
        // Predicated region
        $region133: #{downsampler_block.3} parent=123 // pred_check
          %p4470 = pneg %p149
        $region134: #{downsampler_block.3} parent=123 // pred_check_branch
          %4472 = sbr.rel (%p4470) target = $region136
        $region135: #{downsampler_block.3} parent=123 // pred_region
          %s4473 = smul.u32 8, %s20
        $region136: #{downsampler_block.3} parent=123 // pred_fallthru
          _
      $region124: #{downsampler_block.3} parent=5 // pred_fallthru
        _
      %p4474 = scmp.le.s32.totalorder 2, %s10
      // Predicated region
      $region137: #{downsampler_block.3} parent=5 // pred_check
        %p4475 = pneg %p4474
      $region138: #{downsampler_block.3} parent=5 // pred_check_branch
        %4477 = sbr.rel (%p4475) target = $region140
      $region139: #{downsampler_block.3} parent=5 // pred_region
        %s4478 = ssub.s32 %s10, 2
        // Predicated region
        $region141: #{downsampler_block.3} parent=139 // pred_check
          %p4479 = pneg %p155
        $region142: #{downsampler_block.3} parent=139 // pred_check_branch
          %4481 = sbr.rel (%p4479) target = $region144
        $region143: #{downsampler_block.3} parent=139 // pred_region
          %s4482 = smul.u32 8, %s22
          %p4483 = scmp.lt.s32.totalorder %s21, 1
          %s4484 = scalar_select %p4483, %s21, 1
          %p4485 = scmp.lt.s32.totalorder %s4482, 7
          %s4486 = scalar_select %p4485, %s4482, 7
          %s4487 = smul.addr %s4486, 2
          %s4488 = smul.addr %s4484, 16
          %s4489 = sadd.s32 %s4487, %s4488
          %s4490 = smul.addr %s4489, 8
          %s4491 = scalar_lea.vmem %s4, %s4490
        $region144: #{downsampler_block.3} parent=139 // pred_fallthru
          _
      $region140: #{downsampler_block.3} parent=5 // pred_fallthru
        _
    $region6: #{downsampler_block.3} parent=1 // loop_footer
      %s14 = sadd.s32 1, %s10
    $region7: #{downsampler_block.3} parent=1 // loop_footer_branch
      %9 = sbr.rel target = $region3
    $region8: #{downsampler_block.3} parent=1 // loop_exit
      _

</llo_original>
